<compile_context>
chip_gen: v7x
topology: tpu7x:2x2x1
jax: 0.10.0
libtpu: 0.0.40
codegen_flags: <defaults>
</compile_context>

<pallas_src>
import jax
import jax.numpy as jnp
from jax.experimental import pallas as pl
from jax.experimental.pallas import tpu as pltpu

BN_EPS = 0.8  # nn.BatchNorm2d(out_size, 0.8) -> eps = 0.8


def _col_upsample_mats(W):
    """(W, 3*2W) 0/1 matrix: x_row @ U[:, dx*2W:(dx+1)*2W] is the nearest-x2
    upsampled, zero-padded row read at conv column tap dx (dx in {0,1,2})."""
    W2 = 2 * W
    t = jnp.arange(W, dtype=jnp.int32)[:, None]   # source column
    j = jnp.arange(W2, dtype=jnp.int32)[None, :]  # output column
    mats = []
    for dx in range(3):
        m = j + dx  # position inside the zero-padded upsampled row [0, W2+2)
        hit = (m >= 1) & (m <= W2) & (((m - 1) // 2) == t)
        mats.append(hit.astype(jnp.float32))
    return jnp.concatenate(mats, axis=1)          # (W, 3*W2), dx-major blocks


def unet_up_kernel(x_ref, u_ref, w_ref, gamma_ref, beta_ref, o_ref, s_ref):
    # x_ref:     (N*Cin, H*W)          bf16 input, rows ordered (n, ci), spatial flat
    # u_ref:     (W, 3*W2)             bf16 column upsample/pad/shift matrices
    # w_ref:     (3, 3, cpg, Cin)      bf16 conv weights, (dy, dx) leading
    # gamma/beta:(cpg, 1)              f32 BN affine params for this channel group
    # o_ref:     (N, cpg, H2*W2)       f32 output block (flat NCHW spatial)
    # s_ref:     (3, N*Cin, (H2+2)*W2) bf16 scratch: dx-shifted upsampled planes,
    #            flat over (padded row, column), one zero row at top & bottom.
    NC = x_ref.shape[0]
    N, cpg, HW2 = o_ref.shape
    Cin = NC // N
    W = u_ref.shape[0]
    W2 = 2 * W
    H = x_ref.shape[1] // W
    H2 = 2 * H

    # ---- Step 1: column upsample + zero pad + dx shift on the MXU, written straight
    # into the flat row-padded planes (each source row stored twice = row x2 nearest).
    zeros_pad = jnp.zeros((3, NC, W2), s_ref.dtype)
    s_ref[:, :, 0:W2] = zeros_pad                            # padded row hp = 0
    s_ref[:, :, (H2 + 1) * W2:(H2 + 2) * W2] = zeros_pad     # padded row hp = H2+1
    # TODO(synk): switch to lax.fori_loop with pl.ds/pl.multiple_of for large H.
    for h in range(H):
        row = x_ref[:, h * W:(h + 1) * W]                    # (NC, W) bf16
        ups = jnp.dot(row, u_ref[...],
                      preferred_element_type=jnp.float32)    # (NC, 3*W2)
        ups = ups.astype(s_ref.dtype)
        for dx in range(3):
            r = ups[:, dx * W2:(dx + 1) * W2]                # (NC, W2)
            # upsampled rows 2h, 2h+1 -> padded rows 2h+1, 2h+2 (contiguous lanes).
            s_ref[dx, :, (2 * h + 1) * W2:(2 * h + 3) * W2] = jnp.concatenate(
                [r, r], axis=1)

    # ---- Step 2: 3x3 conv as 9 per-tap lane-dense matmuls per image.  Raw conv
    # planes go to o_ref; BN sum / sumsq are accumulated from the live registers.
    c_sum = jnp.zeros((cpg, 1), jnp.float32)
    c_ssq = jnp.zeros((cpg, 1), jnp.float32)
    for n in range(N):
        acc = jnp.zeros((cpg, HW2), jnp.float32)
        for dy in range(3):
            for dx in range(3):
                rhs = s_ref[dx, n * Cin:(n + 1) * Cin,
                            dy * W2:dy * W2 + HW2]           # (Cin, H2*W2) bf16
                acc += jnp.dot(w_ref[dy, dx], rhs,
                               preferred_element_type=jnp.float32)
        o_ref[n] = acc
        c_sum += jnp.sum(acc, axis=1, keepdims=True)
        c_ssq += jnp.sum(acc * acc, axis=1, keepdims=True)

    # ---- Step 3: BatchNorm2d (training-mode batch stats over N,H2,W2; biased var;
    # eps=0.8) + ReLU, vectorized over all channels of the group.
    inv_cnt = 1.0 / float(N * HW2)
    mean = c_sum * inv_cnt
    var = c_ssq * inv_cnt - mean * mean
    scale = gamma_ref[...] * jax.lax.rsqrt(var + BN_EPS)     # (cpg, 1)
    shift = beta_ref[...] - mean * scale
    for n in range(N):
        o_ref[n] = jnp.maximum(o_ref[n] * scale + shift, 0.0)


@jax.jit
def unet_up(x_nchw, skip_nchw, w_oihw, gamma, beta):
    """Forward pass of UnetUp. x: (N, Cin, H, W); skip: (N, Cskip, 2H, 2W)."""
    N, Cin, H, W = x_nchw.shape
    Cout = w_oihw.shape[0]
    H2, W2 = 2 * H, 2 * W

    # Single channel group (see header).  TODO(synk): G=2 on v7x when Cout/G >= 128.
    G = 1
    cpg = Cout // G

    x_flat = x_nchw.reshape(N * Cin, H * W).astype(jnp.bfloat16)    # free reshape
    u_cat = _col_upsample_mats(W).astype(jnp.bfloat16)              # (W, 3*W2)
    w_k = jnp.transpose(w_oihw, (2, 3, 0, 1)).astype(jnp.bfloat16)  # (3,3,Cout,Cin)
    gamma2 = gamma.astype(jnp.float32).reshape(Cout, 1)
    beta2 = beta.astype(jnp.float32).reshape(Cout, 1)

    y_flat = pl.pallas_call(
        unet_up_kernel,
        out_shape=jax.ShapeDtypeStruct((N, Cout, H2 * W2), jnp.float32),
        grid=(G,),
        in_specs=[
            pl.BlockSpec((N * Cin, H * W), lambda g: (0, 0)),
            pl.BlockSpec((W, 3 * W2), lambda g: (0, 0)),
            pl.BlockSpec((3, 3, cpg, Cin), lambda g: (0, 0, g, 0)),
            pl.BlockSpec((cpg, 1), lambda g: (g, 0)),
            pl.BlockSpec((cpg, 1), lambda g: (g, 0)),
        ],
        out_specs=pl.BlockSpec((N, cpg, H2 * W2), lambda g: (0, g, 0)),
        scratch_shapes=[
            pltpu.VMEM((3, N * Cin, (H2 + 2) * W2), jnp.bfloat16),
        ],
        compiler_params=pltpu.CompilerParams(
            dimension_semantics=("parallel",),
            vmem_limit_bytes=32 * 1024 * 1024,
        ),
    )(x_flat, u_cat, w_k, gamma2, beta2)

    y = y_flat.reshape(N, Cout, H2, W2)   # free metadata reshape (row-major)
    # torch.cat((y, skip), 1): a single fused XLA copy into the concat result.
    return jnp.concatenate([y, skip_nchw.astype(jnp.float32)], axis=1)


def unet_up_reference(x_nchw, skip_nchw, w_oihw, gamma, beta):
    """Pure-JAX reference for correctness checking."""
    x_up = jnp.repeat(jnp.repeat(x_nchw, 2, axis=2), 2, axis=3)
    y = jax.lax.conv_general_dilated(
        x_up, w_oihw, window_strides=(1, 1), padding="SAME",
        dimension_numbers=("NCHW", "OIHW", "NCHW"))
    mean = jnp.mean(y, axis=(0, 2, 3), keepdims=True)
    var = jnp.mean((y - mean) ** 2, axis=(0, 2, 3), keepdims=True)
    y = (y - mean) * jax.lax.rsqrt(var + BN_EPS)
    y = y * gamma.reshape(1, -1, 1, 1) + beta.reshape(1, -1, 1, 1)
    y = jnp.maximum(y, 0.0)
    return jnp.concatenate([y, skip_nchw], axis=1)


if __name__ == "__main__":
    # Small shapes consistent with the module: in_size=4, out_size=8, 16x16 input.
    N, Cin, Cout, H, W = 2, 4, 8, 16, 16
    Cskip = Cout  # standard UNet skip connection channel count

    key = jax.random.PRNGKey(0)
    kx, ks, kw, kg, kb = jax.random.split(key, 5)
    x = jax.random.normal(kx, (N, Cin, H, W), dtype=jnp.float32)
    skip = jax.random.normal(ks, (N, Cskip, 2 * H, 2 * W), dtype=jnp.float32)
    w = (jax.random.normal(kw, (Cout, Cin, 3, 3), dtype=jnp.float32)
         * (1.0 / (Cin * 9) ** 0.5))
    gamma = 1.0 + 0.1 * jax.random.normal(kg, (Cout,), dtype=jnp.float32)
    beta = 0.1 * jax.random.normal(kb, (Cout,), dtype=jnp.float32)

    # The kernel feeds the MXU with bf16 operands; quantize x / w identically for the
    # f32 reference so the comparison isolates kernel correctness (accumulation stays
    # f32 on both paths).
    x = x.astype(jnp.bfloat16).astype(jnp.float32)
    w = w.astype(jnp.bfloat16).astype(jnp.float32)

    out = jax.block_until_ready(unet_up(x, skip, w, gamma, beta))
    ref = jax.block_until_ready(unet_up_reference(x, skip, w, gamma, beta))

    assert out.shape == (N, Cout + Cskip, 2 * H, 2 * W), out.shape
    assert out.dtype == jnp.float32
    max_err = float(jnp.max(jnp.abs(out - ref)))
    assert jnp.allclose(out, ref, atol=1e-3, rtol=1e-3), max_err

    print("KERNEL_OK")
</pallas_src>

<mosaic_0001>
module attributes {stable_mosaic.version = 11 : i64} {
  func.func @unet_up_kernel(%arg0: i32, %arg1: memref<8x256xbf16, #tpu.memory_space<vmem>>, %arg2: memref<16x96xbf16, #tpu.memory_space<vmem>>, %arg3: memref<3x3x8x4xbf16, #tpu.memory_space<vmem>>, %arg4: memref<8x1xf32, #tpu.memory_space<vmem>>, %arg5: memref<8x1xf32, #tpu.memory_space<vmem>>, %arg6: memref<2x8x1024xf32, #tpu.memory_space<vmem>>, %arg7: memref<3x8x1088xbf16, #tpu.memory_space<vmem>>) attributes {dimension_semantics = [#tpu.dimension_semantics<parallel>], iteration_bounds = array<i64: 1>, scalar_prefetch = 0 : i64, scratch_operands = 1 : i64, tpu.core_type = #tpu.core_type<tc>, window_params = [{pipeline_mode = #tpu.pipeline_mode<synchronous>, transform_indices = @transform_0, window_bounds = array<i64: 8, 256>}, {pipeline_mode = #tpu.pipeline_mode<synchronous>, transform_indices = @transform_1, window_bounds = array<i64: 16, 96>}, {transform_indices = @transform_2, window_bounds = array<i64: 3, 3, 8, 4>}, {transform_indices = @transform_3, window_bounds = array<i64: 8, 1>}, {transform_indices = @transform_4, window_bounds = array<i64: 8, 1>}, {transform_indices = @transform_5, window_bounds = array<i64: 2, 8, 1024>}]} {
    %cst = arith.constant 0.000000e+00 : bf16
    %0 = vector.broadcast %cst : bf16 to vector<3x8x32xbf16>
    %c0 = arith.constant 0 : index
    %c0_0 = arith.constant 0 : index
    %c0_1 = arith.constant 0 : index
    %1 = vector.load %arg7[%c0, %c0_0, %c0_1] : memref<3x8x1088xbf16, #tpu.memory_space<vmem>>, vector<3x8x32xbf16>
    tpu.vector_store %arg7[%c0, %c0_0, %c0_1], %0 {strides = array<i32>} : memref<3x8x1088xbf16, #tpu.memory_space<vmem>>, vector<3x8x32xbf16>,
    %c0_2 = arith.constant 0 : index
    %c0_3 = arith.constant 0 : index
    %c1056 = arith.constant 1056 : index
    %2 = vector.load %arg7[%c0_2, %c0_3, %c1056] : memref<3x8x1088xbf16, #tpu.memory_space<vmem>>, vector<3x8x32xbf16>
    tpu.vector_store %arg7[%c0_2, %c0_3, %c1056], %0 {strides = array<i32>} : memref<3x8x1088xbf16, #tpu.memory_space<vmem>>, vector<3x8x32xbf16>,
    %c0_4 = arith.constant 0 : index
    %c0_5 = arith.constant 0 : index
    %3 = vector.load %arg1[%c0_4, %c0_5] : memref<8x256xbf16, #tpu.memory_space<vmem>>, vector<8x16xbf16>
    %c0_6 = arith.constant 0 : index
    %c0_7 = arith.constant 0 : index
    %4 = vector.load %arg2[%c0_6, %c0_7] : memref<16x96xbf16, #tpu.memory_space<vmem>>, vector<16x96xbf16>
    %cst_8 = arith.constant dense<0.000000e+00> : vector<8x96xf32>
    %5 = tpu.matmul %3, %4, %cst_8 {dimension_numbers = #tpu.dot_dimension_numbers<[1], [0], [0], [1], [0, 0, 1, 1], [], []>} : vector<8x16xbf16>, vector<16x96xbf16>, vector<8x96xf32> -> vector<8x96xf32>
    %6 = arith.truncf %5 : vector<8x96xf32> to vector<8x96xbf16>
    %7 = vector.extract_strided_slice %6 {offsets = [0, 0], sizes = [8, 32], strides = [1, 1]} : vector<8x96xbf16> to vector<8x32xbf16>
    %8 = tpu.concatenate %7, %7 in 1 : vector<8x32xbf16>, vector<8x32xbf16> -> vector<8x64xbf16>
    %c0_9 = arith.constant 0 : index
    %c0_10 = arith.constant 0 : index
    %c32 = arith.constant 32 : index
    %9 = vector.load %arg7[%c0_9, %c0_10, %c32] : memref<3x8x1088xbf16, #tpu.memory_space<vmem>>, vector<1x8x64xbf16>
    %10 = vector.shape_cast %9 : vector<1x8x64xbf16> to vector<8x64xbf16>
    %11 = vector.shape_cast %8 : vector<8x64xbf16> to vector<1x8x64xbf16>
    tpu.vector_store %arg7[%c0_9, %c0_10, %c32], %11 {strides = array<i32>} : memref<3x8x1088xbf16, #tpu.memory_space<vmem>>, vector<1x8x64xbf16>,
    %12 = vector.extract_strided_slice %6 {offsets = [0, 32], sizes = [8, 32], strides = [1, 1]} : vector<8x96xbf16> to vector<8x32xbf16>
    %13 = tpu.concatenate %12, %12 in 1 : vector<8x32xbf16>, vector<8x32xbf16> -> vector<8x64xbf16>
    %c1 = arith.constant 1 : index
    %c0_11 = arith.constant 0 : index
    %c32_12 = arith.constant 32 : index
    %14 = vector.load %arg7[%c1, %c0_11, %c32_12] : memref<3x8x1088xbf16, #tpu.memory_space<vmem>>, vector<1x8x64xbf16>
    %15 = vector.shape_cast %14 : vector<1x8x64xbf16> to vector<8x64xbf16>
    %16 = vector.shape_cast %13 : vector<8x64xbf16> to vector<1x8x64xbf16>
    tpu.vector_store %arg7[%c1, %c0_11, %c32_12], %16 {strides = array<i32>} : memref<3x8x1088xbf16, #tpu.memory_space<vmem>>, vector<1x8x64xbf16>,
    %17 = vector.extract_strided_slice %6 {offsets = [0, 64], sizes = [8, 32], strides = [1, 1]} : vector<8x96xbf16> to vector<8x32xbf16>
    %18 = tpu.concatenate %17, %17 in 1 : vector<8x32xbf16>, vector<8x32xbf16> -> vector<8x64xbf16>
    %c2 = arith.constant 2 : index
    %c0_13 = arith.constant 0 : index
    %c32_14 = arith.constant 32 : index
    %19 = vector.load %arg7[%c2, %c0_13, %c32_14] : memref<3x8x1088xbf16, #tpu.memory_space<vmem>>, vector<1x8x64xbf16>
    %20 = vector.shape_cast %19 : vector<1x8x64xbf16> to vector<8x64xbf16>
    %21 = vector.shape_cast %18 : vector<8x64xbf16> to vector<1x8x64xbf16>
    tpu.vector_store %arg7[%c2, %c0_13, %c32_14], %21 {strides = array<i32>} : memref<3x8x1088xbf16, #tpu.memory_space<vmem>>, vector<1x8x64xbf16>,
    %c0_15 = arith.constant 0 : index
    %c16 = arith.constant 16 : index
    %22 = vector.load %arg1[%c0_15, %c16] : memref<8x256xbf16, #tpu.memory_space<vmem>>, vector<8x16xbf16>
    %c0_16 = arith.constant 0 : index
    %c0_17 = arith.constant 0 : index
    %23 = vector.load %arg2[%c0_16, %c0_17] : memref<16x96xbf16, #tpu.memory_space<vmem>>, vector<16x96xbf16>
    %cst_18 = arith.constant dense<0.000000e+00> : vector<8x96xf32>
    %24 = tpu.matmul %22, %23, %cst_18 {dimension_numbers = #tpu.dot_dimension_numbers<[1], [0], [0], [1], [0, 0, 1, 1], [], []>} : vector<8x16xbf16>, vector<16x96xbf16>, vector<8x96xf32> -> vector<8x96xf32>
    %25 = arith.truncf %24 : vector<8x96xf32> to vector<8x96xbf16>
    %26 = vector.extract_strided_slice %25 {offsets = [0, 0], sizes = [8, 32], strides = [1, 1]} : vector<8x96xbf16> to vector<8x32xbf16>
    %27 = tpu.concatenate %26, %26 in 1 : vector<8x32xbf16>, vector<8x32xbf16> -> vector<8x64xbf16>
    %c0_19 = arith.constant 0 : index
    %c0_20 = arith.constant 0 : index
    %c96 = arith.constant 96 : index
    %28 = vector.load %arg7[%c0_19, %c0_20, %c96] : memref<3x8x1088xbf16, #tpu.memory_space<vmem>>, vector<1x8x64xbf16>
    %29 = vector.shape_cast %28 : vector<1x8x64xbf16> to vector<8x64xbf16>
    %30 = vector.shape_cast %27 : vector<8x64xbf16> to vector<1x8x64xbf16>
    tpu.vector_store %arg7[%c0_19, %c0_20, %c96], %30 {strides = array<i32>} : memref<3x8x1088xbf16, #tpu.memory_space<vmem>>, vector<1x8x64xbf16>,
    %31 = vector.extract_strided_slice %25 {offsets = [0, 32], sizes = [8, 32], strides = [1, 1]} : vector<8x96xbf16> to vector<8x32xbf16>
    %32 = tpu.concatenate %31, %31 in 1 : vector<8x32xbf16>, vector<8x32xbf16> -> vector<8x64xbf16>
    %c1_21 = arith.constant 1 : index
    %c0_22 = arith.constant 0 : index
    %c96_23 = arith.constant 96 : index
    %33 = vector.load %arg7[%c1_21, %c0_22, %c96_23] : memref<3x8x1088xbf16, #tpu.memory_space<vmem>>, vector<1x8x64xbf16>
    %34 = vector.shape_cast %33 : vector<1x8x64xbf16> to vector<8x64xbf16>
    %35 = vector.shape_cast %32 : vector<8x64xbf16> to vector<1x8x64xbf16>
    tpu.vector_store %arg7[%c1_21, %c0_22, %c96_23], %35 {strides = array<i32>} : memref<3x8x1088xbf16, #tpu.memory_space<vmem>>, vector<1x8x64xbf16>,
    %36 = vector.extract_strided_slice %25 {offsets = [0, 64], sizes = [8, 32], strides = [1, 1]} : vector<8x96xbf16> to vector<8x32xbf16>
    %37 = tpu.concatenate %36, %36 in 1 : vector<8x32xbf16>, vector<8x32xbf16> -> vector<8x64xbf16>
    %c2_24 = arith.constant 2 : index
    %c0_25 = arith.constant 0 : index
    %c96_26 = arith.constant 96 : index
    %38 = vector.load %arg7[%c2_24, %c0_25, %c96_26] : memref<3x8x1088xbf16, #tpu.memory_space<vmem>>, vector<1x8x64xbf16>
    %39 = vector.shape_cast %38 : vector<1x8x64xbf16> to vector<8x64xbf16>
    %40 = vector.shape_cast %37 : vector<8x64xbf16> to vector<1x8x64xbf16>
    tpu.vector_store %arg7[%c2_24, %c0_25, %c96_26], %40 {strides = array<i32>} : memref<3x8x1088xbf16, #tpu.memory_space<vmem>>, vector<1x8x64xbf16>,
    %c0_27 = arith.constant 0 : index
    %c32_28 = arith.constant 32 : index
    %41 = vector.load %arg1[%c0_27, %c32_28] : memref<8x256xbf16, #tpu.memory_space<vmem>>, vector<8x16xbf16>
    %c0_29 = arith.constant 0 : index
    %c0_30 = arith.constant 0 : index
    %42 = vector.load %arg2[%c0_29, %c0_30] : memref<16x96xbf16, #tpu.memory_space<vmem>>, vector<16x96xbf16>
    %cst_31 = arith.constant dense<0.000000e+00> : vector<8x96xf32>
    %43 = tpu.matmul %41, %42, %cst_31 {dimension_numbers = #tpu.dot_dimension_numbers<[1], [0], [0], [1], [0, 0, 1, 1], [], []>} : vector<8x16xbf16>, vector<16x96xbf16>, vector<8x96xf32> -> vector<8x96xf32>
    %44 = arith.truncf %43 : vector<8x96xf32> to vector<8x96xbf16>
    %45 = vector.extract_strided_slice %44 {offsets = [0, 0], sizes = [8, 32], strides = [1, 1]} : vector<8x96xbf16> to vector<8x32xbf16>
    %46 = tpu.concatenate %45, %45 in 1 : vector<8x32xbf16>, vector<8x32xbf16> -> vector<8x64xbf16>
    %c0_32 = arith.constant 0 : index
    %c0_33 = arith.constant 0 : index
    %c160 = arith.constant 160 : index
    %47 = vector.load %arg7[%c0_32, %c0_33, %c160] : memref<3x8x1088xbf16, #tpu.memory_space<vmem>>, vector<1x8x64xbf16>
    %48 = vector.shape_cast %47 : vector<1x8x64xbf16> to vector<8x64xbf16>
    %49 = vector.shape_cast %46 : vector<8x64xbf16> to vector<1x8x64xbf16>
    tpu.vector_store %arg7[%c0_32, %c0_33, %c160], %49 {strides = array<i32>} : memref<3x8x1088xbf16, #tpu.memory_space<vmem>>, vector<1x8x64xbf16>,
    %50 = vector.extract_strided_slice %44 {offsets = [0, 32], sizes = [8, 32], strides = [1, 1]} : vector<8x96xbf16> to vector<8x32xbf16>
    %51 = tpu.concatenate %50, %50 in 1 : vector<8x32xbf16>, vector<8x32xbf16> -> vector<8x64xbf16>
    %c1_34 = arith.constant 1 : index
    %c0_35 = arith.constant 0 : index
    %c160_36 = arith.constant 160 : index
    %52 = vector.load %arg7[%c1_34, %c0_35, %c160_36] : memref<3x8x1088xbf16, #tpu.memory_space<vmem>>, vector<1x8x64xbf16>
    %53 = vector.shape_cast %52 : vector<1x8x64xbf16> to vector<8x64xbf16>
    %54 = vector.shape_cast %51 : vector<8x64xbf16> to vector<1x8x64xbf16>
    tpu.vector_store %arg7[%c1_34, %c0_35, %c160_36], %54 {strides = array<i32>} : memref<3x8x1088xbf16, #tpu.memory_space<vmem>>, vector<1x8x64xbf16>,
    %55 = vector.extract_strided_slice %44 {offsets = [0, 64], sizes = [8, 32], strides = [1, 1]} : vector<8x96xbf16> to vector<8x32xbf16>
    %56 = tpu.concatenate %55, %55 in 1 : vector<8x32xbf16>, vector<8x32xbf16> -> vector<8x64xbf16>
    %c2_37 = arith.constant 2 : index
    %c0_38 = arith.constant 0 : index
    %c160_39 = arith.constant 160 : index
    %57 = vector.load %arg7[%c2_37, %c0_38, %c160_39] : memref<3x8x1088xbf16, #tpu.memory_space<vmem>>, vector<1x8x64xbf16>
    %58 = vector.shape_cast %57 : vector<1x8x64xbf16> to vector<8x64xbf16>
    %59 = vector.shape_cast %56 : vector<8x64xbf16> to vector<1x8x64xbf16>
    tpu.vector_store %arg7[%c2_37, %c0_38, %c160_39], %59 {strides = array<i32>} : memref<3x8x1088xbf16, #tpu.memory_space<vmem>>, vector<1x8x64xbf16>,
    %c0_40 = arith.constant 0 : index
    %c48 = arith.constant 48 : index
    %60 = vector.load %arg1[%c0_40, %c48] : memref<8x256xbf16, #tpu.memory_space<vmem>>, vector<8x16xbf16>
    %c0_41 = arith.constant 0 : index
    %c0_42 = arith.constant 0 : index
    %61 = vector.load %arg2[%c0_41, %c0_42] : memref<16x96xbf16, #tpu.memory_space<vmem>>, vector<16x96xbf16>
    %cst_43 = arith.constant dense<0.000000e+00> : vector<8x96xf32>
    %62 = tpu.matmul %60, %61, %cst_43 {dimension_numbers = #tpu.dot_dimension_numbers<[1], [0], [0], [1], [0, 0, 1, 1], [], []>} : vector<8x16xbf16>, vector<16x96xbf16>, vector<8x96xf32> -> vector<8x96xf32>
    %63 = arith.truncf %62 : vector<8x96xf32> to vector<8x96xbf16>
    %64 = vector.extract_strided_slice %63 {offsets = [0, 0], sizes = [8, 32], strides = [1, 1]} : vector<8x96xbf16> to vector<8x32xbf16>
    %65 = tpu.concatenate %64, %64 in 1 : vector<8x32xbf16>, vector<8x32xbf16> -> vector<8x64xbf16>
    %c0_44 = arith.constant 0 : index
    %c0_45 = arith.constant 0 : index
    %c224 = arith.constant 224 : index
    %66 = vector.load %arg7[%c0_44, %c0_45, %c224] : memref<3x8x1088xbf16, #tpu.memory_space<vmem>>, vector<1x8x64xbf16>
    %67 = vector.shape_cast %66 : vector<1x8x64xbf16> to vector<8x64xbf16>
    %68 = vector.shape_cast %65 : vector<8x64xbf16> to vector<1x8x64xbf16>
    tpu.vector_store %arg7[%c0_44, %c0_45, %c224], %68 {strides = array<i32>} : memref<3x8x1088xbf16, #tpu.memory_space<vmem>>, vector<1x8x64xbf16>,
    %69 = vector.extract_strided_slice %63 {offsets = [0, 32], sizes = [8, 32], strides = [1, 1]} : vector<8x96xbf16> to vector<8x32xbf16>
    %70 = tpu.concatenate %69, %69 in 1 : vector<8x32xbf16>, vector<8x32xbf16> -> vector<8x64xbf16>
    %c1_46 = arith.constant 1 : index
    %c0_47 = arith.constant 0 : index
    %c224_48 = arith.constant 224 : index
    %71 = vector.load %arg7[%c1_46, %c0_47, %c224_48] : memref<3x8x1088xbf16, #tpu.memory_space<vmem>>, vector<1x8x64xbf16>
    %72 = vector.shape_cast %71 : vector<1x8x64xbf16> to vector<8x64xbf16>
    %73 = vector.shape_cast %70 : vector<8x64xbf16> to vector<1x8x64xbf16>
    tpu.vector_store %arg7[%c1_46, %c0_47, %c224_48], %73 {strides = array<i32>} : memref<3x8x1088xbf16, #tpu.memory_space<vmem>>, vector<1x8x64xbf16>,
    %74 = vector.extract_strided_slice %63 {offsets = [0, 64], sizes = [8, 32], strides = [1, 1]} : vector<8x96xbf16> to vector<8x32xbf16>
    %75 = tpu.concatenate %74, %74 in 1 : vector<8x32xbf16>, vector<8x32xbf16> -> vector<8x64xbf16>
    %c2_49 = arith.constant 2 : index
    %c0_50 = arith.constant 0 : index
    %c224_51 = arith.constant 224 : index
    %76 = vector.load %arg7[%c2_49, %c0_50, %c224_51] : memref<3x8x1088xbf16, #tpu.memory_space<vmem>>, vector<1x8x64xbf16>
    %77 = vector.shape_cast %76 : vector<1x8x64xbf16> to vector<8x64xbf16>
    %78 = vector.shape_cast %75 : vector<8x64xbf16> to vector<1x8x64xbf16>
    tpu.vector_store %arg7[%c2_49, %c0_50, %c224_51], %78 {strides = array<i32>} : memref<3x8x1088xbf16, #tpu.memory_space<vmem>>, vector<1x8x64xbf16>,
    %c0_52 = arith.constant 0 : index
    %c64 = arith.constant 64 : index
    %79 = vector.load %arg1[%c0_52, %c64] : memref<8x256xbf16, #tpu.memory_space<vmem>>, vector<8x16xbf16>
    %c0_53 = arith.constant 0 : index
    %c0_54 = arith.constant 0 : index
    %80 = vector.load %arg2[%c0_53, %c0_54] : memref<16x96xbf16, #tpu.memory_space<vmem>>, vector<16x96xbf16>
    %cst_55 = arith.constant dense<0.000000e+00> : vector<8x96xf32>
    %81 = tpu.matmul %79, %80, %cst_55 {dimension_numbers = #tpu.dot_dimension_numbers<[1], [0], [0], [1], [0, 0, 1, 1], [], []>} : vector<8x16xbf16>, vector<16x96xbf16>, vector<8x96xf32> -> vector<8x96xf32>
    %82 = arith.truncf %81 : vector<8x96xf32> to vector<8x96xbf16>
    %83 = vector.extract_strided_slice %82 {offsets = [0, 0], sizes = [8, 32], strides = [1, 1]} : vector<8x96xbf16> to vector<8x32xbf16>
    %84 = tpu.concatenate %83, %83 in 1 : vector<8x32xbf16>, vector<8x32xbf16> -> vector<8x64xbf16>
    %c0_56 = arith.constant 0 : index
    %c0_57 = arith.constant 0 : index
    %c288 = arith.constant 288 : index
    %85 = vector.load %arg7[%c0_56, %c0_57, %c288] : memref<3x8x1088xbf16, #tpu.memory_space<vmem>>, vector<1x8x64xbf16>
    %86 = vector.shape_cast %85 : vector<1x8x64xbf16> to vector<8x64xbf16>
    %87 = vector.shape_cast %84 : vector<8x64xbf16> to vector<1x8x64xbf16>
    tpu.vector_store %arg7[%c0_56, %c0_57, %c288], %87 {strides = array<i32>} : memref<3x8x1088xbf16, #tpu.memory_space<vmem>>, vector<1x8x64xbf16>,
    %88 = vector.extract_strided_slice %82 {offsets = [0, 32], sizes = [8, 32], strides = [1, 1]} : vector<8x96xbf16> to vector<8x32xbf16>
    %89 = tpu.concatenate %88, %88 in 1 : vector<8x32xbf16>, vector<8x32xbf16> -> vector<8x64xbf16>
    %c1_58 = arith.constant 1 : index
    %c0_59 = arith.constant 0 : index
    %c288_60 = arith.constant 288 : index
    %90 = vector.load %arg7[%c1_58, %c0_59, %c288_60] : memref<3x8x1088xbf16, #tpu.memory_space<vmem>>, vector<1x8x64xbf16>
    %91 = vector.shape_cast %90 : vector<1x8x64xbf16> to vector<8x64xbf16>
    %92 = vector.shape_cast %89 : vector<8x64xbf16> to vector<1x8x64xbf16>
    tpu.vector_store %arg7[%c1_58, %c0_59, %c288_60], %92 {strides = array<i32>} : memref<3x8x1088xbf16, #tpu.memory_space<vmem>>, vector<1x8x64xbf16>,
    %93 = vector.extract_strided_slice %82 {offsets = [0, 64], sizes = [8, 32], strides = [1, 1]} : vector<8x96xbf16> to vector<8x32xbf16>
    %94 = tpu.concatenate %93, %93 in 1 : vector<8x32xbf16>, vector<8x32xbf16> -> vector<8x64xbf16>
    %c2_61 = arith.constant 2 : index
    %c0_62 = arith.constant 0 : index
    %c288_63 = arith.constant 288 : index
    %95 = vector.load %arg7[%c2_61, %c0_62, %c288_63] : memref<3x8x1088xbf16, #tpu.memory_space<vmem>>, vector<1x8x64xbf16>
    %96 = vector.shape_cast %95 : vector<1x8x64xbf16> to vector<8x64xbf16>
    %97 = vector.shape_cast %94 : vector<8x64xbf16> to vector<1x8x64xbf16>
    tpu.vector_store %arg7[%c2_61, %c0_62, %c288_63], %97 {strides = array<i32>} : memref<3x8x1088xbf16, #tpu.memory_space<vmem>>, vector<1x8x64xbf16>,
    %c0_64 = arith.constant 0 : index
    %c80 = arith.constant 80 : index
    %98 = vector.load %arg1[%c0_64, %c80] : memref<8x256xbf16, #tpu.memory_space<vmem>>, vector<8x16xbf16>
    %c0_65 = arith.constant 0 : index
    %c0_66 = arith.constant 0 : index
    %99 = vector.load %arg2[%c0_65, %c0_66] : memref<16x96xbf16, #tpu.memory_space<vmem>>, vector<16x96xbf16>
    %cst_67 = arith.constant dense<0.000000e+00> : vector<8x96xf32>
    %100 = tpu.matmul %98, %99, %cst_67 {dimension_numbers = #tpu.dot_dimension_numbers<[1], [0], [0], [1], [0, 0, 1, 1], [], []>} : vector<8x16xbf16>, vector<16x96xbf16>, vector<8x96xf32> -> vector<8x96xf32>
    %101 = arith.truncf %100 : vector<8x96xf32> to vector<8x96xbf16>
    %102 = vector.extract_strided_slice %101 {offsets = [0, 0], sizes = [8, 32], strides = [1, 1]} : vector<8x96xbf16> to vector<8x32xbf16>
    %103 = tpu.concatenate %102, %102 in 1 : vector<8x32xbf16>, vector<8x32xbf16> -> vector<8x64xbf16>
    %c0_68 = arith.constant 0 : index
    %c0_69 = arith.constant 0 : index
    %c352 = arith.constant 352 : index
    %104 = vector.load %arg7[%c0_68, %c0_69, %c352] : memref<3x8x1088xbf16, #tpu.memory_space<vmem>>, vector<1x8x64xbf16>
    %105 = vector.shape_cast %104 : vector<1x8x64xbf16> to vector<8x64xbf16>
    %106 = vector.shape_cast %103 : vector<8x64xbf16> to vector<1x8x64xbf16>
    tpu.vector_store %arg7[%c0_68, %c0_69, %c352], %106 {strides = array<i32>} : memref<3x8x1088xbf16, #tpu.memory_space<vmem>>, vector<1x8x64xbf16>,
    %107 = vector.extract_strided_slice %101 {offsets = [0, 32], sizes = [8, 32], strides = [1, 1]} : vector<8x96xbf16> to vector<8x32xbf16>
    %108 = tpu.concatenate %107, %107 in 1 : vector<8x32xbf16>, vector<8x32xbf16> -> vector<8x64xbf16>
    %c1_70 = arith.constant 1 : index
    %c0_71 = arith.constant 0 : index
    %c352_72 = arith.constant 352 : index
    %109 = vector.load %arg7[%c1_70, %c0_71, %c352_72] : memref<3x8x1088xbf16, #tpu.memory_space<vmem>>, vector<1x8x64xbf16>
    %110 = vector.shape_cast %109 : vector<1x8x64xbf16> to vector<8x64xbf16>
    %111 = vector.shape_cast %108 : vector<8x64xbf16> to vector<1x8x64xbf16>
    tpu.vector_store %arg7[%c1_70, %c0_71, %c352_72], %111 {strides = array<i32>} : memref<3x8x1088xbf16, #tpu.memory_space<vmem>>, vector<1x8x64xbf16>,
    %112 = vector.extract_strided_slice %101 {offsets = [0, 64], sizes = [8, 32], strides = [1, 1]} : vector<8x96xbf16> to vector<8x32xbf16>
    %113 = tpu.concatenate %112, %112 in 1 : vector<8x32xbf16>, vector<8x32xbf16> -> vector<8x64xbf16>
    %c2_73 = arith.constant 2 : index
    %c0_74 = arith.constant 0 : index
    %c352_75 = arith.constant 352 : index
    %114 = vector.load %arg7[%c2_73, %c0_74, %c352_75] : memref<3x8x1088xbf16, #tpu.memory_space<vmem>>, vector<1x8x64xbf16>
    %115 = vector.shape_cast %114 : vector<1x8x64xbf16> to vector<8x64xbf16>
    %116 = vector.shape_cast %113 : vector<8x64xbf16> to vector<1x8x64xbf16>
    tpu.vector_store %arg7[%c2_73, %c0_74, %c352_75], %116 {strides = array<i32>} : memref<3x8x1088xbf16, #tpu.memory_space<vmem>>, vector<1x8x64xbf16>,
    %c0_76 = arith.constant 0 : index
    %c96_77 = arith.constant 96 : index
    %117 = vector.load %arg1[%c0_76, %c96_77] : memref<8x256xbf16, #tpu.memory_space<vmem>>, vector<8x16xbf16>
    %c0_78 = arith.constant 0 : index
    %c0_79 = arith.constant 0 : index
    %118 = vector.load %arg2[%c0_78, %c0_79] : memref<16x96xbf16, #tpu.memory_space<vmem>>, vector<16x96xbf16>
    %cst_80 = arith.constant dense<0.000000e+00> : vector<8x96xf32>
    %119 = tpu.matmul %117, %118, %cst_80 {dimension_numbers = #tpu.dot_dimension_numbers<[1], [0], [0], [1], [0, 0, 1, 1], [], []>} : vector<8x16xbf16>, vector<16x96xbf16>, vector<8x96xf32> -> vector<8x96xf32>
    %120 = arith.truncf %119 : vector<8x96xf32> to vector<8x96xbf16>
    %121 = vector.extract_strided_slice %120 {offsets = [0, 0], sizes = [8, 32], strides = [1, 1]} : vector<8x96xbf16> to vector<8x32xbf16>
    %122 = tpu.concatenate %121, %121 in 1 : vector<8x32xbf16>, vector<8x32xbf16> -> vector<8x64xbf16>
    %c0_81 = arith.constant 0 : index
    %c0_82 = arith.constant 0 : index
    %c416 = arith.constant 416 : index
    %123 = vector.load %arg7[%c0_81, %c0_82, %c416] : memref<3x8x1088xbf16, #tpu.memory_space<vmem>>, vector<1x8x64xbf16>
    %124 = vector.shape_cast %123 : vector<1x8x64xbf16> to vector<8x64xbf16>
    %125 = vector.shape_cast %122 : vector<8x64xbf16> to vector<1x8x64xbf16>
    tpu.vector_store %arg7[%c0_81, %c0_82, %c416], %125 {strides = array<i32>} : memref<3x8x1088xbf16, #tpu.memory_space<vmem>>, vector<1x8x64xbf16>,
    %126 = vector.extract_strided_slice %120 {offsets = [0, 32], sizes = [8, 32], strides = [1, 1]} : vector<8x96xbf16> to vector<8x32xbf16>
    %127 = tpu.concatenate %126, %126 in 1 : vector<8x32xbf16>, vector<8x32xbf16> -> vector<8x64xbf16>
    %c1_83 = arith.constant 1 : index
    %c0_84 = arith.constant 0 : index
    %c416_85 = arith.constant 416 : index
    %128 = vector.load %arg7[%c1_83, %c0_84, %c416_85] : memref<3x8x1088xbf16, #tpu.memory_space<vmem>>, vector<1x8x64xbf16>
    %129 = vector.shape_cast %128 : vector<1x8x64xbf16> to vector<8x64xbf16>
    %130 = vector.shape_cast %127 : vector<8x64xbf16> to vector<1x8x64xbf16>
    tpu.vector_store %arg7[%c1_83, %c0_84, %c416_85], %130 {strides = array<i32>} : memref<3x8x1088xbf16, #tpu.memory_space<vmem>>, vector<1x8x64xbf16>,
    %131 = vector.extract_strided_slice %120 {offsets = [0, 64], sizes = [8, 32], strides = [1, 1]} : vector<8x96xbf16> to vector<8x32xbf16>
    %132 = tpu.concatenate %131, %131 in 1 : vector<8x32xbf16>, vector<8x32xbf16> -> vector<8x64xbf16>
    %c2_86 = arith.constant 2 : index
    %c0_87 = arith.constant 0 : index
    %c416_88 = arith.constant 416 : index
    %133 = vector.load %arg7[%c2_86, %c0_87, %c416_88] : memref<3x8x1088xbf16, #tpu.memory_space<vmem>>, vector<1x8x64xbf16>
    %134 = vector.shape_cast %133 : vector<1x8x64xbf16> to vector<8x64xbf16>
    %135 = vector.shape_cast %132 : vector<8x64xbf16> to vector<1x8x64xbf16>
    tpu.vector_store %arg7[%c2_86, %c0_87, %c416_88], %135 {strides = array<i32>} : memref<3x8x1088xbf16, #tpu.memory_space<vmem>>, vector<1x8x64xbf16>,
    %c0_89 = arith.constant 0 : index
    %c112 = arith.constant 112 : index
    %136 = vector.load %arg1[%c0_89, %c112] : memref<8x256xbf16, #tpu.memory_space<vmem>>, vector<8x16xbf16>
    %c0_90 = arith.constant 0 : index
    %c0_91 = arith.constant 0 : index
    %137 = vector.load %arg2[%c0_90, %c0_91] : memref<16x96xbf16, #tpu.memory_space<vmem>>, vector<16x96xbf16>
    %cst_92 = arith.constant dense<0.000000e+00> : vector<8x96xf32>
    %138 = tpu.matmul %136, %137, %cst_92 {dimension_numbers = #tpu.dot_dimension_numbers<[1], [0], [0], [1], [0, 0, 1, 1], [], []>} : vector<8x16xbf16>, vector<16x96xbf16>, vector<8x96xf32> -> vector<8x96xf32>
    %139 = arith.truncf %138 : vector<8x96xf32> to vector<8x96xbf16>
    %140 = vector.extract_strided_slice %139 {offsets = [0, 0], sizes = [8, 32], strides = [1, 1]} : vector<8x96xbf16> to vector<8x32xbf16>
    %141 = tpu.concatenate %140, %140 in 1 : vector<8x32xbf16>, vector<8x32xbf16> -> vector<8x64xbf16>
    %c0_93 = arith.constant 0 : index
    %c0_94 = arith.constant 0 : index
    %c480 = arith.constant 480 : index
    %142 = vector.load %arg7[%c0_93, %c0_94, %c480] : memref<3x8x1088xbf16, #tpu.memory_space<vmem>>, vector<1x8x64xbf16>
    %143 = vector.shape_cast %142 : vector<1x8x64xbf16> to vector<8x64xbf16>
    %144 = vector.shape_cast %141 : vector<8x64xbf16> to vector<1x8x64xbf16>
    tpu.vector_store %arg7[%c0_93, %c0_94, %c480], %144 {strides = array<i32>} : memref<3x8x1088xbf16, #tpu.memory_space<vmem>>, vector<1x8x64xbf16>,
    %145 = vector.extract_strided_slice %139 {offsets = [0, 32], sizes = [8, 32], strides = [1, 1]} : vector<8x96xbf16> to vector<8x32xbf16>
    %146 = tpu.concatenate %145, %145 in 1 : vector<8x32xbf16>, vector<8x32xbf16> -> vector<8x64xbf16>
    %c1_95 = arith.constant 1 : index
    %c0_96 = arith.constant 0 : index
    %c480_97 = arith.constant 480 : index
    %147 = vector.load %arg7[%c1_95, %c0_96, %c480_97] : memref<3x8x1088xbf16, #tpu.memory_space<vmem>>, vector<1x8x64xbf16>
    %148 = vector.shape_cast %147 : vector<1x8x64xbf16> to vector<8x64xbf16>
    %149 = vector.shape_cast %146 : vector<8x64xbf16> to vector<1x8x64xbf16>
    tpu.vector_store %arg7[%c1_95, %c0_96, %c480_97], %149 {strides = array<i32>} : memref<3x8x1088xbf16, #tpu.memory_space<vmem>>, vector<1x8x64xbf16>,
    %150 = vector.extract_strided_slice %139 {offsets = [0, 64], sizes = [8, 32], strides = [1, 1]} : vector<8x96xbf16> to vector<8x32xbf16>
    %151 = tpu.concatenate %150, %150 in 1 : vector<8x32xbf16>, vector<8x32xbf16> -> vector<8x64xbf16>
    %c2_98 = arith.constant 2 : index
    %c0_99 = arith.constant 0 : index
    %c480_100 = arith.constant 480 : index
    %152 = vector.load %arg7[%c2_98, %c0_99, %c480_100] : memref<3x8x1088xbf16, #tpu.memory_space<vmem>>, vector<1x8x64xbf16>
    %153 = vector.shape_cast %152 : vector<1x8x64xbf16> to vector<8x64xbf16>
    %154 = vector.shape_cast %151 : vector<8x64xbf16> to vector<1x8x64xbf16>
    tpu.vector_store %arg7[%c2_98, %c0_99, %c480_100], %154 {strides = array<i32>} : memref<3x8x1088xbf16, #tpu.memory_space<vmem>>, vector<1x8x64xbf16>,
    %c0_101 = arith.constant 0 : index
    %c128 = arith.constant 128 : index
    %155 = vector.load %arg1[%c0_101, %c128] : memref<8x256xbf16, #tpu.memory_space<vmem>>, vector<8x16xbf16>
    %c0_102 = arith.constant 0 : index
    %c0_103 = arith.constant 0 : index
    %156 = vector.load %arg2[%c0_102, %c0_103] : memref<16x96xbf16, #tpu.memory_space<vmem>>, vector<16x96xbf16>
    %cst_104 = arith.constant dense<0.000000e+00> : vector<8x96xf32>
    %157 = tpu.matmul %155, %156, %cst_104 {dimension_numbers = #tpu.dot_dimension_numbers<[1], [0], [0], [1], [0, 0, 1, 1], [], []>} : vector<8x16xbf16>, vector<16x96xbf16>, vector<8x96xf32> -> vector<8x96xf32>
    %158 = arith.truncf %157 : vector<8x96xf32> to vector<8x96xbf16>
    %159 = vector.extract_strided_slice %158 {offsets = [0, 0], sizes = [8, 32], strides = [1, 1]} : vector<8x96xbf16> to vector<8x32xbf16>
    %160 = tpu.concatenate %159, %159 in 1 : vector<8x32xbf16>, vector<8x32xbf16> -> vector<8x64xbf16>
    %c0_105 = arith.constant 0 : index
    %c0_106 = arith.constant 0 : index
    %c544 = arith.constant 544 : index
    %161 = vector.load %arg7[%c0_105, %c0_106, %c544] : memref<3x8x1088xbf16, #tpu.memory_space<vmem>>, vector<1x8x64xbf16>
    %162 = vector.shape_cast %161 : vector<1x8x64xbf16> to vector<8x64xbf16>
    %163 = vector.shape_cast %160 : vector<8x64xbf16> to vector<1x8x64xbf16>
    tpu.vector_store %arg7[%c0_105, %c0_106, %c544], %163 {strides = array<i32>} : memref<3x8x1088xbf16, #tpu.memory_space<vmem>>, vector<1x8x64xbf16>,
    %164 = vector.extract_strided_slice %158 {offsets = [0, 32], sizes = [8, 32], strides = [1, 1]} : vector<8x96xbf16> to vector<8x32xbf16>
    %165 = tpu.concatenate %164, %164 in 1 : vector<8x32xbf16>, vector<8x32xbf16> -> vector<8x64xbf16>
    %c1_107 = arith.constant 1 : index
    %c0_108 = arith.constant 0 : index
    %c544_109 = arith.constant 544 : index
    %166 = vector.load %arg7[%c1_107, %c0_108, %c544_109] : memref<3x8x1088xbf16, #tpu.memory_space<vmem>>, vector<1x8x64xbf16>
    %167 = vector.shape_cast %166 : vector<1x8x64xbf16> to vector<8x64xbf16>
    %168 = vector.shape_cast %165 : vector<8x64xbf16> to vector<1x8x64xbf16>
    tpu.vector_store %arg7[%c1_107, %c0_108, %c544_109], %168 {strides = array<i32>} : memref<3x8x1088xbf16, #tpu.memory_space<vmem>>, vector<1x8x64xbf16>,
    %169 = vector.extract_strided_slice %158 {offsets = [0, 64], sizes = [8, 32], strides = [1, 1]} : vector<8x96xbf16> to vector<8x32xbf16>
    %170 = tpu.concatenate %169, %169 in 1 : vector<8x32xbf16>, vector<8x32xbf16> -> vector<8x64xbf16>
    %c2_110 = arith.constant 2 : index
    %c0_111 = arith.constant 0 : index
    %c544_112 = arith.constant 544 : index
    %171 = vector.load %arg7[%c2_110, %c0_111, %c544_112] : memref<3x8x1088xbf16, #tpu.memory_space<vmem>>, vector<1x8x64xbf16>
    %172 = vector.shape_cast %171 : vector<1x8x64xbf16> to vector<8x64xbf16>
    %173 = vector.shape_cast %170 : vector<8x64xbf16> to vector<1x8x64xbf16>
    tpu.vector_store %arg7[%c2_110, %c0_111, %c544_112], %173 {strides = array<i32>} : memref<3x8x1088xbf16, #tpu.memory_space<vmem>>, vector<1x8x64xbf16>,
    %c0_113 = arith.constant 0 : index
    %c144 = arith.constant 144 : index
    %174 = vector.load %arg1[%c0_113, %c144] : memref<8x256xbf16, #tpu.memory_space<vmem>>, vector<8x16xbf16>
    %c0_114 = arith.constant 0 : index
    %c0_115 = arith.constant 0 : index
    %175 = vector.load %arg2[%c0_114, %c0_115] : memref<16x96xbf16, #tpu.memory_space<vmem>>, vector<16x96xbf16>
    %cst_116 = arith.constant dense<0.000000e+00> : vector<8x96xf32>
    %176 = tpu.matmul %174, %175, %cst_116 {dimension_numbers = #tpu.dot_dimension_numbers<[1], [0], [0], [1], [0, 0, 1, 1], [], []>} : vector<8x16xbf16>, vector<16x96xbf16>, vector<8x96xf32> -> vector<8x96xf32>
    %177 = arith.truncf %176 : vector<8x96xf32> to vector<8x96xbf16>
    %178 = vector.extract_strided_slice %177 {offsets = [0, 0], sizes = [8, 32], strides = [1, 1]} : vector<8x96xbf16> to vector<8x32xbf16>
    %179 = tpu.concatenate %178, %178 in 1 : vector<8x32xbf16>, vector<8x32xbf16> -> vector<8x64xbf16>
    %c0_117 = arith.constant 0 : index
    %c0_118 = arith.constant 0 : index
    %c608 = arith.constant 608 : index
    %180 = vector.load %arg7[%c0_117, %c0_118, %c608] : memref<3x8x1088xbf16, #tpu.memory_space<vmem>>, vector<1x8x64xbf16>
    %181 = vector.shape_cast %180 : vector<1x8x64xbf16> to vector<8x64xbf16>
    %182 = vector.shape_cast %179 : vector<8x64xbf16> to vector<1x8x64xbf16>
    tpu.vector_store %arg7[%c0_117, %c0_118, %c608], %182 {strides = array<i32>} : memref<3x8x1088xbf16, #tpu.memory_space<vmem>>, vector<1x8x64xbf16>,
    %183 = vector.extract_strided_slice %177 {offsets = [0, 32], sizes = [8, 32], strides = [1, 1]} : vector<8x96xbf16> to vector<8x32xbf16>
    %184 = tpu.concatenate %183, %183 in 1 : vector<8x32xbf16>, vector<8x32xbf16> -> vector<8x64xbf16>
    %c1_119 = arith.constant 1 : index
    %c0_120 = arith.constant 0 : index
    %c608_121 = arith.constant 608 : index
    %185 = vector.load %arg7[%c1_119, %c0_120, %c608_121] : memref<3x8x1088xbf16, #tpu.memory_space<vmem>>, vector<1x8x64xbf16>
    %186 = vector.shape_cast %185 : vector<1x8x64xbf16> to vector<8x64xbf16>
    %187 = vector.shape_cast %184 : vector<8x64xbf16> to vector<1x8x64xbf16>
    tpu.vector_store %arg7[%c1_119, %c0_120, %c608_121], %187 {strides = array<i32>} : memref<3x8x1088xbf16, #tpu.memory_space<vmem>>, vector<1x8x64xbf16>,
    %188 = vector.extract_strided_slice %177 {offsets = [0, 64], sizes = [8, 32], strides = [1, 1]} : vector<8x96xbf16> to vector<8x32xbf16>
    %189 = tpu.concatenate %188, %188 in 1 : vector<8x32xbf16>, vector<8x32xbf16> -> vector<8x64xbf16>
    %c2_122 = arith.constant 2 : index
    %c0_123 = arith.constant 0 : index
    %c608_124 = arith.constant 608 : index
    %190 = vector.load %arg7[%c2_122, %c0_123, %c608_124] : memref<3x8x1088xbf16, #tpu.memory_space<vmem>>, vector<1x8x64xbf16>
    %191 = vector.shape_cast %190 : vector<1x8x64xbf16> to vector<8x64xbf16>
    %192 = vector.shape_cast %189 : vector<8x64xbf16> to vector<1x8x64xbf16>
    tpu.vector_store %arg7[%c2_122, %c0_123, %c608_124], %192 {strides = array<i32>} : memref<3x8x1088xbf16, #tpu.memory_space<vmem>>, vector<1x8x64xbf16>,
    %c0_125 = arith.constant 0 : index
    %c160_126 = arith.constant 160 : index
    %193 = vector.load %arg1[%c0_125, %c160_126] : memref<8x256xbf16, #tpu.memory_space<vmem>>, vector<8x16xbf16>
    %c0_127 = arith.constant 0 : index
    %c0_128 = arith.constant 0 : index
    %194 = vector.load %arg2[%c0_127, %c0_128] : memref<16x96xbf16, #tpu.memory_space<vmem>>, vector<16x96xbf16>
    %cst_129 = arith.constant dense<0.000000e+00> : vector<8x96xf32>
    %195 = tpu.matmul %193, %194, %cst_129 {dimension_numbers = #tpu.dot_dimension_numbers<[1], [0], [0], [1], [0, 0, 1, 1], [], []>} : vector<8x16xbf16>, vector<16x96xbf16>, vector<8x96xf32> -> vector<8x96xf32>
    %196 = arith.truncf %195 : vector<8x96xf32> to vector<8x96xbf16>
    %197 = vector.extract_strided_slice %196 {offsets = [0, 0], sizes = [8, 32], strides = [1, 1]} : vector<8x96xbf16> to vector<8x32xbf16>
    %198 = tpu.concatenate %197, %197 in 1 : vector<8x32xbf16>, vector<8x32xbf16> -> vector<8x64xbf16>
    %c0_130 = arith.constant 0 : index
    %c0_131 = arith.constant 0 : index
    %c672 = arith.constant 672 : index
    %199 = vector.load %arg7[%c0_130, %c0_131, %c672] : memref<3x8x1088xbf16, #tpu.memory_space<vmem>>, vector<1x8x64xbf16>
    %200 = vector.shape_cast %199 : vector<1x8x64xbf16> to vector<8x64xbf16>
    %201 = vector.shape_cast %198 : vector<8x64xbf16> to vector<1x8x64xbf16>
    tpu.vector_store %arg7[%c0_130, %c0_131, %c672], %201 {strides = array<i32>} : memref<3x8x1088xbf16, #tpu.memory_space<vmem>>, vector<1x8x64xbf16>,
    %202 = vector.extract_strided_slice %196 {offsets = [0, 32], sizes = [8, 32], strides = [1, 1]} : vector<8x96xbf16> to vector<8x32xbf16>
    %203 = tpu.concatenate %202, %202 in 1 : vector<8x32xbf16>, vector<8x32xbf16> -> vector<8x64xbf16>
    %c1_132 = arith.constant 1 : index
    %c0_133 = arith.constant 0 : index
    %c672_134 = arith.constant 672 : index
    %204 = vector.load %arg7[%c1_132, %c0_133, %c672_134] : memref<3x8x1088xbf16, #tpu.memory_space<vmem>>, vector<1x8x64xbf16>
    %205 = vector.shape_cast %204 : vector<1x8x64xbf16> to vector<8x64xbf16>
    %206 = vector.shape_cast %203 : vector<8x64xbf16> to vector<1x8x64xbf16>
    tpu.vector_store %arg7[%c1_132, %c0_133, %c672_134], %206 {strides = array<i32>} : memref<3x8x1088xbf16, #tpu.memory_space<vmem>>, vector<1x8x64xbf16>,
    %207 = vector.extract_strided_slice %196 {offsets = [0, 64], sizes = [8, 32], strides = [1, 1]} : vector<8x96xbf16> to vector<8x32xbf16>
    %208 = tpu.concatenate %207, %207 in 1 : vector<8x32xbf16>, vector<8x32xbf16> -> vector<8x64xbf16>
    %c2_135 = arith.constant 2 : index
    %c0_136 = arith.constant 0 : index
    %c672_137 = arith.constant 672 : index
    %209 = vector.load %arg7[%c2_135, %c0_136, %c672_137] : memref<3x8x1088xbf16, #tpu.memory_space<vmem>>, vector<1x8x64xbf16>
    %210 = vector.shape_cast %209 : vector<1x8x64xbf16> to vector<8x64xbf16>
    %211 = vector.shape_cast %208 : vector<8x64xbf16> to vector<1x8x64xbf16>
    tpu.vector_store %arg7[%c2_135, %c0_136, %c672_137], %211 {strides = array<i32>} : memref<3x8x1088xbf16, #tpu.memory_space<vmem>>, vector<1x8x64xbf16>,
    %c0_138 = arith.constant 0 : index
    %c176 = arith.constant 176 : index
    %212 = vector.load %arg1[%c0_138, %c176] : memref<8x256xbf16, #tpu.memory_space<vmem>>, vector<8x16xbf16>
    %c0_139 = arith.constant 0 : index
    %c0_140 = arith.constant 0 : index
    %213 = vector.load %arg2[%c0_139, %c0_140] : memref<16x96xbf16, #tpu.memory_space<vmem>>, vector<16x96xbf16>
    %cst_141 = arith.constant dense<0.000000e+00> : vector<8x96xf32>
    %214 = tpu.matmul %212, %213, %cst_141 {dimension_numbers = #tpu.dot_dimension_numbers<[1], [0], [0], [1], [0, 0, 1, 1], [], []>} : vector<8x16xbf16>, vector<16x96xbf16>, vector<8x96xf32> -> vector<8x96xf32>
    %215 = arith.truncf %214 : vector<8x96xf32> to vector<8x96xbf16>
    %216 = vector.extract_strided_slice %215 {offsets = [0, 0], sizes = [8, 32], strides = [1, 1]} : vector<8x96xbf16> to vector<8x32xbf16>
    %217 = tpu.concatenate %216, %216 in 1 : vector<8x32xbf16>, vector<8x32xbf16> -> vector<8x64xbf16>
    %c0_142 = arith.constant 0 : index
    %c0_143 = arith.constant 0 : index
    %c736 = arith.constant 736 : index
    %218 = vector.load %arg7[%c0_142, %c0_143, %c736] : memref<3x8x1088xbf16, #tpu.memory_space<vmem>>, vector<1x8x64xbf16>
    %219 = vector.shape_cast %218 : vector<1x8x64xbf16> to vector<8x64xbf16>
    %220 = vector.shape_cast %217 : vector<8x64xbf16> to vector<1x8x64xbf16>
    tpu.vector_store %arg7[%c0_142, %c0_143, %c736], %220 {strides = array<i32>} : memref<3x8x1088xbf16, #tpu.memory_space<vmem>>, vector<1x8x64xbf16>,
    %221 = vector.extract_strided_slice %215 {offsets = [0, 32], sizes = [8, 32], strides = [1, 1]} : vector<8x96xbf16> to vector<8x32xbf16>
    %222 = tpu.concatenate %221, %221 in 1 : vector<8x32xbf16>, vector<8x32xbf16> -> vector<8x64xbf16>
    %c1_144 = arith.constant 1 : index
    %c0_145 = arith.constant 0 : index
    %c736_146 = arith.constant 736 : index
    %223 = vector.load %arg7[%c1_144, %c0_145, %c736_146] : memref<3x8x1088xbf16, #tpu.memory_space<vmem>>, vector<1x8x64xbf16>
    %224 = vector.shape_cast %223 : vector<1x8x64xbf16> to vector<8x64xbf16>
    %225 = vector.shape_cast %222 : vector<8x64xbf16> to vector<1x8x64xbf16>
    tpu.vector_store %arg7[%c1_144, %c0_145, %c736_146], %225 {strides = array<i32>} : memref<3x8x1088xbf16, #tpu.memory_space<vmem>>, vector<1x8x64xbf16>,
    %226 = vector.extract_strided_slice %215 {offsets = [0, 64], sizes = [8, 32], strides = [1, 1]} : vector<8x96xbf16> to vector<8x32xbf16>
    %227 = tpu.concatenate %226, %226 in 1 : vector<8x32xbf16>, vector<8x32xbf16> -> vector<8x64xbf16>
    %c2_147 = arith.constant 2 : index
    %c0_148 = arith.constant 0 : index
    %c736_149 = arith.constant 736 : index
    %228 = vector.load %arg7[%c2_147, %c0_148, %c736_149] : memref<3x8x1088xbf16, #tpu.memory_space<vmem>>, vector<1x8x64xbf16>
    %229 = vector.shape_cast %228 : vector<1x8x64xbf16> to vector<8x64xbf16>
    %230 = vector.shape_cast %227 : vector<8x64xbf16> to vector<1x8x64xbf16>
    tpu.vector_store %arg7[%c2_147, %c0_148, %c736_149], %230 {strides = array<i32>} : memref<3x8x1088xbf16, #tpu.memory_space<vmem>>, vector<1x8x64xbf16>,
    %c0_150 = arith.constant 0 : index
    %c192 = arith.constant 192 : index
    %231 = vector.load %arg1[%c0_150, %c192] : memref<8x256xbf16, #tpu.memory_space<vmem>>, vector<8x16xbf16>
    %c0_151 = arith.constant 0 : index
    %c0_152 = arith.constant 0 : index
    %232 = vector.load %arg2[%c0_151, %c0_152] : memref<16x96xbf16, #tpu.memory_space<vmem>>, vector<16x96xbf16>
    %cst_153 = arith.constant dense<0.000000e+00> : vector<8x96xf32>
    %233 = tpu.matmul %231, %232, %cst_153 {dimension_numbers = #tpu.dot_dimension_numbers<[1], [0], [0], [1], [0, 0, 1, 1], [], []>} : vector<8x16xbf16>, vector<16x96xbf16>, vector<8x96xf32> -> vector<8x96xf32>
    %234 = arith.truncf %233 : vector<8x96xf32> to vector<8x96xbf16>
    %235 = vector.extract_strided_slice %234 {offsets = [0, 0], sizes = [8, 32], strides = [1, 1]} : vector<8x96xbf16> to vector<8x32xbf16>
    %236 = tpu.concatenate %235, %235 in 1 : vector<8x32xbf16>, vector<8x32xbf16> -> vector<8x64xbf16>
    %c0_154 = arith.constant 0 : index
    %c0_155 = arith.constant 0 : index
    %c800 = arith.constant 800 : index
    %237 = vector.load %arg7[%c0_154, %c0_155, %c800] : memref<3x8x1088xbf16, #tpu.memory_space<vmem>>, vector<1x8x64xbf16>
    %238 = vector.shape_cast %237 : vector<1x8x64xbf16> to vector<8x64xbf16>
    %239 = vector.shape_cast %236 : vector<8x64xbf16> to vector<1x8x64xbf16>
    tpu.vector_store %arg7[%c0_154, %c0_155, %c800], %239 {strides = array<i32>} : memref<3x8x1088xbf16, #tpu.memory_space<vmem>>, vector<1x8x64xbf16>,
    %240 = vector.extract_strided_slice %234 {offsets = [0, 32], sizes = [8, 32], strides = [1, 1]} : vector<8x96xbf16> to vector<8x32xbf16>
    %241 = tpu.concatenate %240, %240 in 1 : vector<8x32xbf16>, vector<8x32xbf16> -> vector<8x64xbf16>
    %c1_156 = arith.constant 1 : index
    %c0_157 = arith.constant 0 : index
    %c800_158 = arith.constant 800 : index
    %242 = vector.load %arg7[%c1_156, %c0_157, %c800_158] : memref<3x8x1088xbf16, #tpu.memory_space<vmem>>, vector<1x8x64xbf16>
    %243 = vector.shape_cast %242 : vector<1x8x64xbf16> to vector<8x64xbf16>
    %244 = vector.shape_cast %241 : vector<8x64xbf16> to vector<1x8x64xbf16>
    tpu.vector_store %arg7[%c1_156, %c0_157, %c800_158], %244 {strides = array<i32>} : memref<3x8x1088xbf16, #tpu.memory_space<vmem>>, vector<1x8x64xbf16>,
    %245 = vector.extract_strided_slice %234 {offsets = [0, 64], sizes = [8, 32], strides = [1, 1]} : vector<8x96xbf16> to vector<8x32xbf16>
    %246 = tpu.concatenate %245, %245 in 1 : vector<8x32xbf16>, vector<8x32xbf16> -> vector<8x64xbf16>
    %c2_159 = arith.constant 2 : index
    %c0_160 = arith.constant 0 : index
    %c800_161 = arith.constant 800 : index
    %247 = vector.load %arg7[%c2_159, %c0_160, %c800_161] : memref<3x8x1088xbf16, #tpu.memory_space<vmem>>, vector<1x8x64xbf16>
    %248 = vector.shape_cast %247 : vector<1x8x64xbf16> to vector<8x64xbf16>
    %249 = vector.shape_cast %246 : vector<8x64xbf16> to vector<1x8x64xbf16>
    tpu.vector_store %arg7[%c2_159, %c0_160, %c800_161], %249 {strides = array<i32>} : memref<3x8x1088xbf16, #tpu.memory_space<vmem>>, vector<1x8x64xbf16>,
    %c0_162 = arith.constant 0 : index
    %c208 = arith.constant 208 : index
    %250 = vector.load %arg1[%c0_162, %c208] : memref<8x256xbf16, #tpu.memory_space<vmem>>, vector<8x16xbf16>
    %c0_163 = arith.constant 0 : index
    %c0_164 = arith.constant 0 : index
    %251 = vector.load %arg2[%c0_163, %c0_164] : memref<16x96xbf16, #tpu.memory_space<vmem>>, vector<16x96xbf16>
    %cst_165 = arith.constant dense<0.000000e+00> : vector<8x96xf32>
    %252 = tpu.matmul %250, %251, %cst_165 {dimension_numbers = #tpu.dot_dimension_numbers<[1], [0], [0], [1], [0, 0, 1, 1], [], []>} : vector<8x16xbf16>, vector<16x96xbf16>, vector<8x96xf32> -> vector<8x96xf32>
    %253 = arith.truncf %252 : vector<8x96xf32> to vector<8x96xbf16>
    %254 = vector.extract_strided_slice %253 {offsets = [0, 0], sizes = [8, 32], strides = [1, 1]} : vector<8x96xbf16> to vector<8x32xbf16>
    %255 = tpu.concatenate %254, %254 in 1 : vector<8x32xbf16>, vector<8x32xbf16> -> vector<8x64xbf16>
    %c0_166 = arith.constant 0 : index
    %c0_167 = arith.constant 0 : index
    %c864 = arith.constant 864 : index
    %256 = vector.load %arg7[%c0_166, %c0_167, %c864] : memref<3x8x1088xbf16, #tpu.memory_space<vmem>>, vector<1x8x64xbf16>
    %257 = vector.shape_cast %256 : vector<1x8x64xbf16> to vector<8x64xbf16>
    %258 = vector.shape_cast %255 : vector<8x64xbf16> to vector<1x8x64xbf16>
    tpu.vector_store %arg7[%c0_166, %c0_167, %c864], %258 {strides = array<i32>} : memref<3x8x1088xbf16, #tpu.memory_space<vmem>>, vector<1x8x64xbf16>,
    %259 = vector.extract_strided_slice %253 {offsets = [0, 32], sizes = [8, 32], strides = [1, 1]} : vector<8x96xbf16> to vector<8x32xbf16>
    %260 = tpu.concatenate %259, %259 in 1 : vector<8x32xbf16>, vector<8x32xbf16> -> vector<8x64xbf16>
    %c1_168 = arith.constant 1 : index
    %c0_169 = arith.constant 0 : index
    %c864_170 = arith.constant 864 : index
    %261 = vector.load %arg7[%c1_168, %c0_169, %c864_170] : memref<3x8x1088xbf16, #tpu.memory_space<vmem>>, vector<1x8x64xbf16>
    %262 = vector.shape_cast %261 : vector<1x8x64xbf16> to vector<8x64xbf16>
    %263 = vector.shape_cast %260 : vector<8x64xbf16> to vector<1x8x64xbf16>
    tpu.vector_store %arg7[%c1_168, %c0_169, %c864_170], %263 {strides = array<i32>} : memref<3x8x1088xbf16, #tpu.memory_space<vmem>>, vector<1x8x64xbf16>,
    %264 = vector.extract_strided_slice %253 {offsets = [0, 64], sizes = [8, 32], strides = [1, 1]} : vector<8x96xbf16> to vector<8x32xbf16>
    %265 = tpu.concatenate %264, %264 in 1 : vector<8x32xbf16>, vector<8x32xbf16> -> vector<8x64xbf16>
    %c2_171 = arith.constant 2 : index
    %c0_172 = arith.constant 0 : index
    %c864_173 = arith.constant 864 : index
    %266 = vector.load %arg7[%c2_171, %c0_172, %c864_173] : memref<3x8x1088xbf16, #tpu.memory_space<vmem>>, vector<1x8x64xbf16>
    %267 = vector.shape_cast %266 : vector<1x8x64xbf16> to vector<8x64xbf16>
    %268 = vector.shape_cast %265 : vector<8x64xbf16> to vector<1x8x64xbf16>
    tpu.vector_store %arg7[%c2_171, %c0_172, %c864_173], %268 {strides = array<i32>} : memref<3x8x1088xbf16, #tpu.memory_space<vmem>>, vector<1x8x64xbf16>,
    %c0_174 = arith.constant 0 : index
    %c224_175 = arith.constant 224 : index
    %269 = vector.load %arg1[%c0_174, %c224_175] : memref<8x256xbf16, #tpu.memory_space<vmem>>, vector<8x16xbf16>
    %c0_176 = arith.constant 0 : index
    %c0_177 = arith.constant 0 : index
    %270 = vector.load %arg2[%c0_176, %c0_177] : memref<16x96xbf16, #tpu.memory_space<vmem>>, vector<16x96xbf16>
    %cst_178 = arith.constant dense<0.000000e+00> : vector<8x96xf32>
    %271 = tpu.matmul %269, %270, %cst_178 {dimension_numbers = #tpu.dot_dimension_numbers<[1], [0], [0], [1], [0, 0, 1, 1], [], []>} : vector<8x16xbf16>, vector<16x96xbf16>, vector<8x96xf32> -> vector<8x96xf32>
    %272 = arith.truncf %271 : vector<8x96xf32> to vector<8x96xbf16>
    %273 = vector.extract_strided_slice %272 {offsets = [0, 0], sizes = [8, 32], strides = [1, 1]} : vector<8x96xbf16> to vector<8x32xbf16>
    %274 = tpu.concatenate %273, %273 in 1 : vector<8x32xbf16>, vector<8x32xbf16> -> vector<8x64xbf16>
    %c0_179 = arith.constant 0 : index
    %c0_180 = arith.constant 0 : index
    %c928 = arith.constant 928 : index
    %275 = vector.load %arg7[%c0_179, %c0_180, %c928] : memref<3x8x1088xbf16, #tpu.memory_space<vmem>>, vector<1x8x64xbf16>
    %276 = vector.shape_cast %275 : vector<1x8x64xbf16> to vector<8x64xbf16>
    %277 = vector.shape_cast %274 : vector<8x64xbf16> to vector<1x8x64xbf16>
    tpu.vector_store %arg7[%c0_179, %c0_180, %c928], %277 {strides = array<i32>} : memref<3x8x1088xbf16, #tpu.memory_space<vmem>>, vector<1x8x64xbf16>,
    %278 = vector.extract_strided_slice %272 {offsets = [0, 32], sizes = [8, 32], strides = [1, 1]} : vector<8x96xbf16> to vector<8x32xbf16>
    %279 = tpu.concatenate %278, %278 in 1 : vector<8x32xbf16>, vector<8x32xbf16> -> vector<8x64xbf16>
    %c1_181 = arith.constant 1 : index
    %c0_182 = arith.constant 0 : index
    %c928_183 = arith.constant 928 : index
    %280 = vector.load %arg7[%c1_181, %c0_182, %c928_183] : memref<3x8x1088xbf16, #tpu.memory_space<vmem>>, vector<1x8x64xbf16>
    %281 = vector.shape_cast %280 : vector<1x8x64xbf16> to vector<8x64xbf16>
    %282 = vector.shape_cast %279 : vector<8x64xbf16> to vector<1x8x64xbf16>
    tpu.vector_store %arg7[%c1_181, %c0_182, %c928_183], %282 {strides = array<i32>} : memref<3x8x1088xbf16, #tpu.memory_space<vmem>>, vector<1x8x64xbf16>,
    %283 = vector.extract_strided_slice %272 {offsets = [0, 64], sizes = [8, 32], strides = [1, 1]} : vector<8x96xbf16> to vector<8x32xbf16>
    %284 = tpu.concatenate %283, %283 in 1 : vector<8x32xbf16>, vector<8x32xbf16> -> vector<8x64xbf16>
    %c2_184 = arith.constant 2 : index
    %c0_185 = arith.constant 0 : index
    %c928_186 = arith.constant 928 : index
    %285 = vector.load %arg7[%c2_184, %c0_185, %c928_186] : memref<3x8x1088xbf16, #tpu.memory_space<vmem>>, vector<1x8x64xbf16>
    %286 = vector.shape_cast %285 : vector<1x8x64xbf16> to vector<8x64xbf16>
    %287 = vector.shape_cast %284 : vector<8x64xbf16> to vector<1x8x64xbf16>
    tpu.vector_store %arg7[%c2_184, %c0_185, %c928_186], %287 {strides = array<i32>} : memref<3x8x1088xbf16, #tpu.memory_space<vmem>>, vector<1x8x64xbf16>,
    %c0_187 = arith.constant 0 : index
    %c240 = arith.constant 240 : index
    %288 = vector.load %arg1[%c0_187, %c240] : memref<8x256xbf16, #tpu.memory_space<vmem>>, vector<8x16xbf16>
    %c0_188 = arith.constant 0 : index
    %c0_189 = arith.constant 0 : index
    %289 = vector.load %arg2[%c0_188, %c0_189] : memref<16x96xbf16, #tpu.memory_space<vmem>>, vector<16x96xbf16>
    %cst_190 = arith.constant dense<0.000000e+00> : vector<8x96xf32>
    %290 = tpu.matmul %288, %289, %cst_190 {dimension_numbers = #tpu.dot_dimension_numbers<[1], [0], [0], [1], [0, 0, 1, 1], [], []>} : vector<8x16xbf16>, vector<16x96xbf16>, vector<8x96xf32> -> vector<8x96xf32>
    %291 = arith.truncf %290 : vector<8x96xf32> to vector<8x96xbf16>
    %292 = vector.extract_strided_slice %291 {offsets = [0, 0], sizes = [8, 32], strides = [1, 1]} : vector<8x96xbf16> to vector<8x32xbf16>
    %293 = tpu.concatenate %292, %292 in 1 : vector<8x32xbf16>, vector<8x32xbf16> -> vector<8x64xbf16>
    %c0_191 = arith.constant 0 : index
    %c0_192 = arith.constant 0 : index
    %c992 = arith.constant 992 : index
    %294 = vector.load %arg7[%c0_191, %c0_192, %c992] : memref<3x8x1088xbf16, #tpu.memory_space<vmem>>, vector<1x8x64xbf16>
    %295 = vector.shape_cast %294 : vector<1x8x64xbf16> to vector<8x64xbf16>
    %296 = vector.shape_cast %293 : vector<8x64xbf16> to vector<1x8x64xbf16>
    tpu.vector_store %arg7[%c0_191, %c0_192, %c992], %296 {strides = array<i32>} : memref<3x8x1088xbf16, #tpu.memory_space<vmem>>, vector<1x8x64xbf16>,
    %297 = vector.extract_strided_slice %291 {offsets = [0, 32], sizes = [8, 32], strides = [1, 1]} : vector<8x96xbf16> to vector<8x32xbf16>
    %298 = tpu.concatenate %297, %297 in 1 : vector<8x32xbf16>, vector<8x32xbf16> -> vector<8x64xbf16>
    %c1_193 = arith.constant 1 : index
    %c0_194 = arith.constant 0 : index
    %c992_195 = arith.constant 992 : index
    %299 = vector.load %arg7[%c1_193, %c0_194, %c992_195] : memref<3x8x1088xbf16, #tpu.memory_space<vmem>>, vector<1x8x64xbf16>
    %300 = vector.shape_cast %299 : vector<1x8x64xbf16> to vector<8x64xbf16>
    %301 = vector.shape_cast %298 : vector<8x64xbf16> to vector<1x8x64xbf16>
    tpu.vector_store %arg7[%c1_193, %c0_194, %c992_195], %301 {strides = array<i32>} : memref<3x8x1088xbf16, #tpu.memory_space<vmem>>, vector<1x8x64xbf16>,
    %302 = vector.extract_strided_slice %291 {offsets = [0, 64], sizes = [8, 32], strides = [1, 1]} : vector<8x96xbf16> to vector<8x32xbf16>
    %303 = tpu.concatenate %302, %302 in 1 : vector<8x32xbf16>, vector<8x32xbf16> -> vector<8x64xbf16>
    %c2_196 = arith.constant 2 : index
    %c0_197 = arith.constant 0 : index
    %c992_198 = arith.constant 992 : index
    %304 = vector.load %arg7[%c2_196, %c0_197, %c992_198] : memref<3x8x1088xbf16, #tpu.memory_space<vmem>>, vector<1x8x64xbf16>
    %305 = vector.shape_cast %304 : vector<1x8x64xbf16> to vector<8x64xbf16>
    %306 = vector.shape_cast %303 : vector<8x64xbf16> to vector<1x8x64xbf16>
    tpu.vector_store %arg7[%c2_196, %c0_197, %c992_198], %306 {strides = array<i32>} : memref<3x8x1088xbf16, #tpu.memory_space<vmem>>, vector<1x8x64xbf16>,
    %cst_199 = arith.constant 0.000000e+00 : f32
    %307 = vector.broadcast %cst_199 : f32 to vector<8x1xf32>
    %cst_200 = arith.constant 0.000000e+00 : f32
    %308 = vector.broadcast %cst_200 : f32 to vector<8x1xf32>
    %cst_201 = arith.constant 0.000000e+00 : f32
    %309 = vector.broadcast %cst_201 : f32 to vector<8x1024xf32>
    %c0_202 = arith.constant 0 : index
    %c0_203 = arith.constant 0 : index
    %c0_204 = arith.constant 0 : index
    %310 = vector.load %arg7[%c0_202, %c0_203, %c0_204] : memref<3x8x1088xbf16, #tpu.memory_space<vmem>>, vector<1x4x1024xbf16>
    %311 = vector.shape_cast %310 : vector<1x4x1024xbf16> to vector<4x1024xbf16>
    %c0_205 = arith.constant 0 : index
    %c0_206 = arith.constant 0 : index
    %c0_207 = arith.constant 0 : index
    %c0_208 = arith.constant 0 : index
    %312 = vector.load %arg3[%c0_205, %c0_206, %c0_207, %c0_208] : memref<3x3x8x4xbf16, #tpu.memory_space<vmem>>, vector<1x1x8x4xbf16>
    %313 = vector.shape_cast %312 : vector<1x1x8x4xbf16> to vector<8x4xbf16>
    %cst_209 = arith.constant dense<0.000000e+00> : vector<8x1024xf32>
    %314 = tpu.matmul %313, %311, %cst_209 {dimension_numbers = #tpu.dot_dimension_numbers<[1], [0], [0], [1], [0, 0, 1, 1], [], []>} : vector<8x4xbf16>, vector<4x1024xbf16>, vector<8x1024xf32> -> vector<8x1024xf32>
    %315 = arith.addf %309, %314 : vector<8x1024xf32>
    %c1_210 = arith.constant 1 : index
    %c0_211 = arith.constant 0 : index
    %c0_212 = arith.constant 0 : index
    %316 = vector.load %arg7[%c1_210, %c0_211, %c0_212] : memref<3x8x1088xbf16, #tpu.memory_space<vmem>>, vector<1x4x1024xbf16>
    %317 = vector.shape_cast %316 : vector<1x4x1024xbf16> to vector<4x1024xbf16>
    %c0_213 = arith.constant 0 : index
    %c1_214 = arith.constant 1 : index
    %c0_215 = arith.constant 0 : index
    %c0_216 = arith.constant 0 : index
    %318 = vector.load %arg3[%c0_213, %c1_214, %c0_215, %c0_216] : memref<3x3x8x4xbf16, #tpu.memory_space<vmem>>, vector<1x1x8x4xbf16>
    %319 = vector.shape_cast %318 : vector<1x1x8x4xbf16> to vector<8x4xbf16>
    %cst_217 = arith.constant dense<0.000000e+00> : vector<8x1024xf32>
    %320 = tpu.matmul %319, %317, %cst_217 {dimension_numbers = #tpu.dot_dimension_numbers<[1], [0], [0], [1], [0, 0, 1, 1], [], []>} : vector<8x4xbf16>, vector<4x1024xbf16>, vector<8x1024xf32> -> vector<8x1024xf32>
    %321 = arith.addf %315, %320 : vector<8x1024xf32>
    %c2_218 = arith.constant 2 : index
    %c0_219 = arith.constant 0 : index
    %c0_220 = arith.constant 0 : index
    %322 = vector.load %arg7[%c2_218, %c0_219, %c0_220] : memref<3x8x1088xbf16, #tpu.memory_space<vmem>>, vector<1x4x1024xbf16>
    %323 = vector.shape_cast %322 : vector<1x4x1024xbf16> to vector<4x1024xbf16>
    %c0_221 = arith.constant 0 : index
    %c2_222 = arith.constant 2 : index
    %c0_223 = arith.constant 0 : index
    %c0_224 = arith.constant 0 : index
    %324 = vector.load %arg3[%c0_221, %c2_222, %c0_223, %c0_224] : memref<3x3x8x4xbf16, #tpu.memory_space<vmem>>, vector<1x1x8x4xbf16>
    %325 = vector.shape_cast %324 : vector<1x1x8x4xbf16> to vector<8x4xbf16>
    %cst_225 = arith.constant dense<0.000000e+00> : vector<8x1024xf32>
    %326 = tpu.matmul %325, %323, %cst_225 {dimension_numbers = #tpu.dot_dimension_numbers<[1], [0], [0], [1], [0, 0, 1, 1], [], []>} : vector<8x4xbf16>, vector<4x1024xbf16>, vector<8x1024xf32> -> vector<8x1024xf32>
    %327 = arith.addf %321, %326 : vector<8x1024xf32>
    %c0_226 = arith.constant 0 : index
    %c0_227 = arith.constant 0 : index
    %c32_228 = arith.constant 32 : index
    %328 = vector.load %arg7[%c0_226, %c0_227, %c32_228] : memref<3x8x1088xbf16, #tpu.memory_space<vmem>>, vector<1x4x1024xbf16>
    %329 = vector.shape_cast %328 : vector<1x4x1024xbf16> to vector<4x1024xbf16>
    %c1_229 = arith.constant 1 : index
    %c0_230 = arith.constant 0 : index
    %c0_231 = arith.constant 0 : index
    %c0_232 = arith.constant 0 : index
    %330 = vector.load %arg3[%c1_229, %c0_230, %c0_231, %c0_232] : memref<3x3x8x4xbf16, #tpu.memory_space<vmem>>, vector<1x1x8x4xbf16>
    %331 = vector.shape_cast %330 : vector<1x1x8x4xbf16> to vector<8x4xbf16>
    %cst_233 = arith.constant dense<0.000000e+00> : vector<8x1024xf32>
    %332 = tpu.matmul %331, %329, %cst_233 {dimension_numbers = #tpu.dot_dimension_numbers<[1], [0], [0], [1], [0, 0, 1, 1], [], []>} : vector<8x4xbf16>, vector<4x1024xbf16>, vector<8x1024xf32> -> vector<8x1024xf32>
    %333 = arith.addf %327, %332 : vector<8x1024xf32>
    %c1_234 = arith.constant 1 : index
    %c0_235 = arith.constant 0 : index
    %c32_236 = arith.constant 32 : index
    %334 = vector.load %arg7[%c1_234, %c0_235, %c32_236] : memref<3x8x1088xbf16, #tpu.memory_space<vmem>>, vector<1x4x1024xbf16>
    %335 = vector.shape_cast %334 : vector<1x4x1024xbf16> to vector<4x1024xbf16>
    %c1_237 = arith.constant 1 : index
    %c1_238 = arith.constant 1 : index
    %c0_239 = arith.constant 0 : index
    %c0_240 = arith.constant 0 : index
    %336 = vector.load %arg3[%c1_237, %c1_238, %c0_239, %c0_240] : memref<3x3x8x4xbf16, #tpu.memory_space<vmem>>, vector<1x1x8x4xbf16>
    %337 = vector.shape_cast %336 : vector<1x1x8x4xbf16> to vector<8x4xbf16>
    %cst_241 = arith.constant dense<0.000000e+00> : vector<8x1024xf32>
    %338 = tpu.matmul %337, %335, %cst_241 {dimension_numbers = #tpu.dot_dimension_numbers<[1], [0], [0], [1], [0, 0, 1, 1], [], []>} : vector<8x4xbf16>, vector<4x1024xbf16>, vector<8x1024xf32> -> vector<8x1024xf32>
    %339 = arith.addf %333, %338 : vector<8x1024xf32>
    %c2_242 = arith.constant 2 : index
    %c0_243 = arith.constant 0 : index
    %c32_244 = arith.constant 32 : index
    %340 = vector.load %arg7[%c2_242, %c0_243, %c32_244] : memref<3x8x1088xbf16, #tpu.memory_space<vmem>>, vector<1x4x1024xbf16>
    %341 = vector.shape_cast %340 : vector<1x4x1024xbf16> to vector<4x1024xbf16>
    %c1_245 = arith.constant 1 : index
    %c2_246 = arith.constant 2 : index
    %c0_247 = arith.constant 0 : index
    %c0_248 = arith.constant 0 : index
    %342 = vector.load %arg3[%c1_245, %c2_246, %c0_247, %c0_248] : memref<3x3x8x4xbf16, #tpu.memory_space<vmem>>, vector<1x1x8x4xbf16>
    %343 = vector.shape_cast %342 : vector<1x1x8x4xbf16> to vector<8x4xbf16>
    %cst_249 = arith.constant dense<0.000000e+00> : vector<8x1024xf32>
    %344 = tpu.matmul %343, %341, %cst_249 {dimension_numbers = #tpu.dot_dimension_numbers<[1], [0], [0], [1], [0, 0, 1, 1], [], []>} : vector<8x4xbf16>, vector<4x1024xbf16>, vector<8x1024xf32> -> vector<8x1024xf32>
    %345 = arith.addf %339, %344 : vector<8x1024xf32>
    %c0_250 = arith.constant 0 : index
    %c0_251 = arith.constant 0 : index
    %c64_252 = arith.constant 64 : index
    %346 = vector.load %arg7[%c0_250, %c0_251, %c64_252] : memref<3x8x1088xbf16, #tpu.memory_space<vmem>>, vector<1x4x1024xbf16>
    %347 = vector.shape_cast %346 : vector<1x4x1024xbf16> to vector<4x1024xbf16>
    %c2_253 = arith.constant 2 : index
    %c0_254 = arith.constant 0 : index
    %c0_255 = arith.constant 0 : index
    %c0_256 = arith.constant 0 : index
    %348 = vector.load %arg3[%c2_253, %c0_254, %c0_255, %c0_256] : memref<3x3x8x4xbf16, #tpu.memory_space<vmem>>, vector<1x1x8x4xbf16>
    %349 = vector.shape_cast %348 : vector<1x1x8x4xbf16> to vector<8x4xbf16>
    %cst_257 = arith.constant dense<0.000000e+00> : vector<8x1024xf32>
    %350 = tpu.matmul %349, %347, %cst_257 {dimension_numbers = #tpu.dot_dimension_numbers<[1], [0], [0], [1], [0, 0, 1, 1], [], []>} : vector<8x4xbf16>, vector<4x1024xbf16>, vector<8x1024xf32> -> vector<8x1024xf32>
    %351 = arith.addf %345, %350 : vector<8x1024xf32>
    %c1_258 = arith.constant 1 : index
    %c0_259 = arith.constant 0 : index
    %c64_260 = arith.constant 64 : index
    %352 = vector.load %arg7[%c1_258, %c0_259, %c64_260] : memref<3x8x1088xbf16, #tpu.memory_space<vmem>>, vector<1x4x1024xbf16>
    %353 = vector.shape_cast %352 : vector<1x4x1024xbf16> to vector<4x1024xbf16>
    %c2_261 = arith.constant 2 : index
    %c1_262 = arith.constant 1 : index
    %c0_263 = arith.constant 0 : index
    %c0_264 = arith.constant 0 : index
    %354 = vector.load %arg3[%c2_261, %c1_262, %c0_263, %c0_264] : memref<3x3x8x4xbf16, #tpu.memory_space<vmem>>, vector<1x1x8x4xbf16>
    %355 = vector.shape_cast %354 : vector<1x1x8x4xbf16> to vector<8x4xbf16>
    %cst_265 = arith.constant dense<0.000000e+00> : vector<8x1024xf32>
    %356 = tpu.matmul %355, %353, %cst_265 {dimension_numbers = #tpu.dot_dimension_numbers<[1], [0], [0], [1], [0, 0, 1, 1], [], []>} : vector<8x4xbf16>, vector<4x1024xbf16>, vector<8x1024xf32> -> vector<8x1024xf32>
    %357 = arith.addf %351, %356 : vector<8x1024xf32>
    %c2_266 = arith.constant 2 : index
    %c0_267 = arith.constant 0 : index
    %c64_268 = arith.constant 64 : index
    %358 = vector.load %arg7[%c2_266, %c0_267, %c64_268] : memref<3x8x1088xbf16, #tpu.memory_space<vmem>>, vector<1x4x1024xbf16>
    %359 = vector.shape_cast %358 : vector<1x4x1024xbf16> to vector<4x1024xbf16>
    %c2_269 = arith.constant 2 : index
    %c2_270 = arith.constant 2 : index
    %c0_271 = arith.constant 0 : index
    %c0_272 = arith.constant 0 : index
    %360 = vector.load %arg3[%c2_269, %c2_270, %c0_271, %c0_272] : memref<3x3x8x4xbf16, #tpu.memory_space<vmem>>, vector<1x1x8x4xbf16>
    %361 = vector.shape_cast %360 : vector<1x1x8x4xbf16> to vector<8x4xbf16>
    %cst_273 = arith.constant dense<0.000000e+00> : vector<8x1024xf32>
    %362 = tpu.matmul %361, %359, %cst_273 {dimension_numbers = #tpu.dot_dimension_numbers<[1], [0], [0], [1], [0, 0, 1, 1], [], []>} : vector<8x4xbf16>, vector<4x1024xbf16>, vector<8x1024xf32> -> vector<8x1024xf32>
    %363 = arith.addf %357, %362 : vector<8x1024xf32>
    %c0_274 = arith.constant 0 : index
    %c0_275 = arith.constant 0 : index
    %c0_276 = arith.constant 0 : index
    %364 = vector.load %arg6[%c0_274, %c0_275, %c0_276] : memref<2x8x1024xf32, #tpu.memory_space<vmem>>, vector<1x8x1024xf32>
    %365 = vector.shape_cast %364 : vector<1x8x1024xf32> to vector<8x1024xf32>
    %366 = vector.shape_cast %363 : vector<8x1024xf32> to vector<1x8x1024xf32>
    tpu.vector_store %arg6[%c0_274, %c0_275, %c0_276], %366 {strides = array<i32>} : memref<2x8x1024xf32, #tpu.memory_space<vmem>>, vector<1x8x1024xf32>,
    %cst_277 = arith.constant dense<0.000000e+00> : vector<8xf32>
    %367 = vector.multi_reduction <add>, %363, %cst_277 [1] : vector<8x1024xf32> to vector<8xf32>
    %368 = vector.shape_cast %367 : vector<8xf32> to vector<8x1xf32>
    %369 = arith.addf %307, %368 : vector<8x1xf32>
    %370 = arith.mulf %363, %363 : vector<8x1024xf32>
    %cst_278 = arith.constant dense<0.000000e+00> : vector<8xf32>
    %371 = vector.multi_reduction <add>, %370, %cst_278 [1] : vector<8x1024xf32> to vector<8xf32>
    %372 = vector.shape_cast %371 : vector<8xf32> to vector<8x1xf32>
    %373 = arith.addf %308, %372 : vector<8x1xf32>
    %cst_279 = arith.constant 0.000000e+00 : f32
    %374 = vector.broadcast %cst_279 : f32 to vector<8x1024xf32>
    %c0_280 = arith.constant 0 : index
    %c4 = arith.constant 4 : index
    %c0_281 = arith.constant 0 : index
    %375 = vector.load %arg7[%c0_280, %c4, %c0_281] : memref<3x8x1088xbf16, #tpu.memory_space<vmem>>, vector<1x4x1024xbf16>
    %376 = vector.shape_cast %375 : vector<1x4x1024xbf16> to vector<4x1024xbf16>
    %c0_282 = arith.constant 0 : index
    %c0_283 = arith.constant 0 : index
    %c0_284 = arith.constant 0 : index
    %c0_285 = arith.constant 0 : index
    %377 = vector.load %arg3[%c0_282, %c0_283, %c0_284, %c0_285] : memref<3x3x8x4xbf16, #tpu.memory_space<vmem>>, vector<1x1x8x4xbf16>
    %378 = vector.shape_cast %377 : vector<1x1x8x4xbf16> to vector<8x4xbf16>
    %cst_286 = arith.constant dense<0.000000e+00> : vector<8x1024xf32>
    %379 = tpu.matmul %378, %376, %cst_286 {dimension_numbers = #tpu.dot_dimension_numbers<[1], [0], [0], [1], [0, 0, 1, 1], [], []>} : vector<8x4xbf16>, vector<4x1024xbf16>, vector<8x1024xf32> -> vector<8x1024xf32>
    %380 = arith.addf %374, %379 : vector<8x1024xf32>
    %c1_287 = arith.constant 1 : index
    %c4_288 = arith.constant 4 : index
    %c0_289 = arith.constant 0 : index
    %381 = vector.load %arg7[%c1_287, %c4_288, %c0_289] : memref<3x8x1088xbf16, #tpu.memory_space<vmem>>, vector<1x4x1024xbf16>
    %382 = vector.shape_cast %381 : vector<1x4x1024xbf16> to vector<4x1024xbf16>
    %c0_290 = arith.constant 0 : index
    %c1_291 = arith.constant 1 : index
    %c0_292 = arith.constant 0 : index
    %c0_293 = arith.constant 0 : index
    %383 = vector.load %arg3[%c0_290, %c1_291, %c0_292, %c0_293] : memref<3x3x8x4xbf16, #tpu.memory_space<vmem>>, vector<1x1x8x4xbf16>
    %384 = vector.shape_cast %383 : vector<1x1x8x4xbf16> to vector<8x4xbf16>
    %cst_294 = arith.constant dense<0.000000e+00> : vector<8x1024xf32>
    %385 = tpu.matmul %384, %382, %cst_294 {dimension_numbers = #tpu.dot_dimension_numbers<[1], [0], [0], [1], [0, 0, 1, 1], [], []>} : vector<8x4xbf16>, vector<4x1024xbf16>, vector<8x1024xf32> -> vector<8x1024xf32>
    %386 = arith.addf %380, %385 : vector<8x1024xf32>
    %c2_295 = arith.constant 2 : index
    %c4_296 = arith.constant 4 : index
    %c0_297 = arith.constant 0 : index
    %387 = vector.load %arg7[%c2_295, %c4_296, %c0_297] : memref<3x8x1088xbf16, #tpu.memory_space<vmem>>, vector<1x4x1024xbf16>
    %388 = vector.shape_cast %387 : vector<1x4x1024xbf16> to vector<4x1024xbf16>
    %c0_298 = arith.constant 0 : index
    %c2_299 = arith.constant 2 : index
    %c0_300 = arith.constant 0 : index
    %c0_301 = arith.constant 0 : index
    %389 = vector.load %arg3[%c0_298, %c2_299, %c0_300, %c0_301] : memref<3x3x8x4xbf16, #tpu.memory_space<vmem>>, vector<1x1x8x4xbf16>
    %390 = vector.shape_cast %389 : vector<1x1x8x4xbf16> to vector<8x4xbf16>
    %cst_302 = arith.constant dense<0.000000e+00> : vector<8x1024xf32>
    %391 = tpu.matmul %390, %388, %cst_302 {dimension_numbers = #tpu.dot_dimension_numbers<[1], [0], [0], [1], [0, 0, 1, 1], [], []>} : vector<8x4xbf16>, vector<4x1024xbf16>, vector<8x1024xf32> -> vector<8x1024xf32>
    %392 = arith.addf %386, %391 : vector<8x1024xf32>
    %c0_303 = arith.constant 0 : index
    %c4_304 = arith.constant 4 : index
    %c32_305 = arith.constant 32 : index
    %393 = vector.load %arg7[%c0_303, %c4_304, %c32_305] : memref<3x8x1088xbf16, #tpu.memory_space<vmem>>, vector<1x4x1024xbf16>
    %394 = vector.shape_cast %393 : vector<1x4x1024xbf16> to vector<4x1024xbf16>
    %c1_306 = arith.constant 1 : index
    %c0_307 = arith.constant 0 : index
    %c0_308 = arith.constant 0 : index
    %c0_309 = arith.constant 0 : index
    %395 = vector.load %arg3[%c1_306, %c0_307, %c0_308, %c0_309] : memref<3x3x8x4xbf16, #tpu.memory_space<vmem>>, vector<1x1x8x4xbf16>
    %396 = vector.shape_cast %395 : vector<1x1x8x4xbf16> to vector<8x4xbf16>
    %cst_310 = arith.constant dense<0.000000e+00> : vector<8x1024xf32>
    %397 = tpu.matmul %396, %394, %cst_310 {dimension_numbers = #tpu.dot_dimension_numbers<[1], [0], [0], [1], [0, 0, 1, 1], [], []>} : vector<8x4xbf16>, vector<4x1024xbf16>, vector<8x1024xf32> -> vector<8x1024xf32>
    %398 = arith.addf %392, %397 : vector<8x1024xf32>
    %c1_311 = arith.constant 1 : index
    %c4_312 = arith.constant 4 : index
    %c32_313 = arith.constant 32 : index
    %399 = vector.load %arg7[%c1_311, %c4_312, %c32_313] : memref<3x8x1088xbf16, #tpu.memory_space<vmem>>, vector<1x4x1024xbf16>
    %400 = vector.shape_cast %399 : vector<1x4x1024xbf16> to vector<4x1024xbf16>
    %c1_314 = arith.constant 1 : index
    %c1_315 = arith.constant 1 : index
    %c0_316 = arith.constant 0 : index
    %c0_317 = arith.constant 0 : index
    %401 = vector.load %arg3[%c1_314, %c1_315, %c0_316, %c0_317] : memref<3x3x8x4xbf16, #tpu.memory_space<vmem>>, vector<1x1x8x4xbf16>
    %402 = vector.shape_cast %401 : vector<1x1x8x4xbf16> to vector<8x4xbf16>
    %cst_318 = arith.constant dense<0.000000e+00> : vector<8x1024xf32>
    %403 = tpu.matmul %402, %400, %cst_318 {dimension_numbers = #tpu.dot_dimension_numbers<[1], [0], [0], [1], [0, 0, 1, 1], [], []>} : vector<8x4xbf16>, vector<4x1024xbf16>, vector<8x1024xf32> -> vector<8x1024xf32>
    %404 = arith.addf %398, %403 : vector<8x1024xf32>
    %c2_319 = arith.constant 2 : index
    %c4_320 = arith.constant 4 : index
    %c32_321 = arith.constant 32 : index
    %405 = vector.load %arg7[%c2_319, %c4_320, %c32_321] : memref<3x8x1088xbf16, #tpu.memory_space<vmem>>, vector<1x4x1024xbf16>
    %406 = vector.shape_cast %405 : vector<1x4x1024xbf16> to vector<4x1024xbf16>
    %c1_322 = arith.constant 1 : index
    %c2_323 = arith.constant 2 : index
    %c0_324 = arith.constant 0 : index
    %c0_325 = arith.constant 0 : index
    %407 = vector.load %arg3[%c1_322, %c2_323, %c0_324, %c0_325] : memref<3x3x8x4xbf16, #tpu.memory_space<vmem>>, vector<1x1x8x4xbf16>
    %408 = vector.shape_cast %407 : vector<1x1x8x4xbf16> to vector<8x4xbf16>
    %cst_326 = arith.constant dense<0.000000e+00> : vector<8x1024xf32>
    %409 = tpu.matmul %408, %406, %cst_326 {dimension_numbers = #tpu.dot_dimension_numbers<[1], [0], [0], [1], [0, 0, 1, 1], [], []>} : vector<8x4xbf16>, vector<4x1024xbf16>, vector<8x1024xf32> -> vector<8x1024xf32>
    %410 = arith.addf %404, %409 : vector<8x1024xf32>
    %c0_327 = arith.constant 0 : index
    %c4_328 = arith.constant 4 : index
    %c64_329 = arith.constant 64 : index
    %411 = vector.load %arg7[%c0_327, %c4_328, %c64_329] : memref<3x8x1088xbf16, #tpu.memory_space<vmem>>, vector<1x4x1024xbf16>
    %412 = vector.shape_cast %411 : vector<1x4x1024xbf16> to vector<4x1024xbf16>
    %c2_330 = arith.constant 2 : index
    %c0_331 = arith.constant 0 : index
    %c0_332 = arith.constant 0 : index
    %c0_333 = arith.constant 0 : index
    %413 = vector.load %arg3[%c2_330, %c0_331, %c0_332, %c0_333] : memref<3x3x8x4xbf16, #tpu.memory_space<vmem>>, vector<1x1x8x4xbf16>
    %414 = vector.shape_cast %413 : vector<1x1x8x4xbf16> to vector<8x4xbf16>
    %cst_334 = arith.constant dense<0.000000e+00> : vector<8x1024xf32>
    %415 = tpu.matmul %414, %412, %cst_334 {dimension_numbers = #tpu.dot_dimension_numbers<[1], [0], [0], [1], [0, 0, 1, 1], [], []>} : vector<8x4xbf16>, vector<4x1024xbf16>, vector<8x1024xf32> -> vector<8x1024xf32>
    %416 = arith.addf %410, %415 : vector<8x1024xf32>
    %c1_335 = arith.constant 1 : index
    %c4_336 = arith.constant 4 : index
    %c64_337 = arith.constant 64 : index
    %417 = vector.load %arg7[%c1_335, %c4_336, %c64_337] : memref<3x8x1088xbf16, #tpu.memory_space<vmem>>, vector<1x4x1024xbf16>
    %418 = vector.shape_cast %417 : vector<1x4x1024xbf16> to vector<4x1024xbf16>
    %c2_338 = arith.constant 2 : index
    %c1_339 = arith.constant 1 : index
    %c0_340 = arith.constant 0 : index
    %c0_341 = arith.constant 0 : index
    %419 = vector.load %arg3[%c2_338, %c1_339, %c0_340, %c0_341] : memref<3x3x8x4xbf16, #tpu.memory_space<vmem>>, vector<1x1x8x4xbf16>
    %420 = vector.shape_cast %419 : vector<1x1x8x4xbf16> to vector<8x4xbf16>
    %cst_342 = arith.constant dense<0.000000e+00> : vector<8x1024xf32>
    %421 = tpu.matmul %420, %418, %cst_342 {dimension_numbers = #tpu.dot_dimension_numbers<[1], [0], [0], [1], [0, 0, 1, 1], [], []>} : vector<8x4xbf16>, vector<4x1024xbf16>, vector<8x1024xf32> -> vector<8x1024xf32>
    %422 = arith.addf %416, %421 : vector<8x1024xf32>
    %c2_343 = arith.constant 2 : index
    %c4_344 = arith.constant 4 : index
    %c64_345 = arith.constant 64 : index
    %423 = vector.load %arg7[%c2_343, %c4_344, %c64_345] : memref<3x8x1088xbf16, #tpu.memory_space<vmem>>, vector<1x4x1024xbf16>
    %424 = vector.shape_cast %423 : vector<1x4x1024xbf16> to vector<4x1024xbf16>
    %c2_346 = arith.constant 2 : index
    %c2_347 = arith.constant 2 : index
    %c0_348 = arith.constant 0 : index
    %c0_349 = arith.constant 0 : index
    %425 = vector.load %arg3[%c2_346, %c2_347, %c0_348, %c0_349] : memref<3x3x8x4xbf16, #tpu.memory_space<vmem>>, vector<1x1x8x4xbf16>
    %426 = vector.shape_cast %425 : vector<1x1x8x4xbf16> to vector<8x4xbf16>
    %cst_350 = arith.constant dense<0.000000e+00> : vector<8x1024xf32>
    %427 = tpu.matmul %426, %424, %cst_350 {dimension_numbers = #tpu.dot_dimension_numbers<[1], [0], [0], [1], [0, 0, 1, 1], [], []>} : vector<8x4xbf16>, vector<4x1024xbf16>, vector<8x1024xf32> -> vector<8x1024xf32>
    %428 = arith.addf %422, %427 : vector<8x1024xf32>
    %c1_351 = arith.constant 1 : index
    %c0_352 = arith.constant 0 : index
    %c0_353 = arith.constant 0 : index
    %429 = vector.load %arg6[%c1_351, %c0_352, %c0_353] : memref<2x8x1024xf32, #tpu.memory_space<vmem>>, vector<1x8x1024xf32>
    %430 = vector.shape_cast %429 : vector<1x8x1024xf32> to vector<8x1024xf32>
    %431 = vector.shape_cast %428 : vector<8x1024xf32> to vector<1x8x1024xf32>
    tpu.vector_store %arg6[%c1_351, %c0_352, %c0_353], %431 {strides = array<i32>} : memref<2x8x1024xf32, #tpu.memory_space<vmem>>, vector<1x8x1024xf32>,
    %cst_354 = arith.constant dense<0.000000e+00> : vector<8xf32>
    %432 = vector.multi_reduction <add>, %428, %cst_354 [1] : vector<8x1024xf32> to vector<8xf32>
    %433 = vector.shape_cast %432 : vector<8xf32> to vector<8x1xf32>
    %434 = arith.addf %369, %433 : vector<8x1xf32>
    %435 = arith.mulf %428, %428 : vector<8x1024xf32>
    %cst_355 = arith.constant dense<0.000000e+00> : vector<8xf32>
    %436 = vector.multi_reduction <add>, %435, %cst_355 [1] : vector<8x1024xf32> to vector<8xf32>
    %437 = vector.shape_cast %436 : vector<8xf32> to vector<8x1xf32>
    %438 = arith.addf %373, %437 : vector<8x1xf32>
    %cst_356 = arith.constant 4.8828125E-4 : f32
    %439 = vector.broadcast %cst_356 : f32 to vector<8x1xf32>
    %440 = arith.mulf %434, %439 : vector<8x1xf32>
    %cst_357 = arith.constant 4.8828125E-4 : f32
    %441 = vector.broadcast %cst_357 : f32 to vector<8x1xf32>
    %442 = arith.mulf %438, %441 : vector<8x1xf32>
    %443 = arith.mulf %440, %440 : vector<8x1xf32>
    %444 = arith.subf %442, %443 : vector<8x1xf32>
    %c0_358 = arith.constant 0 : index
    %c0_359 = arith.constant 0 : index
    %445 = vector.load %arg4[%c0_358, %c0_359] : memref<8x1xf32, #tpu.memory_space<vmem>>, vector<8x1xf32>
    %cst_360 = arith.constant 8.000000e-01 : f32
    %446 = vector.broadcast %cst_360 : f32 to vector<8x1xf32>
    %447 = arith.addf %444, %446 : vector<8x1xf32>
    %448 = math.rsqrt %447 : vector<8x1xf32>
    %449 = arith.mulf %445, %448 : vector<8x1xf32>
    %c0_361 = arith.constant 0 : index
    %c0_362 = arith.constant 0 : index
    %450 = vector.load %arg5[%c0_361, %c0_362] : memref<8x1xf32, #tpu.memory_space<vmem>>, vector<8x1xf32>
    %451 = arith.mulf %440, %449 : vector<8x1xf32>
    %452 = arith.subf %450, %451 : vector<8x1xf32>
    %c0_363 = arith.constant 0 : index
    %c0_364 = arith.constant 0 : index
    %c0_365 = arith.constant 0 : index
    %453 = vector.load %arg6[%c0_363, %c0_364, %c0_365] : memref<2x8x1024xf32, #tpu.memory_space<vmem>>, vector<1x8x1024xf32>
    %454 = vector.shape_cast %453 : vector<1x8x1024xf32> to vector<8x1024xf32>
    %455 = vector.broadcast %449 : vector<8x1xf32> to vector<8x1024xf32>
    %456 = arith.mulf %454, %455 : vector<8x1024xf32>
    %457 = vector.broadcast %452 : vector<8x1xf32> to vector<8x1024xf32>
    %458 = arith.addf %456, %457 : vector<8x1024xf32>
    %cst_366 = arith.constant 0.000000e+00 : f32
    %459 = vector.broadcast %cst_366 : f32 to vector<8x1024xf32>
    %460 = arith.maximumf %458, %459 : vector<8x1024xf32>
    %c0_367 = arith.constant 0 : index
    %c0_368 = arith.constant 0 : index
    %c0_369 = arith.constant 0 : index
    %461 = vector.load %arg6[%c0_367, %c0_368, %c0_369] : memref<2x8x1024xf32, #tpu.memory_space<vmem>>, vector<1x8x1024xf32>
    %462 = vector.shape_cast %461 : vector<1x8x1024xf32> to vector<8x1024xf32>
    %463 = vector.shape_cast %460 : vector<8x1024xf32> to vector<1x8x1024xf32>
    tpu.vector_store %arg6[%c0_367, %c0_368, %c0_369], %463 {strides = array<i32>} : memref<2x8x1024xf32, #tpu.memory_space<vmem>>, vector<1x8x1024xf32>,
    %c1_370 = arith.constant 1 : index
    %c0_371 = arith.constant 0 : index
    %c0_372 = arith.constant 0 : index
    %464 = vector.load %arg6[%c1_370, %c0_371, %c0_372] : memref<2x8x1024xf32, #tpu.memory_space<vmem>>, vector<1x8x1024xf32>
    %465 = vector.shape_cast %464 : vector<1x8x1024xf32> to vector<8x1024xf32>
    %466 = vector.broadcast %449 : vector<8x1xf32> to vector<8x1024xf32>
    %467 = arith.mulf %465, %466 : vector<8x1024xf32>
    %468 = vector.broadcast %452 : vector<8x1xf32> to vector<8x1024xf32>
    %469 = arith.addf %467, %468 : vector<8x1024xf32>
    %cst_373 = arith.constant 0.000000e+00 : f32
    %470 = vector.broadcast %cst_373 : f32 to vector<8x1024xf32>
    %471 = arith.maximumf %469, %470 : vector<8x1024xf32>
    %c1_374 = arith.constant 1 : index
    %c0_375 = arith.constant 0 : index
    %c0_376 = arith.constant 0 : index
    %472 = vector.load %arg6[%c1_374, %c0_375, %c0_376] : memref<2x8x1024xf32, #tpu.memory_space<vmem>>, vector<1x8x1024xf32>
    %473 = vector.shape_cast %472 : vector<1x8x1024xf32> to vector<8x1024xf32>
    %474 = vector.shape_cast %471 : vector<8x1024xf32> to vector<1x8x1024xf32>
    tpu.vector_store %arg6[%c1_374, %c0_375, %c0_376], %474 {strides = array<i32>} : memref<2x8x1024xf32, #tpu.memory_space<vmem>>, vector<1x8x1024xf32>,
    return
  }
  func.func @transform_0(%arg0: i32) -> (i32, i32) {
    %c0_i32 = arith.constant 0 : i32
    %c0_i32_0 = arith.constant 0 : i32
    %c0_i32_1 = arith.constant 0 : i32
    return %c0_i32, %c0_i32_0 : i32, i32
  }
  func.func @transform_1(%arg0: i32) -> (i32, i32) {
    %c0_i32 = arith.constant 0 : i32
    %c0_i32_0 = arith.constant 0 : i32
    %c0_i32_1 = arith.constant 0 : i32
    return %c0_i32, %c0_i32_0 : i32, i32
  }
  func.func @transform_2(%arg0: i32) -> (i32, i32, i32, i32) {
    %c0_i32 = arith.constant 0 : i32
    %c0_i32_0 = arith.constant 0 : i32
    %c0_i32_1 = arith.constant 0 : i32
    %c0_i32_2 = arith.constant 0 : i32
    return %c0_i32, %c0_i32_0, %arg0, %c0_i32_1 : i32, i32, i32, i32
  }
  func.func @transform_3(%arg0: i32) -> (i32, i32) {
    %c0_i32 = arith.constant 0 : i32
    %c0_i32_0 = arith.constant 0 : i32
    return %arg0, %c0_i32 : i32, i32
  }
  func.func @transform_4(%arg0: i32) -> (i32, i32) {
    %c0_i32 = arith.constant 0 : i32
    %c0_i32_0 = arith.constant 0 : i32
    return %arg0, %c0_i32 : i32, i32
  }
  func.func @transform_5(%arg0: i32) -> (i32, i32, i32) {
    %c0_i32 = arith.constant 0 : i32
    %c0_i32_0 = arith.constant 0 : i32
    %c0_i32_1 = arith.constant 0 : i32
    return %c0_i32, %arg0, %c0_i32_0 : i32, i32, i32
  }
}

</mosaic_0001>

<llo_original>
// kernel: unet_up.1
$region0: #{unet_up.1}
  #allocation0 [shape = 'u32[]', space=smem, size = 0x4, offset = 0x4, fixed_abs, tag = 'smem constant byte address 0x4 - core index']
  #allocation1 [shape = 'u32[144,128]{1,0:T(1,128)}', space=vmem, size = 0x12000, scoped, tag = 'internal scratch']
  #allocation2 [shape = 'bf16[3,8,1088]{2,1,0:T(8,128)(2,1)}', space=vmem, size = 0xd800, scoped, tag = 'scratch operand']
  %s0 = inlined_call_operand.vmem [shape: bf16[8,256], index: 0, kind: input, shape index: {}]
  %s1 = inlined_call_operand.vmem [shape: bf16[16,96], index: 1, kind: input, shape index: {}]
  %s2 = inlined_call_operand.vmem [shape: bf16[3,3,8,4], index: 2, kind: input, shape index: {}]
  %s3 = inlined_call_operand.vmem [shape: f32[8,1], index: 3, kind: input, shape index: {}]
  %s4 = inlined_call_operand.vmem [shape: f32[8,1], index: 4, kind: input, shape index: {}]
  %s5 = inlined_call_operand.vmem [shape: f32[2,8,1024], index: 5, kind: output, shape index: {}]
  %s6 = sld [smem:[#allocation0]]
  $region30: #{unet_up.1} parent=0
    _
  %s8 = ssub.s32 1, %s6
  %s9 = scalar_select 0, %s8, %s6
  // Predicated region
  $region2: #{unet_up.1} parent=0 // pred_check
    _
  $region3: #{unet_up.1} parent=0 // pred_check_branch
    %11 = sbr.rel (0) target = $region5
  $region4: #{unet_up.1} parent=0 // pred_region
    _
  $region5: #{unet_up.1} parent=0 // pred_fallthru
    _
  // Predicated region
  $region6: #{unet_up.1} parent=0 // pred_check
    _
  $region7: #{unet_up.1} parent=0 // pred_check_branch
    %13 = sbr.rel (0) target = $region9
  $region8: #{unet_up.1} parent=0 // pred_region
    _
  $region9: #{unet_up.1} parent=0 // pred_fallthru
    _
  // Predicated region
  $region10: #{unet_up.1} parent=0 // pred_check
    _
  $region11: #{unet_up.1} parent=0 // pred_check_branch
    %15 = sbr.rel (0) target = $region13
  $region12: #{unet_up.1} parent=0 // pred_region
    _
  $region13: #{unet_up.1} parent=0 // pred_fallthru
    _
  // Predicated region
  $region14: #{unet_up.1} parent=0 // pred_check
    _
  $region15: #{unet_up.1} parent=0 // pred_check_branch
    %17 = sbr.rel (0) target = $region17
  $region16: #{unet_up.1} parent=0 // pred_region
    _
  $region17: #{unet_up.1} parent=0 // pred_fallthru
    _
  // Predicated region
  $region18: #{unet_up.1} parent=0 // pred_check
    _
  $region19: #{unet_up.1} parent=0 // pred_check_branch
    %19 = sbr.rel (0) target = $region21
  $region20: #{unet_up.1} parent=0 // pred_region
    _
  $region21: #{unet_up.1} parent=0 // pred_fallthru
    _
  %vm21 = vcmask 257024
  %22 = vst.msk [vmem:[#allocation2] sm:$0xf] %vm21, 0
  %23 = vst.msk [vmem:[#allocation2 + $0x24] sm:$0xf] %vm21, 0
  %24 = vst.msk [vmem:[#allocation2 + $0x48] sm:$0xf] %vm21, 0
  %vm25 = vcmask 519424
  %26 = vst.msk [vmem:[#allocation2 + $0x20] sm:$0xf] %vm25, 0
  %27 = vst.msk [vmem:[#allocation2 + $0x44] sm:$0xf] %vm25, 0
  %28 = vst.msk [vmem:[#allocation2 + $0x68] sm:$0xf] %vm25, 0
  %v29 = vld [vmem:[%s0] sm:$0xf]
  %v30 = vld [vmem:[%s1] sm:$0xf]
  %v31 = vld [vmem:[%s1 + $0x4] sm:$0xf]
  %v34 = vunpack.c.l.b16 %v30
  %v35 = vunpack.c.l.b16 %v31
  %v36 = vpack.c.b16 %v35, %v34
  %vm38 = vcmask 130048
  %v40 = vsel %vm38, %v29, 0
  %42 = vmatprep.subr.bf16.mxu0 0
  %43 = vmatpush1.bf16.msra.mxu0 %v36
  %44 = vmatprep.subr.bf16.mxu0 0
  %45 = vmatpush1.bf16.msra.mxu0 0
  %46 = vmatprep.subr.bf16.mxu0 0
  %47 = vmatpush1.bf16.msra.mxu0 0
  %48 = vmatprep.subr.bf16.mxu0 0
  %49 = vmatpush1.bf16.msra.mxu0 0
  %50 = vmatprep.subr.bf16.mxu0 0
  %51 = vmatpush1.bf16.msra.mxu0 0
  %52 = vmatprep.subr.bf16.mxu0 0
  %53 = vmatpush1.bf16.msra.mxu0 0
  %54 = vmatprep.subr.bf16.mxu0 0
  %55 = vmatpush1.bf16.msra.mxu0 0
  %56 = vmatprep.subr.bf16.mxu0 0
  %57 = vmatpush1.bf16.msra.mxu0 0
  %58 = vmatprep.subr.bf16.mxu0 0
  %59 = vmatpush1.bf16.msra.mxu0 0
  %60 = vmatprep.subr.bf16.mxu0 0
  %61 = vmatpush1.bf16.msra.mxu0 0
  %62 = vmatprep.subr.bf16.mxu0 0
  %63 = vmatpush1.bf16.msra.mxu0 0
  %64 = vmatprep.subr.bf16.mxu0 0
  %65 = vmatpush1.bf16.msra.mxu0 0
  %66 = vmatprep.subr.bf16.mxu0 0
  %67 = vmatpush1.bf16.msra.mxu0 0
  %68 = vmatprep.subr.bf16.mxu0 0
  %69 = vmatpush1.bf16.msra.mxu0 0
  %70 = vmatprep.subr.bf16.mxu0 0
  %71 = vmatpush1.bf16.msra.mxu0 0
  %72 = vmatprep.subr.bf16.mxu0 0
  %73 = vmatpush1.bf16.msra.mxu0 0
  %74 = vmatprep.mubr.bf16.mxu0 0
  %75 = vmatmul.mubr.bf16.gmra.mrb[0].mxu0 %v40
  %v76 = vpop.f32.mrb[0].mxu0
  %v77 = vadd.f32 0.0, %v76
  %v78 = vpop.f32.mrb[0].mxu0
  %v79 = vpop.f32.mrb[0].mxu0
  %v80 = vpop.f32.mrb[0].mxu0
  %81 = vdwg.mxu0
  %v82 = vpack.c.bf16 %v77, %v77
  %84 = vrot.lane.b32.xlu0 %v82, 32
  %v85 = vpop.permute.xlu0 %84
  %vm86 = vcmask 261120
  %v89 = vsel %vm86, %v82, %v85
  %v91 = vunpack.c.l.b16 %v89
  %v92 = vpack.c.b16 %v91, %v91
  %93 = vrot.lane.b32.xlu0 %v92, 32
  %v94 = vpop.permute.xlu0 %93
  %vm96 = vcmask 781568
  %97 = vst.msk [vmem:[#allocation2] sm:$0xf] %vm96, %v94
  %98 = vrot.lane.b32.xlu0 %v82, 96
  %v99 = vpop.permute.xlu0 %98
  %v101 = vsel %vm86, %v99, %v82
  %v103 = vunpack.c.l.b16 %v101
  %v104 = vpack.c.b16 %v103, %v103
  %105 = vrot.lane.b32.xlu0 %v104, 32
  %v106 = vpop.permute.xlu0 %105
  %s108 = scalar_lea.vmem [#allocation2], 36
  %109 = vst.msk [vmem:[%s108] sm:$0xf] %vm96, %v106
  %110 = vrot.lane.b32.xlu0 %v82, 64
  %v111 = vpop.permute.xlu0 %110
  %v113 = vsel %vm86, %v111, %v99
  %v115 = vunpack.c.l.b16 %v113
  %v116 = vpack.c.b16 %v115, %v115
  %117 = vrot.lane.b32.xlu0 %v116, 32
  %v118 = vpop.permute.xlu0 %117
  %s120 = scalar_lea.vmem [#allocation2], 72
  %121 = vst.msk [vmem:[%s120] sm:$0xf] %vm96, %v118
  %v122 = vld [vmem:[%s0] sm:$0xf]
  %v123 = vld [vmem:[%s1] sm:$0xf]
  %v124 = vld [vmem:[%s1 + $0x4] sm:$0xf]
  %v126 = vunpack.c.l.b16 %v122
  %v127 = vpack.c.b16 %v126, %v126
  %128 = vrot.lane.b32.xlu0 %v127, 112
  %v129 = vpop.permute.xlu0 %128
  %v132 = vunpack.c.l.b16 %v123
  %v133 = vunpack.c.l.b16 %v124
  %v134 = vpack.c.b16 %v133, %v132
  %v137 = vsel %vm38, %v129, 0
  %139 = vmatprep.subr.bf16.mxu0 0
  %140 = vmatpush1.bf16.msra.mxu0 %v134
  %141 = vmatprep.subr.bf16.mxu0 0
  %142 = vmatpush1.bf16.msra.mxu0 0
  %143 = vmatprep.subr.bf16.mxu0 0
  %144 = vmatpush1.bf16.msra.mxu0 0
  %145 = vmatprep.subr.bf16.mxu0 0
  %146 = vmatpush1.bf16.msra.mxu0 0
  %147 = vmatprep.subr.bf16.mxu0 0
  %148 = vmatpush1.bf16.msra.mxu0 0
  %149 = vmatprep.subr.bf16.mxu0 0
  %150 = vmatpush1.bf16.msra.mxu0 0
  %151 = vmatprep.subr.bf16.mxu0 0
  %152 = vmatpush1.bf16.msra.mxu0 0
  %153 = vmatprep.subr.bf16.mxu0 0
  %154 = vmatpush1.bf16.msra.mxu0 0
  %155 = vmatprep.subr.bf16.mxu0 0
  %156 = vmatpush1.bf16.msra.mxu0 0
  %157 = vmatprep.subr.bf16.mxu0 0
  %158 = vmatpush1.bf16.msra.mxu0 0
  %159 = vmatprep.subr.bf16.mxu0 0
  %160 = vmatpush1.bf16.msra.mxu0 0
  %161 = vmatprep.subr.bf16.mxu0 0
  %162 = vmatpush1.bf16.msra.mxu0 0
  %163 = vmatprep.subr.bf16.mxu0 0
  %164 = vmatpush1.bf16.msra.mxu0 0
  %165 = vmatprep.subr.bf16.mxu0 0
  %166 = vmatpush1.bf16.msra.mxu0 0
  %167 = vmatprep.subr.bf16.mxu0 0
  %168 = vmatpush1.bf16.msra.mxu0 0
  %169 = vmatprep.subr.bf16.mxu0 0
  %170 = vmatpush1.bf16.msra.mxu0 0
  %171 = vmatprep.mubr.bf16.mxu0 0
  %172 = vmatmul.mubr.bf16.gmra.mrb[0].mxu0 %v137
  %v173 = vpop.f32.mrb[0].mxu0
  %v174 = vadd.f32 0.0, %v173
  %v175 = vpop.f32.mrb[0].mxu0
  %v176 = vpop.f32.mrb[0].mxu0
  %v177 = vpop.f32.mrb[0].mxu0
  %178 = vdwg.mxu0
  %v179 = vpack.c.bf16 %v174, %v174
  %181 = vrot.lane.b32.xlu0 %v179, 32
  %v182 = vpop.permute.xlu0 %181
  %v185 = vsel %vm86, %v179, %v182
  %v187 = vunpack.c.l.b16 %v185
  %v188 = vpack.c.b16 %v187, %v187
  %189 = vrot.lane.b32.xlu0 %v188, 96
  %v190 = vpop.permute.xlu0 %189
  %v191 = vrot.slane %v190, 4
  %vm192 = vcmask 785408
  %v193 = vsel %vm192, %v191, %v190
  %vm195 = vcmask 1044224
  %vm196 = vcmask 261124
  %vm197 = vmor %vm196, %vm195
  %198 = vst.msk [vmem:[#allocation2] sm:$0xff] %vm197, %v193
  %199 = vrot.lane.b32.xlu0 %v179, 96
  %v200 = vpop.permute.xlu0 %199
  %v202 = vsel %vm86, %v200, %v179
  %v204 = vunpack.c.l.b16 %v202
  %v205 = vpack.c.b16 %v204, %v204
  %206 = vrot.lane.b32.xlu0 %v205, 96
  %v207 = vpop.permute.xlu0 %206
  %v208 = vrot.slane %v207, 4
  %v209 = vsel %vm192, %v208, %v207
  %211 = vst.msk [vmem:[%s108] sm:$0xff] %vm197, %v209
  %212 = vrot.lane.b32.xlu0 %v179, 64
  %v213 = vpop.permute.xlu0 %212
  %v215 = vsel %vm86, %v213, %v200
  %v217 = vunpack.c.l.b16 %v215
  %v218 = vpack.c.b16 %v217, %v217
  %219 = vrot.lane.b32.xlu0 %v218, 96
  %v220 = vpop.permute.xlu0 %219
  %v221 = vrot.slane %v220, 4
  %v222 = vsel %vm192, %v221, %v220
  %224 = vst.msk [vmem:[%s120] sm:$0xff] %vm197, %v222
  %v225 = vld [vmem:[%s0] sm:$0xf]
  %v226 = vld [vmem:[%s1] sm:$0xf]
  %v227 = vld [vmem:[%s1 + $0x4] sm:$0xf]
  %v229 = vunpack.c.l.b16 %v225
  %v230 = vpack.c.b16 %v229, %v229
  %231 = vrot.lane.b32.xlu0 %v230, 96
  %v232 = vpop.permute.xlu0 %231
  %v235 = vunpack.c.l.b16 %v226
  %v236 = vunpack.c.l.b16 %v227
  %v237 = vpack.c.b16 %v236, %v235
  %v240 = vsel %vm38, %v232, 0
  %242 = vmatprep.subr.bf16.mxu0 0
  %243 = vmatpush1.bf16.msra.mxu0 %v237
  %244 = vmatprep.subr.bf16.mxu0 0
  %245 = vmatpush1.bf16.msra.mxu0 0
  %246 = vmatprep.subr.bf16.mxu0 0
  %247 = vmatpush1.bf16.msra.mxu0 0
  %248 = vmatprep.subr.bf16.mxu0 0
  %249 = vmatpush1.bf16.msra.mxu0 0
  %250 = vmatprep.subr.bf16.mxu0 0
  %251 = vmatpush1.bf16.msra.mxu0 0
  %252 = vmatprep.subr.bf16.mxu0 0
  %253 = vmatpush1.bf16.msra.mxu0 0
  %254 = vmatprep.subr.bf16.mxu0 0
  %255 = vmatpush1.bf16.msra.mxu0 0
  %256 = vmatprep.subr.bf16.mxu0 0
  %257 = vmatpush1.bf16.msra.mxu0 0
  %258 = vmatprep.subr.bf16.mxu0 0
  %259 = vmatpush1.bf16.msra.mxu0 0
  %260 = vmatprep.subr.bf16.mxu0 0
  %261 = vmatpush1.bf16.msra.mxu0 0
  %262 = vmatprep.subr.bf16.mxu0 0
  %263 = vmatpush1.bf16.msra.mxu0 0
  %264 = vmatprep.subr.bf16.mxu0 0
  %265 = vmatpush1.bf16.msra.mxu0 0
  %266 = vmatprep.subr.bf16.mxu0 0
  %267 = vmatpush1.bf16.msra.mxu0 0
  %268 = vmatprep.subr.bf16.mxu0 0
  %269 = vmatpush1.bf16.msra.mxu0 0
  %270 = vmatprep.subr.bf16.mxu0 0
  %271 = vmatpush1.bf16.msra.mxu0 0
  %272 = vmatprep.subr.bf16.mxu0 0
  %273 = vmatpush1.bf16.msra.mxu0 0
  %274 = vmatprep.mubr.bf16.mxu0 0
  %275 = vmatmul.mubr.bf16.gmra.mrb[0].mxu0 %v240
  %v276 = vpop.f32.mrb[0].mxu0
  %v277 = vadd.f32 0.0, %v276
  %v278 = vpop.f32.mrb[0].mxu0
  %v279 = vpop.f32.mrb[0].mxu0
  %v280 = vpop.f32.mrb[0].mxu0
  %281 = vdwg.mxu0
  %v282 = vpack.c.bf16 %v277, %v277
  %284 = vrot.lane.b32.xlu0 %v282, 32
  %v285 = vpop.permute.xlu0 %284
  %v288 = vsel %vm86, %v282, %v285
  %v290 = vunpack.c.l.b16 %v288
  %v291 = vpack.c.b16 %v290, %v290
  %292 = vrot.lane.b32.xlu0 %v291, 32
  %v293 = vpop.permute.xlu0 %292
  %295 = vst.msk [vmem:[#allocation2 + $0x4] sm:$0xf] %vm96, %v293
  %296 = vrot.lane.b32.xlu0 %v282, 96
  %v297 = vpop.permute.xlu0 %296
  %v299 = vsel %vm86, %v297, %v282
  %v301 = vunpack.c.l.b16 %v299
  %v302 = vpack.c.b16 %v301, %v301
  %303 = vrot.lane.b32.xlu0 %v302, 32
  %v304 = vpop.permute.xlu0 %303
  %306 = vst.msk [vmem:[%s108 + $0x4] sm:$0xf] %vm96, %v304
  %307 = vrot.lane.b32.xlu0 %v282, 64
  %v308 = vpop.permute.xlu0 %307
  %v310 = vsel %vm86, %v308, %v297
  %v312 = vunpack.c.l.b16 %v310
  %v313 = vpack.c.b16 %v312, %v312
  %314 = vrot.lane.b32.xlu0 %v313, 32
  %v315 = vpop.permute.xlu0 %314
  %317 = vst.msk [vmem:[%s120 + $0x4] sm:$0xf] %vm96, %v315
  %v318 = vld [vmem:[%s0] sm:$0xf]
  %v319 = vld [vmem:[%s1] sm:$0xf]
  %v320 = vld [vmem:[%s1 + $0x4] sm:$0xf]
  %v322 = vunpack.c.l.b16 %v318
  %v323 = vpack.c.b16 %v322, %v322
  %324 = vrot.lane.b32.xlu0 %v323, 80
  %v325 = vpop.permute.xlu0 %324
  %v328 = vunpack.c.l.b16 %v319
  %v329 = vunpack.c.l.b16 %v320
  %v330 = vpack.c.b16 %v329, %v328
  %v333 = vsel %vm38, %v325, 0
  %335 = vmatprep.subr.bf16.mxu0 0
  %336 = vmatpush1.bf16.msra.mxu0 %v330
  %337 = vmatprep.subr.bf16.mxu0 0
  %338 = vmatpush1.bf16.msra.mxu0 0
  %339 = vmatprep.subr.bf16.mxu0 0
  %340 = vmatpush1.bf16.msra.mxu0 0
  %341 = vmatprep.subr.bf16.mxu0 0
  %342 = vmatpush1.bf16.msra.mxu0 0
  %343 = vmatprep.subr.bf16.mxu0 0
  %344 = vmatpush1.bf16.msra.mxu0 0
  %345 = vmatprep.subr.bf16.mxu0 0
  %346 = vmatpush1.bf16.msra.mxu0 0
  %347 = vmatprep.subr.bf16.mxu0 0
  %348 = vmatpush1.bf16.msra.mxu0 0
  %349 = vmatprep.subr.bf16.mxu0 0
  %350 = vmatpush1.bf16.msra.mxu0 0
  %351 = vmatprep.subr.bf16.mxu0 0
  %352 = vmatpush1.bf16.msra.mxu0 0
  %353 = vmatprep.subr.bf16.mxu0 0
  %354 = vmatpush1.bf16.msra.mxu0 0
  %355 = vmatprep.subr.bf16.mxu0 0
  %356 = vmatpush1.bf16.msra.mxu0 0
  %357 = vmatprep.subr.bf16.mxu0 0
  %358 = vmatpush1.bf16.msra.mxu0 0
  %359 = vmatprep.subr.bf16.mxu0 0
  %360 = vmatpush1.bf16.msra.mxu0 0
  %361 = vmatprep.subr.bf16.mxu0 0
  %362 = vmatpush1.bf16.msra.mxu0 0
  %363 = vmatprep.subr.bf16.mxu0 0
  %364 = vmatpush1.bf16.msra.mxu0 0
  %365 = vmatprep.subr.bf16.mxu0 0
  %366 = vmatpush1.bf16.msra.mxu0 0
  %367 = vmatprep.mubr.bf16.mxu0 0
  %368 = vmatmul.mubr.bf16.gmra.mrb[0].mxu0 %v333
  %v369 = vpop.f32.mrb[0].mxu0
  %v370 = vadd.f32 0.0, %v369
  %v371 = vpop.f32.mrb[0].mxu0
  %v372 = vpop.f32.mrb[0].mxu0
  %v373 = vpop.f32.mrb[0].mxu0
  %374 = vdwg.mxu0
  %v375 = vpack.c.bf16 %v370, %v370
  %377 = vrot.lane.b32.xlu0 %v375, 32
  %v378 = vpop.permute.xlu0 %377
  %v381 = vsel %vm86, %v375, %v378
  %v383 = vunpack.c.l.b16 %v381
  %v384 = vpack.c.b16 %v383, %v383
  %385 = vrot.lane.b32.xlu0 %v384, 96
  %v386 = vpop.permute.xlu0 %385
  %v387 = vrot.slane %v386, 4
  %v388 = vsel %vm192, %v387, %v386
  %390 = vst.msk [vmem:[#allocation2 + $0x4] sm:$0xff] %vm197, %v388
  %391 = vrot.lane.b32.xlu0 %v375, 96
  %v392 = vpop.permute.xlu0 %391
  %v394 = vsel %vm86, %v392, %v375
  %v396 = vunpack.c.l.b16 %v394
  %v397 = vpack.c.b16 %v396, %v396
  %398 = vrot.lane.b32.xlu0 %v397, 96
  %v399 = vpop.permute.xlu0 %398
  %v400 = vrot.slane %v399, 4
  %v401 = vsel %vm192, %v400, %v399
  %403 = vst.msk [vmem:[%s108 + $0x4] sm:$0xff] %vm197, %v401
  %404 = vrot.lane.b32.xlu0 %v375, 64
  %v405 = vpop.permute.xlu0 %404
  %v407 = vsel %vm86, %v405, %v392
  %v409 = vunpack.c.l.b16 %v407
  %v410 = vpack.c.b16 %v409, %v409
  %411 = vrot.lane.b32.xlu0 %v410, 96
  %v412 = vpop.permute.xlu0 %411
  %v413 = vrot.slane %v412, 4
  %v414 = vsel %vm192, %v413, %v412
  %416 = vst.msk [vmem:[%s120 + $0x4] sm:$0xff] %vm197, %v414
  %v417 = vld [vmem:[%s0] sm:$0xf]
  %v418 = vld [vmem:[%s1] sm:$0xf]
  %v419 = vld [vmem:[%s1 + $0x4] sm:$0xf]
  %v421 = vunpack.c.l.b16 %v417
  %v422 = vpack.c.b16 %v421, %v421
  %423 = vrot.lane.b32.xlu0 %v422, 64
  %v424 = vpop.permute.xlu0 %423
  %v427 = vunpack.c.l.b16 %v418
  %v428 = vunpack.c.l.b16 %v419
  %v429 = vpack.c.b16 %v428, %v427
  %v432 = vsel %vm38, %v424, 0
  %434 = vmatprep.subr.bf16.mxu0 0
  %435 = vmatpush1.bf16.msra.mxu0 %v429
  %436 = vmatprep.subr.bf16.mxu0 0
  %437 = vmatpush1.bf16.msra.mxu0 0
  %438 = vmatprep.subr.bf16.mxu0 0
  %439 = vmatpush1.bf16.msra.mxu0 0
  %440 = vmatprep.subr.bf16.mxu0 0
  %441 = vmatpush1.bf16.msra.mxu0 0
  %442 = vmatprep.subr.bf16.mxu0 0
  %443 = vmatpush1.bf16.msra.mxu0 0
  %444 = vmatprep.subr.bf16.mxu0 0
  %445 = vmatpush1.bf16.msra.mxu0 0
  %446 = vmatprep.subr.bf16.mxu0 0
  %447 = vmatpush1.bf16.msra.mxu0 0
  %448 = vmatprep.subr.bf16.mxu0 0
  %449 = vmatpush1.bf16.msra.mxu0 0
  %450 = vmatprep.subr.bf16.mxu0 0
  %451 = vmatpush1.bf16.msra.mxu0 0
  %452 = vmatprep.subr.bf16.mxu0 0
  %453 = vmatpush1.bf16.msra.mxu0 0
  %454 = vmatprep.subr.bf16.mxu0 0
  %455 = vmatpush1.bf16.msra.mxu0 0
  %456 = vmatprep.subr.bf16.mxu0 0
  %457 = vmatpush1.bf16.msra.mxu0 0
  %458 = vmatprep.subr.bf16.mxu0 0
  %459 = vmatpush1.bf16.msra.mxu0 0
  %460 = vmatprep.subr.bf16.mxu0 0
  %461 = vmatpush1.bf16.msra.mxu0 0
  %462 = vmatprep.subr.bf16.mxu0 0
  %463 = vmatpush1.bf16.msra.mxu0 0
  %464 = vmatprep.subr.bf16.mxu0 0
  %465 = vmatpush1.bf16.msra.mxu0 0
  %466 = vmatprep.mubr.bf16.mxu0 0
  %467 = vmatmul.mubr.bf16.gmra.mrb[0].mxu0 %v432
  %v468 = vpop.f32.mrb[0].mxu0
  %v469 = vadd.f32 0.0, %v468
  %v470 = vpop.f32.mrb[0].mxu0
  %v471 = vpop.f32.mrb[0].mxu0
  %v472 = vpop.f32.mrb[0].mxu0
  %473 = vdwg.mxu0
  %v474 = vpack.c.bf16 %v469, %v469
  %476 = vrot.lane.b32.xlu0 %v474, 32
  %v477 = vpop.permute.xlu0 %476
  %v480 = vsel %vm86, %v474, %v477
  %v482 = vunpack.c.l.b16 %v480
  %v483 = vpack.c.b16 %v482, %v482
  %484 = vrot.lane.b32.xlu0 %v483, 32
  %v485 = vpop.permute.xlu0 %484
  %487 = vst.msk [vmem:[#allocation2 + $0x8] sm:$0xf] %vm96, %v485
  %488 = vrot.lane.b32.xlu0 %v474, 96
  %v489 = vpop.permute.xlu0 %488
  %v491 = vsel %vm86, %v489, %v474
  %v493 = vunpack.c.l.b16 %v491
  %v494 = vpack.c.b16 %v493, %v493
  %495 = vrot.lane.b32.xlu0 %v494, 32
  %v496 = vpop.permute.xlu0 %495
  %498 = vst.msk [vmem:[%s108 + $0x8] sm:$0xf] %vm96, %v496
  %499 = vrot.lane.b32.xlu0 %v474, 64
  %v500 = vpop.permute.xlu0 %499
  %v502 = vsel %vm86, %v500, %v489
  %v504 = vunpack.c.l.b16 %v502
  %v505 = vpack.c.b16 %v504, %v504
  %506 = vrot.lane.b32.xlu0 %v505, 32
  %v507 = vpop.permute.xlu0 %506
  %509 = vst.msk [vmem:[%s120 + $0x8] sm:$0xf] %vm96, %v507
  %v510 = vld [vmem:[%s0] sm:$0xf]
  %v511 = vld [vmem:[%s1] sm:$0xf]
  %v512 = vld [vmem:[%s1 + $0x4] sm:$0xf]
  %v514 = vunpack.c.l.b16 %v510
  %v515 = vpack.c.b16 %v514, %v514
  %516 = vrot.lane.b32.xlu0 %v515, 48
  %v517 = vpop.permute.xlu0 %516
  %v520 = vunpack.c.l.b16 %v511
  %v521 = vunpack.c.l.b16 %v512
  %v522 = vpack.c.b16 %v521, %v520
  %v525 = vsel %vm38, %v517, 0
  %527 = vmatprep.subr.bf16.mxu0 0
  %528 = vmatpush1.bf16.msra.mxu0 %v522
  %529 = vmatprep.subr.bf16.mxu0 0
  %530 = vmatpush1.bf16.msra.mxu0 0
  %531 = vmatprep.subr.bf16.mxu0 0
  %532 = vmatpush1.bf16.msra.mxu0 0
  %533 = vmatprep.subr.bf16.mxu0 0
  %534 = vmatpush1.bf16.msra.mxu0 0
  %535 = vmatprep.subr.bf16.mxu0 0
  %536 = vmatpush1.bf16.msra.mxu0 0
  %537 = vmatprep.subr.bf16.mxu0 0
  %538 = vmatpush1.bf16.msra.mxu0 0
  %539 = vmatprep.subr.bf16.mxu0 0
  %540 = vmatpush1.bf16.msra.mxu0 0
  %541 = vmatprep.subr.bf16.mxu0 0
  %542 = vmatpush1.bf16.msra.mxu0 0
  %543 = vmatprep.subr.bf16.mxu0 0
  %544 = vmatpush1.bf16.msra.mxu0 0
  %545 = vmatprep.subr.bf16.mxu0 0
  %546 = vmatpush1.bf16.msra.mxu0 0
  %547 = vmatprep.subr.bf16.mxu0 0
  %548 = vmatpush1.bf16.msra.mxu0 0
  %549 = vmatprep.subr.bf16.mxu0 0
  %550 = vmatpush1.bf16.msra.mxu0 0
  %551 = vmatprep.subr.bf16.mxu0 0
  %552 = vmatpush1.bf16.msra.mxu0 0
  %553 = vmatprep.subr.bf16.mxu0 0
  %554 = vmatpush1.bf16.msra.mxu0 0
  %555 = vmatprep.subr.bf16.mxu0 0
  %556 = vmatpush1.bf16.msra.mxu0 0
  %557 = vmatprep.subr.bf16.mxu0 0
  %558 = vmatpush1.bf16.msra.mxu0 0
  %559 = vmatprep.mubr.bf16.mxu0 0
  %560 = vmatmul.mubr.bf16.gmra.mrb[0].mxu0 %v525
  %v561 = vpop.f32.mrb[0].mxu0
  %v562 = vadd.f32 0.0, %v561
  %v563 = vpop.f32.mrb[0].mxu0
  %v564 = vpop.f32.mrb[0].mxu0
  %v565 = vpop.f32.mrb[0].mxu0
  %566 = vdwg.mxu0
  %v567 = vpack.c.bf16 %v562, %v562
  %569 = vrot.lane.b32.xlu0 %v567, 32
  %v570 = vpop.permute.xlu0 %569
  %v573 = vsel %vm86, %v567, %v570
  %v575 = vunpack.c.l.b16 %v573
  %v576 = vpack.c.b16 %v575, %v575
  %577 = vrot.lane.b32.xlu0 %v576, 96
  %v578 = vpop.permute.xlu0 %577
  %v579 = vrot.slane %v578, 4
  %v580 = vsel %vm192, %v579, %v578
  %582 = vst.msk [vmem:[#allocation2 + $0x8] sm:$0xff] %vm197, %v580
  %583 = vrot.lane.b32.xlu0 %v567, 96
  %v584 = vpop.permute.xlu0 %583
  %v586 = vsel %vm86, %v584, %v567
  %v588 = vunpack.c.l.b16 %v586
  %v589 = vpack.c.b16 %v588, %v588
  %590 = vrot.lane.b32.xlu0 %v589, 96
  %v591 = vpop.permute.xlu0 %590
  %v592 = vrot.slane %v591, 4
  %v593 = vsel %vm192, %v592, %v591
  %595 = vst.msk [vmem:[%s108 + $0x8] sm:$0xff] %vm197, %v593
  %596 = vrot.lane.b32.xlu0 %v567, 64
  %v597 = vpop.permute.xlu0 %596
  %v599 = vsel %vm86, %v597, %v584
  %v601 = vunpack.c.l.b16 %v599
  %v602 = vpack.c.b16 %v601, %v601
  %603 = vrot.lane.b32.xlu0 %v602, 96
  %v604 = vpop.permute.xlu0 %603
  %v605 = vrot.slane %v604, 4
  %v606 = vsel %vm192, %v605, %v604
  %608 = vst.msk [vmem:[%s120 + $0x8] sm:$0xff] %vm197, %v606
  %v609 = vld [vmem:[%s0] sm:$0xf]
  %v610 = vld [vmem:[%s1] sm:$0xf]
  %v611 = vld [vmem:[%s1 + $0x4] sm:$0xf]
  %v613 = vunpack.c.l.b16 %v609
  %v614 = vpack.c.b16 %v613, %v613
  %615 = vrot.lane.b32.xlu0 %v614, 32
  %v616 = vpop.permute.xlu0 %615
  %v619 = vunpack.c.l.b16 %v610
  %v620 = vunpack.c.l.b16 %v611
  %v621 = vpack.c.b16 %v620, %v619
  %v624 = vsel %vm38, %v616, 0
  %626 = vmatprep.subr.bf16.mxu0 0
  %627 = vmatpush1.bf16.msra.mxu0 %v621
  %628 = vmatprep.subr.bf16.mxu0 0
  %629 = vmatpush1.bf16.msra.mxu0 0
  %630 = vmatprep.subr.bf16.mxu0 0
  %631 = vmatpush1.bf16.msra.mxu0 0
  %632 = vmatprep.subr.bf16.mxu0 0
  %633 = vmatpush1.bf16.msra.mxu0 0
  %634 = vmatprep.subr.bf16.mxu0 0
  %635 = vmatpush1.bf16.msra.mxu0 0
  %636 = vmatprep.subr.bf16.mxu0 0
  %637 = vmatpush1.bf16.msra.mxu0 0
  %638 = vmatprep.subr.bf16.mxu0 0
  %639 = vmatpush1.bf16.msra.mxu0 0
  %640 = vmatprep.subr.bf16.mxu0 0
  %641 = vmatpush1.bf16.msra.mxu0 0
  %642 = vmatprep.subr.bf16.mxu0 0
  %643 = vmatpush1.bf16.msra.mxu0 0
  %644 = vmatprep.subr.bf16.mxu0 0
  %645 = vmatpush1.bf16.msra.mxu0 0
  %646 = vmatprep.subr.bf16.mxu0 0
  %647 = vmatpush1.bf16.msra.mxu0 0
  %648 = vmatprep.subr.bf16.mxu0 0
  %649 = vmatpush1.bf16.msra.mxu0 0
  %650 = vmatprep.subr.bf16.mxu0 0
  %651 = vmatpush1.bf16.msra.mxu0 0
  %652 = vmatprep.subr.bf16.mxu0 0
  %653 = vmatpush1.bf16.msra.mxu0 0
  %654 = vmatprep.subr.bf16.mxu0 0
  %655 = vmatpush1.bf16.msra.mxu0 0
  %656 = vmatprep.subr.bf16.mxu0 0
  %657 = vmatpush1.bf16.msra.mxu0 0
  %658 = vmatprep.mubr.bf16.mxu0 0
  %659 = vmatmul.mubr.bf16.gmra.mrb[0].mxu0 %v624
  %v660 = vpop.f32.mrb[0].mxu0
  %v661 = vadd.f32 0.0, %v660
  %v662 = vpop.f32.mrb[0].mxu0
  %v663 = vpop.f32.mrb[0].mxu0
  %v664 = vpop.f32.mrb[0].mxu0
  %665 = vdwg.mxu0
  %v666 = vpack.c.bf16 %v661, %v661
  %668 = vrot.lane.b32.xlu0 %v666, 32
  %v669 = vpop.permute.xlu0 %668
  %v672 = vsel %vm86, %v666, %v669
  %v674 = vunpack.c.l.b16 %v672
  %v675 = vpack.c.b16 %v674, %v674
  %676 = vrot.lane.b32.xlu0 %v675, 32
  %v677 = vpop.permute.xlu0 %676
  %679 = vst.msk [vmem:[#allocation2 + $0xc] sm:$0xf] %vm96, %v677
  %680 = vrot.lane.b32.xlu0 %v666, 96
  %v681 = vpop.permute.xlu0 %680
  %v683 = vsel %vm86, %v681, %v666
  %v685 = vunpack.c.l.b16 %v683
  %v686 = vpack.c.b16 %v685, %v685
  %687 = vrot.lane.b32.xlu0 %v686, 32
  %v688 = vpop.permute.xlu0 %687
  %690 = vst.msk [vmem:[%s108 + $0xc] sm:$0xf] %vm96, %v688
  %691 = vrot.lane.b32.xlu0 %v666, 64
  %v692 = vpop.permute.xlu0 %691
  %v694 = vsel %vm86, %v692, %v681
  %v696 = vunpack.c.l.b16 %v694
  %v697 = vpack.c.b16 %v696, %v696
  %698 = vrot.lane.b32.xlu0 %v697, 32
  %v699 = vpop.permute.xlu0 %698
  %701 = vst.msk [vmem:[%s120 + $0xc] sm:$0xf] %vm96, %v699
  %v702 = vld [vmem:[%s0] sm:$0xf]
  %v703 = vld [vmem:[%s1] sm:$0xf]
  %v704 = vld [vmem:[%s1 + $0x4] sm:$0xf]
  %v706 = vunpack.c.l.b16 %v702
  %v707 = vpack.c.b16 %v706, %v706
  %708 = vrot.lane.b32.xlu0 %v707, 16
  %v709 = vpop.permute.xlu0 %708
  %v712 = vunpack.c.l.b16 %v703
  %v713 = vunpack.c.l.b16 %v704
  %v714 = vpack.c.b16 %v713, %v712
  %v717 = vsel %vm38, %v709, 0
  %719 = vmatprep.subr.bf16.mxu0 0
  %720 = vmatpush1.bf16.msra.mxu0 %v714
  %721 = vmatprep.subr.bf16.mxu0 0
  %722 = vmatpush1.bf16.msra.mxu0 0
  %723 = vmatprep.subr.bf16.mxu0 0
  %724 = vmatpush1.bf16.msra.mxu0 0
  %725 = vmatprep.subr.bf16.mxu0 0
  %726 = vmatpush1.bf16.msra.mxu0 0
  %727 = vmatprep.subr.bf16.mxu0 0
  %728 = vmatpush1.bf16.msra.mxu0 0
  %729 = vmatprep.subr.bf16.mxu0 0
  %730 = vmatpush1.bf16.msra.mxu0 0
  %731 = vmatprep.subr.bf16.mxu0 0
  %732 = vmatpush1.bf16.msra.mxu0 0
  %733 = vmatprep.subr.bf16.mxu0 0
  %734 = vmatpush1.bf16.msra.mxu0 0
  %735 = vmatprep.subr.bf16.mxu0 0
  %736 = vmatpush1.bf16.msra.mxu0 0
  %737 = vmatprep.subr.bf16.mxu0 0
  %738 = vmatpush1.bf16.msra.mxu0 0
  %739 = vmatprep.subr.bf16.mxu0 0
  %740 = vmatpush1.bf16.msra.mxu0 0
  %741 = vmatprep.subr.bf16.mxu0 0
  %742 = vmatpush1.bf16.msra.mxu0 0
  %743 = vmatprep.subr.bf16.mxu0 0
  %744 = vmatpush1.bf16.msra.mxu0 0
  %745 = vmatprep.subr.bf16.mxu0 0
  %746 = vmatpush1.bf16.msra.mxu0 0
  %747 = vmatprep.subr.bf16.mxu0 0
  %748 = vmatpush1.bf16.msra.mxu0 0
  %749 = vmatprep.subr.bf16.mxu0 0
  %750 = vmatpush1.bf16.msra.mxu0 0
  %751 = vmatprep.mubr.bf16.mxu0 0
  %752 = vmatmul.mubr.bf16.gmra.mrb[0].mxu0 %v717
  %v753 = vpop.f32.mrb[0].mxu0
  %v754 = vadd.f32 0.0, %v753
  %v755 = vpop.f32.mrb[0].mxu0
  %v756 = vpop.f32.mrb[0].mxu0
  %v757 = vpop.f32.mrb[0].mxu0
  %758 = vdwg.mxu0
  %v759 = vpack.c.bf16 %v754, %v754
  %761 = vrot.lane.b32.xlu0 %v759, 32
  %v762 = vpop.permute.xlu0 %761
  %v765 = vsel %vm86, %v759, %v762
  %v767 = vunpack.c.l.b16 %v765
  %v768 = vpack.c.b16 %v767, %v767
  %769 = vrot.lane.b32.xlu0 %v768, 96
  %v770 = vpop.permute.xlu0 %769
  %v771 = vrot.slane %v770, 4
  %v772 = vsel %vm192, %v771, %v770
  %774 = vst.msk [vmem:[#allocation2 + $0xc] sm:$0xff] %vm197, %v772
  %775 = vrot.lane.b32.xlu0 %v759, 96
  %v776 = vpop.permute.xlu0 %775
  %v778 = vsel %vm86, %v776, %v759
  %v780 = vunpack.c.l.b16 %v778
  %v781 = vpack.c.b16 %v780, %v780
  %782 = vrot.lane.b32.xlu0 %v781, 96
  %v783 = vpop.permute.xlu0 %782
  %v784 = vrot.slane %v783, 4
  %v785 = vsel %vm192, %v784, %v783
  %787 = vst.msk [vmem:[%s108 + $0xc] sm:$0xff] %vm197, %v785
  %788 = vrot.lane.b32.xlu0 %v759, 64
  %v789 = vpop.permute.xlu0 %788
  %v791 = vsel %vm86, %v789, %v776
  %v793 = vunpack.c.l.b16 %v791
  %v794 = vpack.c.b16 %v793, %v793
  %795 = vrot.lane.b32.xlu0 %v794, 96
  %v796 = vpop.permute.xlu0 %795
  %v797 = vrot.slane %v796, 4
  %v798 = vsel %vm192, %v797, %v796
  %800 = vst.msk [vmem:[%s120 + $0xc] sm:$0xff] %vm197, %v798
  %v801 = vld [vmem:[%s0 + $0x4] sm:$0xf]
  %v802 = vld [vmem:[%s1] sm:$0xf]
  %v803 = vld [vmem:[%s1 + $0x4] sm:$0xf]
  %v806 = vunpack.c.l.b16 %v802
  %v807 = vunpack.c.l.b16 %v803
  %v808 = vpack.c.b16 %v807, %v806
  %v811 = vsel %vm38, %v801, 0
  %813 = vmatprep.subr.bf16.mxu0 0
  %814 = vmatpush1.bf16.msra.mxu0 %v808
  %815 = vmatprep.subr.bf16.mxu0 0
  %816 = vmatpush1.bf16.msra.mxu0 0
  %817 = vmatprep.subr.bf16.mxu0 0
  %818 = vmatpush1.bf16.msra.mxu0 0
  %819 = vmatprep.subr.bf16.mxu0 0
  %820 = vmatpush1.bf16.msra.mxu0 0
  %821 = vmatprep.subr.bf16.mxu0 0
  %822 = vmatpush1.bf16.msra.mxu0 0
  %823 = vmatprep.subr.bf16.mxu0 0
  %824 = vmatpush1.bf16.msra.mxu0 0
  %825 = vmatprep.subr.bf16.mxu0 0
  %826 = vmatpush1.bf16.msra.mxu0 0
  %827 = vmatprep.subr.bf16.mxu0 0
  %828 = vmatpush1.bf16.msra.mxu0 0
  %829 = vmatprep.subr.bf16.mxu0 0
  %830 = vmatpush1.bf16.msra.mxu0 0
  %831 = vmatprep.subr.bf16.mxu0 0
  %832 = vmatpush1.bf16.msra.mxu0 0
  %833 = vmatprep.subr.bf16.mxu0 0
  %834 = vmatpush1.bf16.msra.mxu0 0
  %835 = vmatprep.subr.bf16.mxu0 0
  %836 = vmatpush1.bf16.msra.mxu0 0
  %837 = vmatprep.subr.bf16.mxu0 0
  %838 = vmatpush1.bf16.msra.mxu0 0
  %839 = vmatprep.subr.bf16.mxu0 0
  %840 = vmatpush1.bf16.msra.mxu0 0
  %841 = vmatprep.subr.bf16.mxu0 0
  %842 = vmatpush1.bf16.msra.mxu0 0
  %843 = vmatprep.subr.bf16.mxu0 0
  %844 = vmatpush1.bf16.msra.mxu0 0
  %845 = vmatprep.mubr.bf16.mxu0 0
  %846 = vmatmul.mubr.bf16.gmra.mrb[0].mxu0 %v811
  %v847 = vpop.f32.mrb[0].mxu0
  %v848 = vadd.f32 0.0, %v847
  %v849 = vpop.f32.mrb[0].mxu0
  %v850 = vpop.f32.mrb[0].mxu0
  %v851 = vpop.f32.mrb[0].mxu0
  %852 = vdwg.mxu0
  %v853 = vpack.c.bf16 %v848, %v848
  %855 = vrot.lane.b32.xlu0 %v853, 32
  %v856 = vpop.permute.xlu0 %855
  %v859 = vsel %vm86, %v853, %v856
  %v861 = vunpack.c.l.b16 %v859
  %v862 = vpack.c.b16 %v861, %v861
  %863 = vrot.lane.b32.xlu0 %v862, 32
  %v864 = vpop.permute.xlu0 %863
  %866 = vst.msk [vmem:[#allocation2 + $0x10] sm:$0xf] %vm96, %v864
  %867 = vrot.lane.b32.xlu0 %v853, 96
  %v868 = vpop.permute.xlu0 %867
  %v870 = vsel %vm86, %v868, %v853
  %v872 = vunpack.c.l.b16 %v870
  %v873 = vpack.c.b16 %v872, %v872
  %874 = vrot.lane.b32.xlu0 %v873, 32
  %v875 = vpop.permute.xlu0 %874
  %877 = vst.msk [vmem:[%s108 + $0x10] sm:$0xf] %vm96, %v875
  %878 = vrot.lane.b32.xlu0 %v853, 64
  %v879 = vpop.permute.xlu0 %878
  %v881 = vsel %vm86, %v879, %v868
  %v883 = vunpack.c.l.b16 %v881
  %v884 = vpack.c.b16 %v883, %v883
  %885 = vrot.lane.b32.xlu0 %v884, 32
  %v886 = vpop.permute.xlu0 %885
  %888 = vst.msk [vmem:[%s120 + $0x10] sm:$0xf] %vm96, %v886
  %v889 = vld [vmem:[%s0 + $0x4] sm:$0xf]
  %v890 = vld [vmem:[%s1] sm:$0xf]
  %v891 = vld [vmem:[%s1 + $0x4] sm:$0xf]
  %v893 = vunpack.c.l.b16 %v889
  %v894 = vpack.c.b16 %v893, %v893
  %895 = vrot.lane.b32.xlu0 %v894, 112
  %v896 = vpop.permute.xlu0 %895
  %v899 = vunpack.c.l.b16 %v890
  %v900 = vunpack.c.l.b16 %v891
  %v901 = vpack.c.b16 %v900, %v899
  %v904 = vsel %vm38, %v896, 0
  %906 = vmatprep.subr.bf16.mxu0 0
  %907 = vmatpush1.bf16.msra.mxu0 %v901
  %908 = vmatprep.subr.bf16.mxu0 0
  %909 = vmatpush1.bf16.msra.mxu0 0
  %910 = vmatprep.subr.bf16.mxu0 0
  %911 = vmatpush1.bf16.msra.mxu0 0
  %912 = vmatprep.subr.bf16.mxu0 0
  %913 = vmatpush1.bf16.msra.mxu0 0
  %914 = vmatprep.subr.bf16.mxu0 0
  %915 = vmatpush1.bf16.msra.mxu0 0
  %916 = vmatprep.subr.bf16.mxu0 0
  %917 = vmatpush1.bf16.msra.mxu0 0
  %918 = vmatprep.subr.bf16.mxu0 0
  %919 = vmatpush1.bf16.msra.mxu0 0
  %920 = vmatprep.subr.bf16.mxu0 0
  %921 = vmatpush1.bf16.msra.mxu0 0
  %922 = vmatprep.subr.bf16.mxu0 0
  %923 = vmatpush1.bf16.msra.mxu0 0
  %924 = vmatprep.subr.bf16.mxu0 0
  %925 = vmatpush1.bf16.msra.mxu0 0
  %926 = vmatprep.subr.bf16.mxu0 0
  %927 = vmatpush1.bf16.msra.mxu0 0
  %928 = vmatprep.subr.bf16.mxu0 0
  %929 = vmatpush1.bf16.msra.mxu0 0
  %930 = vmatprep.subr.bf16.mxu0 0
  %931 = vmatpush1.bf16.msra.mxu0 0
  %932 = vmatprep.subr.bf16.mxu0 0
  %933 = vmatpush1.bf16.msra.mxu0 0
  %934 = vmatprep.subr.bf16.mxu0 0
  %935 = vmatpush1.bf16.msra.mxu0 0
  %936 = vmatprep.subr.bf16.mxu0 0
  %937 = vmatpush1.bf16.msra.mxu0 0
  %938 = vmatprep.mubr.bf16.mxu0 0
  %939 = vmatmul.mubr.bf16.gmra.mrb[0].mxu0 %v904
  %v940 = vpop.f32.mrb[0].mxu0
  %v941 = vadd.f32 0.0, %v940
  %v942 = vpop.f32.mrb[0].mxu0
  %v943 = vpop.f32.mrb[0].mxu0
  %v944 = vpop.f32.mrb[0].mxu0
  %945 = vdwg.mxu0
  %v946 = vpack.c.bf16 %v941, %v941
  %948 = vrot.lane.b32.xlu0 %v946, 32
  %v949 = vpop.permute.xlu0 %948
  %v952 = vsel %vm86, %v946, %v949
  %v954 = vunpack.c.l.b16 %v952
  %v955 = vpack.c.b16 %v954, %v954
  %956 = vrot.lane.b32.xlu0 %v955, 96
  %v957 = vpop.permute.xlu0 %956
  %v958 = vrot.slane %v957, 4
  %v959 = vsel %vm192, %v958, %v957
  %961 = vst.msk [vmem:[#allocation2 + $0x10] sm:$0xff] %vm197, %v959
  %962 = vrot.lane.b32.xlu0 %v946, 96
  %v963 = vpop.permute.xlu0 %962
  %v965 = vsel %vm86, %v963, %v946
  %v967 = vunpack.c.l.b16 %v965
  %v968 = vpack.c.b16 %v967, %v967
  %969 = vrot.lane.b32.xlu0 %v968, 96
  %v970 = vpop.permute.xlu0 %969
  %v971 = vrot.slane %v970, 4
  %v972 = vsel %vm192, %v971, %v970
  %974 = vst.msk [vmem:[%s108 + $0x10] sm:$0xff] %vm197, %v972
  %975 = vrot.lane.b32.xlu0 %v946, 64
  %v976 = vpop.permute.xlu0 %975
  %v978 = vsel %vm86, %v976, %v963
  %v980 = vunpack.c.l.b16 %v978
  %v981 = vpack.c.b16 %v980, %v980
  %982 = vrot.lane.b32.xlu0 %v981, 96
  %v983 = vpop.permute.xlu0 %982
  %v984 = vrot.slane %v983, 4
  %v985 = vsel %vm192, %v984, %v983
  %987 = vst.msk [vmem:[%s120 + $0x10] sm:$0xff] %vm197, %v985
  %v988 = vld [vmem:[%s0 + $0x4] sm:$0xf]
  %v989 = vld [vmem:[%s1] sm:$0xf]
  %v990 = vld [vmem:[%s1 + $0x4] sm:$0xf]
  %v992 = vunpack.c.l.b16 %v988
  %v993 = vpack.c.b16 %v992, %v992
  %994 = vrot.lane.b32.xlu0 %v993, 96
  %v995 = vpop.permute.xlu0 %994
  %v998 = vunpack.c.l.b16 %v989
  %v999 = vunpack.c.l.b16 %v990
  %v1000 = vpack.c.b16 %v999, %v998
  %v1003 = vsel %vm38, %v995, 0
  %1005 = vmatprep.subr.bf16.mxu0 0
  %1006 = vmatpush1.bf16.msra.mxu0 %v1000
  %1007 = vmatprep.subr.bf16.mxu0 0
  %1008 = vmatpush1.bf16.msra.mxu0 0
  %1009 = vmatprep.subr.bf16.mxu0 0
  %1010 = vmatpush1.bf16.msra.mxu0 0
  %1011 = vmatprep.subr.bf16.mxu0 0
  %1012 = vmatpush1.bf16.msra.mxu0 0
  %1013 = vmatprep.subr.bf16.mxu0 0
  %1014 = vmatpush1.bf16.msra.mxu0 0
  %1015 = vmatprep.subr.bf16.mxu0 0
  %1016 = vmatpush1.bf16.msra.mxu0 0
  %1017 = vmatprep.subr.bf16.mxu0 0
  %1018 = vmatpush1.bf16.msra.mxu0 0
  %1019 = vmatprep.subr.bf16.mxu0 0
  %1020 = vmatpush1.bf16.msra.mxu0 0
  %1021 = vmatprep.subr.bf16.mxu0 0
  %1022 = vmatpush1.bf16.msra.mxu0 0
  %1023 = vmatprep.subr.bf16.mxu0 0
  %1024 = vmatpush1.bf16.msra.mxu0 0
  %1025 = vmatprep.subr.bf16.mxu0 0
  %1026 = vmatpush1.bf16.msra.mxu0 0
  %1027 = vmatprep.subr.bf16.mxu0 0
  %1028 = vmatpush1.bf16.msra.mxu0 0
  %1029 = vmatprep.subr.bf16.mxu0 0
  %1030 = vmatpush1.bf16.msra.mxu0 0
  %1031 = vmatprep.subr.bf16.mxu0 0
  %1032 = vmatpush1.bf16.msra.mxu0 0
  %1033 = vmatprep.subr.bf16.mxu0 0
  %1034 = vmatpush1.bf16.msra.mxu0 0
  %1035 = vmatprep.subr.bf16.mxu0 0
  %1036 = vmatpush1.bf16.msra.mxu0 0
  %1037 = vmatprep.mubr.bf16.mxu0 0
  %1038 = vmatmul.mubr.bf16.gmra.mrb[0].mxu0 %v1003
  %v1039 = vpop.f32.mrb[0].mxu0
  %v1040 = vadd.f32 0.0, %v1039
  %v1041 = vpop.f32.mrb[0].mxu0
  %v1042 = vpop.f32.mrb[0].mxu0
  %v1043 = vpop.f32.mrb[0].mxu0
  %1044 = vdwg.mxu0
  %v1045 = vpack.c.bf16 %v1040, %v1040
  %1047 = vrot.lane.b32.xlu0 %v1045, 32
  %v1048 = vpop.permute.xlu0 %1047
  %v1051 = vsel %vm86, %v1045, %v1048
  %v1053 = vunpack.c.l.b16 %v1051
  %v1054 = vpack.c.b16 %v1053, %v1053
  %1055 = vrot.lane.b32.xlu0 %v1054, 32
  %v1056 = vpop.permute.xlu0 %1055
  %1058 = vst.msk [vmem:[#allocation2 + $0x14] sm:$0xf] %vm96, %v1056
  %1059 = vrot.lane.b32.xlu0 %v1045, 96
  %v1060 = vpop.permute.xlu0 %1059
  %v1062 = vsel %vm86, %v1060, %v1045
  %v1064 = vunpack.c.l.b16 %v1062
  %v1065 = vpack.c.b16 %v1064, %v1064
  %1066 = vrot.lane.b32.xlu0 %v1065, 32
  %v1067 = vpop.permute.xlu0 %1066
  %1069 = vst.msk [vmem:[%s108 + $0x14] sm:$0xf] %vm96, %v1067
  %1070 = vrot.lane.b32.xlu0 %v1045, 64
  %v1071 = vpop.permute.xlu0 %1070
  %v1073 = vsel %vm86, %v1071, %v1060
  %v1075 = vunpack.c.l.b16 %v1073
  %v1076 = vpack.c.b16 %v1075, %v1075
  %1077 = vrot.lane.b32.xlu0 %v1076, 32
  %v1078 = vpop.permute.xlu0 %1077
  %1080 = vst.msk [vmem:[%s120 + $0x14] sm:$0xf] %vm96, %v1078
  %v1081 = vld [vmem:[%s0 + $0x4] sm:$0xf]
  %v1082 = vld [vmem:[%s1] sm:$0xf]
  %v1083 = vld [vmem:[%s1 + $0x4] sm:$0xf]
  %v1085 = vunpack.c.l.b16 %v1081
  %v1086 = vpack.c.b16 %v1085, %v1085
  %1087 = vrot.lane.b32.xlu0 %v1086, 80
  %v1088 = vpop.permute.xlu0 %1087
  %v1091 = vunpack.c.l.b16 %v1082
  %v1092 = vunpack.c.l.b16 %v1083
  %v1093 = vpack.c.b16 %v1092, %v1091
  %v1096 = vsel %vm38, %v1088, 0
  %1098 = vmatprep.subr.bf16.mxu0 0
  %1099 = vmatpush1.bf16.msra.mxu0 %v1093
  %1100 = vmatprep.subr.bf16.mxu0 0
  %1101 = vmatpush1.bf16.msra.mxu0 0
  %1102 = vmatprep.subr.bf16.mxu0 0
  %1103 = vmatpush1.bf16.msra.mxu0 0
  %1104 = vmatprep.subr.bf16.mxu0 0
  %1105 = vmatpush1.bf16.msra.mxu0 0
  %1106 = vmatprep.subr.bf16.mxu0 0
  %1107 = vmatpush1.bf16.msra.mxu0 0
  %1108 = vmatprep.subr.bf16.mxu0 0
  %1109 = vmatpush1.bf16.msra.mxu0 0
  %1110 = vmatprep.subr.bf16.mxu0 0
  %1111 = vmatpush1.bf16.msra.mxu0 0
  %1112 = vmatprep.subr.bf16.mxu0 0
  %1113 = vmatpush1.bf16.msra.mxu0 0
  %1114 = vmatprep.subr.bf16.mxu0 0
  %1115 = vmatpush1.bf16.msra.mxu0 0
  %1116 = vmatprep.subr.bf16.mxu0 0
  %1117 = vmatpush1.bf16.msra.mxu0 0
  %1118 = vmatprep.subr.bf16.mxu0 0
  %1119 = vmatpush1.bf16.msra.mxu0 0
  %1120 = vmatprep.subr.bf16.mxu0 0
  %1121 = vmatpush1.bf16.msra.mxu0 0
  %1122 = vmatprep.subr.bf16.mxu0 0
  %1123 = vmatpush1.bf16.msra.mxu0 0
  %1124 = vmatprep.subr.bf16.mxu0 0
  %1125 = vmatpush1.bf16.msra.mxu0 0
  %1126 = vmatprep.subr.bf16.mxu0 0
  %1127 = vmatpush1.bf16.msra.mxu0 0
  %1128 = vmatprep.subr.bf16.mxu0 0
  %1129 = vmatpush1.bf16.msra.mxu0 0
  %1130 = vmatprep.mubr.bf16.mxu0 0
  %1131 = vmatmul.mubr.bf16.gmra.mrb[0].mxu0 %v1096
  %v1132 = vpop.f32.mrb[0].mxu0
  %v1133 = vadd.f32 0.0, %v1132
  %v1134 = vpop.f32.mrb[0].mxu0
  %v1135 = vpop.f32.mrb[0].mxu0
  %v1136 = vpop.f32.mrb[0].mxu0
  %1137 = vdwg.mxu0
  %v1138 = vpack.c.bf16 %v1133, %v1133
  %1140 = vrot.lane.b32.xlu0 %v1138, 32
  %v1141 = vpop.permute.xlu0 %1140
  %v1144 = vsel %vm86, %v1138, %v1141
  %v1146 = vunpack.c.l.b16 %v1144
  %v1147 = vpack.c.b16 %v1146, %v1146
  %1148 = vrot.lane.b32.xlu0 %v1147, 96
  %v1149 = vpop.permute.xlu0 %1148
  %v1150 = vrot.slane %v1149, 4
  %v1151 = vsel %vm192, %v1150, %v1149
  %1153 = vst.msk [vmem:[#allocation2 + $0x14] sm:$0xff] %vm197, %v1151
  %1154 = vrot.lane.b32.xlu0 %v1138, 96
  %v1155 = vpop.permute.xlu0 %1154
  %v1157 = vsel %vm86, %v1155, %v1138
  %v1159 = vunpack.c.l.b16 %v1157
  %v1160 = vpack.c.b16 %v1159, %v1159
  %1161 = vrot.lane.b32.xlu0 %v1160, 96
  %v1162 = vpop.permute.xlu0 %1161
  %v1163 = vrot.slane %v1162, 4
  %v1164 = vsel %vm192, %v1163, %v1162
  %1166 = vst.msk [vmem:[%s108 + $0x14] sm:$0xff] %vm197, %v1164
  %1167 = vrot.lane.b32.xlu0 %v1138, 64
  %v1168 = vpop.permute.xlu0 %1167
  %v1170 = vsel %vm86, %v1168, %v1155
  %v1172 = vunpack.c.l.b16 %v1170
  %v1173 = vpack.c.b16 %v1172, %v1172
  %1174 = vrot.lane.b32.xlu0 %v1173, 96
  %v1175 = vpop.permute.xlu0 %1174
  %v1176 = vrot.slane %v1175, 4
  %v1177 = vsel %vm192, %v1176, %v1175
  %1179 = vst.msk [vmem:[%s120 + $0x14] sm:$0xff] %vm197, %v1177
  %v1180 = vld [vmem:[%s0 + $0x4] sm:$0xf]
  %v1181 = vld [vmem:[%s1] sm:$0xf]
  %v1182 = vld [vmem:[%s1 + $0x4] sm:$0xf]
  %v1184 = vunpack.c.l.b16 %v1180
  %v1185 = vpack.c.b16 %v1184, %v1184
  %1186 = vrot.lane.b32.xlu0 %v1185, 64
  %v1187 = vpop.permute.xlu0 %1186
  %v1190 = vunpack.c.l.b16 %v1181
  %v1191 = vunpack.c.l.b16 %v1182
  %v1192 = vpack.c.b16 %v1191, %v1190
  %v1195 = vsel %vm38, %v1187, 0
  %1197 = vmatprep.subr.bf16.mxu0 0
  %1198 = vmatpush1.bf16.msra.mxu0 %v1192
  %1199 = vmatprep.subr.bf16.mxu0 0
  %1200 = vmatpush1.bf16.msra.mxu0 0
  %1201 = vmatprep.subr.bf16.mxu0 0
  %1202 = vmatpush1.bf16.msra.mxu0 0
  %1203 = vmatprep.subr.bf16.mxu0 0
  %1204 = vmatpush1.bf16.msra.mxu0 0
  %1205 = vmatprep.subr.bf16.mxu0 0
  %1206 = vmatpush1.bf16.msra.mxu0 0
  %1207 = vmatprep.subr.bf16.mxu0 0
  %1208 = vmatpush1.bf16.msra.mxu0 0
  %1209 = vmatprep.subr.bf16.mxu0 0
  %1210 = vmatpush1.bf16.msra.mxu0 0
  %1211 = vmatprep.subr.bf16.mxu0 0
  %1212 = vmatpush1.bf16.msra.mxu0 0
  %1213 = vmatprep.subr.bf16.mxu0 0
  %1214 = vmatpush1.bf16.msra.mxu0 0
  %1215 = vmatprep.subr.bf16.mxu0 0
  %1216 = vmatpush1.bf16.msra.mxu0 0
  %1217 = vmatprep.subr.bf16.mxu0 0
  %1218 = vmatpush1.bf16.msra.mxu0 0
  %1219 = vmatprep.subr.bf16.mxu0 0
  %1220 = vmatpush1.bf16.msra.mxu0 0
  %1221 = vmatprep.subr.bf16.mxu0 0
  %1222 = vmatpush1.bf16.msra.mxu0 0
  %1223 = vmatprep.subr.bf16.mxu0 0
  %1224 = vmatpush1.bf16.msra.mxu0 0
  %1225 = vmatprep.subr.bf16.mxu0 0
  %1226 = vmatpush1.bf16.msra.mxu0 0
  %1227 = vmatprep.subr.bf16.mxu0 0
  %1228 = vmatpush1.bf16.msra.mxu0 0
  %1229 = vmatprep.mubr.bf16.mxu0 0
  %1230 = vmatmul.mubr.bf16.gmra.mrb[0].mxu0 %v1195
  %v1231 = vpop.f32.mrb[0].mxu0
  %v1232 = vadd.f32 0.0, %v1231
  %v1233 = vpop.f32.mrb[0].mxu0
  %v1234 = vpop.f32.mrb[0].mxu0
  %v1235 = vpop.f32.mrb[0].mxu0
  %1236 = vdwg.mxu0
  %v1237 = vpack.c.bf16 %v1232, %v1232
  %1239 = vrot.lane.b32.xlu0 %v1237, 32
  %v1240 = vpop.permute.xlu0 %1239
  %v1243 = vsel %vm86, %v1237, %v1240
  %v1245 = vunpack.c.l.b16 %v1243
  %v1246 = vpack.c.b16 %v1245, %v1245
  %1247 = vrot.lane.b32.xlu0 %v1246, 32
  %v1248 = vpop.permute.xlu0 %1247
  %1250 = vst.msk [vmem:[#allocation2 + $0x18] sm:$0xf] %vm96, %v1248
  %1251 = vrot.lane.b32.xlu0 %v1237, 96
  %v1252 = vpop.permute.xlu0 %1251
  %v1254 = vsel %vm86, %v1252, %v1237
  %v1256 = vunpack.c.l.b16 %v1254
  %v1257 = vpack.c.b16 %v1256, %v1256
  %1258 = vrot.lane.b32.xlu0 %v1257, 32
  %v1259 = vpop.permute.xlu0 %1258
  %1261 = vst.msk [vmem:[%s108 + $0x18] sm:$0xf] %vm96, %v1259
  %1262 = vrot.lane.b32.xlu0 %v1237, 64
  %v1263 = vpop.permute.xlu0 %1262
  %v1265 = vsel %vm86, %v1263, %v1252
  %v1267 = vunpack.c.l.b16 %v1265
  %v1268 = vpack.c.b16 %v1267, %v1267
  %1269 = vrot.lane.b32.xlu0 %v1268, 32
  %v1270 = vpop.permute.xlu0 %1269
  %1272 = vst.msk [vmem:[%s120 + $0x18] sm:$0xf] %vm96, %v1270
  %v1273 = vld [vmem:[%s0 + $0x4] sm:$0xf]
  %v1274 = vld [vmem:[%s1] sm:$0xf]
  %v1275 = vld [vmem:[%s1 + $0x4] sm:$0xf]
  %v1277 = vunpack.c.l.b16 %v1273
  %v1278 = vpack.c.b16 %v1277, %v1277
  %1279 = vrot.lane.b32.xlu0 %v1278, 48
  %v1280 = vpop.permute.xlu0 %1279
  %v1283 = vunpack.c.l.b16 %v1274
  %v1284 = vunpack.c.l.b16 %v1275
  %v1285 = vpack.c.b16 %v1284, %v1283
  %v1288 = vsel %vm38, %v1280, 0
  %1290 = vmatprep.subr.bf16.mxu0 0
  %1291 = vmatpush1.bf16.msra.mxu0 %v1285
  %1292 = vmatprep.subr.bf16.mxu0 0
  %1293 = vmatpush1.bf16.msra.mxu0 0
  %1294 = vmatprep.subr.bf16.mxu0 0
  %1295 = vmatpush1.bf16.msra.mxu0 0
  %1296 = vmatprep.subr.bf16.mxu0 0
  %1297 = vmatpush1.bf16.msra.mxu0 0
  %1298 = vmatprep.subr.bf16.mxu0 0
  %1299 = vmatpush1.bf16.msra.mxu0 0
  %1300 = vmatprep.subr.bf16.mxu0 0
  %1301 = vmatpush1.bf16.msra.mxu0 0
  %1302 = vmatprep.subr.bf16.mxu0 0
  %1303 = vmatpush1.bf16.msra.mxu0 0
  %1304 = vmatprep.subr.bf16.mxu0 0
  %1305 = vmatpush1.bf16.msra.mxu0 0
  %1306 = vmatprep.subr.bf16.mxu0 0
  %1307 = vmatpush1.bf16.msra.mxu0 0
  %1308 = vmatprep.subr.bf16.mxu0 0
  %1309 = vmatpush1.bf16.msra.mxu0 0
  %1310 = vmatprep.subr.bf16.mxu0 0
  %1311 = vmatpush1.bf16.msra.mxu0 0
  %1312 = vmatprep.subr.bf16.mxu0 0
  %1313 = vmatpush1.bf16.msra.mxu0 0
  %1314 = vmatprep.subr.bf16.mxu0 0
  %1315 = vmatpush1.bf16.msra.mxu0 0
  %1316 = vmatprep.subr.bf16.mxu0 0
  %1317 = vmatpush1.bf16.msra.mxu0 0
  %1318 = vmatprep.subr.bf16.mxu0 0
  %1319 = vmatpush1.bf16.msra.mxu0 0
  %1320 = vmatprep.subr.bf16.mxu0 0
  %1321 = vmatpush1.bf16.msra.mxu0 0
  %1322 = vmatprep.mubr.bf16.mxu0 0
  %1323 = vmatmul.mubr.bf16.gmra.mrb[0].mxu0 %v1288
  %v1324 = vpop.f32.mrb[0].mxu0
  %v1325 = vadd.f32 0.0, %v1324
  %v1326 = vpop.f32.mrb[0].mxu0
  %v1327 = vpop.f32.mrb[0].mxu0
  %v1328 = vpop.f32.mrb[0].mxu0
  %1329 = vdwg.mxu0
  %v1330 = vpack.c.bf16 %v1325, %v1325
  %1332 = vrot.lane.b32.xlu0 %v1330, 32
  %v1333 = vpop.permute.xlu0 %1332
  %v1336 = vsel %vm86, %v1330, %v1333
  %v1338 = vunpack.c.l.b16 %v1336
  %v1339 = vpack.c.b16 %v1338, %v1338
  %1340 = vrot.lane.b32.xlu0 %v1339, 96
  %v1341 = vpop.permute.xlu0 %1340
  %v1342 = vrot.slane %v1341, 4
  %v1343 = vsel %vm192, %v1342, %v1341
  %1345 = vst.msk [vmem:[#allocation2 + $0x18] sm:$0xff] %vm197, %v1343
  %1346 = vrot.lane.b32.xlu0 %v1330, 96
  %v1347 = vpop.permute.xlu0 %1346
  %v1349 = vsel %vm86, %v1347, %v1330
  %v1351 = vunpack.c.l.b16 %v1349
  %v1352 = vpack.c.b16 %v1351, %v1351
  %1353 = vrot.lane.b32.xlu0 %v1352, 96
  %v1354 = vpop.permute.xlu0 %1353
  %v1355 = vrot.slane %v1354, 4
  %v1356 = vsel %vm192, %v1355, %v1354
  %1358 = vst.msk [vmem:[%s108 + $0x18] sm:$0xff] %vm197, %v1356
  %1359 = vrot.lane.b32.xlu0 %v1330, 64
  %v1360 = vpop.permute.xlu0 %1359
  %v1362 = vsel %vm86, %v1360, %v1347
  %v1364 = vunpack.c.l.b16 %v1362
  %v1365 = vpack.c.b16 %v1364, %v1364
  %1366 = vrot.lane.b32.xlu0 %v1365, 96
  %v1367 = vpop.permute.xlu0 %1366
  %v1368 = vrot.slane %v1367, 4
  %v1369 = vsel %vm192, %v1368, %v1367
  %1371 = vst.msk [vmem:[%s120 + $0x18] sm:$0xff] %vm197, %v1369
  %v1372 = vld [vmem:[%s0 + $0x4] sm:$0xf]
  %v1373 = vld [vmem:[%s1] sm:$0xf]
  %v1374 = vld [vmem:[%s1 + $0x4] sm:$0xf]
  %v1376 = vunpack.c.l.b16 %v1372
  %v1377 = vpack.c.b16 %v1376, %v1376
  %1378 = vrot.lane.b32.xlu0 %v1377, 32
  %v1379 = vpop.permute.xlu0 %1378
  %v1382 = vunpack.c.l.b16 %v1373
  %v1383 = vunpack.c.l.b16 %v1374
  %v1384 = vpack.c.b16 %v1383, %v1382
  %v1387 = vsel %vm38, %v1379, 0
  %1389 = vmatprep.subr.bf16.mxu0 0
  %1390 = vmatpush1.bf16.msra.mxu0 %v1384
  %1391 = vmatprep.subr.bf16.mxu0 0
  %1392 = vmatpush1.bf16.msra.mxu0 0
  %1393 = vmatprep.subr.bf16.mxu0 0
  %1394 = vmatpush1.bf16.msra.mxu0 0
  %1395 = vmatprep.subr.bf16.mxu0 0
  %1396 = vmatpush1.bf16.msra.mxu0 0
  %1397 = vmatprep.subr.bf16.mxu0 0
  %1398 = vmatpush1.bf16.msra.mxu0 0
  %1399 = vmatprep.subr.bf16.mxu0 0
  %1400 = vmatpush1.bf16.msra.mxu0 0
  %1401 = vmatprep.subr.bf16.mxu0 0
  %1402 = vmatpush1.bf16.msra.mxu0 0
  %1403 = vmatprep.subr.bf16.mxu0 0
  %1404 = vmatpush1.bf16.msra.mxu0 0
  %1405 = vmatprep.subr.bf16.mxu0 0
  %1406 = vmatpush1.bf16.msra.mxu0 0
  %1407 = vmatprep.subr.bf16.mxu0 0
  %1408 = vmatpush1.bf16.msra.mxu0 0
  %1409 = vmatprep.subr.bf16.mxu0 0
  %1410 = vmatpush1.bf16.msra.mxu0 0
  %1411 = vmatprep.subr.bf16.mxu0 0
  %1412 = vmatpush1.bf16.msra.mxu0 0
  %1413 = vmatprep.subr.bf16.mxu0 0
  %1414 = vmatpush1.bf16.msra.mxu0 0
  %1415 = vmatprep.subr.bf16.mxu0 0
  %1416 = vmatpush1.bf16.msra.mxu0 0
  %1417 = vmatprep.subr.bf16.mxu0 0
  %1418 = vmatpush1.bf16.msra.mxu0 0
  %1419 = vmatprep.subr.bf16.mxu0 0
  %1420 = vmatpush1.bf16.msra.mxu0 0
  %1421 = vmatprep.mubr.bf16.mxu0 0
  %1422 = vmatmul.mubr.bf16.gmra.mrb[0].mxu0 %v1387
  %v1423 = vpop.f32.mrb[0].mxu0
  %v1424 = vadd.f32 0.0, %v1423
  %v1425 = vpop.f32.mrb[0].mxu0
  %v1426 = vpop.f32.mrb[0].mxu0
  %v1427 = vpop.f32.mrb[0].mxu0
  %1428 = vdwg.mxu0
  %v1429 = vpack.c.bf16 %v1424, %v1424
  %1431 = vrot.lane.b32.xlu0 %v1429, 32
  %v1432 = vpop.permute.xlu0 %1431
  %v1435 = vsel %vm86, %v1429, %v1432
  %v1437 = vunpack.c.l.b16 %v1435
  %v1438 = vpack.c.b16 %v1437, %v1437
  %1439 = vrot.lane.b32.xlu0 %v1438, 32
  %v1440 = vpop.permute.xlu0 %1439
  %1442 = vst.msk [vmem:[#allocation2 + $0x1c] sm:$0xf] %vm96, %v1440
  %1443 = vrot.lane.b32.xlu0 %v1429, 96
  %v1444 = vpop.permute.xlu0 %1443
  %v1446 = vsel %vm86, %v1444, %v1429
  %v1448 = vunpack.c.l.b16 %v1446
  %v1449 = vpack.c.b16 %v1448, %v1448
  %1450 = vrot.lane.b32.xlu0 %v1449, 32
  %v1451 = vpop.permute.xlu0 %1450
  %1453 = vst.msk [vmem:[%s108 + $0x1c] sm:$0xf] %vm96, %v1451
  %1454 = vrot.lane.b32.xlu0 %v1429, 64
  %v1455 = vpop.permute.xlu0 %1454
  %v1457 = vsel %vm86, %v1455, %v1444
  %v1459 = vunpack.c.l.b16 %v1457
  %v1460 = vpack.c.b16 %v1459, %v1459
  %1461 = vrot.lane.b32.xlu0 %v1460, 32
  %v1462 = vpop.permute.xlu0 %1461
  %1464 = vst.msk [vmem:[%s120 + $0x1c] sm:$0xf] %vm96, %v1462
  %v1465 = vld [vmem:[%s0 + $0x4] sm:$0xf]
  %v1466 = vld [vmem:[%s1] sm:$0xf]
  %v1467 = vld [vmem:[%s1 + $0x4] sm:$0xf]
  %v1469 = vunpack.c.l.b16 %v1465
  %v1470 = vpack.c.b16 %v1469, %v1469
  %1471 = vrot.lane.b32.xlu0 %v1470, 16
  %v1472 = vpop.permute.xlu0 %1471
  %v1475 = vunpack.c.l.b16 %v1466
  %v1476 = vunpack.c.l.b16 %v1467
  %v1477 = vpack.c.b16 %v1476, %v1475
  %v1480 = vsel %vm38, %v1472, 0
  %1482 = vmatprep.subr.bf16.mxu0 0
  %1483 = vmatpush1.bf16.msra.mxu0 %v1477
  %1484 = vmatprep.subr.bf16.mxu0 0
  %1485 = vmatpush1.bf16.msra.mxu0 0
  %1486 = vmatprep.subr.bf16.mxu0 0
  %1487 = vmatpush1.bf16.msra.mxu0 0
  %1488 = vmatprep.subr.bf16.mxu0 0
  %1489 = vmatpush1.bf16.msra.mxu0 0
  %1490 = vmatprep.subr.bf16.mxu0 0
  %1491 = vmatpush1.bf16.msra.mxu0 0
  %1492 = vmatprep.subr.bf16.mxu0 0
  %1493 = vmatpush1.bf16.msra.mxu0 0
  %1494 = vmatprep.subr.bf16.mxu0 0
  %1495 = vmatpush1.bf16.msra.mxu0 0
  %1496 = vmatprep.subr.bf16.mxu0 0
  %1497 = vmatpush1.bf16.msra.mxu0 0
  %1498 = vmatprep.subr.bf16.mxu0 0
  %1499 = vmatpush1.bf16.msra.mxu0 0
  %1500 = vmatprep.subr.bf16.mxu0 0
  %1501 = vmatpush1.bf16.msra.mxu0 0
  %1502 = vmatprep.subr.bf16.mxu0 0
  %1503 = vmatpush1.bf16.msra.mxu0 0
  %1504 = vmatprep.subr.bf16.mxu0 0
  %1505 = vmatpush1.bf16.msra.mxu0 0
  %1506 = vmatprep.subr.bf16.mxu0 0
  %1507 = vmatpush1.bf16.msra.mxu0 0
  %1508 = vmatprep.subr.bf16.mxu0 0
  %1509 = vmatpush1.bf16.msra.mxu0 0
  %1510 = vmatprep.subr.bf16.mxu0 0
  %1511 = vmatpush1.bf16.msra.mxu0 0
  %1512 = vmatprep.subr.bf16.mxu0 0
  %1513 = vmatpush1.bf16.msra.mxu0 0
  %1514 = vmatprep.mubr.bf16.mxu0 0
  %1515 = vmatmul.mubr.bf16.gmra.mrb[0].mxu0 %v1480
  %v1516 = vpop.f32.mrb[0].mxu0
  %v1517 = vadd.f32 0.0, %v1516
  %v1518 = vpop.f32.mrb[0].mxu0
  %v1519 = vpop.f32.mrb[0].mxu0
  %v1520 = vpop.f32.mrb[0].mxu0
  %1521 = vdwg.mxu0
  %v1522 = vpack.c.bf16 %v1517, %v1517
  %1524 = vrot.lane.b32.xlu0 %v1522, 32
  %v1525 = vpop.permute.xlu0 %1524
  %v1528 = vsel %vm86, %v1522, %v1525
  %v1530 = vunpack.c.l.b16 %v1528
  %v1531 = vpack.c.b16 %v1530, %v1530
  %1532 = vrot.lane.b32.xlu0 %v1531, 96
  %v1533 = vpop.permute.xlu0 %1532
  %v1534 = vrot.slane %v1533, 4
  %v1535 = vsel %vm192, %v1534, %v1533
  %1537 = vst.msk [vmem:[#allocation2 + $0x1c] sm:$0xff] %vm197, %v1535
  %1538 = vrot.lane.b32.xlu0 %v1522, 96
  %v1539 = vpop.permute.xlu0 %1538
  %v1541 = vsel %vm86, %v1539, %v1522
  %v1543 = vunpack.c.l.b16 %v1541
  %v1544 = vpack.c.b16 %v1543, %v1543
  %1545 = vrot.lane.b32.xlu0 %v1544, 96
  %v1546 = vpop.permute.xlu0 %1545
  %v1547 = vrot.slane %v1546, 4
  %v1548 = vsel %vm192, %v1547, %v1546
  %1550 = vst.msk [vmem:[%s108 + $0x1c] sm:$0xff] %vm197, %v1548
  %1551 = vrot.lane.b32.xlu0 %v1522, 64
  %v1552 = vpop.permute.xlu0 %1551
  %v1554 = vsel %vm86, %v1552, %v1539
  %v1556 = vunpack.c.l.b16 %v1554
  %v1557 = vpack.c.b16 %v1556, %v1556
  %1558 = vrot.lane.b32.xlu0 %v1557, 96
  %v1559 = vpop.permute.xlu0 %1558
  %v1560 = vrot.slane %v1559, 4
  %v1561 = vsel %vm192, %v1560, %v1559
  %1563 = vst.msk [vmem:[%s120 + $0x1c] sm:$0xff] %vm197, %v1561
  %v1564 = vld [vmem:[#allocation2] sm:$0x33]
  %v1565 = vld [vmem:[#allocation2 + $0x8] sm:$0x33]
  %v1566 = vld [vmem:[#allocation2 + $0x10] sm:$0x33]
  %v1567 = vld [vmem:[#allocation2 + $0x18] sm:$0x33]
  %v1568 = vld [vmem:[%s2] sm:$0xf]
  %v1569 = vld [vmem:[%s108] sm:$0x33]
  %v1570 = vld [vmem:[%s108 + $0x8] sm:$0x33]
  %v1571 = vld [vmem:[%s108 + $0x10] sm:$0x33]
  %v1572 = vld [vmem:[%s108 + $0x18] sm:$0x33]
  %s1573 = scalar_lea.vmem %s2, 4
  %v1574 = vld [vmem:[%s1573] sm:$0xf]
  %v1579 = vunpack.c.l.b16 %v1569
  %v1580 = vunpack.c.h.b16 %v1569
  %v1581 = vunpack.c.l.b16 %v1570
  %v1582 = vunpack.c.h.b16 %v1570
  %v1583 = vunpack.c.l.b16 %v1571
  %v1584 = vunpack.c.h.b16 %v1571
  %v1585 = vunpack.c.l.b16 %v1572
  %v1586 = vunpack.c.h.b16 %v1572
  %v1587 = vpack.c.b16 %v1579, %v1579
  %v1588 = vpack.c.b16 %v1580, %v1580
  %v1589 = vpack.c.b16 %v1581, %v1581
  %v1590 = vpack.c.b16 %v1582, %v1582
  %v1591 = vpack.c.b16 %v1583, %v1583
  %v1592 = vpack.c.b16 %v1584, %v1584
  %v1593 = vpack.c.b16 %v1585, %v1585
  %v1594 = vpack.c.b16 %v1586, %v1586
  %vm1595 = vcmask 31744
  %v1597 = vsel %vm1595, %v1574, 0
  %vm1599 = vcmask 1041408
  %v1601 = vsel %vm1599, %v1587, 0
  %v1604 = vsel %vm1599, %v1588, 0
  %v1607 = vsel %vm1599, %v1589, 0
  %v1610 = vsel %vm1599, %v1590, 0
  %v1613 = vsel %vm1599, %v1591, 0
  %v1616 = vsel %vm1599, %v1592, 0
  %v1619 = vsel %vm1599, %v1593, 0
  %v1622 = vsel %vm1599, %v1594, 0
  %1624 = vmatprep.subr.bf16.mxu0 %v1604
  %1625 = vmatpush1.bf16.msra.mxu0 %v1601
  %1626 = vmatprep.subr.bf16.mxu0 0
  %1627 = vmatpush1.bf16.msra.mxu0 0
  %1628 = vmatprep.subr.bf16.mxu0 0
  %1629 = vmatpush1.bf16.msra.mxu0 0
  %1630 = vmatprep.subr.bf16.mxu0 0
  %1631 = vmatpush1.bf16.msra.mxu0 0
  %1632 = vmatprep.subr.bf16.mxu0 0
  %1633 = vmatpush1.bf16.msra.mxu0 0
  %1634 = vmatprep.subr.bf16.mxu0 0
  %1635 = vmatpush1.bf16.msra.mxu0 0
  %1636 = vmatprep.subr.bf16.mxu0 0
  %1637 = vmatpush1.bf16.msra.mxu0 0
  %1638 = vmatprep.subr.bf16.mxu0 0
  %1639 = vmatpush1.bf16.msra.mxu0 0
  %1640 = vmatprep.subr.bf16.mxu0 0
  %1641 = vmatpush1.bf16.msra.mxu0 0
  %1642 = vmatprep.subr.bf16.mxu0 0
  %1643 = vmatpush1.bf16.msra.mxu0 0
  %1644 = vmatprep.subr.bf16.mxu0 0
  %1645 = vmatpush1.bf16.msra.mxu0 0
  %1646 = vmatprep.subr.bf16.mxu0 0
  %1647 = vmatpush1.bf16.msra.mxu0 0
  %1648 = vmatprep.subr.bf16.mxu0 0
  %1649 = vmatpush1.bf16.msra.mxu0 0
  %1650 = vmatprep.subr.bf16.mxu0 0
  %1651 = vmatpush1.bf16.msra.mxu0 0
  %1652 = vmatprep.subr.bf16.mxu0 0
  %1653 = vmatpush1.bf16.msra.mxu0 0
  %1654 = vmatprep.subr.bf16.mxu0 0
  %1655 = vmatpush1.bf16.msra.mxu0 0
  %1656 = vmatprep.mubr.bf16.mxu0 0
  %1657 = vmatmul.mubr.bf16.gmra.mrb[0].mxu0 %v1597
  %v1658 = vpop.f32.mrb[0].mxu0
  %v1659 = vadd.f32 0.0, %v1658
  %v1660 = vpop.f32.mrb[0].mxu0
  %v1661 = vadd.f32 0.0, %v1660
  %v1662 = vpop.f32.mrb[0].mxu0
  %v1663 = vpop.f32.mrb[0].mxu0
  %1664 = vdwg.mxu0
  %1665 = vmatprep.subr.bf16.mxu0 %v1610
  %1666 = vmatpush1.bf16.msra.mxu0 %v1607
  %1667 = vmatprep.subr.bf16.mxu0 0
  %1668 = vmatpush1.bf16.msra.mxu0 0
  %1669 = vmatprep.subr.bf16.mxu0 0
  %1670 = vmatpush1.bf16.msra.mxu0 0
  %1671 = vmatprep.subr.bf16.mxu0 0
  %1672 = vmatpush1.bf16.msra.mxu0 0
  %1673 = vmatprep.subr.bf16.mxu0 0
  %1674 = vmatpush1.bf16.msra.mxu0 0
  %1675 = vmatprep.subr.bf16.mxu0 0
  %1676 = vmatpush1.bf16.msra.mxu0 0
  %1677 = vmatprep.subr.bf16.mxu0 0
  %1678 = vmatpush1.bf16.msra.mxu0 0
  %1679 = vmatprep.subr.bf16.mxu0 0
  %1680 = vmatpush1.bf16.msra.mxu0 0
  %1681 = vmatprep.subr.bf16.mxu0 0
  %1682 = vmatpush1.bf16.msra.mxu0 0
  %1683 = vmatprep.subr.bf16.mxu0 0
  %1684 = vmatpush1.bf16.msra.mxu0 0
  %1685 = vmatprep.subr.bf16.mxu0 0
  %1686 = vmatpush1.bf16.msra.mxu0 0
  %1687 = vmatprep.subr.bf16.mxu0 0
  %1688 = vmatpush1.bf16.msra.mxu0 0
  %1689 = vmatprep.subr.bf16.mxu0 0
  %1690 = vmatpush1.bf16.msra.mxu0 0
  %1691 = vmatprep.subr.bf16.mxu0 0
  %1692 = vmatpush1.bf16.msra.mxu0 0
  %1693 = vmatprep.subr.bf16.mxu0 0
  %1694 = vmatpush1.bf16.msra.mxu0 0
  %1695 = vmatprep.subr.bf16.mxu0 0
  %1696 = vmatpush1.bf16.msra.mxu0 0
  %1697 = vmatprep.mubr.bf16.mxu0 0
  %1698 = vmatmul.mubr.bf16.gmra.mrb[0].mxu0 %v1597
  %v1699 = vpop.f32.mrb[0].mxu0
  %v1700 = vadd.f32 0.0, %v1699
  %v1701 = vpop.f32.mrb[0].mxu0
  %v1702 = vadd.f32 0.0, %v1701
  %v1703 = vpop.f32.mrb[0].mxu0
  %v1704 = vpop.f32.mrb[0].mxu0
  %1705 = vdwg.mxu0
  %1706 = vmatprep.subr.bf16.mxu0 %v1616
  %1707 = vmatpush1.bf16.msra.mxu0 %v1613
  %1708 = vmatprep.subr.bf16.mxu0 0
  %1709 = vmatpush1.bf16.msra.mxu0 0
  %1710 = vmatprep.subr.bf16.mxu0 0
  %1711 = vmatpush1.bf16.msra.mxu0 0
  %1712 = vmatprep.subr.bf16.mxu0 0
  %1713 = vmatpush1.bf16.msra.mxu0 0
  %1714 = vmatprep.subr.bf16.mxu0 0
  %1715 = vmatpush1.bf16.msra.mxu0 0
  %1716 = vmatprep.subr.bf16.mxu0 0
  %1717 = vmatpush1.bf16.msra.mxu0 0
  %1718 = vmatprep.subr.bf16.mxu0 0
  %1719 = vmatpush1.bf16.msra.mxu0 0
  %1720 = vmatprep.subr.bf16.mxu0 0
  %1721 = vmatpush1.bf16.msra.mxu0 0
  %1722 = vmatprep.subr.bf16.mxu0 0
  %1723 = vmatpush1.bf16.msra.mxu0 0
  %1724 = vmatprep.subr.bf16.mxu0 0
  %1725 = vmatpush1.bf16.msra.mxu0 0
  %1726 = vmatprep.subr.bf16.mxu0 0
  %1727 = vmatpush1.bf16.msra.mxu0 0
  %1728 = vmatprep.subr.bf16.mxu0 0
  %1729 = vmatpush1.bf16.msra.mxu0 0
  %1730 = vmatprep.subr.bf16.mxu0 0
  %1731 = vmatpush1.bf16.msra.mxu0 0
  %1732 = vmatprep.subr.bf16.mxu0 0
  %1733 = vmatpush1.bf16.msra.mxu0 0
  %1734 = vmatprep.subr.bf16.mxu0 0
  %1735 = vmatpush1.bf16.msra.mxu0 0
  %1736 = vmatprep.subr.bf16.mxu0 0
  %1737 = vmatpush1.bf16.msra.mxu0 0
  %1738 = vmatprep.mubr.bf16.mxu0 0
  %1739 = vmatmul.mubr.bf16.gmra.mrb[0].mxu0 %v1597
  %v1740 = vpop.f32.mrb[0].mxu0
  %v1741 = vadd.f32 0.0, %v1740
  %v1742 = vpop.f32.mrb[0].mxu0
  %v1743 = vadd.f32 0.0, %v1742
  %v1744 = vpop.f32.mrb[0].mxu0
  %v1745 = vpop.f32.mrb[0].mxu0
  %1746 = vdwg.mxu0
  %1747 = vmatprep.subr.bf16.mxu0 %v1622
  %1748 = vmatpush1.bf16.msra.mxu0 %v1619
  %1749 = vmatprep.subr.bf16.mxu0 0
  %1750 = vmatpush1.bf16.msra.mxu0 0
  %1751 = vmatprep.subr.bf16.mxu0 0
  %1752 = vmatpush1.bf16.msra.mxu0 0
  %1753 = vmatprep.subr.bf16.mxu0 0
  %1754 = vmatpush1.bf16.msra.mxu0 0
  %1755 = vmatprep.subr.bf16.mxu0 0
  %1756 = vmatpush1.bf16.msra.mxu0 0
  %1757 = vmatprep.subr.bf16.mxu0 0
  %1758 = vmatpush1.bf16.msra.mxu0 0
  %1759 = vmatprep.subr.bf16.mxu0 0
  %1760 = vmatpush1.bf16.msra.mxu0 0
  %1761 = vmatprep.subr.bf16.mxu0 0
  %1762 = vmatpush1.bf16.msra.mxu0 0
  %1763 = vmatprep.subr.bf16.mxu0 0
  %1764 = vmatpush1.bf16.msra.mxu0 0
  %1765 = vmatprep.subr.bf16.mxu0 0
  %1766 = vmatpush1.bf16.msra.mxu0 0
  %1767 = vmatprep.subr.bf16.mxu0 0
  %1768 = vmatpush1.bf16.msra.mxu0 0
  %1769 = vmatprep.subr.bf16.mxu0 0
  %1770 = vmatpush1.bf16.msra.mxu0 0
  %1771 = vmatprep.subr.bf16.mxu0 0
  %1772 = vmatpush1.bf16.msra.mxu0 0
  %1773 = vmatprep.subr.bf16.mxu0 0
  %1774 = vmatpush1.bf16.msra.mxu0 0
  %1775 = vmatprep.subr.bf16.mxu0 0
  %1776 = vmatpush1.bf16.msra.mxu0 0
  %1777 = vmatprep.subr.bf16.mxu0 0
  %1778 = vmatpush1.bf16.msra.mxu0 0
  %1779 = vmatprep.mubr.bf16.mxu0 0
  %1780 = vmatmul.mubr.bf16.gmra.mrb[0].mxu0 %v1597
  %v1781 = vpop.f32.mrb[0].mxu0
  %v1782 = vadd.f32 0.0, %v1781
  %v1783 = vpop.f32.mrb[0].mxu0
  %v1784 = vadd.f32 0.0, %v1783
  %v1785 = vpop.f32.mrb[0].mxu0
  %v1786 = vpop.f32.mrb[0].mxu0
  %1787 = vdwg.mxu0
  %v1792 = vunpack.c.l.b16 %v1564
  %v1793 = vunpack.c.h.b16 %v1564
  %v1794 = vunpack.c.l.b16 %v1565
  %v1795 = vunpack.c.h.b16 %v1565
  %v1796 = vunpack.c.l.b16 %v1566
  %v1797 = vunpack.c.h.b16 %v1566
  %v1798 = vunpack.c.l.b16 %v1567
  %v1799 = vunpack.c.h.b16 %v1567
  %v1800 = vpack.c.b16 %v1792, %v1792
  %v1801 = vpack.c.b16 %v1793, %v1793
  %v1802 = vpack.c.b16 %v1794, %v1794
  %v1803 = vpack.c.b16 %v1795, %v1795
  %v1804 = vpack.c.b16 %v1796, %v1796
  %v1805 = vpack.c.b16 %v1797, %v1797
  %v1806 = vpack.c.b16 %v1798, %v1798
  %v1807 = vpack.c.b16 %v1799, %v1799
  %v1809 = vsel %vm1595, %v1568, 0
  %v1812 = vsel %vm1599, %v1800, 0
  %v1815 = vsel %vm1599, %v1801, 0
  %v1818 = vsel %vm1599, %v1802, 0
  %v1821 = vsel %vm1599, %v1803, 0
  %v1824 = vsel %vm1599, %v1804, 0
  %v1827 = vsel %vm1599, %v1805, 0
  %v1830 = vsel %vm1599, %v1806, 0
  %v1833 = vsel %vm1599, %v1807, 0
  %1835 = vmatprep.subr.bf16.mxu0 %v1815
  %1836 = vmatpush1.bf16.msra.mxu0 %v1812
  %1837 = vmatprep.subr.bf16.mxu0 0
  %1838 = vmatpush1.bf16.msra.mxu0 0
  %1839 = vmatprep.subr.bf16.mxu0 0
  %1840 = vmatpush1.bf16.msra.mxu0 0
  %1841 = vmatprep.subr.bf16.mxu0 0
  %1842 = vmatpush1.bf16.msra.mxu0 0
  %1843 = vmatprep.subr.bf16.mxu0 0
  %1844 = vmatpush1.bf16.msra.mxu0 0
  %1845 = vmatprep.subr.bf16.mxu0 0
  %1846 = vmatpush1.bf16.msra.mxu0 0
  %1847 = vmatprep.subr.bf16.mxu0 0
  %1848 = vmatpush1.bf16.msra.mxu0 0
  %1849 = vmatprep.subr.bf16.mxu0 0
  %1850 = vmatpush1.bf16.msra.mxu0 0
  %1851 = vmatprep.subr.bf16.mxu0 0
  %1852 = vmatpush1.bf16.msra.mxu0 0
  %1853 = vmatprep.subr.bf16.mxu0 0
  %1854 = vmatpush1.bf16.msra.mxu0 0
  %1855 = vmatprep.subr.bf16.mxu0 0
  %1856 = vmatpush1.bf16.msra.mxu0 0
  %1857 = vmatprep.subr.bf16.mxu0 0
  %1858 = vmatpush1.bf16.msra.mxu0 0
  %1859 = vmatprep.subr.bf16.mxu0 0
  %1860 = vmatpush1.bf16.msra.mxu0 0
  %1861 = vmatprep.subr.bf16.mxu0 0
  %1862 = vmatpush1.bf16.msra.mxu0 0
  %1863 = vmatprep.subr.bf16.mxu0 0
  %1864 = vmatpush1.bf16.msra.mxu0 0
  %1865 = vmatprep.subr.bf16.mxu0 0
  %1866 = vmatpush1.bf16.msra.mxu0 0
  %1867 = vmatprep.mubr.bf16.mxu0 0
  %1868 = vmatmul.mubr.bf16.gmra.mrb[0].mxu0 %v1809
  %v1869 = vpop.f32.mrb[0].mxu0
  %v1870 = vadd.f32 %v1659, %v1869
  %v1871 = vpop.f32.mrb[0].mxu0
  %v1872 = vadd.f32 %v1661, %v1871
  %v1873 = vpop.f32.mrb[0].mxu0
  %v1874 = vpop.f32.mrb[0].mxu0
  %1875 = vdwg.mxu0
  %1876 = vmatprep.subr.bf16.mxu0 %v1821
  %1877 = vmatpush1.bf16.msra.mxu0 %v1818
  %1878 = vmatprep.subr.bf16.mxu0 0
  %1879 = vmatpush1.bf16.msra.mxu0 0
  %1880 = vmatprep.subr.bf16.mxu0 0
  %1881 = vmatpush1.bf16.msra.mxu0 0
  %1882 = vmatprep.subr.bf16.mxu0 0
  %1883 = vmatpush1.bf16.msra.mxu0 0
  %1884 = vmatprep.subr.bf16.mxu0 0
  %1885 = vmatpush1.bf16.msra.mxu0 0
  %1886 = vmatprep.subr.bf16.mxu0 0
  %1887 = vmatpush1.bf16.msra.mxu0 0
  %1888 = vmatprep.subr.bf16.mxu0 0
  %1889 = vmatpush1.bf16.msra.mxu0 0
  %1890 = vmatprep.subr.bf16.mxu0 0
  %1891 = vmatpush1.bf16.msra.mxu0 0
  %1892 = vmatprep.subr.bf16.mxu0 0
  %1893 = vmatpush1.bf16.msra.mxu0 0
  %1894 = vmatprep.subr.bf16.mxu0 0
  %1895 = vmatpush1.bf16.msra.mxu0 0
  %1896 = vmatprep.subr.bf16.mxu0 0
  %1897 = vmatpush1.bf16.msra.mxu0 0
  %1898 = vmatprep.subr.bf16.mxu0 0
  %1899 = vmatpush1.bf16.msra.mxu0 0
  %1900 = vmatprep.subr.bf16.mxu0 0
  %1901 = vmatpush1.bf16.msra.mxu0 0
  %1902 = vmatprep.subr.bf16.mxu0 0
  %1903 = vmatpush1.bf16.msra.mxu0 0
  %1904 = vmatprep.subr.bf16.mxu0 0
  %1905 = vmatpush1.bf16.msra.mxu0 0
  %1906 = vmatprep.subr.bf16.mxu0 0
  %1907 = vmatpush1.bf16.msra.mxu0 0
  %1908 = vmatprep.mubr.bf16.mxu0 0
  %1909 = vmatmul.mubr.bf16.gmra.mrb[0].mxu0 %v1809
  %v1910 = vpop.f32.mrb[0].mxu0
  %v1911 = vadd.f32 %v1700, %v1910
  %v1912 = vpop.f32.mrb[0].mxu0
  %v1913 = vadd.f32 %v1702, %v1912
  %v1914 = vpop.f32.mrb[0].mxu0
  %v1915 = vpop.f32.mrb[0].mxu0
  %1916 = vdwg.mxu0
  %1917 = vmatprep.subr.bf16.mxu0 %v1827
  %1918 = vmatpush1.bf16.msra.mxu0 %v1824
  %1919 = vmatprep.subr.bf16.mxu0 0
  %1920 = vmatpush1.bf16.msra.mxu0 0
  %1921 = vmatprep.subr.bf16.mxu0 0
  %1922 = vmatpush1.bf16.msra.mxu0 0
  %1923 = vmatprep.subr.bf16.mxu0 0
  %1924 = vmatpush1.bf16.msra.mxu0 0
  %1925 = vmatprep.subr.bf16.mxu0 0
  %1926 = vmatpush1.bf16.msra.mxu0 0
  %1927 = vmatprep.subr.bf16.mxu0 0
  %1928 = vmatpush1.bf16.msra.mxu0 0
  %1929 = vmatprep.subr.bf16.mxu0 0
  %1930 = vmatpush1.bf16.msra.mxu0 0
  %1931 = vmatprep.subr.bf16.mxu0 0
  %1932 = vmatpush1.bf16.msra.mxu0 0
  %1933 = vmatprep.subr.bf16.mxu0 0
  %1934 = vmatpush1.bf16.msra.mxu0 0
  %1935 = vmatprep.subr.bf16.mxu0 0
  %1936 = vmatpush1.bf16.msra.mxu0 0
  %1937 = vmatprep.subr.bf16.mxu0 0
  %1938 = vmatpush1.bf16.msra.mxu0 0
  %1939 = vmatprep.subr.bf16.mxu0 0
  %1940 = vmatpush1.bf16.msra.mxu0 0
  %1941 = vmatprep.subr.bf16.mxu0 0
  %1942 = vmatpush1.bf16.msra.mxu0 0
  %1943 = vmatprep.subr.bf16.mxu0 0
  %1944 = vmatpush1.bf16.msra.mxu0 0
  %1945 = vmatprep.subr.bf16.mxu0 0
  %1946 = vmatpush1.bf16.msra.mxu0 0
  %1947 = vmatprep.subr.bf16.mxu0 0
  %1948 = vmatpush1.bf16.msra.mxu0 0
  %1949 = vmatprep.mubr.bf16.mxu0 0
  %1950 = vmatmul.mubr.bf16.gmra.mrb[0].mxu0 %v1809
  %v1951 = vpop.f32.mrb[0].mxu0
  %v1952 = vadd.f32 %v1741, %v1951
  %v1953 = vpop.f32.mrb[0].mxu0
  %v1954 = vadd.f32 %v1743, %v1953
  %v1955 = vpop.f32.mrb[0].mxu0
  %v1956 = vpop.f32.mrb[0].mxu0
  %1957 = vdwg.mxu0
  %1958 = vmatprep.subr.bf16.mxu0 %v1833
  %1959 = vmatpush1.bf16.msra.mxu0 %v1830
  %1960 = vmatprep.subr.bf16.mxu0 0
  %1961 = vmatpush1.bf16.msra.mxu0 0
  %1962 = vmatprep.subr.bf16.mxu0 0
  %1963 = vmatpush1.bf16.msra.mxu0 0
  %1964 = vmatprep.subr.bf16.mxu0 0
  %1965 = vmatpush1.bf16.msra.mxu0 0
  %1966 = vmatprep.subr.bf16.mxu0 0
  %1967 = vmatpush1.bf16.msra.mxu0 0
  %1968 = vmatprep.subr.bf16.mxu0 0
  %1969 = vmatpush1.bf16.msra.mxu0 0
  %1970 = vmatprep.subr.bf16.mxu0 0
  %1971 = vmatpush1.bf16.msra.mxu0 0
  %1972 = vmatprep.subr.bf16.mxu0 0
  %1973 = vmatpush1.bf16.msra.mxu0 0
  %1974 = vmatprep.subr.bf16.mxu0 0
  %1975 = vmatpush1.bf16.msra.mxu0 0
  %1976 = vmatprep.subr.bf16.mxu0 0
  %1977 = vmatpush1.bf16.msra.mxu0 0
  %1978 = vmatprep.subr.bf16.mxu0 0
  %1979 = vmatpush1.bf16.msra.mxu0 0
  %1980 = vmatprep.subr.bf16.mxu0 0
  %1981 = vmatpush1.bf16.msra.mxu0 0
  %1982 = vmatprep.subr.bf16.mxu0 0
  %1983 = vmatpush1.bf16.msra.mxu0 0
  %1984 = vmatprep.subr.bf16.mxu0 0
  %1985 = vmatpush1.bf16.msra.mxu0 0
  %1986 = vmatprep.subr.bf16.mxu0 0
  %1987 = vmatpush1.bf16.msra.mxu0 0
  %1988 = vmatprep.subr.bf16.mxu0 0
  %1989 = vmatpush1.bf16.msra.mxu0 0
  %1990 = vmatprep.mubr.bf16.mxu0 0
  %1991 = vmatmul.mubr.bf16.gmra.mrb[0].mxu0 %v1809
  %v1992 = vpop.f32.mrb[0].mxu0
  %v1993 = vadd.f32 %v1782, %v1992
  %v1994 = vpop.f32.mrb[0].mxu0
  %v1995 = vadd.f32 %v1784, %v1994
  %v1996 = vpop.f32.mrb[0].mxu0
  %v1997 = vpop.f32.mrb[0].mxu0
  %1998 = vdwg.mxu0
  %v1999 = vld [vmem:[%s120] sm:$0x33]
  %v2000 = vld [vmem:[%s120 + $0x8] sm:$0x33]
  %v2001 = vld [vmem:[%s120 + $0x10] sm:$0x33]
  %v2002 = vld [vmem:[%s120 + $0x18] sm:$0x33]
  %s2003 = scalar_lea.vmem %s2, 8
  %v2004 = vld [vmem:[%s2003] sm:$0xf]
  %v2009 = vunpack.c.l.b16 %v1999
  %v2010 = vunpack.c.h.b16 %v1999
  %v2011 = vunpack.c.l.b16 %v2000
  %v2012 = vunpack.c.h.b16 %v2000
  %v2013 = vunpack.c.l.b16 %v2001
  %v2014 = vunpack.c.h.b16 %v2001
  %v2015 = vunpack.c.l.b16 %v2002
  %v2016 = vunpack.c.h.b16 %v2002
  %v2017 = vpack.c.b16 %v2009, %v2009
  %v2018 = vpack.c.b16 %v2010, %v2010
  %v2019 = vpack.c.b16 %v2011, %v2011
  %v2020 = vpack.c.b16 %v2012, %v2012
  %v2021 = vpack.c.b16 %v2013, %v2013
  %v2022 = vpack.c.b16 %v2014, %v2014
  %v2023 = vpack.c.b16 %v2015, %v2015
  %v2024 = vpack.c.b16 %v2016, %v2016
  %v2026 = vsel %vm1595, %v2004, 0
  %v2029 = vsel %vm1599, %v2017, 0
  %v2032 = vsel %vm1599, %v2018, 0
  %v2035 = vsel %vm1599, %v2019, 0
  %v2038 = vsel %vm1599, %v2020, 0
  %v2041 = vsel %vm1599, %v2021, 0
  %v2044 = vsel %vm1599, %v2022, 0
  %v2047 = vsel %vm1599, %v2023, 0
  %v2050 = vsel %vm1599, %v2024, 0
  %2052 = vmatprep.subr.bf16.mxu0 %v2032
  %2053 = vmatpush1.bf16.msra.mxu0 %v2029
  %2054 = vmatprep.subr.bf16.mxu0 0
  %2055 = vmatpush1.bf16.msra.mxu0 0
  %2056 = vmatprep.subr.bf16.mxu0 0
  %2057 = vmatpush1.bf16.msra.mxu0 0
  %2058 = vmatprep.subr.bf16.mxu0 0
  %2059 = vmatpush1.bf16.msra.mxu0 0
  %2060 = vmatprep.subr.bf16.mxu0 0
  %2061 = vmatpush1.bf16.msra.mxu0 0
  %2062 = vmatprep.subr.bf16.mxu0 0
  %2063 = vmatpush1.bf16.msra.mxu0 0
  %2064 = vmatprep.subr.bf16.mxu0 0
  %2065 = vmatpush1.bf16.msra.mxu0 0
  %2066 = vmatprep.subr.bf16.mxu0 0
  %2067 = vmatpush1.bf16.msra.mxu0 0
  %2068 = vmatprep.subr.bf16.mxu0 0
  %2069 = vmatpush1.bf16.msra.mxu0 0
  %2070 = vmatprep.subr.bf16.mxu0 0
  %2071 = vmatpush1.bf16.msra.mxu0 0
  %2072 = vmatprep.subr.bf16.mxu0 0
  %2073 = vmatpush1.bf16.msra.mxu0 0
  %2074 = vmatprep.subr.bf16.mxu0 0
  %2075 = vmatpush1.bf16.msra.mxu0 0
  %2076 = vmatprep.subr.bf16.mxu0 0
  %2077 = vmatpush1.bf16.msra.mxu0 0
  %2078 = vmatprep.subr.bf16.mxu0 0
  %2079 = vmatpush1.bf16.msra.mxu0 0
  %2080 = vmatprep.subr.bf16.mxu0 0
  %2081 = vmatpush1.bf16.msra.mxu0 0
  %2082 = vmatprep.subr.bf16.mxu0 0
  %2083 = vmatpush1.bf16.msra.mxu0 0
  %2084 = vmatprep.mubr.bf16.mxu0 0
  %2085 = vmatmul.mubr.bf16.gmra.mrb[0].mxu0 %v2026
  %v2086 = vpop.f32.mrb[0].mxu0
  %v2087 = vadd.f32 0.0, %v2086
  %v2088 = vpop.f32.mrb[0].mxu0
  %v2089 = vadd.f32 0.0, %v2088
  %v2090 = vpop.f32.mrb[0].mxu0
  %v2091 = vpop.f32.mrb[0].mxu0
  %2092 = vdwg.mxu0
  %2093 = vmatprep.subr.bf16.mxu0 %v2038
  %2094 = vmatpush1.bf16.msra.mxu0 %v2035
  %2095 = vmatprep.subr.bf16.mxu0 0
  %2096 = vmatpush1.bf16.msra.mxu0 0
  %2097 = vmatprep.subr.bf16.mxu0 0
  %2098 = vmatpush1.bf16.msra.mxu0 0
  %2099 = vmatprep.subr.bf16.mxu0 0
  %2100 = vmatpush1.bf16.msra.mxu0 0
  %2101 = vmatprep.subr.bf16.mxu0 0
  %2102 = vmatpush1.bf16.msra.mxu0 0
  %2103 = vmatprep.subr.bf16.mxu0 0
  %2104 = vmatpush1.bf16.msra.mxu0 0
  %2105 = vmatprep.subr.bf16.mxu0 0
  %2106 = vmatpush1.bf16.msra.mxu0 0
  %2107 = vmatprep.subr.bf16.mxu0 0
  %2108 = vmatpush1.bf16.msra.mxu0 0
  %2109 = vmatprep.subr.bf16.mxu0 0
  %2110 = vmatpush1.bf16.msra.mxu0 0
  %2111 = vmatprep.subr.bf16.mxu0 0
  %2112 = vmatpush1.bf16.msra.mxu0 0
  %2113 = vmatprep.subr.bf16.mxu0 0
  %2114 = vmatpush1.bf16.msra.mxu0 0
  %2115 = vmatprep.subr.bf16.mxu0 0
  %2116 = vmatpush1.bf16.msra.mxu0 0
  %2117 = vmatprep.subr.bf16.mxu0 0
  %2118 = vmatpush1.bf16.msra.mxu0 0
  %2119 = vmatprep.subr.bf16.mxu0 0
  %2120 = vmatpush1.bf16.msra.mxu0 0
  %2121 = vmatprep.subr.bf16.mxu0 0
  %2122 = vmatpush1.bf16.msra.mxu0 0
  %2123 = vmatprep.subr.bf16.mxu0 0
  %2124 = vmatpush1.bf16.msra.mxu0 0
  %2125 = vmatprep.mubr.bf16.mxu0 0
  %2126 = vmatmul.mubr.bf16.gmra.mrb[0].mxu0 %v2026
  %v2127 = vpop.f32.mrb[0].mxu0
  %v2128 = vadd.f32 0.0, %v2127
  %v2129 = vpop.f32.mrb[0].mxu0
  %v2130 = vadd.f32 0.0, %v2129
  %v2131 = vpop.f32.mrb[0].mxu0
  %v2132 = vpop.f32.mrb[0].mxu0
  %2133 = vdwg.mxu0
  %2134 = vmatprep.subr.bf16.mxu0 %v2044
  %2135 = vmatpush1.bf16.msra.mxu0 %v2041
  %2136 = vmatprep.subr.bf16.mxu0 0
  %2137 = vmatpush1.bf16.msra.mxu0 0
  %2138 = vmatprep.subr.bf16.mxu0 0
  %2139 = vmatpush1.bf16.msra.mxu0 0
  %2140 = vmatprep.subr.bf16.mxu0 0
  %2141 = vmatpush1.bf16.msra.mxu0 0
  %2142 = vmatprep.subr.bf16.mxu0 0
  %2143 = vmatpush1.bf16.msra.mxu0 0
  %2144 = vmatprep.subr.bf16.mxu0 0
  %2145 = vmatpush1.bf16.msra.mxu0 0
  %2146 = vmatprep.subr.bf16.mxu0 0
  %2147 = vmatpush1.bf16.msra.mxu0 0
  %2148 = vmatprep.subr.bf16.mxu0 0
  %2149 = vmatpush1.bf16.msra.mxu0 0
  %2150 = vmatprep.subr.bf16.mxu0 0
  %2151 = vmatpush1.bf16.msra.mxu0 0
  %2152 = vmatprep.subr.bf16.mxu0 0
  %2153 = vmatpush1.bf16.msra.mxu0 0
  %2154 = vmatprep.subr.bf16.mxu0 0
  %2155 = vmatpush1.bf16.msra.mxu0 0
  %2156 = vmatprep.subr.bf16.mxu0 0
  %2157 = vmatpush1.bf16.msra.mxu0 0
  %2158 = vmatprep.subr.bf16.mxu0 0
  %2159 = vmatpush1.bf16.msra.mxu0 0
  %2160 = vmatprep.subr.bf16.mxu0 0
  %2161 = vmatpush1.bf16.msra.mxu0 0
  %2162 = vmatprep.subr.bf16.mxu0 0
  %2163 = vmatpush1.bf16.msra.mxu0 0
  %2164 = vmatprep.subr.bf16.mxu0 0
  %2165 = vmatpush1.bf16.msra.mxu0 0
  %2166 = vmatprep.mubr.bf16.mxu0 0
  %2167 = vmatmul.mubr.bf16.gmra.mrb[0].mxu0 %v2026
  %v2168 = vpop.f32.mrb[0].mxu0
  %v2169 = vadd.f32 0.0, %v2168
  %v2170 = vpop.f32.mrb[0].mxu0
  %v2171 = vadd.f32 0.0, %v2170
  %v2172 = vpop.f32.mrb[0].mxu0
  %v2173 = vpop.f32.mrb[0].mxu0
  %2174 = vdwg.mxu0
  %2175 = vmatprep.subr.bf16.mxu0 %v2050
  %2176 = vmatpush1.bf16.msra.mxu0 %v2047
  %2177 = vmatprep.subr.bf16.mxu0 0
  %2178 = vmatpush1.bf16.msra.mxu0 0
  %2179 = vmatprep.subr.bf16.mxu0 0
  %2180 = vmatpush1.bf16.msra.mxu0 0
  %2181 = vmatprep.subr.bf16.mxu0 0
  %2182 = vmatpush1.bf16.msra.mxu0 0
  %2183 = vmatprep.subr.bf16.mxu0 0
  %2184 = vmatpush1.bf16.msra.mxu0 0
  %2185 = vmatprep.subr.bf16.mxu0 0
  %2186 = vmatpush1.bf16.msra.mxu0 0
  %2187 = vmatprep.subr.bf16.mxu0 0
  %2188 = vmatpush1.bf16.msra.mxu0 0
  %2189 = vmatprep.subr.bf16.mxu0 0
  %2190 = vmatpush1.bf16.msra.mxu0 0
  %2191 = vmatprep.subr.bf16.mxu0 0
  %2192 = vmatpush1.bf16.msra.mxu0 0
  %2193 = vmatprep.subr.bf16.mxu0 0
  %2194 = vmatpush1.bf16.msra.mxu0 0
  %2195 = vmatprep.subr.bf16.mxu0 0
  %2196 = vmatpush1.bf16.msra.mxu0 0
  %2197 = vmatprep.subr.bf16.mxu0 0
  %2198 = vmatpush1.bf16.msra.mxu0 0
  %2199 = vmatprep.subr.bf16.mxu0 0
  %2200 = vmatpush1.bf16.msra.mxu0 0
  %2201 = vmatprep.subr.bf16.mxu0 0
  %2202 = vmatpush1.bf16.msra.mxu0 0
  %2203 = vmatprep.subr.bf16.mxu0 0
  %2204 = vmatpush1.bf16.msra.mxu0 0
  %2205 = vmatprep.subr.bf16.mxu0 0
  %2206 = vmatpush1.bf16.msra.mxu0 0
  %2207 = vmatprep.mubr.bf16.mxu0 0
  %2208 = vmatmul.mubr.bf16.gmra.mrb[0].mxu0 %v2026
  %v2209 = vpop.f32.mrb[0].mxu0
  %v2210 = vadd.f32 0.0, %v2209
  %v2211 = vpop.f32.mrb[0].mxu0
  %v2212 = vadd.f32 0.0, %v2211
  %v2213 = vpop.f32.mrb[0].mxu0
  %v2214 = vpop.f32.mrb[0].mxu0
  %2215 = vdwg.mxu0
  %v2216 = vadd.f32 %v1870, %v2087
  %v2217 = vadd.f32 %v1872, %v2089
  %v2218 = vadd.f32 %v1911, %v2128
  %v2219 = vadd.f32 %v1913, %v2130
  %v2220 = vadd.f32 %v1952, %v2169
  %v2221 = vadd.f32 %v1954, %v2171
  %v2222 = vadd.f32 %v1993, %v2210
  %v2223 = vadd.f32 %v1995, %v2212
  %v2224 = vld [vmem:[#allocation2] sm:$0x33]
  %v2225 = vld [vmem:[#allocation2 + $0x8] sm:$0x33]
  %v2226 = vld [vmem:[#allocation2 + $0x10] sm:$0x33]
  %v2227 = vld [vmem:[#allocation2 + $0x18] sm:$0x33]
  %v2228 = vld [vmem:[#allocation2 + $0x20] sm:$0x3]
  %s2229 = scalar_lea.vmem %s2, 12
  %v2230 = vld [vmem:[%s2229] sm:$0xf]
  %v2236 = vunpack.c.l.b16 %v2224
  %v2237 = vunpack.c.h.b16 %v2224
  %v2238 = vunpack.c.l.b16 %v2225
  %v2239 = vunpack.c.h.b16 %v2225
  %v2240 = vunpack.c.l.b16 %v2226
  %v2241 = vunpack.c.h.b16 %v2226
  %v2242 = vunpack.c.l.b16 %v2227
  %v2243 = vunpack.c.h.b16 %v2227
  %v2244 = vunpack.c.l.b16 %v2228
  %v2245 = vpack.c.b16 %v2236, %v2236
  %v2246 = vpack.c.b16 %v2237, %v2237
  %v2247 = vpack.c.b16 %v2238, %v2238
  %v2248 = vpack.c.b16 %v2239, %v2239
  %v2249 = vpack.c.b16 %v2240, %v2240
  %v2250 = vpack.c.b16 %v2241, %v2241
  %v2251 = vpack.c.b16 %v2242, %v2242
  %v2252 = vpack.c.b16 %v2243, %v2243
  %v2253 = vpack.c.b16 %v2244, %v2244
  %2254 = vrot.lane.b32.xlu0 %v2245, 96
  %v2255 = vpop.permute.xlu0 %2254
  %2256 = vrot.lane.b32.xlu0 %v2246, 96
  %v2257 = vpop.permute.xlu0 %2256
  %2258 = vrot.lane.b32.xlu0 %v2247, 96
  %v2259 = vpop.permute.xlu0 %2258
  %2260 = vrot.lane.b32.xlu0 %v2248, 96
  %v2261 = vpop.permute.xlu0 %2260
  %2262 = vrot.lane.b32.xlu0 %v2249, 96
  %v2263 = vpop.permute.xlu0 %2262
  %2264 = vrot.lane.b32.xlu0 %v2250, 96
  %v2265 = vpop.permute.xlu0 %2264
  %2266 = vrot.lane.b32.xlu0 %v2251, 96
  %v2267 = vpop.permute.xlu0 %2266
  %2268 = vrot.lane.b32.xlu0 %v2252, 96
  %v2269 = vpop.permute.xlu0 %2268
  %2270 = vrot.lane.b32.xlu0 %v2253, 96
  %v2271 = vpop.permute.xlu0 %2270
  %v2272 = vsel %vm192, %v2255, %v2257
  %v2273 = vsel %vm192, %v2257, %v2259
  %v2274 = vsel %vm192, %v2259, %v2261
  %v2275 = vsel %vm192, %v2261, %v2263
  %v2276 = vsel %vm192, %v2263, %v2265
  %v2277 = vsel %vm192, %v2265, %v2267
  %v2278 = vsel %vm192, %v2267, %v2269
  %v2279 = vsel %vm192, %v2269, %v2271
  %v2281 = vsel %vm1595, %v2230, 0
  %v2284 = vsel %vm1599, %v2272, 0
  %v2287 = vsel %vm1599, %v2273, 0
  %v2290 = vsel %vm1599, %v2274, 0
  %v2293 = vsel %vm1599, %v2275, 0
  %v2296 = vsel %vm1599, %v2276, 0
  %v2299 = vsel %vm1599, %v2277, 0
  %v2302 = vsel %vm1599, %v2278, 0
  %v2305 = vsel %vm1599, %v2279, 0
  %2307 = vmatprep.subr.bf16.mxu0 %v2287
  %2308 = vmatpush1.bf16.msra.mxu0 %v2284
  %2309 = vmatprep.subr.bf16.mxu0 0
  %2310 = vmatpush1.bf16.msra.mxu0 0
  %2311 = vmatprep.subr.bf16.mxu0 0
  %2312 = vmatpush1.bf16.msra.mxu0 0
  %2313 = vmatprep.subr.bf16.mxu0 0
  %2314 = vmatpush1.bf16.msra.mxu0 0
  %2315 = vmatprep.subr.bf16.mxu0 0
  %2316 = vmatpush1.bf16.msra.mxu0 0
  %2317 = vmatprep.subr.bf16.mxu0 0
  %2318 = vmatpush1.bf16.msra.mxu0 0
  %2319 = vmatprep.subr.bf16.mxu0 0
  %2320 = vmatpush1.bf16.msra.mxu0 0
  %2321 = vmatprep.subr.bf16.mxu0 0
  %2322 = vmatpush1.bf16.msra.mxu0 0
  %2323 = vmatprep.subr.bf16.mxu0 0
  %2324 = vmatpush1.bf16.msra.mxu0 0
  %2325 = vmatprep.subr.bf16.mxu0 0
  %2326 = vmatpush1.bf16.msra.mxu0 0
  %2327 = vmatprep.subr.bf16.mxu0 0
  %2328 = vmatpush1.bf16.msra.mxu0 0
  %2329 = vmatprep.subr.bf16.mxu0 0
  %2330 = vmatpush1.bf16.msra.mxu0 0
  %2331 = vmatprep.subr.bf16.mxu0 0
  %2332 = vmatpush1.bf16.msra.mxu0 0
  %2333 = vmatprep.subr.bf16.mxu0 0
  %2334 = vmatpush1.bf16.msra.mxu0 0
  %2335 = vmatprep.subr.bf16.mxu0 0
  %2336 = vmatpush1.bf16.msra.mxu0 0
  %2337 = vmatprep.subr.bf16.mxu0 0
  %2338 = vmatpush1.bf16.msra.mxu0 0
  %2339 = vmatprep.mubr.bf16.mxu0 0
  %2340 = vmatmul.mubr.bf16.gmra.mrb[0].mxu0 %v2281
  %v2341 = vpop.f32.mrb[0].mxu0
  %v2342 = vadd.f32 0.0, %v2341
  %v2343 = vpop.f32.mrb[0].mxu0
  %v2344 = vadd.f32 0.0, %v2343
  %v2345 = vpop.f32.mrb[0].mxu0
  %v2346 = vpop.f32.mrb[0].mxu0
  %2347 = vdwg.mxu0
  %2348 = vmatprep.subr.bf16.mxu0 %v2293
  %2349 = vmatpush1.bf16.msra.mxu0 %v2290
  %2350 = vmatprep.subr.bf16.mxu0 0
  %2351 = vmatpush1.bf16.msra.mxu0 0
  %2352 = vmatprep.subr.bf16.mxu0 0
  %2353 = vmatpush1.bf16.msra.mxu0 0
  %2354 = vmatprep.subr.bf16.mxu0 0
  %2355 = vmatpush1.bf16.msra.mxu0 0
  %2356 = vmatprep.subr.bf16.mxu0 0
  %2357 = vmatpush1.bf16.msra.mxu0 0
  %2358 = vmatprep.subr.bf16.mxu0 0
  %2359 = vmatpush1.bf16.msra.mxu0 0
  %2360 = vmatprep.subr.bf16.mxu0 0
  %2361 = vmatpush1.bf16.msra.mxu0 0
  %2362 = vmatprep.subr.bf16.mxu0 0
  %2363 = vmatpush1.bf16.msra.mxu0 0
  %2364 = vmatprep.subr.bf16.mxu0 0
  %2365 = vmatpush1.bf16.msra.mxu0 0
  %2366 = vmatprep.subr.bf16.mxu0 0
  %2367 = vmatpush1.bf16.msra.mxu0 0
  %2368 = vmatprep.subr.bf16.mxu0 0
  %2369 = vmatpush1.bf16.msra.mxu0 0
  %2370 = vmatprep.subr.bf16.mxu0 0
  %2371 = vmatpush1.bf16.msra.mxu0 0
  %2372 = vmatprep.subr.bf16.mxu0 0
  %2373 = vmatpush1.bf16.msra.mxu0 0
  %2374 = vmatprep.subr.bf16.mxu0 0
  %2375 = vmatpush1.bf16.msra.mxu0 0
  %2376 = vmatprep.subr.bf16.mxu0 0
  %2377 = vmatpush1.bf16.msra.mxu0 0
  %2378 = vmatprep.subr.bf16.mxu0 0
  %2379 = vmatpush1.bf16.msra.mxu0 0
  %2380 = vmatprep.mubr.bf16.mxu0 0
  %2381 = vmatmul.mubr.bf16.gmra.mrb[0].mxu0 %v2281
  %v2382 = vpop.f32.mrb[0].mxu0
  %v2383 = vadd.f32 0.0, %v2382
  %v2384 = vpop.f32.mrb[0].mxu0
  %v2385 = vadd.f32 0.0, %v2384
  %v2386 = vpop.f32.mrb[0].mxu0
  %v2387 = vpop.f32.mrb[0].mxu0
  %2388 = vdwg.mxu0
  %2389 = vmatprep.subr.bf16.mxu0 %v2299
  %2390 = vmatpush1.bf16.msra.mxu0 %v2296
  %2391 = vmatprep.subr.bf16.mxu0 0
  %2392 = vmatpush1.bf16.msra.mxu0 0
  %2393 = vmatprep.subr.bf16.mxu0 0
  %2394 = vmatpush1.bf16.msra.mxu0 0
  %2395 = vmatprep.subr.bf16.mxu0 0
  %2396 = vmatpush1.bf16.msra.mxu0 0
  %2397 = vmatprep.subr.bf16.mxu0 0
  %2398 = vmatpush1.bf16.msra.mxu0 0
  %2399 = vmatprep.subr.bf16.mxu0 0
  %2400 = vmatpush1.bf16.msra.mxu0 0
  %2401 = vmatprep.subr.bf16.mxu0 0
  %2402 = vmatpush1.bf16.msra.mxu0 0
  %2403 = vmatprep.subr.bf16.mxu0 0
  %2404 = vmatpush1.bf16.msra.mxu0 0
  %2405 = vmatprep.subr.bf16.mxu0 0
  %2406 = vmatpush1.bf16.msra.mxu0 0
  %2407 = vmatprep.subr.bf16.mxu0 0
  %2408 = vmatpush1.bf16.msra.mxu0 0
  %2409 = vmatprep.subr.bf16.mxu0 0
  %2410 = vmatpush1.bf16.msra.mxu0 0
  %2411 = vmatprep.subr.bf16.mxu0 0
  %2412 = vmatpush1.bf16.msra.mxu0 0
  %2413 = vmatprep.subr.bf16.mxu0 0
  %2414 = vmatpush1.bf16.msra.mxu0 0
  %2415 = vmatprep.subr.bf16.mxu0 0
  %2416 = vmatpush1.bf16.msra.mxu0 0
  %2417 = vmatprep.subr.bf16.mxu0 0
  %2418 = vmatpush1.bf16.msra.mxu0 0
  %2419 = vmatprep.subr.bf16.mxu0 0
  %2420 = vmatpush1.bf16.msra.mxu0 0
  %2421 = vmatprep.mubr.bf16.mxu0 0
  %2422 = vmatmul.mubr.bf16.gmra.mrb[0].mxu0 %v2281
  %v2423 = vpop.f32.mrb[0].mxu0
  %v2424 = vadd.f32 0.0, %v2423
  %v2425 = vpop.f32.mrb[0].mxu0
  %v2426 = vadd.f32 0.0, %v2425
  %v2427 = vpop.f32.mrb[0].mxu0
  %v2428 = vpop.f32.mrb[0].mxu0
  %2429 = vdwg.mxu0
  %2430 = vmatprep.subr.bf16.mxu0 %v2305
  %2431 = vmatpush1.bf16.msra.mxu0 %v2302
  %2432 = vmatprep.subr.bf16.mxu0 0
  %2433 = vmatpush1.bf16.msra.mxu0 0
  %2434 = vmatprep.subr.bf16.mxu0 0
  %2435 = vmatpush1.bf16.msra.mxu0 0
  %2436 = vmatprep.subr.bf16.mxu0 0
  %2437 = vmatpush1.bf16.msra.mxu0 0
  %2438 = vmatprep.subr.bf16.mxu0 0
  %2439 = vmatpush1.bf16.msra.mxu0 0
  %2440 = vmatprep.subr.bf16.mxu0 0
  %2441 = vmatpush1.bf16.msra.mxu0 0
  %2442 = vmatprep.subr.bf16.mxu0 0
  %2443 = vmatpush1.bf16.msra.mxu0 0
  %2444 = vmatprep.subr.bf16.mxu0 0
  %2445 = vmatpush1.bf16.msra.mxu0 0
  %2446 = vmatprep.subr.bf16.mxu0 0
  %2447 = vmatpush1.bf16.msra.mxu0 0
  %2448 = vmatprep.subr.bf16.mxu0 0
  %2449 = vmatpush1.bf16.msra.mxu0 0
  %2450 = vmatprep.subr.bf16.mxu0 0
  %2451 = vmatpush1.bf16.msra.mxu0 0
  %2452 = vmatprep.subr.bf16.mxu0 0
  %2453 = vmatpush1.bf16.msra.mxu0 0
  %2454 = vmatprep.subr.bf16.mxu0 0
  %2455 = vmatpush1.bf16.msra.mxu0 0
  %2456 = vmatprep.subr.bf16.mxu0 0
  %2457 = vmatpush1.bf16.msra.mxu0 0
  %2458 = vmatprep.subr.bf16.mxu0 0
  %2459 = vmatpush1.bf16.msra.mxu0 0
  %2460 = vmatprep.subr.bf16.mxu0 0
  %2461 = vmatpush1.bf16.msra.mxu0 0
  %2462 = vmatprep.mubr.bf16.mxu0 0
  %2463 = vmatmul.mubr.bf16.gmra.mrb[0].mxu0 %v2281
  %v2464 = vpop.f32.mrb[0].mxu0
  %v2465 = vadd.f32 0.0, %v2464
  %v2466 = vpop.f32.mrb[0].mxu0
  %v2467 = vadd.f32 0.0, %v2466
  %v2468 = vpop.f32.mrb[0].mxu0
  %v2469 = vpop.f32.mrb[0].mxu0
  %2470 = vdwg.mxu0
  %v2471 = vadd.f32 %v2216, %v2342
  %v2472 = vadd.f32 %v2217, %v2344
  %v2473 = vadd.f32 %v2218, %v2383
  %v2474 = vadd.f32 %v2219, %v2385
  %v2475 = vadd.f32 %v2220, %v2424
  %v2476 = vadd.f32 %v2221, %v2426
  %v2477 = vadd.f32 %v2222, %v2465
  %v2478 = vadd.f32 %v2223, %v2467
  %v2479 = vld [vmem:[%s108] sm:$0x33]
  %v2480 = vld [vmem:[%s108 + $0x8] sm:$0x33]
  %v2481 = vld [vmem:[%s108 + $0x10] sm:$0x33]
  %v2482 = vld [vmem:[%s108 + $0x18] sm:$0x33]
  %v2483 = vld [vmem:[%s108 + $0x20] sm:$0x3]
  %s2484 = scalar_lea.vmem %s2, 16
  %v2485 = vld [vmem:[%s2484] sm:$0xf]
  %v2491 = vunpack.c.l.b16 %v2479
  %v2492 = vunpack.c.h.b16 %v2479
  %v2493 = vunpack.c.l.b16 %v2480
  %v2494 = vunpack.c.h.b16 %v2480
  %v2495 = vunpack.c.l.b16 %v2481
  %v2496 = vunpack.c.h.b16 %v2481
  %v2497 = vunpack.c.l.b16 %v2482
  %v2498 = vunpack.c.h.b16 %v2482
  %v2499 = vunpack.c.l.b16 %v2483
  %v2500 = vpack.c.b16 %v2491, %v2491
  %v2501 = vpack.c.b16 %v2492, %v2492
  %v2502 = vpack.c.b16 %v2493, %v2493
  %v2503 = vpack.c.b16 %v2494, %v2494
  %v2504 = vpack.c.b16 %v2495, %v2495
  %v2505 = vpack.c.b16 %v2496, %v2496
  %v2506 = vpack.c.b16 %v2497, %v2497
  %v2507 = vpack.c.b16 %v2498, %v2498
  %v2508 = vpack.c.b16 %v2499, %v2499
  %2509 = vrot.lane.b32.xlu0 %v2500, 96
  %v2510 = vpop.permute.xlu0 %2509
  %2511 = vrot.lane.b32.xlu0 %v2501, 96
  %v2512 = vpop.permute.xlu0 %2511
  %2513 = vrot.lane.b32.xlu0 %v2502, 96
  %v2514 = vpop.permute.xlu0 %2513
  %2515 = vrot.lane.b32.xlu0 %v2503, 96
  %v2516 = vpop.permute.xlu0 %2515
  %2517 = vrot.lane.b32.xlu0 %v2504, 96
  %v2518 = vpop.permute.xlu0 %2517
  %2519 = vrot.lane.b32.xlu0 %v2505, 96
  %v2520 = vpop.permute.xlu0 %2519
  %2521 = vrot.lane.b32.xlu0 %v2506, 96
  %v2522 = vpop.permute.xlu0 %2521
  %2523 = vrot.lane.b32.xlu0 %v2507, 96
  %v2524 = vpop.permute.xlu0 %2523
  %2525 = vrot.lane.b32.xlu0 %v2508, 96
  %v2526 = vpop.permute.xlu0 %2525
  %v2527 = vsel %vm192, %v2510, %v2512
  %v2528 = vsel %vm192, %v2512, %v2514
  %v2529 = vsel %vm192, %v2514, %v2516
  %v2530 = vsel %vm192, %v2516, %v2518
  %v2531 = vsel %vm192, %v2518, %v2520
  %v2532 = vsel %vm192, %v2520, %v2522
  %v2533 = vsel %vm192, %v2522, %v2524
  %v2534 = vsel %vm192, %v2524, %v2526
  %v2536 = vsel %vm1595, %v2485, 0
  %v2539 = vsel %vm1599, %v2527, 0
  %v2542 = vsel %vm1599, %v2528, 0
  %v2545 = vsel %vm1599, %v2529, 0
  %v2548 = vsel %vm1599, %v2530, 0
  %v2551 = vsel %vm1599, %v2531, 0
  %v2554 = vsel %vm1599, %v2532, 0
  %v2557 = vsel %vm1599, %v2533, 0
  %v2560 = vsel %vm1599, %v2534, 0
  %2562 = vmatprep.subr.bf16.mxu0 %v2542
  %2563 = vmatpush1.bf16.msra.mxu0 %v2539
  %2564 = vmatprep.subr.bf16.mxu0 0
  %2565 = vmatpush1.bf16.msra.mxu0 0
  %2566 = vmatprep.subr.bf16.mxu0 0
  %2567 = vmatpush1.bf16.msra.mxu0 0
  %2568 = vmatprep.subr.bf16.mxu0 0
  %2569 = vmatpush1.bf16.msra.mxu0 0
  %2570 = vmatprep.subr.bf16.mxu0 0
  %2571 = vmatpush1.bf16.msra.mxu0 0
  %2572 = vmatprep.subr.bf16.mxu0 0
  %2573 = vmatpush1.bf16.msra.mxu0 0
  %2574 = vmatprep.subr.bf16.mxu0 0
  %2575 = vmatpush1.bf16.msra.mxu0 0
  %2576 = vmatprep.subr.bf16.mxu0 0
  %2577 = vmatpush1.bf16.msra.mxu0 0
  %2578 = vmatprep.subr.bf16.mxu0 0
  %2579 = vmatpush1.bf16.msra.mxu0 0
  %2580 = vmatprep.subr.bf16.mxu0 0
  %2581 = vmatpush1.bf16.msra.mxu0 0
  %2582 = vmatprep.subr.bf16.mxu0 0
  %2583 = vmatpush1.bf16.msra.mxu0 0
  %2584 = vmatprep.subr.bf16.mxu0 0
  %2585 = vmatpush1.bf16.msra.mxu0 0
  %2586 = vmatprep.subr.bf16.mxu0 0
  %2587 = vmatpush1.bf16.msra.mxu0 0
  %2588 = vmatprep.subr.bf16.mxu0 0
  %2589 = vmatpush1.bf16.msra.mxu0 0
  %2590 = vmatprep.subr.bf16.mxu0 0
  %2591 = vmatpush1.bf16.msra.mxu0 0
  %2592 = vmatprep.subr.bf16.mxu0 0
  %2593 = vmatpush1.bf16.msra.mxu0 0
  %2594 = vmatprep.mubr.bf16.mxu0 0
  %2595 = vmatmul.mubr.bf16.gmra.mrb[0].mxu0 %v2536
  %v2596 = vpop.f32.mrb[0].mxu0
  %v2597 = vadd.f32 0.0, %v2596
  %v2598 = vpop.f32.mrb[0].mxu0
  %v2599 = vadd.f32 0.0, %v2598
  %v2600 = vpop.f32.mrb[0].mxu0
  %v2601 = vpop.f32.mrb[0].mxu0
  %2602 = vdwg.mxu0
  %2603 = vmatprep.subr.bf16.mxu0 %v2548
  %2604 = vmatpush1.bf16.msra.mxu0 %v2545
  %2605 = vmatprep.subr.bf16.mxu0 0
  %2606 = vmatpush1.bf16.msra.mxu0 0
  %2607 = vmatprep.subr.bf16.mxu0 0
  %2608 = vmatpush1.bf16.msra.mxu0 0
  %2609 = vmatprep.subr.bf16.mxu0 0
  %2610 = vmatpush1.bf16.msra.mxu0 0
  %2611 = vmatprep.subr.bf16.mxu0 0
  %2612 = vmatpush1.bf16.msra.mxu0 0
  %2613 = vmatprep.subr.bf16.mxu0 0
  %2614 = vmatpush1.bf16.msra.mxu0 0
  %2615 = vmatprep.subr.bf16.mxu0 0
  %2616 = vmatpush1.bf16.msra.mxu0 0
  %2617 = vmatprep.subr.bf16.mxu0 0
  %2618 = vmatpush1.bf16.msra.mxu0 0
  %2619 = vmatprep.subr.bf16.mxu0 0
  %2620 = vmatpush1.bf16.msra.mxu0 0
  %2621 = vmatprep.subr.bf16.mxu0 0
  %2622 = vmatpush1.bf16.msra.mxu0 0
  %2623 = vmatprep.subr.bf16.mxu0 0
  %2624 = vmatpush1.bf16.msra.mxu0 0
  %2625 = vmatprep.subr.bf16.mxu0 0
  %2626 = vmatpush1.bf16.msra.mxu0 0
  %2627 = vmatprep.subr.bf16.mxu0 0
  %2628 = vmatpush1.bf16.msra.mxu0 0
  %2629 = vmatprep.subr.bf16.mxu0 0
  %2630 = vmatpush1.bf16.msra.mxu0 0
  %2631 = vmatprep.subr.bf16.mxu0 0
  %2632 = vmatpush1.bf16.msra.mxu0 0
  %2633 = vmatprep.subr.bf16.mxu0 0
  %2634 = vmatpush1.bf16.msra.mxu0 0
  %2635 = vmatprep.mubr.bf16.mxu0 0
  %2636 = vmatmul.mubr.bf16.gmra.mrb[0].mxu0 %v2536
  %v2637 = vpop.f32.mrb[0].mxu0
  %v2638 = vadd.f32 0.0, %v2637
  %v2639 = vpop.f32.mrb[0].mxu0
  %v2640 = vadd.f32 0.0, %v2639
  %v2641 = vpop.f32.mrb[0].mxu0
  %v2642 = vpop.f32.mrb[0].mxu0
  %2643 = vdwg.mxu0
  %2644 = vmatprep.subr.bf16.mxu0 %v2554
  %2645 = vmatpush1.bf16.msra.mxu0 %v2551
  %2646 = vmatprep.subr.bf16.mxu0 0
  %2647 = vmatpush1.bf16.msra.mxu0 0
  %2648 = vmatprep.subr.bf16.mxu0 0
  %2649 = vmatpush1.bf16.msra.mxu0 0
  %2650 = vmatprep.subr.bf16.mxu0 0
  %2651 = vmatpush1.bf16.msra.mxu0 0
  %2652 = vmatprep.subr.bf16.mxu0 0
  %2653 = vmatpush1.bf16.msra.mxu0 0
  %2654 = vmatprep.subr.bf16.mxu0 0
  %2655 = vmatpush1.bf16.msra.mxu0 0
  %2656 = vmatprep.subr.bf16.mxu0 0
  %2657 = vmatpush1.bf16.msra.mxu0 0
  %2658 = vmatprep.subr.bf16.mxu0 0
  %2659 = vmatpush1.bf16.msra.mxu0 0
  %2660 = vmatprep.subr.bf16.mxu0 0
  %2661 = vmatpush1.bf16.msra.mxu0 0
  %2662 = vmatprep.subr.bf16.mxu0 0
  %2663 = vmatpush1.bf16.msra.mxu0 0
  %2664 = vmatprep.subr.bf16.mxu0 0
  %2665 = vmatpush1.bf16.msra.mxu0 0
  %2666 = vmatprep.subr.bf16.mxu0 0
  %2667 = vmatpush1.bf16.msra.mxu0 0
  %2668 = vmatprep.subr.bf16.mxu0 0
  %2669 = vmatpush1.bf16.msra.mxu0 0
  %2670 = vmatprep.subr.bf16.mxu0 0
  %2671 = vmatpush1.bf16.msra.mxu0 0
  %2672 = vmatprep.subr.bf16.mxu0 0
  %2673 = vmatpush1.bf16.msra.mxu0 0
  %2674 = vmatprep.subr.bf16.mxu0 0
  %2675 = vmatpush1.bf16.msra.mxu0 0
  %2676 = vmatprep.mubr.bf16.mxu0 0
  %2677 = vmatmul.mubr.bf16.gmra.mrb[0].mxu0 %v2536
  %v2678 = vpop.f32.mrb[0].mxu0
  %v2679 = vadd.f32 0.0, %v2678
  %v2680 = vpop.f32.mrb[0].mxu0
  %v2681 = vadd.f32 0.0, %v2680
  %v2682 = vpop.f32.mrb[0].mxu0
  %v2683 = vpop.f32.mrb[0].mxu0
  %2684 = vdwg.mxu0
  %2685 = vmatprep.subr.bf16.mxu0 %v2560
  %2686 = vmatpush1.bf16.msra.mxu0 %v2557
  %2687 = vmatprep.subr.bf16.mxu0 0
  %2688 = vmatpush1.bf16.msra.mxu0 0
  %2689 = vmatprep.subr.bf16.mxu0 0
  %2690 = vmatpush1.bf16.msra.mxu0 0
  %2691 = vmatprep.subr.bf16.mxu0 0
  %2692 = vmatpush1.bf16.msra.mxu0 0
  %2693 = vmatprep.subr.bf16.mxu0 0
  %2694 = vmatpush1.bf16.msra.mxu0 0
  %2695 = vmatprep.subr.bf16.mxu0 0
  %2696 = vmatpush1.bf16.msra.mxu0 0
  %2697 = vmatprep.subr.bf16.mxu0 0
  %2698 = vmatpush1.bf16.msra.mxu0 0
  %2699 = vmatprep.subr.bf16.mxu0 0
  %2700 = vmatpush1.bf16.msra.mxu0 0
  %2701 = vmatprep.subr.bf16.mxu0 0
  %2702 = vmatpush1.bf16.msra.mxu0 0
  %2703 = vmatprep.subr.bf16.mxu0 0
  %2704 = vmatpush1.bf16.msra.mxu0 0
  %2705 = vmatprep.subr.bf16.mxu0 0
  %2706 = vmatpush1.bf16.msra.mxu0 0
  %2707 = vmatprep.subr.bf16.mxu0 0
  %2708 = vmatpush1.bf16.msra.mxu0 0
  %2709 = vmatprep.subr.bf16.mxu0 0
  %2710 = vmatpush1.bf16.msra.mxu0 0
  %2711 = vmatprep.subr.bf16.mxu0 0
  %2712 = vmatpush1.bf16.msra.mxu0 0
  %2713 = vmatprep.subr.bf16.mxu0 0
  %2714 = vmatpush1.bf16.msra.mxu0 0
  %2715 = vmatprep.subr.bf16.mxu0 0
  %2716 = vmatpush1.bf16.msra.mxu0 0
  %2717 = vmatprep.mubr.bf16.mxu0 0
  %2718 = vmatmul.mubr.bf16.gmra.mrb[0].mxu0 %v2536
  %v2719 = vpop.f32.mrb[0].mxu0
  %v2720 = vadd.f32 0.0, %v2719
  %v2721 = vpop.f32.mrb[0].mxu0
  %v2722 = vadd.f32 0.0, %v2721
  %v2723 = vpop.f32.mrb[0].mxu0
  %v2724 = vpop.f32.mrb[0].mxu0
  %2725 = vdwg.mxu0
  %v2726 = vadd.f32 %v2471, %v2597
  %v2727 = vadd.f32 %v2472, %v2599
  %v2728 = vadd.f32 %v2473, %v2638
  %v2729 = vadd.f32 %v2474, %v2640
  %v2730 = vadd.f32 %v2475, %v2679
  %v2731 = vadd.f32 %v2476, %v2681
  %v2732 = vadd.f32 %v2477, %v2720
  %v2733 = vadd.f32 %v2478, %v2722
  %v2734 = vld [vmem:[%s120] sm:$0x33]
  %v2735 = vld [vmem:[%s120 + $0x8] sm:$0x33]
  %v2736 = vld [vmem:[%s120 + $0x10] sm:$0x33]
  %v2737 = vld [vmem:[%s120 + $0x18] sm:$0x33]
  %v2738 = vld [vmem:[%s120 + $0x20] sm:$0x3]
  %s2739 = scalar_lea.vmem %s2, 20
  %v2740 = vld [vmem:[%s2739] sm:$0xf]
  %v2746 = vunpack.c.l.b16 %v2734
  %v2747 = vunpack.c.h.b16 %v2734
  %v2748 = vunpack.c.l.b16 %v2735
  %v2749 = vunpack.c.h.b16 %v2735
  %v2750 = vunpack.c.l.b16 %v2736
  %v2751 = vunpack.c.h.b16 %v2736
  %v2752 = vunpack.c.l.b16 %v2737
  %v2753 = vunpack.c.h.b16 %v2737
  %v2754 = vunpack.c.l.b16 %v2738
  %v2755 = vpack.c.b16 %v2746, %v2746
  %v2756 = vpack.c.b16 %v2747, %v2747
  %v2757 = vpack.c.b16 %v2748, %v2748
  %v2758 = vpack.c.b16 %v2749, %v2749
  %v2759 = vpack.c.b16 %v2750, %v2750
  %v2760 = vpack.c.b16 %v2751, %v2751
  %v2761 = vpack.c.b16 %v2752, %v2752
  %v2762 = vpack.c.b16 %v2753, %v2753
  %v2763 = vpack.c.b16 %v2754, %v2754
  %2764 = vrot.lane.b32.xlu0 %v2755, 96
  %v2765 = vpop.permute.xlu0 %2764
  %2766 = vrot.lane.b32.xlu0 %v2756, 96
  %v2767 = vpop.permute.xlu0 %2766
  %2768 = vrot.lane.b32.xlu0 %v2757, 96
  %v2769 = vpop.permute.xlu0 %2768
  %2770 = vrot.lane.b32.xlu0 %v2758, 96
  %v2771 = vpop.permute.xlu0 %2770
  %2772 = vrot.lane.b32.xlu0 %v2759, 96
  %v2773 = vpop.permute.xlu0 %2772
  %2774 = vrot.lane.b32.xlu0 %v2760, 96
  %v2775 = vpop.permute.xlu0 %2774
  %2776 = vrot.lane.b32.xlu0 %v2761, 96
  %v2777 = vpop.permute.xlu0 %2776
  %2778 = vrot.lane.b32.xlu0 %v2762, 96
  %v2779 = vpop.permute.xlu0 %2778
  %2780 = vrot.lane.b32.xlu0 %v2763, 96
  %v2781 = vpop.permute.xlu0 %2780
  %v2782 = vsel %vm192, %v2765, %v2767
  %v2783 = vsel %vm192, %v2767, %v2769
  %v2784 = vsel %vm192, %v2769, %v2771
  %v2785 = vsel %vm192, %v2771, %v2773
  %v2786 = vsel %vm192, %v2773, %v2775
  %v2787 = vsel %vm192, %v2775, %v2777
  %v2788 = vsel %vm192, %v2777, %v2779
  %v2789 = vsel %vm192, %v2779, %v2781
  %v2791 = vsel %vm1595, %v2740, 0
  %v2794 = vsel %vm1599, %v2782, 0
  %v2797 = vsel %vm1599, %v2783, 0
  %v2800 = vsel %vm1599, %v2784, 0
  %v2803 = vsel %vm1599, %v2785, 0
  %v2806 = vsel %vm1599, %v2786, 0
  %v2809 = vsel %vm1599, %v2787, 0
  %v2812 = vsel %vm1599, %v2788, 0
  %v2815 = vsel %vm1599, %v2789, 0
  %2817 = vmatprep.subr.bf16.mxu0 %v2797
  %2818 = vmatpush1.bf16.msra.mxu0 %v2794
  %2819 = vmatprep.subr.bf16.mxu0 0
  %2820 = vmatpush1.bf16.msra.mxu0 0
  %2821 = vmatprep.subr.bf16.mxu0 0
  %2822 = vmatpush1.bf16.msra.mxu0 0
  %2823 = vmatprep.subr.bf16.mxu0 0
  %2824 = vmatpush1.bf16.msra.mxu0 0
  %2825 = vmatprep.subr.bf16.mxu0 0
  %2826 = vmatpush1.bf16.msra.mxu0 0
  %2827 = vmatprep.subr.bf16.mxu0 0
  %2828 = vmatpush1.bf16.msra.mxu0 0
  %2829 = vmatprep.subr.bf16.mxu0 0
  %2830 = vmatpush1.bf16.msra.mxu0 0
  %2831 = vmatprep.subr.bf16.mxu0 0
  %2832 = vmatpush1.bf16.msra.mxu0 0
  %2833 = vmatprep.subr.bf16.mxu0 0
  %2834 = vmatpush1.bf16.msra.mxu0 0
  %2835 = vmatprep.subr.bf16.mxu0 0
  %2836 = vmatpush1.bf16.msra.mxu0 0
  %2837 = vmatprep.subr.bf16.mxu0 0
  %2838 = vmatpush1.bf16.msra.mxu0 0
  %2839 = vmatprep.subr.bf16.mxu0 0
  %2840 = vmatpush1.bf16.msra.mxu0 0
  %2841 = vmatprep.subr.bf16.mxu0 0
  %2842 = vmatpush1.bf16.msra.mxu0 0
  %2843 = vmatprep.subr.bf16.mxu0 0
  %2844 = vmatpush1.bf16.msra.mxu0 0
  %2845 = vmatprep.subr.bf16.mxu0 0
  %2846 = vmatpush1.bf16.msra.mxu0 0
  %2847 = vmatprep.subr.bf16.mxu0 0
  %2848 = vmatpush1.bf16.msra.mxu0 0
  %2849 = vmatprep.mubr.bf16.mxu0 0
  %2850 = vmatmul.mubr.bf16.gmra.mrb[0].mxu0 %v2791
  %v2851 = vpop.f32.mrb[0].mxu0
  %v2852 = vadd.f32 0.0, %v2851
  %v2853 = vpop.f32.mrb[0].mxu0
  %v2854 = vadd.f32 0.0, %v2853
  %v2855 = vpop.f32.mrb[0].mxu0
  %v2856 = vpop.f32.mrb[0].mxu0
  %2857 = vdwg.mxu0
  %2858 = vmatprep.subr.bf16.mxu0 %v2803
  %2859 = vmatpush1.bf16.msra.mxu0 %v2800
  %2860 = vmatprep.subr.bf16.mxu0 0
  %2861 = vmatpush1.bf16.msra.mxu0 0
  %2862 = vmatprep.subr.bf16.mxu0 0
  %2863 = vmatpush1.bf16.msra.mxu0 0
  %2864 = vmatprep.subr.bf16.mxu0 0
  %2865 = vmatpush1.bf16.msra.mxu0 0
  %2866 = vmatprep.subr.bf16.mxu0 0
  %2867 = vmatpush1.bf16.msra.mxu0 0
  %2868 = vmatprep.subr.bf16.mxu0 0
  %2869 = vmatpush1.bf16.msra.mxu0 0
  %2870 = vmatprep.subr.bf16.mxu0 0
  %2871 = vmatpush1.bf16.msra.mxu0 0
  %2872 = vmatprep.subr.bf16.mxu0 0
  %2873 = vmatpush1.bf16.msra.mxu0 0
  %2874 = vmatprep.subr.bf16.mxu0 0
  %2875 = vmatpush1.bf16.msra.mxu0 0
  %2876 = vmatprep.subr.bf16.mxu0 0
  %2877 = vmatpush1.bf16.msra.mxu0 0
  %2878 = vmatprep.subr.bf16.mxu0 0
  %2879 = vmatpush1.bf16.msra.mxu0 0
  %2880 = vmatprep.subr.bf16.mxu0 0
  %2881 = vmatpush1.bf16.msra.mxu0 0
  %2882 = vmatprep.subr.bf16.mxu0 0
  %2883 = vmatpush1.bf16.msra.mxu0 0
  %2884 = vmatprep.subr.bf16.mxu0 0
  %2885 = vmatpush1.bf16.msra.mxu0 0
  %2886 = vmatprep.subr.bf16.mxu0 0
  %2887 = vmatpush1.bf16.msra.mxu0 0
  %2888 = vmatprep.subr.bf16.mxu0 0
  %2889 = vmatpush1.bf16.msra.mxu0 0
  %2890 = vmatprep.mubr.bf16.mxu0 0
  %2891 = vmatmul.mubr.bf16.gmra.mrb[0].mxu0 %v2791
  %v2892 = vpop.f32.mrb[0].mxu0
  %v2893 = vadd.f32 0.0, %v2892
  %v2894 = vpop.f32.mrb[0].mxu0
  %v2895 = vadd.f32 0.0, %v2894
  %v2896 = vpop.f32.mrb[0].mxu0
  %v2897 = vpop.f32.mrb[0].mxu0
  %2898 = vdwg.mxu0
  %2899 = vmatprep.subr.bf16.mxu0 %v2809
  %2900 = vmatpush1.bf16.msra.mxu0 %v2806
  %2901 = vmatprep.subr.bf16.mxu0 0
  %2902 = vmatpush1.bf16.msra.mxu0 0
  %2903 = vmatprep.subr.bf16.mxu0 0
  %2904 = vmatpush1.bf16.msra.mxu0 0
  %2905 = vmatprep.subr.bf16.mxu0 0
  %2906 = vmatpush1.bf16.msra.mxu0 0
  %2907 = vmatprep.subr.bf16.mxu0 0
  %2908 = vmatpush1.bf16.msra.mxu0 0
  %2909 = vmatprep.subr.bf16.mxu0 0
  %2910 = vmatpush1.bf16.msra.mxu0 0
  %2911 = vmatprep.subr.bf16.mxu0 0
  %2912 = vmatpush1.bf16.msra.mxu0 0
  %2913 = vmatprep.subr.bf16.mxu0 0
  %2914 = vmatpush1.bf16.msra.mxu0 0
  %2915 = vmatprep.subr.bf16.mxu0 0
  %2916 = vmatpush1.bf16.msra.mxu0 0
  %2917 = vmatprep.subr.bf16.mxu0 0
  %2918 = vmatpush1.bf16.msra.mxu0 0
  %2919 = vmatprep.subr.bf16.mxu0 0
  %2920 = vmatpush1.bf16.msra.mxu0 0
  %2921 = vmatprep.subr.bf16.mxu0 0
  %2922 = vmatpush1.bf16.msra.mxu0 0
  %2923 = vmatprep.subr.bf16.mxu0 0
  %2924 = vmatpush1.bf16.msra.mxu0 0
  %2925 = vmatprep.subr.bf16.mxu0 0
  %2926 = vmatpush1.bf16.msra.mxu0 0
  %2927 = vmatprep.subr.bf16.mxu0 0
  %2928 = vmatpush1.bf16.msra.mxu0 0
  %2929 = vmatprep.subr.bf16.mxu0 0
  %2930 = vmatpush1.bf16.msra.mxu0 0
  %2931 = vmatprep.mubr.bf16.mxu0 0
  %2932 = vmatmul.mubr.bf16.gmra.mrb[0].mxu0 %v2791
  %v2933 = vpop.f32.mrb[0].mxu0
  %v2934 = vadd.f32 0.0, %v2933
  %v2935 = vpop.f32.mrb[0].mxu0
  %v2936 = vadd.f32 0.0, %v2935
  %v2937 = vpop.f32.mrb[0].mxu0
  %v2938 = vpop.f32.mrb[0].mxu0
  %2939 = vdwg.mxu0
  %2940 = vmatprep.subr.bf16.mxu0 %v2815
  %2941 = vmatpush1.bf16.msra.mxu0 %v2812
  %2942 = vmatprep.subr.bf16.mxu0 0
  %2943 = vmatpush1.bf16.msra.mxu0 0
  %2944 = vmatprep.subr.bf16.mxu0 0
  %2945 = vmatpush1.bf16.msra.mxu0 0
  %2946 = vmatprep.subr.bf16.mxu0 0
  %2947 = vmatpush1.bf16.msra.mxu0 0
  %2948 = vmatprep.subr.bf16.mxu0 0
  %2949 = vmatpush1.bf16.msra.mxu0 0
  %2950 = vmatprep.subr.bf16.mxu0 0
  %2951 = vmatpush1.bf16.msra.mxu0 0
  %2952 = vmatprep.subr.bf16.mxu0 0
  %2953 = vmatpush1.bf16.msra.mxu0 0
  %2954 = vmatprep.subr.bf16.mxu0 0
  %2955 = vmatpush1.bf16.msra.mxu0 0
  %2956 = vmatprep.subr.bf16.mxu0 0
  %2957 = vmatpush1.bf16.msra.mxu0 0
  %2958 = vmatprep.subr.bf16.mxu0 0
  %2959 = vmatpush1.bf16.msra.mxu0 0
  %2960 = vmatprep.subr.bf16.mxu0 0
  %2961 = vmatpush1.bf16.msra.mxu0 0
  %2962 = vmatprep.subr.bf16.mxu0 0
  %2963 = vmatpush1.bf16.msra.mxu0 0
  %2964 = vmatprep.subr.bf16.mxu0 0
  %2965 = vmatpush1.bf16.msra.mxu0 0
  %2966 = vmatprep.subr.bf16.mxu0 0
  %2967 = vmatpush1.bf16.msra.mxu0 0
  %2968 = vmatprep.subr.bf16.mxu0 0
  %2969 = vmatpush1.bf16.msra.mxu0 0
  %2970 = vmatprep.subr.bf16.mxu0 0
  %2971 = vmatpush1.bf16.msra.mxu0 0
  %2972 = vmatprep.mubr.bf16.mxu0 0
  %2973 = vmatmul.mubr.bf16.gmra.mrb[0].mxu0 %v2791
  %v2974 = vpop.f32.mrb[0].mxu0
  %v2975 = vadd.f32 0.0, %v2974
  %v2976 = vpop.f32.mrb[0].mxu0
  %v2977 = vadd.f32 0.0, %v2976
  %v2978 = vpop.f32.mrb[0].mxu0
  %v2979 = vpop.f32.mrb[0].mxu0
  %2980 = vdwg.mxu0
  %v2981 = vadd.f32 %v2726, %v2852
  %v2982 = vadd.f32 %v2727, %v2854
  %v2983 = vadd.f32 %v2728, %v2893
  %v2984 = vadd.f32 %v2729, %v2895
  %v2985 = vadd.f32 %v2730, %v2934
  %v2986 = vadd.f32 %v2731, %v2936
  %v2987 = vadd.f32 %v2732, %v2975
  %v2988 = vadd.f32 %v2733, %v2977
  %s2989 = scalar_lea.vmem %s2, 24
  %v2990 = vld [vmem:[%s2989] sm:$0xf]
  %2991 = vrot.lane.b32.xlu0 %v2245, 64
  %v2992 = vpop.permute.xlu0 %2991
  %2993 = vrot.lane.b32.xlu0 %v2246, 64
  %v2994 = vpop.permute.xlu0 %2993
  %2995 = vrot.lane.b32.xlu0 %v2247, 64
  %v2996 = vpop.permute.xlu0 %2995
  %2997 = vrot.lane.b32.xlu0 %v2248, 64
  %v2998 = vpop.permute.xlu0 %2997
  %2999 = vrot.lane.b32.xlu0 %v2249, 64
  %v3000 = vpop.permute.xlu0 %2999
  %3001 = vrot.lane.b32.xlu0 %v2250, 64
  %v3002 = vpop.permute.xlu0 %3001
  %3003 = vrot.lane.b32.xlu0 %v2251, 64
  %v3004 = vpop.permute.xlu0 %3003
  %3005 = vrot.lane.b32.xlu0 %v2252, 64
  %v3006 = vpop.permute.xlu0 %3005
  %3007 = vrot.lane.b32.xlu0 %v2253, 64
  %v3008 = vpop.permute.xlu0 %3007
  %vm3009 = vcmask 523264
  %v3010 = vsel %vm3009, %v2992, %v2994
  %v3011 = vsel %vm3009, %v2994, %v2996
  %v3012 = vsel %vm3009, %v2996, %v2998
  %v3013 = vsel %vm3009, %v2998, %v3000
  %v3014 = vsel %vm3009, %v3000, %v3002
  %v3015 = vsel %vm3009, %v3002, %v3004
  %v3016 = vsel %vm3009, %v3004, %v3006
  %v3017 = vsel %vm3009, %v3006, %v3008
  %v3019 = vsel %vm1595, %v2990, 0
  %v3022 = vsel %vm1599, %v3010, 0
  %v3025 = vsel %vm1599, %v3011, 0
  %v3028 = vsel %vm1599, %v3012, 0
  %v3031 = vsel %vm1599, %v3013, 0
  %v3034 = vsel %vm1599, %v3014, 0
  %v3037 = vsel %vm1599, %v3015, 0
  %v3040 = vsel %vm1599, %v3016, 0
  %v3043 = vsel %vm1599, %v3017, 0
  %3045 = vmatprep.subr.bf16.mxu0 %v3025
  %3046 = vmatpush1.bf16.msra.mxu0 %v3022
  %3047 = vmatprep.subr.bf16.mxu0 0
  %3048 = vmatpush1.bf16.msra.mxu0 0
  %3049 = vmatprep.subr.bf16.mxu0 0
  %3050 = vmatpush1.bf16.msra.mxu0 0
  %3051 = vmatprep.subr.bf16.mxu0 0
  %3052 = vmatpush1.bf16.msra.mxu0 0
  %3053 = vmatprep.subr.bf16.mxu0 0
  %3054 = vmatpush1.bf16.msra.mxu0 0
  %3055 = vmatprep.subr.bf16.mxu0 0
  %3056 = vmatpush1.bf16.msra.mxu0 0
  %3057 = vmatprep.subr.bf16.mxu0 0
  %3058 = vmatpush1.bf16.msra.mxu0 0
  %3059 = vmatprep.subr.bf16.mxu0 0
  %3060 = vmatpush1.bf16.msra.mxu0 0
  %3061 = vmatprep.subr.bf16.mxu0 0
  %3062 = vmatpush1.bf16.msra.mxu0 0
  %3063 = vmatprep.subr.bf16.mxu0 0
  %3064 = vmatpush1.bf16.msra.mxu0 0
  %3065 = vmatprep.subr.bf16.mxu0 0
  %3066 = vmatpush1.bf16.msra.mxu0 0
  %3067 = vmatprep.subr.bf16.mxu0 0
  %3068 = vmatpush1.bf16.msra.mxu0 0
  %3069 = vmatprep.subr.bf16.mxu0 0
  %3070 = vmatpush1.bf16.msra.mxu0 0
  %3071 = vmatprep.subr.bf16.mxu0 0
  %3072 = vmatpush1.bf16.msra.mxu0 0
  %3073 = vmatprep.subr.bf16.mxu0 0
  %3074 = vmatpush1.bf16.msra.mxu0 0
  %3075 = vmatprep.subr.bf16.mxu0 0
  %3076 = vmatpush1.bf16.msra.mxu0 0
  %3077 = vmatprep.mubr.bf16.mxu0 0
  %3078 = vmatmul.mubr.bf16.gmra.mrb[0].mxu0 %v3019
  %v3079 = vpop.f32.mrb[0].mxu0
  %v3080 = vadd.f32 0.0, %v3079
  %v3081 = vpop.f32.mrb[0].mxu0
  %v3082 = vadd.f32 0.0, %v3081
  %v3083 = vpop.f32.mrb[0].mxu0
  %v3084 = vpop.f32.mrb[0].mxu0
  %3085 = vdwg.mxu0
  %3086 = vmatprep.subr.bf16.mxu0 %v3031
  %3087 = vmatpush1.bf16.msra.mxu0 %v3028
  %3088 = vmatprep.subr.bf16.mxu0 0
  %3089 = vmatpush1.bf16.msra.mxu0 0
  %3090 = vmatprep.subr.bf16.mxu0 0
  %3091 = vmatpush1.bf16.msra.mxu0 0
  %3092 = vmatprep.subr.bf16.mxu0 0
  %3093 = vmatpush1.bf16.msra.mxu0 0
  %3094 = vmatprep.subr.bf16.mxu0 0
  %3095 = vmatpush1.bf16.msra.mxu0 0
  %3096 = vmatprep.subr.bf16.mxu0 0
  %3097 = vmatpush1.bf16.msra.mxu0 0
  %3098 = vmatprep.subr.bf16.mxu0 0
  %3099 = vmatpush1.bf16.msra.mxu0 0
  %3100 = vmatprep.subr.bf16.mxu0 0
  %3101 = vmatpush1.bf16.msra.mxu0 0
  %3102 = vmatprep.subr.bf16.mxu0 0
  %3103 = vmatpush1.bf16.msra.mxu0 0
  %3104 = vmatprep.subr.bf16.mxu0 0
  %3105 = vmatpush1.bf16.msra.mxu0 0
  %3106 = vmatprep.subr.bf16.mxu0 0
  %3107 = vmatpush1.bf16.msra.mxu0 0
  %3108 = vmatprep.subr.bf16.mxu0 0
  %3109 = vmatpush1.bf16.msra.mxu0 0
  %3110 = vmatprep.subr.bf16.mxu0 0
  %3111 = vmatpush1.bf16.msra.mxu0 0
  %3112 = vmatprep.subr.bf16.mxu0 0
  %3113 = vmatpush1.bf16.msra.mxu0 0
  %3114 = vmatprep.subr.bf16.mxu0 0
  %3115 = vmatpush1.bf16.msra.mxu0 0
  %3116 = vmatprep.subr.bf16.mxu0 0
  %3117 = vmatpush1.bf16.msra.mxu0 0
  %3118 = vmatprep.mubr.bf16.mxu0 0
  %3119 = vmatmul.mubr.bf16.gmra.mrb[0].mxu0 %v3019
  %v3120 = vpop.f32.mrb[0].mxu0
  %v3121 = vadd.f32 0.0, %v3120
  %v3122 = vpop.f32.mrb[0].mxu0
  %v3123 = vadd.f32 0.0, %v3122
  %v3124 = vpop.f32.mrb[0].mxu0
  %v3125 = vpop.f32.mrb[0].mxu0
  %3126 = vdwg.mxu0
  %3127 = vmatprep.subr.bf16.mxu0 %v3037
  %3128 = vmatpush1.bf16.msra.mxu0 %v3034
  %3129 = vmatprep.subr.bf16.mxu0 0
  %3130 = vmatpush1.bf16.msra.mxu0 0
  %3131 = vmatprep.subr.bf16.mxu0 0
  %3132 = vmatpush1.bf16.msra.mxu0 0
  %3133 = vmatprep.subr.bf16.mxu0 0
  %3134 = vmatpush1.bf16.msra.mxu0 0
  %3135 = vmatprep.subr.bf16.mxu0 0
  %3136 = vmatpush1.bf16.msra.mxu0 0
  %3137 = vmatprep.subr.bf16.mxu0 0
  %3138 = vmatpush1.bf16.msra.mxu0 0
  %3139 = vmatprep.subr.bf16.mxu0 0
  %3140 = vmatpush1.bf16.msra.mxu0 0
  %3141 = vmatprep.subr.bf16.mxu0 0
  %3142 = vmatpush1.bf16.msra.mxu0 0
  %3143 = vmatprep.subr.bf16.mxu0 0
  %3144 = vmatpush1.bf16.msra.mxu0 0
  %3145 = vmatprep.subr.bf16.mxu0 0
  %3146 = vmatpush1.bf16.msra.mxu0 0
  %3147 = vmatprep.subr.bf16.mxu0 0
  %3148 = vmatpush1.bf16.msra.mxu0 0
  %3149 = vmatprep.subr.bf16.mxu0 0
  %3150 = vmatpush1.bf16.msra.mxu0 0
  %3151 = vmatprep.subr.bf16.mxu0 0
  %3152 = vmatpush1.bf16.msra.mxu0 0
  %3153 = vmatprep.subr.bf16.mxu0 0
  %3154 = vmatpush1.bf16.msra.mxu0 0
  %3155 = vmatprep.subr.bf16.mxu0 0
  %3156 = vmatpush1.bf16.msra.mxu0 0
  %3157 = vmatprep.subr.bf16.mxu0 0
  %3158 = vmatpush1.bf16.msra.mxu0 0
  %3159 = vmatprep.mubr.bf16.mxu0 0
  %3160 = vmatmul.mubr.bf16.gmra.mrb[0].mxu0 %v3019
  %v3161 = vpop.f32.mrb[0].mxu0
  %v3162 = vadd.f32 0.0, %v3161
  %v3163 = vpop.f32.mrb[0].mxu0
  %v3164 = vadd.f32 0.0, %v3163
  %v3165 = vpop.f32.mrb[0].mxu0
  %v3166 = vpop.f32.mrb[0].mxu0
  %3167 = vdwg.mxu0
  %3168 = vmatprep.subr.bf16.mxu0 %v3043
  %3169 = vmatpush1.bf16.msra.mxu0 %v3040
  %3170 = vmatprep.subr.bf16.mxu0 0
  %3171 = vmatpush1.bf16.msra.mxu0 0
  %3172 = vmatprep.subr.bf16.mxu0 0
  %3173 = vmatpush1.bf16.msra.mxu0 0
  %3174 = vmatprep.subr.bf16.mxu0 0
  %3175 = vmatpush1.bf16.msra.mxu0 0
  %3176 = vmatprep.subr.bf16.mxu0 0
  %3177 = vmatpush1.bf16.msra.mxu0 0
  %3178 = vmatprep.subr.bf16.mxu0 0
  %3179 = vmatpush1.bf16.msra.mxu0 0
  %3180 = vmatprep.subr.bf16.mxu0 0
  %3181 = vmatpush1.bf16.msra.mxu0 0
  %3182 = vmatprep.subr.bf16.mxu0 0
  %3183 = vmatpush1.bf16.msra.mxu0 0
  %3184 = vmatprep.subr.bf16.mxu0 0
  %3185 = vmatpush1.bf16.msra.mxu0 0
  %3186 = vmatprep.subr.bf16.mxu0 0
  %3187 = vmatpush1.bf16.msra.mxu0 0
  %3188 = vmatprep.subr.bf16.mxu0 0
  %3189 = vmatpush1.bf16.msra.mxu0 0
  %3190 = vmatprep.subr.bf16.mxu0 0
  %3191 = vmatpush1.bf16.msra.mxu0 0
  %3192 = vmatprep.subr.bf16.mxu0 0
  %3193 = vmatpush1.bf16.msra.mxu0 0
  %3194 = vmatprep.subr.bf16.mxu0 0
  %3195 = vmatpush1.bf16.msra.mxu0 0
  %3196 = vmatprep.subr.bf16.mxu0 0
  %3197 = vmatpush1.bf16.msra.mxu0 0
  %3198 = vmatprep.subr.bf16.mxu0 0
  %3199 = vmatpush1.bf16.msra.mxu0 0
  %3200 = vmatprep.mubr.bf16.mxu0 0
  %3201 = vmatmul.mubr.bf16.gmra.mrb[0].mxu0 %v3019
  %v3202 = vpop.f32.mrb[0].mxu0
  %v3203 = vadd.f32 0.0, %v3202
  %v3204 = vpop.f32.mrb[0].mxu0
  %v3205 = vadd.f32 0.0, %v3204
  %v3206 = vpop.f32.mrb[0].mxu0
  %v3207 = vpop.f32.mrb[0].mxu0
  %3208 = vdwg.mxu0
  %v3209 = vadd.f32 %v2981, %v3080
  %v3210 = vadd.f32 %v2982, %v3082
  %v3211 = vadd.f32 %v2983, %v3121
  %v3212 = vadd.f32 %v2984, %v3123
  %v3213 = vadd.f32 %v2985, %v3162
  %v3214 = vadd.f32 %v2986, %v3164
  %v3215 = vadd.f32 %v2987, %v3203
  %v3216 = vadd.f32 %v2988, %v3205
  %s3217 = scalar_lea.vmem %s2, 28
  %v3218 = vld [vmem:[%s3217] sm:$0xf]
  %3219 = vrot.lane.b32.xlu0 %v2500, 64
  %v3220 = vpop.permute.xlu0 %3219
  %3221 = vrot.lane.b32.xlu0 %v2501, 64
  %v3222 = vpop.permute.xlu0 %3221
  %3223 = vrot.lane.b32.xlu0 %v2502, 64
  %v3224 = vpop.permute.xlu0 %3223
  %3225 = vrot.lane.b32.xlu0 %v2503, 64
  %v3226 = vpop.permute.xlu0 %3225
  %3227 = vrot.lane.b32.xlu0 %v2504, 64
  %v3228 = vpop.permute.xlu0 %3227
  %3229 = vrot.lane.b32.xlu0 %v2505, 64
  %v3230 = vpop.permute.xlu0 %3229
  %3231 = vrot.lane.b32.xlu0 %v2506, 64
  %v3232 = vpop.permute.xlu0 %3231
  %3233 = vrot.lane.b32.xlu0 %v2507, 64
  %v3234 = vpop.permute.xlu0 %3233
  %3235 = vrot.lane.b32.xlu0 %v2508, 64
  %v3236 = vpop.permute.xlu0 %3235
  %v3237 = vsel %vm3009, %v3220, %v3222
  %v3238 = vsel %vm3009, %v3222, %v3224
  %v3239 = vsel %vm3009, %v3224, %v3226
  %v3240 = vsel %vm3009, %v3226, %v3228
  %v3241 = vsel %vm3009, %v3228, %v3230
  %v3242 = vsel %vm3009, %v3230, %v3232
  %v3243 = vsel %vm3009, %v3232, %v3234
  %v3244 = vsel %vm3009, %v3234, %v3236
  %v3246 = vsel %vm1595, %v3218, 0
  %v3249 = vsel %vm1599, %v3237, 0
  %v3252 = vsel %vm1599, %v3238, 0
  %v3255 = vsel %vm1599, %v3239, 0
  %v3258 = vsel %vm1599, %v3240, 0
  %v3261 = vsel %vm1599, %v3241, 0
  %v3264 = vsel %vm1599, %v3242, 0
  %v3267 = vsel %vm1599, %v3243, 0
  %v3270 = vsel %vm1599, %v3244, 0
  %3272 = vmatprep.subr.bf16.mxu0 %v3252
  %3273 = vmatpush1.bf16.msra.mxu0 %v3249
  %3274 = vmatprep.subr.bf16.mxu0 0
  %3275 = vmatpush1.bf16.msra.mxu0 0
  %3276 = vmatprep.subr.bf16.mxu0 0
  %3277 = vmatpush1.bf16.msra.mxu0 0
  %3278 = vmatprep.subr.bf16.mxu0 0
  %3279 = vmatpush1.bf16.msra.mxu0 0
  %3280 = vmatprep.subr.bf16.mxu0 0
  %3281 = vmatpush1.bf16.msra.mxu0 0
  %3282 = vmatprep.subr.bf16.mxu0 0
  %3283 = vmatpush1.bf16.msra.mxu0 0
  %3284 = vmatprep.subr.bf16.mxu0 0
  %3285 = vmatpush1.bf16.msra.mxu0 0
  %3286 = vmatprep.subr.bf16.mxu0 0
  %3287 = vmatpush1.bf16.msra.mxu0 0
  %3288 = vmatprep.subr.bf16.mxu0 0
  %3289 = vmatpush1.bf16.msra.mxu0 0
  %3290 = vmatprep.subr.bf16.mxu0 0
  %3291 = vmatpush1.bf16.msra.mxu0 0
  %3292 = vmatprep.subr.bf16.mxu0 0
  %3293 = vmatpush1.bf16.msra.mxu0 0
  %3294 = vmatprep.subr.bf16.mxu0 0
  %3295 = vmatpush1.bf16.msra.mxu0 0
  %3296 = vmatprep.subr.bf16.mxu0 0
  %3297 = vmatpush1.bf16.msra.mxu0 0
  %3298 = vmatprep.subr.bf16.mxu0 0
  %3299 = vmatpush1.bf16.msra.mxu0 0
  %3300 = vmatprep.subr.bf16.mxu0 0
  %3301 = vmatpush1.bf16.msra.mxu0 0
  %3302 = vmatprep.subr.bf16.mxu0 0
  %3303 = vmatpush1.bf16.msra.mxu0 0
  %3304 = vmatprep.mubr.bf16.mxu0 0
  %3305 = vmatmul.mubr.bf16.gmra.mrb[0].mxu0 %v3246
  %v3306 = vpop.f32.mrb[0].mxu0
  %v3307 = vadd.f32 0.0, %v3306
  %v3308 = vpop.f32.mrb[0].mxu0
  %v3309 = vadd.f32 0.0, %v3308
  %v3310 = vpop.f32.mrb[0].mxu0
  %v3311 = vpop.f32.mrb[0].mxu0
  %3312 = vdwg.mxu0
  %3313 = vmatprep.subr.bf16.mxu0 %v3258
  %3314 = vmatpush1.bf16.msra.mxu0 %v3255
  %3315 = vmatprep.subr.bf16.mxu0 0
  %3316 = vmatpush1.bf16.msra.mxu0 0
  %3317 = vmatprep.subr.bf16.mxu0 0
  %3318 = vmatpush1.bf16.msra.mxu0 0
  %3319 = vmatprep.subr.bf16.mxu0 0
  %3320 = vmatpush1.bf16.msra.mxu0 0
  %3321 = vmatprep.subr.bf16.mxu0 0
  %3322 = vmatpush1.bf16.msra.mxu0 0
  %3323 = vmatprep.subr.bf16.mxu0 0
  %3324 = vmatpush1.bf16.msra.mxu0 0
  %3325 = vmatprep.subr.bf16.mxu0 0
  %3326 = vmatpush1.bf16.msra.mxu0 0
  %3327 = vmatprep.subr.bf16.mxu0 0
  %3328 = vmatpush1.bf16.msra.mxu0 0
  %3329 = vmatprep.subr.bf16.mxu0 0
  %3330 = vmatpush1.bf16.msra.mxu0 0
  %3331 = vmatprep.subr.bf16.mxu0 0
  %3332 = vmatpush1.bf16.msra.mxu0 0
  %3333 = vmatprep.subr.bf16.mxu0 0
  %3334 = vmatpush1.bf16.msra.mxu0 0
  %3335 = vmatprep.subr.bf16.mxu0 0
  %3336 = vmatpush1.bf16.msra.mxu0 0
  %3337 = vmatprep.subr.bf16.mxu0 0
  %3338 = vmatpush1.bf16.msra.mxu0 0
  %3339 = vmatprep.subr.bf16.mxu0 0
  %3340 = vmatpush1.bf16.msra.mxu0 0
  %3341 = vmatprep.subr.bf16.mxu0 0
  %3342 = vmatpush1.bf16.msra.mxu0 0
  %3343 = vmatprep.subr.bf16.mxu0 0
  %3344 = vmatpush1.bf16.msra.mxu0 0
  %3345 = vmatprep.mubr.bf16.mxu0 0
  %3346 = vmatmul.mubr.bf16.gmra.mrb[0].mxu0 %v3246
  %v3347 = vpop.f32.mrb[0].mxu0
  %v3348 = vadd.f32 0.0, %v3347
  %v3349 = vpop.f32.mrb[0].mxu0
  %v3350 = vadd.f32 0.0, %v3349
  %v3351 = vpop.f32.mrb[0].mxu0
  %v3352 = vpop.f32.mrb[0].mxu0
  %3353 = vdwg.mxu0
  %3354 = vmatprep.subr.bf16.mxu0 %v3264
  %3355 = vmatpush1.bf16.msra.mxu0 %v3261
  %3356 = vmatprep.subr.bf16.mxu0 0
  %3357 = vmatpush1.bf16.msra.mxu0 0
  %3358 = vmatprep.subr.bf16.mxu0 0
  %3359 = vmatpush1.bf16.msra.mxu0 0
  %3360 = vmatprep.subr.bf16.mxu0 0
  %3361 = vmatpush1.bf16.msra.mxu0 0
  %3362 = vmatprep.subr.bf16.mxu0 0
  %3363 = vmatpush1.bf16.msra.mxu0 0
  %3364 = vmatprep.subr.bf16.mxu0 0
  %3365 = vmatpush1.bf16.msra.mxu0 0
  %3366 = vmatprep.subr.bf16.mxu0 0
  %3367 = vmatpush1.bf16.msra.mxu0 0
  %3368 = vmatprep.subr.bf16.mxu0 0
  %3369 = vmatpush1.bf16.msra.mxu0 0
  %3370 = vmatprep.subr.bf16.mxu0 0
  %3371 = vmatpush1.bf16.msra.mxu0 0
  %3372 = vmatprep.subr.bf16.mxu0 0
  %3373 = vmatpush1.bf16.msra.mxu0 0
  %3374 = vmatprep.subr.bf16.mxu0 0
  %3375 = vmatpush1.bf16.msra.mxu0 0
  %3376 = vmatprep.subr.bf16.mxu0 0
  %3377 = vmatpush1.bf16.msra.mxu0 0
  %3378 = vmatprep.subr.bf16.mxu0 0
  %3379 = vmatpush1.bf16.msra.mxu0 0
  %3380 = vmatprep.subr.bf16.mxu0 0
  %3381 = vmatpush1.bf16.msra.mxu0 0
  %3382 = vmatprep.subr.bf16.mxu0 0
  %3383 = vmatpush1.bf16.msra.mxu0 0
  %3384 = vmatprep.subr.bf16.mxu0 0
  %3385 = vmatpush1.bf16.msra.mxu0 0
  %3386 = vmatprep.mubr.bf16.mxu0 0
  %3387 = vmatmul.mubr.bf16.gmra.mrb[0].mxu0 %v3246
  %v3388 = vpop.f32.mrb[0].mxu0
  %v3389 = vadd.f32 0.0, %v3388
  %v3390 = vpop.f32.mrb[0].mxu0
  %v3391 = vadd.f32 0.0, %v3390
  %v3392 = vpop.f32.mrb[0].mxu0
  %v3393 = vpop.f32.mrb[0].mxu0
  %3394 = vdwg.mxu0
  %3395 = vmatprep.subr.bf16.mxu0 %v3270
  %3396 = vmatpush1.bf16.msra.mxu0 %v3267
  %3397 = vmatprep.subr.bf16.mxu0 0
  %3398 = vmatpush1.bf16.msra.mxu0 0
  %3399 = vmatprep.subr.bf16.mxu0 0
  %3400 = vmatpush1.bf16.msra.mxu0 0
  %3401 = vmatprep.subr.bf16.mxu0 0
  %3402 = vmatpush1.bf16.msra.mxu0 0
  %3403 = vmatprep.subr.bf16.mxu0 0
  %3404 = vmatpush1.bf16.msra.mxu0 0
  %3405 = vmatprep.subr.bf16.mxu0 0
  %3406 = vmatpush1.bf16.msra.mxu0 0
  %3407 = vmatprep.subr.bf16.mxu0 0
  %3408 = vmatpush1.bf16.msra.mxu0 0
  %3409 = vmatprep.subr.bf16.mxu0 0
  %3410 = vmatpush1.bf16.msra.mxu0 0
  %3411 = vmatprep.subr.bf16.mxu0 0
  %3412 = vmatpush1.bf16.msra.mxu0 0
  %3413 = vmatprep.subr.bf16.mxu0 0
  %3414 = vmatpush1.bf16.msra.mxu0 0
  %3415 = vmatprep.subr.bf16.mxu0 0
  %3416 = vmatpush1.bf16.msra.mxu0 0
  %3417 = vmatprep.subr.bf16.mxu0 0
  %3418 = vmatpush1.bf16.msra.mxu0 0
  %3419 = vmatprep.subr.bf16.mxu0 0
  %3420 = vmatpush1.bf16.msra.mxu0 0
  %3421 = vmatprep.subr.bf16.mxu0 0
  %3422 = vmatpush1.bf16.msra.mxu0 0
  %3423 = vmatprep.subr.bf16.mxu0 0
  %3424 = vmatpush1.bf16.msra.mxu0 0
  %3425 = vmatprep.subr.bf16.mxu0 0
  %3426 = vmatpush1.bf16.msra.mxu0 0
  %3427 = vmatprep.mubr.bf16.mxu0 0
  %3428 = vmatmul.mubr.bf16.gmra.mrb[0].mxu0 %v3246
  %v3429 = vpop.f32.mrb[0].mxu0
  %v3430 = vadd.f32 0.0, %v3429
  %v3431 = vpop.f32.mrb[0].mxu0
  %v3432 = vadd.f32 0.0, %v3431
  %v3433 = vpop.f32.mrb[0].mxu0
  %v3434 = vpop.f32.mrb[0].mxu0
  %3435 = vdwg.mxu0
  %v3436 = vadd.f32 %v3209, %v3307
  %v3437 = vadd.f32 %v3210, %v3309
  %v3438 = vadd.f32 %v3211, %v3348
  %v3439 = vadd.f32 %v3212, %v3350
  %v3440 = vadd.f32 %v3213, %v3389
  %v3441 = vadd.f32 %v3214, %v3391
  %v3442 = vadd.f32 %v3215, %v3430
  %v3443 = vadd.f32 %v3216, %v3432
  %s3444 = scalar_lea.vmem %s2, 32
  %v3445 = vld [vmem:[%s3444] sm:$0xf]
  %3446 = vrot.lane.b32.xlu0 %v2755, 64
  %v3447 = vpop.permute.xlu0 %3446
  %3448 = vrot.lane.b32.xlu0 %v2756, 64
  %v3449 = vpop.permute.xlu0 %3448
  %3450 = vrot.lane.b32.xlu0 %v2757, 64
  %v3451 = vpop.permute.xlu0 %3450
  %3452 = vrot.lane.b32.xlu0 %v2758, 64
  %v3453 = vpop.permute.xlu0 %3452
  %3454 = vrot.lane.b32.xlu0 %v2759, 64
  %v3455 = vpop.permute.xlu0 %3454
  %3456 = vrot.lane.b32.xlu0 %v2760, 64
  %v3457 = vpop.permute.xlu0 %3456
  %3458 = vrot.lane.b32.xlu0 %v2761, 64
  %v3459 = vpop.permute.xlu0 %3458
  %3460 = vrot.lane.b32.xlu0 %v2762, 64
  %v3461 = vpop.permute.xlu0 %3460
  %3462 = vrot.lane.b32.xlu0 %v2763, 64
  %v3463 = vpop.permute.xlu0 %3462
  %v3464 = vsel %vm3009, %v3447, %v3449
  %v3465 = vsel %vm3009, %v3449, %v3451
  %v3466 = vsel %vm3009, %v3451, %v3453
  %v3467 = vsel %vm3009, %v3453, %v3455
  %v3468 = vsel %vm3009, %v3455, %v3457
  %v3469 = vsel %vm3009, %v3457, %v3459
  %v3470 = vsel %vm3009, %v3459, %v3461
  %v3471 = vsel %vm3009, %v3461, %v3463
  %v3473 = vsel %vm1595, %v3445, 0
  %v3476 = vsel %vm1599, %v3464, 0
  %v3479 = vsel %vm1599, %v3465, 0
  %v3482 = vsel %vm1599, %v3466, 0
  %v3485 = vsel %vm1599, %v3467, 0
  %v3488 = vsel %vm1599, %v3468, 0
  %v3491 = vsel %vm1599, %v3469, 0
  %v3494 = vsel %vm1599, %v3470, 0
  %v3497 = vsel %vm1599, %v3471, 0
  %3499 = vmatprep.subr.bf16.mxu0 %v3479
  %3500 = vmatpush1.bf16.msra.mxu0 %v3476
  %3501 = vmatprep.subr.bf16.mxu0 0
  %3502 = vmatpush1.bf16.msra.mxu0 0
  %3503 = vmatprep.subr.bf16.mxu0 0
  %3504 = vmatpush1.bf16.msra.mxu0 0
  %3505 = vmatprep.subr.bf16.mxu0 0
  %3506 = vmatpush1.bf16.msra.mxu0 0
  %3507 = vmatprep.subr.bf16.mxu0 0
  %3508 = vmatpush1.bf16.msra.mxu0 0
  %3509 = vmatprep.subr.bf16.mxu0 0
  %3510 = vmatpush1.bf16.msra.mxu0 0
  %3511 = vmatprep.subr.bf16.mxu0 0
  %3512 = vmatpush1.bf16.msra.mxu0 0
  %3513 = vmatprep.subr.bf16.mxu0 0
  %3514 = vmatpush1.bf16.msra.mxu0 0
  %3515 = vmatprep.subr.bf16.mxu0 0
  %3516 = vmatpush1.bf16.msra.mxu0 0
  %3517 = vmatprep.subr.bf16.mxu0 0
  %3518 = vmatpush1.bf16.msra.mxu0 0
  %3519 = vmatprep.subr.bf16.mxu0 0
  %3520 = vmatpush1.bf16.msra.mxu0 0
  %3521 = vmatprep.subr.bf16.mxu0 0
  %3522 = vmatpush1.bf16.msra.mxu0 0
  %3523 = vmatprep.subr.bf16.mxu0 0
  %3524 = vmatpush1.bf16.msra.mxu0 0
  %3525 = vmatprep.subr.bf16.mxu0 0
  %3526 = vmatpush1.bf16.msra.mxu0 0
  %3527 = vmatprep.subr.bf16.mxu0 0
  %3528 = vmatpush1.bf16.msra.mxu0 0
  %3529 = vmatprep.subr.bf16.mxu0 0
  %3530 = vmatpush1.bf16.msra.mxu0 0
  %3531 = vmatprep.mubr.bf16.mxu0 0
  %3532 = vmatmul.mubr.bf16.gmra.mrb[0].mxu0 %v3473
  %v3533 = vpop.f32.mrb[0].mxu0
  %v3534 = vadd.f32 0.0, %v3533
  %v3535 = vpop.f32.mrb[0].mxu0
  %v3536 = vadd.f32 0.0, %v3535
  %v3537 = vpop.f32.mrb[0].mxu0
  %v3538 = vpop.f32.mrb[0].mxu0
  %3539 = vdwg.mxu0
  %3540 = vmatprep.subr.bf16.mxu0 %v3485
  %3541 = vmatpush1.bf16.msra.mxu0 %v3482
  %3542 = vmatprep.subr.bf16.mxu0 0
  %3543 = vmatpush1.bf16.msra.mxu0 0
  %3544 = vmatprep.subr.bf16.mxu0 0
  %3545 = vmatpush1.bf16.msra.mxu0 0
  %3546 = vmatprep.subr.bf16.mxu0 0
  %3547 = vmatpush1.bf16.msra.mxu0 0
  %3548 = vmatprep.subr.bf16.mxu0 0
  %3549 = vmatpush1.bf16.msra.mxu0 0
  %3550 = vmatprep.subr.bf16.mxu0 0
  %3551 = vmatpush1.bf16.msra.mxu0 0
  %3552 = vmatprep.subr.bf16.mxu0 0
  %3553 = vmatpush1.bf16.msra.mxu0 0
  %3554 = vmatprep.subr.bf16.mxu0 0
  %3555 = vmatpush1.bf16.msra.mxu0 0
  %3556 = vmatprep.subr.bf16.mxu0 0
  %3557 = vmatpush1.bf16.msra.mxu0 0
  %3558 = vmatprep.subr.bf16.mxu0 0
  %3559 = vmatpush1.bf16.msra.mxu0 0
  %3560 = vmatprep.subr.bf16.mxu0 0
  %3561 = vmatpush1.bf16.msra.mxu0 0
  %3562 = vmatprep.subr.bf16.mxu0 0
  %3563 = vmatpush1.bf16.msra.mxu0 0
  %3564 = vmatprep.subr.bf16.mxu0 0
  %3565 = vmatpush1.bf16.msra.mxu0 0
  %3566 = vmatprep.subr.bf16.mxu0 0
  %3567 = vmatpush1.bf16.msra.mxu0 0
  %3568 = vmatprep.subr.bf16.mxu0 0
  %3569 = vmatpush1.bf16.msra.mxu0 0
  %3570 = vmatprep.subr.bf16.mxu0 0
  %3571 = vmatpush1.bf16.msra.mxu0 0
  %3572 = vmatprep.mubr.bf16.mxu0 0
  %3573 = vmatmul.mubr.bf16.gmra.mrb[0].mxu0 %v3473
  %v3574 = vpop.f32.mrb[0].mxu0
  %v3575 = vadd.f32 0.0, %v3574
  %v3576 = vpop.f32.mrb[0].mxu0
  %v3577 = vadd.f32 0.0, %v3576
  %v3578 = vpop.f32.mrb[0].mxu0
  %v3579 = vpop.f32.mrb[0].mxu0
  %3580 = vdwg.mxu0
  %3581 = vmatprep.subr.bf16.mxu0 %v3491
  %3582 = vmatpush1.bf16.msra.mxu0 %v3488
  %3583 = vmatprep.subr.bf16.mxu0 0
  %3584 = vmatpush1.bf16.msra.mxu0 0
  %3585 = vmatprep.subr.bf16.mxu0 0
  %3586 = vmatpush1.bf16.msra.mxu0 0
  %3587 = vmatprep.subr.bf16.mxu0 0
  %3588 = vmatpush1.bf16.msra.mxu0 0
  %3589 = vmatprep.subr.bf16.mxu0 0
  %3590 = vmatpush1.bf16.msra.mxu0 0
  %3591 = vmatprep.subr.bf16.mxu0 0
  %3592 = vmatpush1.bf16.msra.mxu0 0
  %3593 = vmatprep.subr.bf16.mxu0 0
  %3594 = vmatpush1.bf16.msra.mxu0 0
  %3595 = vmatprep.subr.bf16.mxu0 0
  %3596 = vmatpush1.bf16.msra.mxu0 0
  %3597 = vmatprep.subr.bf16.mxu0 0
  %3598 = vmatpush1.bf16.msra.mxu0 0
  %3599 = vmatprep.subr.bf16.mxu0 0
  %3600 = vmatpush1.bf16.msra.mxu0 0
  %3601 = vmatprep.subr.bf16.mxu0 0
  %3602 = vmatpush1.bf16.msra.mxu0 0
  %3603 = vmatprep.subr.bf16.mxu0 0
  %3604 = vmatpush1.bf16.msra.mxu0 0
  %3605 = vmatprep.subr.bf16.mxu0 0
  %3606 = vmatpush1.bf16.msra.mxu0 0
  %3607 = vmatprep.subr.bf16.mxu0 0
  %3608 = vmatpush1.bf16.msra.mxu0 0
  %3609 = vmatprep.subr.bf16.mxu0 0
  %3610 = vmatpush1.bf16.msra.mxu0 0
  %3611 = vmatprep.subr.bf16.mxu0 0
  %3612 = vmatpush1.bf16.msra.mxu0 0
  %3613 = vmatprep.mubr.bf16.mxu0 0
  %3614 = vmatmul.mubr.bf16.gmra.mrb[0].mxu0 %v3473
  %v3615 = vpop.f32.mrb[0].mxu0
  %v3616 = vadd.f32 0.0, %v3615
  %v3617 = vpop.f32.mrb[0].mxu0
  %v3618 = vadd.f32 0.0, %v3617
  %v3619 = vpop.f32.mrb[0].mxu0
  %v3620 = vpop.f32.mrb[0].mxu0
  %3621 = vdwg.mxu0
  %3622 = vmatprep.subr.bf16.mxu0 %v3497
  %3623 = vmatpush1.bf16.msra.mxu0 %v3494
  %3624 = vmatprep.subr.bf16.mxu0 0
  %3625 = vmatpush1.bf16.msra.mxu0 0
  %3626 = vmatprep.subr.bf16.mxu0 0
  %3627 = vmatpush1.bf16.msra.mxu0 0
  %3628 = vmatprep.subr.bf16.mxu0 0
  %3629 = vmatpush1.bf16.msra.mxu0 0
  %3630 = vmatprep.subr.bf16.mxu0 0
  %3631 = vmatpush1.bf16.msra.mxu0 0
  %3632 = vmatprep.subr.bf16.mxu0 0
  %3633 = vmatpush1.bf16.msra.mxu0 0
  %3634 = vmatprep.subr.bf16.mxu0 0
  %3635 = vmatpush1.bf16.msra.mxu0 0
  %3636 = vmatprep.subr.bf16.mxu0 0
  %3637 = vmatpush1.bf16.msra.mxu0 0
  %3638 = vmatprep.subr.bf16.mxu0 0
  %3639 = vmatpush1.bf16.msra.mxu0 0
  %3640 = vmatprep.subr.bf16.mxu0 0
  %3641 = vmatpush1.bf16.msra.mxu0 0
  %3642 = vmatprep.subr.bf16.mxu0 0
  %3643 = vmatpush1.bf16.msra.mxu0 0
  %3644 = vmatprep.subr.bf16.mxu0 0
  %3645 = vmatpush1.bf16.msra.mxu0 0
  %3646 = vmatprep.subr.bf16.mxu0 0
  %3647 = vmatpush1.bf16.msra.mxu0 0
  %3648 = vmatprep.subr.bf16.mxu0 0
  %3649 = vmatpush1.bf16.msra.mxu0 0
  %3650 = vmatprep.subr.bf16.mxu0 0
  %3651 = vmatpush1.bf16.msra.mxu0 0
  %3652 = vmatprep.subr.bf16.mxu0 0
  %3653 = vmatpush1.bf16.msra.mxu0 0
  %3654 = vmatprep.mubr.bf16.mxu0 0
  %3655 = vmatmul.mubr.bf16.gmra.mrb[0].mxu0 %v3473
  %v3656 = vpop.f32.mrb[0].mxu0
  %v3657 = vadd.f32 0.0, %v3656
  %v3658 = vpop.f32.mrb[0].mxu0
  %v3659 = vadd.f32 0.0, %v3658
  %v3660 = vpop.f32.mrb[0].mxu0
  %v3661 = vpop.f32.mrb[0].mxu0
  %3662 = vdwg.mxu0
  %v3663 = vadd.f32 %v3436, %v3534
  %v3664 = vadd.f32 %v3437, %v3536
  %v3665 = vadd.f32 %v3438, %v3575
  %v3666 = vadd.f32 %v3439, %v3577
  %v3667 = vadd.f32 %v3440, %v3616
  %v3668 = vadd.f32 %v3441, %v3618
  %v3669 = vadd.f32 %v3442, %v3657
  %v3670 = vadd.f32 %v3443, %v3659
  %3671 = vst [vmem:[%s5] sm:$0xff] %v3663
  %3672 = vst [vmem:[%s5 + $0x8] sm:$0xff] %v3664
  %3673 = vst [vmem:[%s5 + $0x10] sm:$0xff] %v3665
  %3674 = vst [vmem:[%s5 + $0x18] sm:$0xff] %v3666
  %3675 = vst [vmem:[%s5 + $0x20] sm:$0xff] %v3667
  %3676 = vst [vmem:[%s5 + $0x28] sm:$0xff] %v3668
  %3677 = vst [vmem:[%s5 + $0x30] sm:$0xff] %v3669
  %3678 = vst [vmem:[%s5 + $0x38] sm:$0xff] %v3670
  %v3679 = vadd.f32 %v3663, %v3664
  %v3680 = vadd.f32 %v3679, %v3665
  %v3681 = vadd.f32 %v3680, %v3666
  %v3682 = vadd.f32 %v3681, %v3667
  %v3683 = vadd.f32 %v3682, %v3668
  %v3684 = vadd.f32 %v3683, %v3669
  %v3685 = vadd.f32 %v3684, %v3670
  %3686 = vadd.xlane.f32.xlu0 %v3685
  %v3687 = vpop.xlane.xlu0 %3686
  %v3688 = vadd.f32 %v3687, 0.0
  %v3689 = vmul.f32 %v3663, %v3663
  %v3690 = vmul.f32 %v3664, %v3664
  %v3691 = vmul.f32 %v3665, %v3665
  %v3692 = vmul.f32 %v3666, %v3666
  %v3693 = vmul.f32 %v3667, %v3667
  %v3694 = vmul.f32 %v3668, %v3668
  %v3695 = vmul.f32 %v3669, %v3669
  %v3696 = vmul.f32 %v3670, %v3670
  %v3697 = vadd.f32 %v3689, %v3690
  %v3698 = vadd.f32 %v3697, %v3691
  %v3699 = vadd.f32 %v3698, %v3692
  %v3700 = vadd.f32 %v3699, %v3693
  %v3701 = vadd.f32 %v3700, %v3694
  %v3702 = vadd.f32 %v3701, %v3695
  %v3703 = vadd.f32 %v3702, %v3696
  %3704 = vadd.xlane.f32.xlu0 %v3703
  %v3705 = vpop.xlane.xlu0 %3704
  %v3706 = vadd.f32 %v3705, 0.0
  %v3707 = vld [vmem:[#allocation2] sm:$0xcc]
  %v3708 = vld [vmem:[#allocation2 + $0x8] sm:$0xcc]
  %v3709 = vld [vmem:[#allocation2 + $0x10] sm:$0xcc]
  %v3710 = vld [vmem:[#allocation2 + $0x18] sm:$0xcc]
  %v3711 = vld [vmem:[%s2] sm:$0xf]
  %v3712 = vld [vmem:[%s108] sm:$0xcc]
  %v3713 = vld [vmem:[%s108 + $0x8] sm:$0xcc]
  %v3714 = vld [vmem:[%s108 + $0x10] sm:$0xcc]
  %v3715 = vld [vmem:[%s108 + $0x18] sm:$0xcc]
  %v3716 = vld [vmem:[%s1573] sm:$0xf]
  %v3721 = vunpack.c.l.b16 %v3712
  %v3722 = vunpack.c.h.b16 %v3712
  %v3723 = vunpack.c.l.b16 %v3713
  %v3724 = vunpack.c.h.b16 %v3713
  %v3725 = vunpack.c.l.b16 %v3714
  %v3726 = vunpack.c.h.b16 %v3714
  %v3727 = vunpack.c.l.b16 %v3715
  %v3728 = vunpack.c.h.b16 %v3715
  %v3729 = vpack.c.b16 %v3721, %v3721
  %v3730 = vpack.c.b16 %v3722, %v3722
  %v3731 = vpack.c.b16 %v3723, %v3723
  %v3732 = vpack.c.b16 %v3724, %v3724
  %v3733 = vpack.c.b16 %v3725, %v3725
  %v3734 = vpack.c.b16 %v3726, %v3726
  %v3735 = vpack.c.b16 %v3727, %v3727
  %v3736 = vpack.c.b16 %v3728, %v3728
  %v3737 = vrot.slane %v3729, 2
  %v3738 = vrot.slane %v3730, 2
  %v3739 = vrot.slane %v3731, 2
  %v3740 = vrot.slane %v3732, 2
  %v3741 = vrot.slane %v3733, 2
  %v3742 = vrot.slane %v3734, 2
  %v3743 = vrot.slane %v3735, 2
  %v3744 = vrot.slane %v3736, 2
  %v3746 = vsel %vm1595, %v3716, 0
  %v3749 = vsel %vm1599, %v3737, 0
  %v3752 = vsel %vm1599, %v3738, 0
  %v3755 = vsel %vm1599, %v3739, 0
  %v3758 = vsel %vm1599, %v3740, 0
  %v3761 = vsel %vm1599, %v3741, 0
  %v3764 = vsel %vm1599, %v3742, 0
  %v3767 = vsel %vm1599, %v3743, 0
  %v3770 = vsel %vm1599, %v3744, 0
  %3772 = vmatprep.subr.bf16.mxu0 %v3752
  %3773 = vmatpush1.bf16.msra.mxu0 %v3749
  %3774 = vmatprep.subr.bf16.mxu0 0
  %3775 = vmatpush1.bf16.msra.mxu0 0
  %3776 = vmatprep.subr.bf16.mxu0 0
  %3777 = vmatpush1.bf16.msra.mxu0 0
  %3778 = vmatprep.subr.bf16.mxu0 0
  %3779 = vmatpush1.bf16.msra.mxu0 0
  %3780 = vmatprep.subr.bf16.mxu0 0
  %3781 = vmatpush1.bf16.msra.mxu0 0
  %3782 = vmatprep.subr.bf16.mxu0 0
  %3783 = vmatpush1.bf16.msra.mxu0 0
  %3784 = vmatprep.subr.bf16.mxu0 0
  %3785 = vmatpush1.bf16.msra.mxu0 0
  %3786 = vmatprep.subr.bf16.mxu0 0
  %3787 = vmatpush1.bf16.msra.mxu0 0
  %3788 = vmatprep.subr.bf16.mxu0 0
  %3789 = vmatpush1.bf16.msra.mxu0 0
  %3790 = vmatprep.subr.bf16.mxu0 0
  %3791 = vmatpush1.bf16.msra.mxu0 0
  %3792 = vmatprep.subr.bf16.mxu0 0
  %3793 = vmatpush1.bf16.msra.mxu0 0
  %3794 = vmatprep.subr.bf16.mxu0 0
  %3795 = vmatpush1.bf16.msra.mxu0 0
  %3796 = vmatprep.subr.bf16.mxu0 0
  %3797 = vmatpush1.bf16.msra.mxu0 0
  %3798 = vmatprep.subr.bf16.mxu0 0
  %3799 = vmatpush1.bf16.msra.mxu0 0
  %3800 = vmatprep.subr.bf16.mxu0 0
  %3801 = vmatpush1.bf16.msra.mxu0 0
  %3802 = vmatprep.subr.bf16.mxu0 0
  %3803 = vmatpush1.bf16.msra.mxu0 0
  %3804 = vmatprep.mubr.bf16.mxu0 0
  %3805 = vmatmul.mubr.bf16.gmra.mrb[0].mxu0 %v3746
  %v3806 = vpop.f32.mrb[0].mxu0
  %v3807 = vadd.f32 0.0, %v3806
  %v3808 = vpop.f32.mrb[0].mxu0
  %v3809 = vadd.f32 0.0, %v3808
  %v3810 = vpop.f32.mrb[0].mxu0
  %v3811 = vpop.f32.mrb[0].mxu0
  %3812 = vdwg.mxu0
  %3813 = vmatprep.subr.bf16.mxu0 %v3758
  %3814 = vmatpush1.bf16.msra.mxu0 %v3755
  %3815 = vmatprep.subr.bf16.mxu0 0
  %3816 = vmatpush1.bf16.msra.mxu0 0
  %3817 = vmatprep.subr.bf16.mxu0 0
  %3818 = vmatpush1.bf16.msra.mxu0 0
  %3819 = vmatprep.subr.bf16.mxu0 0
  %3820 = vmatpush1.bf16.msra.mxu0 0
  %3821 = vmatprep.subr.bf16.mxu0 0
  %3822 = vmatpush1.bf16.msra.mxu0 0
  %3823 = vmatprep.subr.bf16.mxu0 0
  %3824 = vmatpush1.bf16.msra.mxu0 0
  %3825 = vmatprep.subr.bf16.mxu0 0
  %3826 = vmatpush1.bf16.msra.mxu0 0
  %3827 = vmatprep.subr.bf16.mxu0 0
  %3828 = vmatpush1.bf16.msra.mxu0 0
  %3829 = vmatprep.subr.bf16.mxu0 0
  %3830 = vmatpush1.bf16.msra.mxu0 0
  %3831 = vmatprep.subr.bf16.mxu0 0
  %3832 = vmatpush1.bf16.msra.mxu0 0
  %3833 = vmatprep.subr.bf16.mxu0 0
  %3834 = vmatpush1.bf16.msra.mxu0 0
  %3835 = vmatprep.subr.bf16.mxu0 0
  %3836 = vmatpush1.bf16.msra.mxu0 0
  %3837 = vmatprep.subr.bf16.mxu0 0
  %3838 = vmatpush1.bf16.msra.mxu0 0
  %3839 = vmatprep.subr.bf16.mxu0 0
  %3840 = vmatpush1.bf16.msra.mxu0 0
  %3841 = vmatprep.subr.bf16.mxu0 0
  %3842 = vmatpush1.bf16.msra.mxu0 0
  %3843 = vmatprep.subr.bf16.mxu0 0
  %3844 = vmatpush1.bf16.msra.mxu0 0
  %3845 = vmatprep.mubr.bf16.mxu0 0
  %3846 = vmatmul.mubr.bf16.gmra.mrb[0].mxu0 %v3746
  %v3847 = vpop.f32.mrb[0].mxu0
  %v3848 = vadd.f32 0.0, %v3847
  %v3849 = vpop.f32.mrb[0].mxu0
  %v3850 = vadd.f32 0.0, %v3849
  %v3851 = vpop.f32.mrb[0].mxu0
  %v3852 = vpop.f32.mrb[0].mxu0
  %3853 = vdwg.mxu0
  %3854 = vmatprep.subr.bf16.mxu0 %v3764
  %3855 = vmatpush1.bf16.msra.mxu0 %v3761
  %3856 = vmatprep.subr.bf16.mxu0 0
  %3857 = vmatpush1.bf16.msra.mxu0 0
  %3858 = vmatprep.subr.bf16.mxu0 0
  %3859 = vmatpush1.bf16.msra.mxu0 0
  %3860 = vmatprep.subr.bf16.mxu0 0
  %3861 = vmatpush1.bf16.msra.mxu0 0
  %3862 = vmatprep.subr.bf16.mxu0 0
  %3863 = vmatpush1.bf16.msra.mxu0 0
  %3864 = vmatprep.subr.bf16.mxu0 0
  %3865 = vmatpush1.bf16.msra.mxu0 0
  %3866 = vmatprep.subr.bf16.mxu0 0
  %3867 = vmatpush1.bf16.msra.mxu0 0
  %3868 = vmatprep.subr.bf16.mxu0 0
  %3869 = vmatpush1.bf16.msra.mxu0 0
  %3870 = vmatprep.subr.bf16.mxu0 0
  %3871 = vmatpush1.bf16.msra.mxu0 0
  %3872 = vmatprep.subr.bf16.mxu0 0
  %3873 = vmatpush1.bf16.msra.mxu0 0
  %3874 = vmatprep.subr.bf16.mxu0 0
  %3875 = vmatpush1.bf16.msra.mxu0 0
  %3876 = vmatprep.subr.bf16.mxu0 0
  %3877 = vmatpush1.bf16.msra.mxu0 0
  %3878 = vmatprep.subr.bf16.mxu0 0
  %3879 = vmatpush1.bf16.msra.mxu0 0
  %3880 = vmatprep.subr.bf16.mxu0 0
  %3881 = vmatpush1.bf16.msra.mxu0 0
  %3882 = vmatprep.subr.bf16.mxu0 0
  %3883 = vmatpush1.bf16.msra.mxu0 0
  %3884 = vmatprep.subr.bf16.mxu0 0
  %3885 = vmatpush1.bf16.msra.mxu0 0
  %3886 = vmatprep.mubr.bf16.mxu0 0
  %3887 = vmatmul.mubr.bf16.gmra.mrb[0].mxu0 %v3746
  %v3888 = vpop.f32.mrb[0].mxu0
  %v3889 = vadd.f32 0.0, %v3888
  %v3890 = vpop.f32.mrb[0].mxu0
  %v3891 = vadd.f32 0.0, %v3890
  %v3892 = vpop.f32.mrb[0].mxu0
  %v3893 = vpop.f32.mrb[0].mxu0
  %3894 = vdwg.mxu0
  %3895 = vmatprep.subr.bf16.mxu0 %v3770
  %3896 = vmatpush1.bf16.msra.mxu0 %v3767
  %3897 = vmatprep.subr.bf16.mxu0 0
  %3898 = vmatpush1.bf16.msra.mxu0 0
  %3899 = vmatprep.subr.bf16.mxu0 0
  %3900 = vmatpush1.bf16.msra.mxu0 0
  %3901 = vmatprep.subr.bf16.mxu0 0
  %3902 = vmatpush1.bf16.msra.mxu0 0
  %3903 = vmatprep.subr.bf16.mxu0 0
  %3904 = vmatpush1.bf16.msra.mxu0 0
  %3905 = vmatprep.subr.bf16.mxu0 0
  %3906 = vmatpush1.bf16.msra.mxu0 0
  %3907 = vmatprep.subr.bf16.mxu0 0
  %3908 = vmatpush1.bf16.msra.mxu0 0
  %3909 = vmatprep.subr.bf16.mxu0 0
  %3910 = vmatpush1.bf16.msra.mxu0 0
  %3911 = vmatprep.subr.bf16.mxu0 0
  %3912 = vmatpush1.bf16.msra.mxu0 0
  %3913 = vmatprep.subr.bf16.mxu0 0
  %3914 = vmatpush1.bf16.msra.mxu0 0
  %3915 = vmatprep.subr.bf16.mxu0 0
  %3916 = vmatpush1.bf16.msra.mxu0 0
  %3917 = vmatprep.subr.bf16.mxu0 0
  %3918 = vmatpush1.bf16.msra.mxu0 0
  %3919 = vmatprep.subr.bf16.mxu0 0
  %3920 = vmatpush1.bf16.msra.mxu0 0
  %3921 = vmatprep.subr.bf16.mxu0 0
  %3922 = vmatpush1.bf16.msra.mxu0 0
  %3923 = vmatprep.subr.bf16.mxu0 0
  %3924 = vmatpush1.bf16.msra.mxu0 0
  %3925 = vmatprep.subr.bf16.mxu0 0
  %3926 = vmatpush1.bf16.msra.mxu0 0
  %3927 = vmatprep.mubr.bf16.mxu0 0
  %3928 = vmatmul.mubr.bf16.gmra.mrb[0].mxu0 %v3746
  %v3929 = vpop.f32.mrb[0].mxu0
  %v3930 = vadd.f32 0.0, %v3929
  %v3931 = vpop.f32.mrb[0].mxu0
  %v3932 = vadd.f32 0.0, %v3931
  %v3933 = vpop.f32.mrb[0].mxu0
  %v3934 = vpop.f32.mrb[0].mxu0
  %3935 = vdwg.mxu0
  %v3940 = vunpack.c.l.b16 %v3707
  %v3941 = vunpack.c.h.b16 %v3707
  %v3942 = vunpack.c.l.b16 %v3708
  %v3943 = vunpack.c.h.b16 %v3708
  %v3944 = vunpack.c.l.b16 %v3709
  %v3945 = vunpack.c.h.b16 %v3709
  %v3946 = vunpack.c.l.b16 %v3710
  %v3947 = vunpack.c.h.b16 %v3710
  %v3948 = vpack.c.b16 %v3940, %v3940
  %v3949 = vpack.c.b16 %v3941, %v3941
  %v3950 = vpack.c.b16 %v3942, %v3942
  %v3951 = vpack.c.b16 %v3943, %v3943
  %v3952 = vpack.c.b16 %v3944, %v3944
  %v3953 = vpack.c.b16 %v3945, %v3945
  %v3954 = vpack.c.b16 %v3946, %v3946
  %v3955 = vpack.c.b16 %v3947, %v3947
  %v3956 = vrot.slane %v3948, 2
  %v3957 = vrot.slane %v3949, 2
  %v3958 = vrot.slane %v3950, 2
  %v3959 = vrot.slane %v3951, 2
  %v3960 = vrot.slane %v3952, 2
  %v3961 = vrot.slane %v3953, 2
  %v3962 = vrot.slane %v3954, 2
  %v3963 = vrot.slane %v3955, 2
  %v3965 = vsel %vm1595, %v3711, 0
  %v3968 = vsel %vm1599, %v3956, 0
  %v3971 = vsel %vm1599, %v3957, 0
  %v3974 = vsel %vm1599, %v3958, 0
  %v3977 = vsel %vm1599, %v3959, 0
  %v3980 = vsel %vm1599, %v3960, 0
  %v3983 = vsel %vm1599, %v3961, 0
  %v3986 = vsel %vm1599, %v3962, 0
  %v3989 = vsel %vm1599, %v3963, 0
  %3991 = vmatprep.subr.bf16.mxu0 %v3971
  %3992 = vmatpush1.bf16.msra.mxu0 %v3968
  %3993 = vmatprep.subr.bf16.mxu0 0
  %3994 = vmatpush1.bf16.msra.mxu0 0
  %3995 = vmatprep.subr.bf16.mxu0 0
  %3996 = vmatpush1.bf16.msra.mxu0 0
  %3997 = vmatprep.subr.bf16.mxu0 0
  %3998 = vmatpush1.bf16.msra.mxu0 0
  %3999 = vmatprep.subr.bf16.mxu0 0
  %4000 = vmatpush1.bf16.msra.mxu0 0
  %4001 = vmatprep.subr.bf16.mxu0 0
  %4002 = vmatpush1.bf16.msra.mxu0 0
  %4003 = vmatprep.subr.bf16.mxu0 0
  %4004 = vmatpush1.bf16.msra.mxu0 0
  %4005 = vmatprep.subr.bf16.mxu0 0
  %4006 = vmatpush1.bf16.msra.mxu0 0
  %4007 = vmatprep.subr.bf16.mxu0 0
  %4008 = vmatpush1.bf16.msra.mxu0 0
  %4009 = vmatprep.subr.bf16.mxu0 0
  %4010 = vmatpush1.bf16.msra.mxu0 0
  %4011 = vmatprep.subr.bf16.mxu0 0
  %4012 = vmatpush1.bf16.msra.mxu0 0
  %4013 = vmatprep.subr.bf16.mxu0 0
  %4014 = vmatpush1.bf16.msra.mxu0 0
  %4015 = vmatprep.subr.bf16.mxu0 0
  %4016 = vmatpush1.bf16.msra.mxu0 0
  %4017 = vmatprep.subr.bf16.mxu0 0
  %4018 = vmatpush1.bf16.msra.mxu0 0
  %4019 = vmatprep.subr.bf16.mxu0 0
  %4020 = vmatpush1.bf16.msra.mxu0 0
  %4021 = vmatprep.subr.bf16.mxu0 0
  %4022 = vmatpush1.bf16.msra.mxu0 0
  %4023 = vmatprep.mubr.bf16.mxu0 0
  %4024 = vmatmul.mubr.bf16.gmra.mrb[0].mxu0 %v3965
  %v4025 = vpop.f32.mrb[0].mxu0
  %v4026 = vadd.f32 %v3807, %v4025
  %v4027 = vpop.f32.mrb[0].mxu0
  %v4028 = vadd.f32 %v3809, %v4027
  %v4029 = vpop.f32.mrb[0].mxu0
  %v4030 = vpop.f32.mrb[0].mxu0
  %4031 = vdwg.mxu0
  %4032 = vmatprep.subr.bf16.mxu0 %v3977
  %4033 = vmatpush1.bf16.msra.mxu0 %v3974
  %4034 = vmatprep.subr.bf16.mxu0 0
  %4035 = vmatpush1.bf16.msra.mxu0 0
  %4036 = vmatprep.subr.bf16.mxu0 0
  %4037 = vmatpush1.bf16.msra.mxu0 0
  %4038 = vmatprep.subr.bf16.mxu0 0
  %4039 = vmatpush1.bf16.msra.mxu0 0
  %4040 = vmatprep.subr.bf16.mxu0 0
  %4041 = vmatpush1.bf16.msra.mxu0 0
  %4042 = vmatprep.subr.bf16.mxu0 0
  %4043 = vmatpush1.bf16.msra.mxu0 0
  %4044 = vmatprep.subr.bf16.mxu0 0
  %4045 = vmatpush1.bf16.msra.mxu0 0
  %4046 = vmatprep.subr.bf16.mxu0 0
  %4047 = vmatpush1.bf16.msra.mxu0 0
  %4048 = vmatprep.subr.bf16.mxu0 0
  %4049 = vmatpush1.bf16.msra.mxu0 0
  %4050 = vmatprep.subr.bf16.mxu0 0
  %4051 = vmatpush1.bf16.msra.mxu0 0
  %4052 = vmatprep.subr.bf16.mxu0 0
  %4053 = vmatpush1.bf16.msra.mxu0 0
  %4054 = vmatprep.subr.bf16.mxu0 0
  %4055 = vmatpush1.bf16.msra.mxu0 0
  %4056 = vmatprep.subr.bf16.mxu0 0
  %4057 = vmatpush1.bf16.msra.mxu0 0
  %4058 = vmatprep.subr.bf16.mxu0 0
  %4059 = vmatpush1.bf16.msra.mxu0 0
  %4060 = vmatprep.subr.bf16.mxu0 0
  %4061 = vmatpush1.bf16.msra.mxu0 0
  %4062 = vmatprep.subr.bf16.mxu0 0
  %4063 = vmatpush1.bf16.msra.mxu0 0
  %4064 = vmatprep.mubr.bf16.mxu0 0
  %4065 = vmatmul.mubr.bf16.gmra.mrb[0].mxu0 %v3965
  %v4066 = vpop.f32.mrb[0].mxu0
  %v4067 = vadd.f32 %v3848, %v4066
  %v4068 = vpop.f32.mrb[0].mxu0
  %v4069 = vadd.f32 %v3850, %v4068
  %v4070 = vpop.f32.mrb[0].mxu0
  %v4071 = vpop.f32.mrb[0].mxu0
  %4072 = vdwg.mxu0
  %4073 = vmatprep.subr.bf16.mxu0 %v3983
  %4074 = vmatpush1.bf16.msra.mxu0 %v3980
  %4075 = vmatprep.subr.bf16.mxu0 0
  %4076 = vmatpush1.bf16.msra.mxu0 0
  %4077 = vmatprep.subr.bf16.mxu0 0
  %4078 = vmatpush1.bf16.msra.mxu0 0
  %4079 = vmatprep.subr.bf16.mxu0 0
  %4080 = vmatpush1.bf16.msra.mxu0 0
  %4081 = vmatprep.subr.bf16.mxu0 0
  %4082 = vmatpush1.bf16.msra.mxu0 0
  %4083 = vmatprep.subr.bf16.mxu0 0
  %4084 = vmatpush1.bf16.msra.mxu0 0
  %4085 = vmatprep.subr.bf16.mxu0 0
  %4086 = vmatpush1.bf16.msra.mxu0 0
  %4087 = vmatprep.subr.bf16.mxu0 0
  %4088 = vmatpush1.bf16.msra.mxu0 0
  %4089 = vmatprep.subr.bf16.mxu0 0
  %4090 = vmatpush1.bf16.msra.mxu0 0
  %4091 = vmatprep.subr.bf16.mxu0 0
  %4092 = vmatpush1.bf16.msra.mxu0 0
  %4093 = vmatprep.subr.bf16.mxu0 0
  %4094 = vmatpush1.bf16.msra.mxu0 0
  %4095 = vmatprep.subr.bf16.mxu0 0
  %4096 = vmatpush1.bf16.msra.mxu0 0
  %4097 = vmatprep.subr.bf16.mxu0 0
  %4098 = vmatpush1.bf16.msra.mxu0 0
  %4099 = vmatprep.subr.bf16.mxu0 0
  %4100 = vmatpush1.bf16.msra.mxu0 0
  %4101 = vmatprep.subr.bf16.mxu0 0
  %4102 = vmatpush1.bf16.msra.mxu0 0
  %4103 = vmatprep.subr.bf16.mxu0 0
  %4104 = vmatpush1.bf16.msra.mxu0 0
  %4105 = vmatprep.mubr.bf16.mxu0 0
  %4106 = vmatmul.mubr.bf16.gmra.mrb[0].mxu0 %v3965
  %v4107 = vpop.f32.mrb[0].mxu0
  %v4108 = vadd.f32 %v3889, %v4107
  %v4109 = vpop.f32.mrb[0].mxu0
  %v4110 = vadd.f32 %v3891, %v4109
  %v4111 = vpop.f32.mrb[0].mxu0
  %v4112 = vpop.f32.mrb[0].mxu0
  %4113 = vdwg.mxu0
  %4114 = vmatprep.subr.bf16.mxu0 %v3989
  %4115 = vmatpush1.bf16.msra.mxu0 %v3986
  %4116 = vmatprep.subr.bf16.mxu0 0
  %4117 = vmatpush1.bf16.msra.mxu0 0
  %4118 = vmatprep.subr.bf16.mxu0 0
  %4119 = vmatpush1.bf16.msra.mxu0 0
  %4120 = vmatprep.subr.bf16.mxu0 0
  %4121 = vmatpush1.bf16.msra.mxu0 0
  %4122 = vmatprep.subr.bf16.mxu0 0
  %4123 = vmatpush1.bf16.msra.mxu0 0
  %4124 = vmatprep.subr.bf16.mxu0 0
  %4125 = vmatpush1.bf16.msra.mxu0 0
  %4126 = vmatprep.subr.bf16.mxu0 0
  %4127 = vmatpush1.bf16.msra.mxu0 0
  %4128 = vmatprep.subr.bf16.mxu0 0
  %4129 = vmatpush1.bf16.msra.mxu0 0
  %4130 = vmatprep.subr.bf16.mxu0 0
  %4131 = vmatpush1.bf16.msra.mxu0 0
  %4132 = vmatprep.subr.bf16.mxu0 0
  %4133 = vmatpush1.bf16.msra.mxu0 0
  %4134 = vmatprep.subr.bf16.mxu0 0
  %4135 = vmatpush1.bf16.msra.mxu0 0
  %4136 = vmatprep.subr.bf16.mxu0 0
  %4137 = vmatpush1.bf16.msra.mxu0 0
  %4138 = vmatprep.subr.bf16.mxu0 0
  %4139 = vmatpush1.bf16.msra.mxu0 0
  %4140 = vmatprep.subr.bf16.mxu0 0
  %4141 = vmatpush1.bf16.msra.mxu0 0
  %4142 = vmatprep.subr.bf16.mxu0 0
  %4143 = vmatpush1.bf16.msra.mxu0 0
  %4144 = vmatprep.subr.bf16.mxu0 0
  %4145 = vmatpush1.bf16.msra.mxu0 0
  %4146 = vmatprep.mubr.bf16.mxu0 0
  %4147 = vmatmul.mubr.bf16.gmra.mrb[0].mxu0 %v3965
  %v4148 = vpop.f32.mrb[0].mxu0
  %v4149 = vadd.f32 %v3930, %v4148
  %v4150 = vpop.f32.mrb[0].mxu0
  %v4151 = vadd.f32 %v3932, %v4150
  %v4152 = vpop.f32.mrb[0].mxu0
  %v4153 = vpop.f32.mrb[0].mxu0
  %4154 = vdwg.mxu0
  %v4155 = vld [vmem:[%s120] sm:$0xcc]
  %v4156 = vld [vmem:[%s120 + $0x8] sm:$0xcc]
  %v4157 = vld [vmem:[%s120 + $0x10] sm:$0xcc]
  %v4158 = vld [vmem:[%s120 + $0x18] sm:$0xcc]
  %v4159 = vld [vmem:[%s2003] sm:$0xf]
  %v4164 = vunpack.c.l.b16 %v4155
  %v4165 = vunpack.c.h.b16 %v4155
  %v4166 = vunpack.c.l.b16 %v4156
  %v4167 = vunpack.c.h.b16 %v4156
  %v4168 = vunpack.c.l.b16 %v4157
  %v4169 = vunpack.c.h.b16 %v4157
  %v4170 = vunpack.c.l.b16 %v4158
  %v4171 = vunpack.c.h.b16 %v4158
  %v4172 = vpack.c.b16 %v4164, %v4164
  %v4173 = vpack.c.b16 %v4165, %v4165
  %v4174 = vpack.c.b16 %v4166, %v4166
  %v4175 = vpack.c.b16 %v4167, %v4167
  %v4176 = vpack.c.b16 %v4168, %v4168
  %v4177 = vpack.c.b16 %v4169, %v4169
  %v4178 = vpack.c.b16 %v4170, %v4170
  %v4179 = vpack.c.b16 %v4171, %v4171
  %v4180 = vrot.slane %v4172, 2
  %v4181 = vrot.slane %v4173, 2
  %v4182 = vrot.slane %v4174, 2
  %v4183 = vrot.slane %v4175, 2
  %v4184 = vrot.slane %v4176, 2
  %v4185 = vrot.slane %v4177, 2
  %v4186 = vrot.slane %v4178, 2
  %v4187 = vrot.slane %v4179, 2
  %v4189 = vsel %vm1595, %v4159, 0
  %v4192 = vsel %vm1599, %v4180, 0
  %v4195 = vsel %vm1599, %v4181, 0
  %v4198 = vsel %vm1599, %v4182, 0
  %v4201 = vsel %vm1599, %v4183, 0
  %v4204 = vsel %vm1599, %v4184, 0
  %v4207 = vsel %vm1599, %v4185, 0
  %v4210 = vsel %vm1599, %v4186, 0
  %v4213 = vsel %vm1599, %v4187, 0
  %4215 = vmatprep.subr.bf16.mxu0 %v4195
  %4216 = vmatpush1.bf16.msra.mxu0 %v4192
  %4217 = vmatprep.subr.bf16.mxu0 0
  %4218 = vmatpush1.bf16.msra.mxu0 0
  %4219 = vmatprep.subr.bf16.mxu0 0
  %4220 = vmatpush1.bf16.msra.mxu0 0
  %4221 = vmatprep.subr.bf16.mxu0 0
  %4222 = vmatpush1.bf16.msra.mxu0 0
  %4223 = vmatprep.subr.bf16.mxu0 0
  %4224 = vmatpush1.bf16.msra.mxu0 0
  %4225 = vmatprep.subr.bf16.mxu0 0
  %4226 = vmatpush1.bf16.msra.mxu0 0
  %4227 = vmatprep.subr.bf16.mxu0 0
  %4228 = vmatpush1.bf16.msra.mxu0 0
  %4229 = vmatprep.subr.bf16.mxu0 0
  %4230 = vmatpush1.bf16.msra.mxu0 0
  %4231 = vmatprep.subr.bf16.mxu0 0
  %4232 = vmatpush1.bf16.msra.mxu0 0
  %4233 = vmatprep.subr.bf16.mxu0 0
  %4234 = vmatpush1.bf16.msra.mxu0 0
  %4235 = vmatprep.subr.bf16.mxu0 0
  %4236 = vmatpush1.bf16.msra.mxu0 0
  %4237 = vmatprep.subr.bf16.mxu0 0
  %4238 = vmatpush1.bf16.msra.mxu0 0
  %4239 = vmatprep.subr.bf16.mxu0 0
  %4240 = vmatpush1.bf16.msra.mxu0 0
  %4241 = vmatprep.subr.bf16.mxu0 0
  %4242 = vmatpush1.bf16.msra.mxu0 0
  %4243 = vmatprep.subr.bf16.mxu0 0
  %4244 = vmatpush1.bf16.msra.mxu0 0
  %4245 = vmatprep.subr.bf16.mxu0 0
  %4246 = vmatpush1.bf16.msra.mxu0 0
  %4247 = vmatprep.mubr.bf16.mxu0 0
  %4248 = vmatmul.mubr.bf16.gmra.mrb[0].mxu0 %v4189
  %v4249 = vpop.f32.mrb[0].mxu0
  %v4250 = vadd.f32 0.0, %v4249
  %v4251 = vpop.f32.mrb[0].mxu0
  %v4252 = vadd.f32 0.0, %v4251
  %v4253 = vpop.f32.mrb[0].mxu0
  %v4254 = vpop.f32.mrb[0].mxu0
  %4255 = vdwg.mxu0
  %4256 = vmatprep.subr.bf16.mxu0 %v4201
  %4257 = vmatpush1.bf16.msra.mxu0 %v4198
  %4258 = vmatprep.subr.bf16.mxu0 0
  %4259 = vmatpush1.bf16.msra.mxu0 0
  %4260 = vmatprep.subr.bf16.mxu0 0
  %4261 = vmatpush1.bf16.msra.mxu0 0
  %4262 = vmatprep.subr.bf16.mxu0 0
  %4263 = vmatpush1.bf16.msra.mxu0 0
  %4264 = vmatprep.subr.bf16.mxu0 0
  %4265 = vmatpush1.bf16.msra.mxu0 0
  %4266 = vmatprep.subr.bf16.mxu0 0
  %4267 = vmatpush1.bf16.msra.mxu0 0
  %4268 = vmatprep.subr.bf16.mxu0 0
  %4269 = vmatpush1.bf16.msra.mxu0 0
  %4270 = vmatprep.subr.bf16.mxu0 0
  %4271 = vmatpush1.bf16.msra.mxu0 0
  %4272 = vmatprep.subr.bf16.mxu0 0
  %4273 = vmatpush1.bf16.msra.mxu0 0
  %4274 = vmatprep.subr.bf16.mxu0 0
  %4275 = vmatpush1.bf16.msra.mxu0 0
  %4276 = vmatprep.subr.bf16.mxu0 0
  %4277 = vmatpush1.bf16.msra.mxu0 0
  %4278 = vmatprep.subr.bf16.mxu0 0
  %4279 = vmatpush1.bf16.msra.mxu0 0
  %4280 = vmatprep.subr.bf16.mxu0 0
  %4281 = vmatpush1.bf16.msra.mxu0 0
  %4282 = vmatprep.subr.bf16.mxu0 0
  %4283 = vmatpush1.bf16.msra.mxu0 0
  %4284 = vmatprep.subr.bf16.mxu0 0
  %4285 = vmatpush1.bf16.msra.mxu0 0
  %4286 = vmatprep.subr.bf16.mxu0 0
  %4287 = vmatpush1.bf16.msra.mxu0 0
  %4288 = vmatprep.mubr.bf16.mxu0 0
  %4289 = vmatmul.mubr.bf16.gmra.mrb[0].mxu0 %v4189
  %v4290 = vpop.f32.mrb[0].mxu0
  %v4291 = vadd.f32 0.0, %v4290
  %v4292 = vpop.f32.mrb[0].mxu0
  %v4293 = vadd.f32 0.0, %v4292
  %v4294 = vpop.f32.mrb[0].mxu0
  %v4295 = vpop.f32.mrb[0].mxu0
  %4296 = vdwg.mxu0
  %4297 = vmatprep.subr.bf16.mxu0 %v4207
  %4298 = vmatpush1.bf16.msra.mxu0 %v4204
  %4299 = vmatprep.subr.bf16.mxu0 0
  %4300 = vmatpush1.bf16.msra.mxu0 0
  %4301 = vmatprep.subr.bf16.mxu0 0
  %4302 = vmatpush1.bf16.msra.mxu0 0
  %4303 = vmatprep.subr.bf16.mxu0 0
  %4304 = vmatpush1.bf16.msra.mxu0 0
  %4305 = vmatprep.subr.bf16.mxu0 0
  %4306 = vmatpush1.bf16.msra.mxu0 0
  %4307 = vmatprep.subr.bf16.mxu0 0
  %4308 = vmatpush1.bf16.msra.mxu0 0
  %4309 = vmatprep.subr.bf16.mxu0 0
  %4310 = vmatpush1.bf16.msra.mxu0 0
  %4311 = vmatprep.subr.bf16.mxu0 0
  %4312 = vmatpush1.bf16.msra.mxu0 0
  %4313 = vmatprep.subr.bf16.mxu0 0
  %4314 = vmatpush1.bf16.msra.mxu0 0
  %4315 = vmatprep.subr.bf16.mxu0 0
  %4316 = vmatpush1.bf16.msra.mxu0 0
  %4317 = vmatprep.subr.bf16.mxu0 0
  %4318 = vmatpush1.bf16.msra.mxu0 0
  %4319 = vmatprep.subr.bf16.mxu0 0
  %4320 = vmatpush1.bf16.msra.mxu0 0
  %4321 = vmatprep.subr.bf16.mxu0 0
  %4322 = vmatpush1.bf16.msra.mxu0 0
  %4323 = vmatprep.subr.bf16.mxu0 0
  %4324 = vmatpush1.bf16.msra.mxu0 0
  %4325 = vmatprep.subr.bf16.mxu0 0
  %4326 = vmatpush1.bf16.msra.mxu0 0
  %4327 = vmatprep.subr.bf16.mxu0 0
  %4328 = vmatpush1.bf16.msra.mxu0 0
  %4329 = vmatprep.mubr.bf16.mxu0 0
  %4330 = vmatmul.mubr.bf16.gmra.mrb[0].mxu0 %v4189
  %v4331 = vpop.f32.mrb[0].mxu0
  %v4332 = vadd.f32 0.0, %v4331
  %v4333 = vpop.f32.mrb[0].mxu0
  %v4334 = vadd.f32 0.0, %v4333
  %v4335 = vpop.f32.mrb[0].mxu0
  %v4336 = vpop.f32.mrb[0].mxu0
  %4337 = vdwg.mxu0
  %4338 = vmatprep.subr.bf16.mxu0 %v4213
  %4339 = vmatpush1.bf16.msra.mxu0 %v4210
  %4340 = vmatprep.subr.bf16.mxu0 0
  %4341 = vmatpush1.bf16.msra.mxu0 0
  %4342 = vmatprep.subr.bf16.mxu0 0
  %4343 = vmatpush1.bf16.msra.mxu0 0
  %4344 = vmatprep.subr.bf16.mxu0 0
  %4345 = vmatpush1.bf16.msra.mxu0 0
  %4346 = vmatprep.subr.bf16.mxu0 0
  %4347 = vmatpush1.bf16.msra.mxu0 0
  %4348 = vmatprep.subr.bf16.mxu0 0
  %4349 = vmatpush1.bf16.msra.mxu0 0
  %4350 = vmatprep.subr.bf16.mxu0 0
  %4351 = vmatpush1.bf16.msra.mxu0 0
  %4352 = vmatprep.subr.bf16.mxu0 0
  %4353 = vmatpush1.bf16.msra.mxu0 0
  %4354 = vmatprep.subr.bf16.mxu0 0
  %4355 = vmatpush1.bf16.msra.mxu0 0
  %4356 = vmatprep.subr.bf16.mxu0 0
  %4357 = vmatpush1.bf16.msra.mxu0 0
  %4358 = vmatprep.subr.bf16.mxu0 0
  %4359 = vmatpush1.bf16.msra.mxu0 0
  %4360 = vmatprep.subr.bf16.mxu0 0
  %4361 = vmatpush1.bf16.msra.mxu0 0
  %4362 = vmatprep.subr.bf16.mxu0 0
  %4363 = vmatpush1.bf16.msra.mxu0 0
  %4364 = vmatprep.subr.bf16.mxu0 0
  %4365 = vmatpush1.bf16.msra.mxu0 0
  %4366 = vmatprep.subr.bf16.mxu0 0
  %4367 = vmatpush1.bf16.msra.mxu0 0
  %4368 = vmatprep.subr.bf16.mxu0 0
  %4369 = vmatpush1.bf16.msra.mxu0 0
  %4370 = vmatprep.mubr.bf16.mxu0 0
  %4371 = vmatmul.mubr.bf16.gmra.mrb[0].mxu0 %v4189
  %v4372 = vpop.f32.mrb[0].mxu0
  %v4373 = vadd.f32 0.0, %v4372
  %v4374 = vpop.f32.mrb[0].mxu0
  %v4375 = vadd.f32 0.0, %v4374
  %v4376 = vpop.f32.mrb[0].mxu0
  %v4377 = vpop.f32.mrb[0].mxu0
  %4378 = vdwg.mxu0
  %v4379 = vadd.f32 %v4026, %v4250
  %v4380 = vadd.f32 %v4028, %v4252
  %v4381 = vadd.f32 %v4067, %v4291
  %v4382 = vadd.f32 %v4069, %v4293
  %v4383 = vadd.f32 %v4108, %v4332
  %v4384 = vadd.f32 %v4110, %v4334
  %v4385 = vadd.f32 %v4149, %v4373
  %v4386 = vadd.f32 %v4151, %v4375
  %v4387 = vld [vmem:[#allocation2] sm:$0xcc]
  %v4388 = vld [vmem:[#allocation2 + $0x8] sm:$0xcc]
  %v4389 = vld [vmem:[#allocation2 + $0x10] sm:$0xcc]
  %v4390 = vld [vmem:[#allocation2 + $0x18] sm:$0xcc]
  %v4391 = vld [vmem:[#allocation2 + $0x20] sm:$0xc]
  %v4392 = vld [vmem:[%s2229] sm:$0xf]
  %v4398 = vunpack.c.l.b16 %v4387
  %v4399 = vunpack.c.h.b16 %v4387
  %v4400 = vunpack.c.l.b16 %v4388
  %v4401 = vunpack.c.h.b16 %v4388
  %v4402 = vunpack.c.l.b16 %v4389
  %v4403 = vunpack.c.h.b16 %v4389
  %v4404 = vunpack.c.l.b16 %v4390
  %v4405 = vunpack.c.h.b16 %v4390
  %v4406 = vunpack.c.l.b16 %v4391
  %v4407 = vpack.c.b16 %v4398, %v4398
  %v4408 = vpack.c.b16 %v4399, %v4399
  %v4409 = vpack.c.b16 %v4400, %v4400
  %v4410 = vpack.c.b16 %v4401, %v4401
  %v4411 = vpack.c.b16 %v4402, %v4402
  %v4412 = vpack.c.b16 %v4403, %v4403
  %v4413 = vpack.c.b16 %v4404, %v4404
  %v4414 = vpack.c.b16 %v4405, %v4405
  %v4415 = vpack.c.b16 %v4406, %v4406
  %v4416 = vrot.slane %v4407, 2
  %v4417 = vrot.slane %v4408, 2
  %v4418 = vrot.slane %v4409, 2
  %v4419 = vrot.slane %v4410, 2
  %v4420 = vrot.slane %v4411, 2
  %v4421 = vrot.slane %v4412, 2
  %v4422 = vrot.slane %v4413, 2
  %v4423 = vrot.slane %v4414, 2
  %v4424 = vrot.slane %v4415, 2
  %4425 = vrot.lane.b32.xlu0 %v4416, 96
  %v4426 = vpop.permute.xlu0 %4425
  %4427 = vrot.lane.b32.xlu0 %v4417, 96
  %v4428 = vpop.permute.xlu0 %4427
  %4429 = vrot.lane.b32.xlu0 %v4418, 96
  %v4430 = vpop.permute.xlu0 %4429
  %4431 = vrot.lane.b32.xlu0 %v4419, 96
  %v4432 = vpop.permute.xlu0 %4431
  %4433 = vrot.lane.b32.xlu0 %v4420, 96
  %v4434 = vpop.permute.xlu0 %4433
  %4435 = vrot.lane.b32.xlu0 %v4421, 96
  %v4436 = vpop.permute.xlu0 %4435
  %4437 = vrot.lane.b32.xlu0 %v4422, 96
  %v4438 = vpop.permute.xlu0 %4437
  %4439 = vrot.lane.b32.xlu0 %v4423, 96
  %v4440 = vpop.permute.xlu0 %4439
  %4441 = vrot.lane.b32.xlu0 %v4424, 96
  %v4442 = vpop.permute.xlu0 %4441
  %v4443 = vsel %vm192, %v4426, %v4428
  %v4444 = vsel %vm192, %v4428, %v4430
  %v4445 = vsel %vm192, %v4430, %v4432
  %v4446 = vsel %vm192, %v4432, %v4434
  %v4447 = vsel %vm192, %v4434, %v4436
  %v4448 = vsel %vm192, %v4436, %v4438
  %v4449 = vsel %vm192, %v4438, %v4440
  %v4450 = vsel %vm192, %v4440, %v4442
  %v4452 = vsel %vm1595, %v4392, 0
  %v4455 = vsel %vm1599, %v4443, 0
  %v4458 = vsel %vm1599, %v4444, 0
  %v4461 = vsel %vm1599, %v4445, 0
  %v4464 = vsel %vm1599, %v4446, 0
  %v4467 = vsel %vm1599, %v4447, 0
  %v4470 = vsel %vm1599, %v4448, 0
  %v4473 = vsel %vm1599, %v4449, 0
  %v4476 = vsel %vm1599, %v4450, 0
  %4478 = vmatprep.subr.bf16.mxu0 %v4458
  %4479 = vmatpush1.bf16.msra.mxu0 %v4455
  %4480 = vmatprep.subr.bf16.mxu0 0
  %4481 = vmatpush1.bf16.msra.mxu0 0
  %4482 = vmatprep.subr.bf16.mxu0 0
  %4483 = vmatpush1.bf16.msra.mxu0 0
  %4484 = vmatprep.subr.bf16.mxu0 0
  %4485 = vmatpush1.bf16.msra.mxu0 0
  %4486 = vmatprep.subr.bf16.mxu0 0
  %4487 = vmatpush1.bf16.msra.mxu0 0
  %4488 = vmatprep.subr.bf16.mxu0 0
  %4489 = vmatpush1.bf16.msra.mxu0 0
  %4490 = vmatprep.subr.bf16.mxu0 0
  %4491 = vmatpush1.bf16.msra.mxu0 0
  %4492 = vmatprep.subr.bf16.mxu0 0
  %4493 = vmatpush1.bf16.msra.mxu0 0
  %4494 = vmatprep.subr.bf16.mxu0 0
  %4495 = vmatpush1.bf16.msra.mxu0 0
  %4496 = vmatprep.subr.bf16.mxu0 0
  %4497 = vmatpush1.bf16.msra.mxu0 0
  %4498 = vmatprep.subr.bf16.mxu0 0
  %4499 = vmatpush1.bf16.msra.mxu0 0
  %4500 = vmatprep.subr.bf16.mxu0 0
  %4501 = vmatpush1.bf16.msra.mxu0 0
  %4502 = vmatprep.subr.bf16.mxu0 0
  %4503 = vmatpush1.bf16.msra.mxu0 0
  %4504 = vmatprep.subr.bf16.mxu0 0
  %4505 = vmatpush1.bf16.msra.mxu0 0
  %4506 = vmatprep.subr.bf16.mxu0 0
  %4507 = vmatpush1.bf16.msra.mxu0 0
  %4508 = vmatprep.subr.bf16.mxu0 0
  %4509 = vmatpush1.bf16.msra.mxu0 0
  %4510 = vmatprep.mubr.bf16.mxu0 0
  %4511 = vmatmul.mubr.bf16.gmra.mrb[0].mxu0 %v4452
  %v4512 = vpop.f32.mrb[0].mxu0
  %v4513 = vadd.f32 0.0, %v4512
  %v4514 = vpop.f32.mrb[0].mxu0
  %v4515 = vadd.f32 0.0, %v4514
  %v4516 = vpop.f32.mrb[0].mxu0
  %v4517 = vpop.f32.mrb[0].mxu0
  %4518 = vdwg.mxu0
  %4519 = vmatprep.subr.bf16.mxu0 %v4464
  %4520 = vmatpush1.bf16.msra.mxu0 %v4461
  %4521 = vmatprep.subr.bf16.mxu0 0
  %4522 = vmatpush1.bf16.msra.mxu0 0
  %4523 = vmatprep.subr.bf16.mxu0 0
  %4524 = vmatpush1.bf16.msra.mxu0 0
  %4525 = vmatprep.subr.bf16.mxu0 0
  %4526 = vmatpush1.bf16.msra.mxu0 0
  %4527 = vmatprep.subr.bf16.mxu0 0
  %4528 = vmatpush1.bf16.msra.mxu0 0
  %4529 = vmatprep.subr.bf16.mxu0 0
  %4530 = vmatpush1.bf16.msra.mxu0 0
  %4531 = vmatprep.subr.bf16.mxu0 0
  %4532 = vmatpush1.bf16.msra.mxu0 0
  %4533 = vmatprep.subr.bf16.mxu0 0
  %4534 = vmatpush1.bf16.msra.mxu0 0
  %4535 = vmatprep.subr.bf16.mxu0 0
  %4536 = vmatpush1.bf16.msra.mxu0 0
  %4537 = vmatprep.subr.bf16.mxu0 0
  %4538 = vmatpush1.bf16.msra.mxu0 0
  %4539 = vmatprep.subr.bf16.mxu0 0
  %4540 = vmatpush1.bf16.msra.mxu0 0
  %4541 = vmatprep.subr.bf16.mxu0 0
  %4542 = vmatpush1.bf16.msra.mxu0 0
  %4543 = vmatprep.subr.bf16.mxu0 0
  %4544 = vmatpush1.bf16.msra.mxu0 0
  %4545 = vmatprep.subr.bf16.mxu0 0
  %4546 = vmatpush1.bf16.msra.mxu0 0
  %4547 = vmatprep.subr.bf16.mxu0 0
  %4548 = vmatpush1.bf16.msra.mxu0 0
  %4549 = vmatprep.subr.bf16.mxu0 0
  %4550 = vmatpush1.bf16.msra.mxu0 0
  %4551 = vmatprep.mubr.bf16.mxu0 0
  %4552 = vmatmul.mubr.bf16.gmra.mrb[0].mxu0 %v4452
  %v4553 = vpop.f32.mrb[0].mxu0
  %v4554 = vadd.f32 0.0, %v4553
  %v4555 = vpop.f32.mrb[0].mxu0
  %v4556 = vadd.f32 0.0, %v4555
  %v4557 = vpop.f32.mrb[0].mxu0
  %v4558 = vpop.f32.mrb[0].mxu0
  %4559 = vdwg.mxu0
  %4560 = vmatprep.subr.bf16.mxu0 %v4470
  %4561 = vmatpush1.bf16.msra.mxu0 %v4467
  %4562 = vmatprep.subr.bf16.mxu0 0
  %4563 = vmatpush1.bf16.msra.mxu0 0
  %4564 = vmatprep.subr.bf16.mxu0 0
  %4565 = vmatpush1.bf16.msra.mxu0 0
  %4566 = vmatprep.subr.bf16.mxu0 0
  %4567 = vmatpush1.bf16.msra.mxu0 0
  %4568 = vmatprep.subr.bf16.mxu0 0
  %4569 = vmatpush1.bf16.msra.mxu0 0
  %4570 = vmatprep.subr.bf16.mxu0 0
  %4571 = vmatpush1.bf16.msra.mxu0 0
  %4572 = vmatprep.subr.bf16.mxu0 0
  %4573 = vmatpush1.bf16.msra.mxu0 0
  %4574 = vmatprep.subr.bf16.mxu0 0
  %4575 = vmatpush1.bf16.msra.mxu0 0
  %4576 = vmatprep.subr.bf16.mxu0 0
  %4577 = vmatpush1.bf16.msra.mxu0 0
  %4578 = vmatprep.subr.bf16.mxu0 0
  %4579 = vmatpush1.bf16.msra.mxu0 0
  %4580 = vmatprep.subr.bf16.mxu0 0
  %4581 = vmatpush1.bf16.msra.mxu0 0
  %4582 = vmatprep.subr.bf16.mxu0 0
  %4583 = vmatpush1.bf16.msra.mxu0 0
  %4584 = vmatprep.subr.bf16.mxu0 0
  %4585 = vmatpush1.bf16.msra.mxu0 0
  %4586 = vmatprep.subr.bf16.mxu0 0
  %4587 = vmatpush1.bf16.msra.mxu0 0
  %4588 = vmatprep.subr.bf16.mxu0 0
  %4589 = vmatpush1.bf16.msra.mxu0 0
  %4590 = vmatprep.subr.bf16.mxu0 0
  %4591 = vmatpush1.bf16.msra.mxu0 0
  %4592 = vmatprep.mubr.bf16.mxu0 0
  %4593 = vmatmul.mubr.bf16.gmra.mrb[0].mxu0 %v4452
  %v4594 = vpop.f32.mrb[0].mxu0
  %v4595 = vadd.f32 0.0, %v4594
  %v4596 = vpop.f32.mrb[0].mxu0
  %v4597 = vadd.f32 0.0, %v4596
  %v4598 = vpop.f32.mrb[0].mxu0
  %v4599 = vpop.f32.mrb[0].mxu0
  %4600 = vdwg.mxu0
  %4601 = vmatprep.subr.bf16.mxu0 %v4476
  %4602 = vmatpush1.bf16.msra.mxu0 %v4473
  %4603 = vmatprep.subr.bf16.mxu0 0
  %4604 = vmatpush1.bf16.msra.mxu0 0
  %4605 = vmatprep.subr.bf16.mxu0 0
  %4606 = vmatpush1.bf16.msra.mxu0 0
  %4607 = vmatprep.subr.bf16.mxu0 0
  %4608 = vmatpush1.bf16.msra.mxu0 0
  %4609 = vmatprep.subr.bf16.mxu0 0
  %4610 = vmatpush1.bf16.msra.mxu0 0
  %4611 = vmatprep.subr.bf16.mxu0 0
  %4612 = vmatpush1.bf16.msra.mxu0 0
  %4613 = vmatprep.subr.bf16.mxu0 0
  %4614 = vmatpush1.bf16.msra.mxu0 0
  %4615 = vmatprep.subr.bf16.mxu0 0
  %4616 = vmatpush1.bf16.msra.mxu0 0
  %4617 = vmatprep.subr.bf16.mxu0 0
  %4618 = vmatpush1.bf16.msra.mxu0 0
  %4619 = vmatprep.subr.bf16.mxu0 0
  %4620 = vmatpush1.bf16.msra.mxu0 0
  %4621 = vmatprep.subr.bf16.mxu0 0
  %4622 = vmatpush1.bf16.msra.mxu0 0
  %4623 = vmatprep.subr.bf16.mxu0 0
  %4624 = vmatpush1.bf16.msra.mxu0 0
  %4625 = vmatprep.subr.bf16.mxu0 0
  %4626 = vmatpush1.bf16.msra.mxu0 0
  %4627 = vmatprep.subr.bf16.mxu0 0
  %4628 = vmatpush1.bf16.msra.mxu0 0
  %4629 = vmatprep.subr.bf16.mxu0 0
  %4630 = vmatpush1.bf16.msra.mxu0 0
  %4631 = vmatprep.subr.bf16.mxu0 0
  %4632 = vmatpush1.bf16.msra.mxu0 0
  %4633 = vmatprep.mubr.bf16.mxu0 0
  %4634 = vmatmul.mubr.bf16.gmra.mrb[0].mxu0 %v4452
  %v4635 = vpop.f32.mrb[0].mxu0
  %v4636 = vadd.f32 0.0, %v4635
  %v4637 = vpop.f32.mrb[0].mxu0
  %v4638 = vadd.f32 0.0, %v4637
  %v4639 = vpop.f32.mrb[0].mxu0
  %v4640 = vpop.f32.mrb[0].mxu0
  %4641 = vdwg.mxu0
  %v4642 = vadd.f32 %v4379, %v4513
  %v4643 = vadd.f32 %v4380, %v4515
  %v4644 = vadd.f32 %v4381, %v4554
  %v4645 = vadd.f32 %v4382, %v4556
  %v4646 = vadd.f32 %v4383, %v4595
  %v4647 = vadd.f32 %v4384, %v4597
  %v4648 = vadd.f32 %v4385, %v4636
  %v4649 = vadd.f32 %v4386, %v4638
  %v4650 = vld [vmem:[%s108] sm:$0xcc]
  %v4651 = vld [vmem:[%s108 + $0x8] sm:$0xcc]
  %v4652 = vld [vmem:[%s108 + $0x10] sm:$0xcc]
  %v4653 = vld [vmem:[%s108 + $0x18] sm:$0xcc]
  %v4654 = vld [vmem:[%s108 + $0x20] sm:$0xc]
  %v4655 = vld [vmem:[%s2484] sm:$0xf]
  %v4661 = vunpack.c.l.b16 %v4650
  %v4662 = vunpack.c.h.b16 %v4650
  %v4663 = vunpack.c.l.b16 %v4651
  %v4664 = vunpack.c.h.b16 %v4651
  %v4665 = vunpack.c.l.b16 %v4652
  %v4666 = vunpack.c.h.b16 %v4652
  %v4667 = vunpack.c.l.b16 %v4653
  %v4668 = vunpack.c.h.b16 %v4653
  %v4669 = vunpack.c.l.b16 %v4654
  %v4670 = vpack.c.b16 %v4661, %v4661
  %v4671 = vpack.c.b16 %v4662, %v4662
  %v4672 = vpack.c.b16 %v4663, %v4663
  %v4673 = vpack.c.b16 %v4664, %v4664
  %v4674 = vpack.c.b16 %v4665, %v4665
  %v4675 = vpack.c.b16 %v4666, %v4666
  %v4676 = vpack.c.b16 %v4667, %v4667
  %v4677 = vpack.c.b16 %v4668, %v4668
  %v4678 = vpack.c.b16 %v4669, %v4669
  %v4679 = vrot.slane %v4670, 2
  %v4680 = vrot.slane %v4671, 2
  %v4681 = vrot.slane %v4672, 2
  %v4682 = vrot.slane %v4673, 2
  %v4683 = vrot.slane %v4674, 2
  %v4684 = vrot.slane %v4675, 2
  %v4685 = vrot.slane %v4676, 2
  %v4686 = vrot.slane %v4677, 2
  %v4687 = vrot.slane %v4678, 2
  %4688 = vrot.lane.b32.xlu0 %v4679, 96
  %v4689 = vpop.permute.xlu0 %4688
  %4690 = vrot.lane.b32.xlu0 %v4680, 96
  %v4691 = vpop.permute.xlu0 %4690
  %4692 = vrot.lane.b32.xlu0 %v4681, 96
  %v4693 = vpop.permute.xlu0 %4692
  %4694 = vrot.lane.b32.xlu0 %v4682, 96
  %v4695 = vpop.permute.xlu0 %4694
  %4696 = vrot.lane.b32.xlu0 %v4683, 96
  %v4697 = vpop.permute.xlu0 %4696
  %4698 = vrot.lane.b32.xlu0 %v4684, 96
  %v4699 = vpop.permute.xlu0 %4698
  %4700 = vrot.lane.b32.xlu0 %v4685, 96
  %v4701 = vpop.permute.xlu0 %4700
  %4702 = vrot.lane.b32.xlu0 %v4686, 96
  %v4703 = vpop.permute.xlu0 %4702
  %4704 = vrot.lane.b32.xlu0 %v4687, 96
  %v4705 = vpop.permute.xlu0 %4704
  %v4706 = vsel %vm192, %v4689, %v4691
  %v4707 = vsel %vm192, %v4691, %v4693
  %v4708 = vsel %vm192, %v4693, %v4695
  %v4709 = vsel %vm192, %v4695, %v4697
  %v4710 = vsel %vm192, %v4697, %v4699
  %v4711 = vsel %vm192, %v4699, %v4701
  %v4712 = vsel %vm192, %v4701, %v4703
  %v4713 = vsel %vm192, %v4703, %v4705
  %v4715 = vsel %vm1595, %v4655, 0
  %v4718 = vsel %vm1599, %v4706, 0
  %v4721 = vsel %vm1599, %v4707, 0
  %v4724 = vsel %vm1599, %v4708, 0
  %v4727 = vsel %vm1599, %v4709, 0
  %v4730 = vsel %vm1599, %v4710, 0
  %v4733 = vsel %vm1599, %v4711, 0
  %v4736 = vsel %vm1599, %v4712, 0
  %v4739 = vsel %vm1599, %v4713, 0
  %4741 = vmatprep.subr.bf16.mxu0 %v4721
  %4742 = vmatpush1.bf16.msra.mxu0 %v4718
  %4743 = vmatprep.subr.bf16.mxu0 0
  %4744 = vmatpush1.bf16.msra.mxu0 0
  %4745 = vmatprep.subr.bf16.mxu0 0
  %4746 = vmatpush1.bf16.msra.mxu0 0
  %4747 = vmatprep.subr.bf16.mxu0 0
  %4748 = vmatpush1.bf16.msra.mxu0 0
  %4749 = vmatprep.subr.bf16.mxu0 0
  %4750 = vmatpush1.bf16.msra.mxu0 0
  %4751 = vmatprep.subr.bf16.mxu0 0
  %4752 = vmatpush1.bf16.msra.mxu0 0
  %4753 = vmatprep.subr.bf16.mxu0 0
  %4754 = vmatpush1.bf16.msra.mxu0 0
  %4755 = vmatprep.subr.bf16.mxu0 0
  %4756 = vmatpush1.bf16.msra.mxu0 0
  %4757 = vmatprep.subr.bf16.mxu0 0
  %4758 = vmatpush1.bf16.msra.mxu0 0
  %4759 = vmatprep.subr.bf16.mxu0 0
  %4760 = vmatpush1.bf16.msra.mxu0 0
  %4761 = vmatprep.subr.bf16.mxu0 0
  %4762 = vmatpush1.bf16.msra.mxu0 0
  %4763 = vmatprep.subr.bf16.mxu0 0
  %4764 = vmatpush1.bf16.msra.mxu0 0
  %4765 = vmatprep.subr.bf16.mxu0 0
  %4766 = vmatpush1.bf16.msra.mxu0 0
  %4767 = vmatprep.subr.bf16.mxu0 0
  %4768 = vmatpush1.bf16.msra.mxu0 0
  %4769 = vmatprep.subr.bf16.mxu0 0
  %4770 = vmatpush1.bf16.msra.mxu0 0
  %4771 = vmatprep.subr.bf16.mxu0 0
  %4772 = vmatpush1.bf16.msra.mxu0 0
  %4773 = vmatprep.mubr.bf16.mxu0 0
  %4774 = vmatmul.mubr.bf16.gmra.mrb[0].mxu0 %v4715
  %v4775 = vpop.f32.mrb[0].mxu0
  %v4776 = vadd.f32 0.0, %v4775
  %v4777 = vpop.f32.mrb[0].mxu0
  %v4778 = vadd.f32 0.0, %v4777
  %v4779 = vpop.f32.mrb[0].mxu0
  %v4780 = vpop.f32.mrb[0].mxu0
  %4781 = vdwg.mxu0
  %4782 = vmatprep.subr.bf16.mxu0 %v4727
  %4783 = vmatpush1.bf16.msra.mxu0 %v4724
  %4784 = vmatprep.subr.bf16.mxu0 0
  %4785 = vmatpush1.bf16.msra.mxu0 0
  %4786 = vmatprep.subr.bf16.mxu0 0
  %4787 = vmatpush1.bf16.msra.mxu0 0
  %4788 = vmatprep.subr.bf16.mxu0 0
  %4789 = vmatpush1.bf16.msra.mxu0 0
  %4790 = vmatprep.subr.bf16.mxu0 0
  %4791 = vmatpush1.bf16.msra.mxu0 0
  %4792 = vmatprep.subr.bf16.mxu0 0
  %4793 = vmatpush1.bf16.msra.mxu0 0
  %4794 = vmatprep.subr.bf16.mxu0 0
  %4795 = vmatpush1.bf16.msra.mxu0 0
  %4796 = vmatprep.subr.bf16.mxu0 0
  %4797 = vmatpush1.bf16.msra.mxu0 0
  %4798 = vmatprep.subr.bf16.mxu0 0
  %4799 = vmatpush1.bf16.msra.mxu0 0
  %4800 = vmatprep.subr.bf16.mxu0 0
  %4801 = vmatpush1.bf16.msra.mxu0 0
  %4802 = vmatprep.subr.bf16.mxu0 0
  %4803 = vmatpush1.bf16.msra.mxu0 0
  %4804 = vmatprep.subr.bf16.mxu0 0
  %4805 = vmatpush1.bf16.msra.mxu0 0
  %4806 = vmatprep.subr.bf16.mxu0 0
  %4807 = vmatpush1.bf16.msra.mxu0 0
  %4808 = vmatprep.subr.bf16.mxu0 0
  %4809 = vmatpush1.bf16.msra.mxu0 0
  %4810 = vmatprep.subr.bf16.mxu0 0
  %4811 = vmatpush1.bf16.msra.mxu0 0
  %4812 = vmatprep.subr.bf16.mxu0 0
  %4813 = vmatpush1.bf16.msra.mxu0 0
  %4814 = vmatprep.mubr.bf16.mxu0 0
  %4815 = vmatmul.mubr.bf16.gmra.mrb[0].mxu0 %v4715
  %v4816 = vpop.f32.mrb[0].mxu0
  %v4817 = vadd.f32 0.0, %v4816
  %v4818 = vpop.f32.mrb[0].mxu0
  %v4819 = vadd.f32 0.0, %v4818
  %v4820 = vpop.f32.mrb[0].mxu0
  %v4821 = vpop.f32.mrb[0].mxu0
  %4822 = vdwg.mxu0
  %4823 = vmatprep.subr.bf16.mxu0 %v4733
  %4824 = vmatpush1.bf16.msra.mxu0 %v4730
  %4825 = vmatprep.subr.bf16.mxu0 0
  %4826 = vmatpush1.bf16.msra.mxu0 0
  %4827 = vmatprep.subr.bf16.mxu0 0
  %4828 = vmatpush1.bf16.msra.mxu0 0
  %4829 = vmatprep.subr.bf16.mxu0 0
  %4830 = vmatpush1.bf16.msra.mxu0 0
  %4831 = vmatprep.subr.bf16.mxu0 0
  %4832 = vmatpush1.bf16.msra.mxu0 0
  %4833 = vmatprep.subr.bf16.mxu0 0
  %4834 = vmatpush1.bf16.msra.mxu0 0
  %4835 = vmatprep.subr.bf16.mxu0 0
  %4836 = vmatpush1.bf16.msra.mxu0 0
  %4837 = vmatprep.subr.bf16.mxu0 0
  %4838 = vmatpush1.bf16.msra.mxu0 0
  %4839 = vmatprep.subr.bf16.mxu0 0
  %4840 = vmatpush1.bf16.msra.mxu0 0
  %4841 = vmatprep.subr.bf16.mxu0 0
  %4842 = vmatpush1.bf16.msra.mxu0 0
  %4843 = vmatprep.subr.bf16.mxu0 0
  %4844 = vmatpush1.bf16.msra.mxu0 0
  %4845 = vmatprep.subr.bf16.mxu0 0
  %4846 = vmatpush1.bf16.msra.mxu0 0
  %4847 = vmatprep.subr.bf16.mxu0 0
  %4848 = vmatpush1.bf16.msra.mxu0 0
  %4849 = vmatprep.subr.bf16.mxu0 0
  %4850 = vmatpush1.bf16.msra.mxu0 0
  %4851 = vmatprep.subr.bf16.mxu0 0
  %4852 = vmatpush1.bf16.msra.mxu0 0
  %4853 = vmatprep.subr.bf16.mxu0 0
  %4854 = vmatpush1.bf16.msra.mxu0 0
  %4855 = vmatprep.mubr.bf16.mxu0 0
  %4856 = vmatmul.mubr.bf16.gmra.mrb[0].mxu0 %v4715
  %v4857 = vpop.f32.mrb[0].mxu0
  %v4858 = vadd.f32 0.0, %v4857
  %v4859 = vpop.f32.mrb[0].mxu0
  %v4860 = vadd.f32 0.0, %v4859
  %v4861 = vpop.f32.mrb[0].mxu0
  %v4862 = vpop.f32.mrb[0].mxu0
  %4863 = vdwg.mxu0
  %4864 = vmatprep.subr.bf16.mxu0 %v4739
  %4865 = vmatpush1.bf16.msra.mxu0 %v4736
  %4866 = vmatprep.subr.bf16.mxu0 0
  %4867 = vmatpush1.bf16.msra.mxu0 0
  %4868 = vmatprep.subr.bf16.mxu0 0
  %4869 = vmatpush1.bf16.msra.mxu0 0
  %4870 = vmatprep.subr.bf16.mxu0 0
  %4871 = vmatpush1.bf16.msra.mxu0 0
  %4872 = vmatprep.subr.bf16.mxu0 0
  %4873 = vmatpush1.bf16.msra.mxu0 0
  %4874 = vmatprep.subr.bf16.mxu0 0
  %4875 = vmatpush1.bf16.msra.mxu0 0
  %4876 = vmatprep.subr.bf16.mxu0 0
  %4877 = vmatpush1.bf16.msra.mxu0 0
  %4878 = vmatprep.subr.bf16.mxu0 0
  %4879 = vmatpush1.bf16.msra.mxu0 0
  %4880 = vmatprep.subr.bf16.mxu0 0
  %4881 = vmatpush1.bf16.msra.mxu0 0
  %4882 = vmatprep.subr.bf16.mxu0 0
  %4883 = vmatpush1.bf16.msra.mxu0 0
  %4884 = vmatprep.subr.bf16.mxu0 0
  %4885 = vmatpush1.bf16.msra.mxu0 0
  %4886 = vmatprep.subr.bf16.mxu0 0
  %4887 = vmatpush1.bf16.msra.mxu0 0
  %4888 = vmatprep.subr.bf16.mxu0 0
  %4889 = vmatpush1.bf16.msra.mxu0 0
  %4890 = vmatprep.subr.bf16.mxu0 0
  %4891 = vmatpush1.bf16.msra.mxu0 0
  %4892 = vmatprep.subr.bf16.mxu0 0
  %4893 = vmatpush1.bf16.msra.mxu0 0
  %4894 = vmatprep.subr.bf16.mxu0 0
  %4895 = vmatpush1.bf16.msra.mxu0 0
  %4896 = vmatprep.mubr.bf16.mxu0 0
  %4897 = vmatmul.mubr.bf16.gmra.mrb[0].mxu0 %v4715
  %v4898 = vpop.f32.mrb[0].mxu0
  %v4899 = vadd.f32 0.0, %v4898
  %v4900 = vpop.f32.mrb[0].mxu0
  %v4901 = vadd.f32 0.0, %v4900
  %v4902 = vpop.f32.mrb[0].mxu0
  %v4903 = vpop.f32.mrb[0].mxu0
  %4904 = vdwg.mxu0
  %v4905 = vadd.f32 %v4642, %v4776
  %v4906 = vadd.f32 %v4643, %v4778
  %v4907 = vadd.f32 %v4644, %v4817
  %v4908 = vadd.f32 %v4645, %v4819
  %v4909 = vadd.f32 %v4646, %v4858
  %v4910 = vadd.f32 %v4647, %v4860
  %v4911 = vadd.f32 %v4648, %v4899
  %v4912 = vadd.f32 %v4649, %v4901
  %v4913 = vld [vmem:[%s120] sm:$0xcc]
  %v4914 = vld [vmem:[%s120 + $0x8] sm:$0xcc]
  %v4915 = vld [vmem:[%s120 + $0x10] sm:$0xcc]
  %v4916 = vld [vmem:[%s120 + $0x18] sm:$0xcc]
  %v4917 = vld [vmem:[%s120 + $0x20] sm:$0xc]
  %v4918 = vld [vmem:[%s2739] sm:$0xf]
  %v4924 = vunpack.c.l.b16 %v4913
  %v4925 = vunpack.c.h.b16 %v4913
  %v4926 = vunpack.c.l.b16 %v4914
  %v4927 = vunpack.c.h.b16 %v4914
  %v4928 = vunpack.c.l.b16 %v4915
  %v4929 = vunpack.c.h.b16 %v4915
  %v4930 = vunpack.c.l.b16 %v4916
  %v4931 = vunpack.c.h.b16 %v4916
  %v4932 = vunpack.c.l.b16 %v4917
  %v4933 = vpack.c.b16 %v4924, %v4924
  %v4934 = vpack.c.b16 %v4925, %v4925
  %v4935 = vpack.c.b16 %v4926, %v4926
  %v4936 = vpack.c.b16 %v4927, %v4927
  %v4937 = vpack.c.b16 %v4928, %v4928
  %v4938 = vpack.c.b16 %v4929, %v4929
  %v4939 = vpack.c.b16 %v4930, %v4930
  %v4940 = vpack.c.b16 %v4931, %v4931
  %v4941 = vpack.c.b16 %v4932, %v4932
  %v4942 = vrot.slane %v4933, 2
  %v4943 = vrot.slane %v4934, 2
  %v4944 = vrot.slane %v4935, 2
  %v4945 = vrot.slane %v4936, 2
  %v4946 = vrot.slane %v4937, 2
  %v4947 = vrot.slane %v4938, 2
  %v4948 = vrot.slane %v4939, 2
  %v4949 = vrot.slane %v4940, 2
  %v4950 = vrot.slane %v4941, 2
  %4951 = vrot.lane.b32.xlu0 %v4942, 96
  %v4952 = vpop.permute.xlu0 %4951
  %4953 = vrot.lane.b32.xlu0 %v4943, 96
  %v4954 = vpop.permute.xlu0 %4953
  %4955 = vrot.lane.b32.xlu0 %v4944, 96
  %v4956 = vpop.permute.xlu0 %4955
  %4957 = vrot.lane.b32.xlu0 %v4945, 96
  %v4958 = vpop.permute.xlu0 %4957
  %4959 = vrot.lane.b32.xlu0 %v4946, 96
  %v4960 = vpop.permute.xlu0 %4959
  %4961 = vrot.lane.b32.xlu0 %v4947, 96
  %v4962 = vpop.permute.xlu0 %4961
  %4963 = vrot.lane.b32.xlu0 %v4948, 96
  %v4964 = vpop.permute.xlu0 %4963
  %4965 = vrot.lane.b32.xlu0 %v4949, 96
  %v4966 = vpop.permute.xlu0 %4965
  %4967 = vrot.lane.b32.xlu0 %v4950, 96
  %v4968 = vpop.permute.xlu0 %4967
  %v4969 = vsel %vm192, %v4952, %v4954
  %v4970 = vsel %vm192, %v4954, %v4956
  %v4971 = vsel %vm192, %v4956, %v4958
  %v4972 = vsel %vm192, %v4958, %v4960
  %v4973 = vsel %vm192, %v4960, %v4962
  %v4974 = vsel %vm192, %v4962, %v4964
  %v4975 = vsel %vm192, %v4964, %v4966
  %v4976 = vsel %vm192, %v4966, %v4968
  %v4978 = vsel %vm1595, %v4918, 0
  %v4981 = vsel %vm1599, %v4969, 0
  %v4984 = vsel %vm1599, %v4970, 0
  %v4987 = vsel %vm1599, %v4971, 0
  %v4990 = vsel %vm1599, %v4972, 0
  %v4993 = vsel %vm1599, %v4973, 0
  %v4996 = vsel %vm1599, %v4974, 0
  %v4999 = vsel %vm1599, %v4975, 0
  %v5002 = vsel %vm1599, %v4976, 0
  %5004 = vmatprep.subr.bf16.mxu0 %v4984
  %5005 = vmatpush1.bf16.msra.mxu0 %v4981
  %5006 = vmatprep.subr.bf16.mxu0 0
  %5007 = vmatpush1.bf16.msra.mxu0 0
  %5008 = vmatprep.subr.bf16.mxu0 0
  %5009 = vmatpush1.bf16.msra.mxu0 0
  %5010 = vmatprep.subr.bf16.mxu0 0
  %5011 = vmatpush1.bf16.msra.mxu0 0
  %5012 = vmatprep.subr.bf16.mxu0 0
  %5013 = vmatpush1.bf16.msra.mxu0 0
  %5014 = vmatprep.subr.bf16.mxu0 0
  %5015 = vmatpush1.bf16.msra.mxu0 0
  %5016 = vmatprep.subr.bf16.mxu0 0
  %5017 = vmatpush1.bf16.msra.mxu0 0
  %5018 = vmatprep.subr.bf16.mxu0 0
  %5019 = vmatpush1.bf16.msra.mxu0 0
  %5020 = vmatprep.subr.bf16.mxu0 0
  %5021 = vmatpush1.bf16.msra.mxu0 0
  %5022 = vmatprep.subr.bf16.mxu0 0
  %5023 = vmatpush1.bf16.msra.mxu0 0
  %5024 = vmatprep.subr.bf16.mxu0 0
  %5025 = vmatpush1.bf16.msra.mxu0 0
  %5026 = vmatprep.subr.bf16.mxu0 0
  %5027 = vmatpush1.bf16.msra.mxu0 0
  %5028 = vmatprep.subr.bf16.mxu0 0
  %5029 = vmatpush1.bf16.msra.mxu0 0
  %5030 = vmatprep.subr.bf16.mxu0 0
  %5031 = vmatpush1.bf16.msra.mxu0 0
  %5032 = vmatprep.subr.bf16.mxu0 0
  %5033 = vmatpush1.bf16.msra.mxu0 0
  %5034 = vmatprep.subr.bf16.mxu0 0
  %5035 = vmatpush1.bf16.msra.mxu0 0
  %5036 = vmatprep.mubr.bf16.mxu0 0
  %5037 = vmatmul.mubr.bf16.gmra.mrb[0].mxu0 %v4978
  %v5038 = vpop.f32.mrb[0].mxu0
  %v5039 = vadd.f32 0.0, %v5038
  %v5040 = vpop.f32.mrb[0].mxu0
  %v5041 = vadd.f32 0.0, %v5040
  %v5042 = vpop.f32.mrb[0].mxu0
  %v5043 = vpop.f32.mrb[0].mxu0
  %5044 = vdwg.mxu0
  %5045 = vmatprep.subr.bf16.mxu0 %v4990
  %5046 = vmatpush1.bf16.msra.mxu0 %v4987
  %5047 = vmatprep.subr.bf16.mxu0 0
  %5048 = vmatpush1.bf16.msra.mxu0 0
  %5049 = vmatprep.subr.bf16.mxu0 0
  %5050 = vmatpush1.bf16.msra.mxu0 0
  %5051 = vmatprep.subr.bf16.mxu0 0
  %5052 = vmatpush1.bf16.msra.mxu0 0
  %5053 = vmatprep.subr.bf16.mxu0 0
  %5054 = vmatpush1.bf16.msra.mxu0 0
  %5055 = vmatprep.subr.bf16.mxu0 0
  %5056 = vmatpush1.bf16.msra.mxu0 0
  %5057 = vmatprep.subr.bf16.mxu0 0
  %5058 = vmatpush1.bf16.msra.mxu0 0
  %5059 = vmatprep.subr.bf16.mxu0 0
  %5060 = vmatpush1.bf16.msra.mxu0 0
  %5061 = vmatprep.subr.bf16.mxu0 0
  %5062 = vmatpush1.bf16.msra.mxu0 0
  %5063 = vmatprep.subr.bf16.mxu0 0
  %5064 = vmatpush1.bf16.msra.mxu0 0
  %5065 = vmatprep.subr.bf16.mxu0 0
  %5066 = vmatpush1.bf16.msra.mxu0 0
  %5067 = vmatprep.subr.bf16.mxu0 0
  %5068 = vmatpush1.bf16.msra.mxu0 0
  %5069 = vmatprep.subr.bf16.mxu0 0
  %5070 = vmatpush1.bf16.msra.mxu0 0
  %5071 = vmatprep.subr.bf16.mxu0 0
  %5072 = vmatpush1.bf16.msra.mxu0 0
  %5073 = vmatprep.subr.bf16.mxu0 0
  %5074 = vmatpush1.bf16.msra.mxu0 0
  %5075 = vmatprep.subr.bf16.mxu0 0
  %5076 = vmatpush1.bf16.msra.mxu0 0
  %5077 = vmatprep.mubr.bf16.mxu0 0
  %5078 = vmatmul.mubr.bf16.gmra.mrb[0].mxu0 %v4978
  %v5079 = vpop.f32.mrb[0].mxu0
  %v5080 = vadd.f32 0.0, %v5079
  %v5081 = vpop.f32.mrb[0].mxu0
  %v5082 = vadd.f32 0.0, %v5081
  %v5083 = vpop.f32.mrb[0].mxu0
  %v5084 = vpop.f32.mrb[0].mxu0
  %5085 = vdwg.mxu0
  %5086 = vmatprep.subr.bf16.mxu0 %v4996
  %5087 = vmatpush1.bf16.msra.mxu0 %v4993
  %5088 = vmatprep.subr.bf16.mxu0 0
  %5089 = vmatpush1.bf16.msra.mxu0 0
  %5090 = vmatprep.subr.bf16.mxu0 0
  %5091 = vmatpush1.bf16.msra.mxu0 0
  %5092 = vmatprep.subr.bf16.mxu0 0
  %5093 = vmatpush1.bf16.msra.mxu0 0
  %5094 = vmatprep.subr.bf16.mxu0 0
  %5095 = vmatpush1.bf16.msra.mxu0 0
  %5096 = vmatprep.subr.bf16.mxu0 0
  %5097 = vmatpush1.bf16.msra.mxu0 0
  %5098 = vmatprep.subr.bf16.mxu0 0
  %5099 = vmatpush1.bf16.msra.mxu0 0
  %5100 = vmatprep.subr.bf16.mxu0 0
  %5101 = vmatpush1.bf16.msra.mxu0 0
  %5102 = vmatprep.subr.bf16.mxu0 0
  %5103 = vmatpush1.bf16.msra.mxu0 0
  %5104 = vmatprep.subr.bf16.mxu0 0
  %5105 = vmatpush1.bf16.msra.mxu0 0
  %5106 = vmatprep.subr.bf16.mxu0 0
  %5107 = vmatpush1.bf16.msra.mxu0 0
  %5108 = vmatprep.subr.bf16.mxu0 0
  %5109 = vmatpush1.bf16.msra.mxu0 0
  %5110 = vmatprep.subr.bf16.mxu0 0
  %5111 = vmatpush1.bf16.msra.mxu0 0
  %5112 = vmatprep.subr.bf16.mxu0 0
  %5113 = vmatpush1.bf16.msra.mxu0 0
  %5114 = vmatprep.subr.bf16.mxu0 0
  %5115 = vmatpush1.bf16.msra.mxu0 0
  %5116 = vmatprep.subr.bf16.mxu0 0
  %5117 = vmatpush1.bf16.msra.mxu0 0
  %5118 = vmatprep.mubr.bf16.mxu0 0
  %5119 = vmatmul.mubr.bf16.gmra.mrb[0].mxu0 %v4978
  %v5120 = vpop.f32.mrb[0].mxu0
  %v5121 = vadd.f32 0.0, %v5120
  %v5122 = vpop.f32.mrb[0].mxu0
  %v5123 = vadd.f32 0.0, %v5122
  %v5124 = vpop.f32.mrb[0].mxu0
  %v5125 = vpop.f32.mrb[0].mxu0
  %5126 = vdwg.mxu0
  %5127 = vmatprep.subr.bf16.mxu0 %v5002
  %5128 = vmatpush1.bf16.msra.mxu0 %v4999
  %5129 = vmatprep.subr.bf16.mxu0 0
  %5130 = vmatpush1.bf16.msra.mxu0 0
  %5131 = vmatprep.subr.bf16.mxu0 0
  %5132 = vmatpush1.bf16.msra.mxu0 0
  %5133 = vmatprep.subr.bf16.mxu0 0
  %5134 = vmatpush1.bf16.msra.mxu0 0
  %5135 = vmatprep.subr.bf16.mxu0 0
  %5136 = vmatpush1.bf16.msra.mxu0 0
  %5137 = vmatprep.subr.bf16.mxu0 0
  %5138 = vmatpush1.bf16.msra.mxu0 0
  %5139 = vmatprep.subr.bf16.mxu0 0
  %5140 = vmatpush1.bf16.msra.mxu0 0
  %5141 = vmatprep.subr.bf16.mxu0 0
  %5142 = vmatpush1.bf16.msra.mxu0 0
  %5143 = vmatprep.subr.bf16.mxu0 0
  %5144 = vmatpush1.bf16.msra.mxu0 0
  %5145 = vmatprep.subr.bf16.mxu0 0
  %5146 = vmatpush1.bf16.msra.mxu0 0
  %5147 = vmatprep.subr.bf16.mxu0 0
  %5148 = vmatpush1.bf16.msra.mxu0 0
  %5149 = vmatprep.subr.bf16.mxu0 0
  %5150 = vmatpush1.bf16.msra.mxu0 0
  %5151 = vmatprep.subr.bf16.mxu0 0
  %5152 = vmatpush1.bf16.msra.mxu0 0
  %5153 = vmatprep.subr.bf16.mxu0 0
  %5154 = vmatpush1.bf16.msra.mxu0 0
  %5155 = vmatprep.subr.bf16.mxu0 0
  %5156 = vmatpush1.bf16.msra.mxu0 0
  %5157 = vmatprep.subr.bf16.mxu0 0
  %5158 = vmatpush1.bf16.msra.mxu0 0
  %5159 = vmatprep.mubr.bf16.mxu0 0
  %5160 = vmatmul.mubr.bf16.gmra.mrb[0].mxu0 %v4978
  %v5161 = vpop.f32.mrb[0].mxu0
  %v5162 = vadd.f32 0.0, %v5161
  %v5163 = vpop.f32.mrb[0].mxu0
  %v5164 = vadd.f32 0.0, %v5163
  %v5165 = vpop.f32.mrb[0].mxu0
  %v5166 = vpop.f32.mrb[0].mxu0
  %5167 = vdwg.mxu0
  %v5168 = vadd.f32 %v4905, %v5039
  %v5169 = vadd.f32 %v4906, %v5041
  %v5170 = vadd.f32 %v4907, %v5080
  %v5171 = vadd.f32 %v4908, %v5082
  %v5172 = vadd.f32 %v4909, %v5121
  %v5173 = vadd.f32 %v4910, %v5123
  %v5174 = vadd.f32 %v4911, %v5162
  %v5175 = vadd.f32 %v4912, %v5164
  %v5176 = vld [vmem:[%s2989] sm:$0xf]
  %5177 = vrot.lane.b32.xlu0 %v4416, 64
  %v5178 = vpop.permute.xlu0 %5177
  %5179 = vrot.lane.b32.xlu0 %v4417, 64
  %v5180 = vpop.permute.xlu0 %5179
  %5181 = vrot.lane.b32.xlu0 %v4418, 64
  %v5182 = vpop.permute.xlu0 %5181
  %5183 = vrot.lane.b32.xlu0 %v4419, 64
  %v5184 = vpop.permute.xlu0 %5183
  %5185 = vrot.lane.b32.xlu0 %v4420, 64
  %v5186 = vpop.permute.xlu0 %5185
  %5187 = vrot.lane.b32.xlu0 %v4421, 64
  %v5188 = vpop.permute.xlu0 %5187
  %5189 = vrot.lane.b32.xlu0 %v4422, 64
  %v5190 = vpop.permute.xlu0 %5189
  %5191 = vrot.lane.b32.xlu0 %v4423, 64
  %v5192 = vpop.permute.xlu0 %5191
  %5193 = vrot.lane.b32.xlu0 %v4424, 64
  %v5194 = vpop.permute.xlu0 %5193
  %v5195 = vsel %vm3009, %v5178, %v5180
  %v5196 = vsel %vm3009, %v5180, %v5182
  %v5197 = vsel %vm3009, %v5182, %v5184
  %v5198 = vsel %vm3009, %v5184, %v5186
  %v5199 = vsel %vm3009, %v5186, %v5188
  %v5200 = vsel %vm3009, %v5188, %v5190
  %v5201 = vsel %vm3009, %v5190, %v5192
  %v5202 = vsel %vm3009, %v5192, %v5194
  %v5204 = vsel %vm1595, %v5176, 0
  %v5207 = vsel %vm1599, %v5195, 0
  %v5210 = vsel %vm1599, %v5196, 0
  %v5213 = vsel %vm1599, %v5197, 0
  %v5216 = vsel %vm1599, %v5198, 0
  %v5219 = vsel %vm1599, %v5199, 0
  %v5222 = vsel %vm1599, %v5200, 0
  %v5225 = vsel %vm1599, %v5201, 0
  %v5228 = vsel %vm1599, %v5202, 0
  %5230 = vmatprep.subr.bf16.mxu0 %v5210
  %5231 = vmatpush1.bf16.msra.mxu0 %v5207
  %5232 = vmatprep.subr.bf16.mxu0 0
  %5233 = vmatpush1.bf16.msra.mxu0 0
  %5234 = vmatprep.subr.bf16.mxu0 0
  %5235 = vmatpush1.bf16.msra.mxu0 0
  %5236 = vmatprep.subr.bf16.mxu0 0
  %5237 = vmatpush1.bf16.msra.mxu0 0
  %5238 = vmatprep.subr.bf16.mxu0 0
  %5239 = vmatpush1.bf16.msra.mxu0 0
  %5240 = vmatprep.subr.bf16.mxu0 0
  %5241 = vmatpush1.bf16.msra.mxu0 0
  %5242 = vmatprep.subr.bf16.mxu0 0
  %5243 = vmatpush1.bf16.msra.mxu0 0
  %5244 = vmatprep.subr.bf16.mxu0 0
  %5245 = vmatpush1.bf16.msra.mxu0 0
  %5246 = vmatprep.subr.bf16.mxu0 0
  %5247 = vmatpush1.bf16.msra.mxu0 0
  %5248 = vmatprep.subr.bf16.mxu0 0
  %5249 = vmatpush1.bf16.msra.mxu0 0
  %5250 = vmatprep.subr.bf16.mxu0 0
  %5251 = vmatpush1.bf16.msra.mxu0 0
  %5252 = vmatprep.subr.bf16.mxu0 0
  %5253 = vmatpush1.bf16.msra.mxu0 0
  %5254 = vmatprep.subr.bf16.mxu0 0
  %5255 = vmatpush1.bf16.msra.mxu0 0
  %5256 = vmatprep.subr.bf16.mxu0 0
  %5257 = vmatpush1.bf16.msra.mxu0 0
  %5258 = vmatprep.subr.bf16.mxu0 0
  %5259 = vmatpush1.bf16.msra.mxu0 0
  %5260 = vmatprep.subr.bf16.mxu0 0
  %5261 = vmatpush1.bf16.msra.mxu0 0
  %5262 = vmatprep.mubr.bf16.mxu0 0
  %5263 = vmatmul.mubr.bf16.gmra.mrb[0].mxu0 %v5204
  %v5264 = vpop.f32.mrb[0].mxu0
  %v5265 = vadd.f32 0.0, %v5264
  %v5266 = vpop.f32.mrb[0].mxu0
  %v5267 = vadd.f32 0.0, %v5266
  %v5268 = vpop.f32.mrb[0].mxu0
  %v5269 = vpop.f32.mrb[0].mxu0
  %5270 = vdwg.mxu0
  %5271 = vmatprep.subr.bf16.mxu0 %v5216
  %5272 = vmatpush1.bf16.msra.mxu0 %v5213
  %5273 = vmatprep.subr.bf16.mxu0 0
  %5274 = vmatpush1.bf16.msra.mxu0 0
  %5275 = vmatprep.subr.bf16.mxu0 0
  %5276 = vmatpush1.bf16.msra.mxu0 0
  %5277 = vmatprep.subr.bf16.mxu0 0
  %5278 = vmatpush1.bf16.msra.mxu0 0
  %5279 = vmatprep.subr.bf16.mxu0 0
  %5280 = vmatpush1.bf16.msra.mxu0 0
  %5281 = vmatprep.subr.bf16.mxu0 0
  %5282 = vmatpush1.bf16.msra.mxu0 0
  %5283 = vmatprep.subr.bf16.mxu0 0
  %5284 = vmatpush1.bf16.msra.mxu0 0
  %5285 = vmatprep.subr.bf16.mxu0 0
  %5286 = vmatpush1.bf16.msra.mxu0 0
  %5287 = vmatprep.subr.bf16.mxu0 0
  %5288 = vmatpush1.bf16.msra.mxu0 0
  %5289 = vmatprep.subr.bf16.mxu0 0
  %5290 = vmatpush1.bf16.msra.mxu0 0
  %5291 = vmatprep.subr.bf16.mxu0 0
  %5292 = vmatpush1.bf16.msra.mxu0 0
  %5293 = vmatprep.subr.bf16.mxu0 0
  %5294 = vmatpush1.bf16.msra.mxu0 0
  %5295 = vmatprep.subr.bf16.mxu0 0
  %5296 = vmatpush1.bf16.msra.mxu0 0
  %5297 = vmatprep.subr.bf16.mxu0 0
  %5298 = vmatpush1.bf16.msra.mxu0 0
  %5299 = vmatprep.subr.bf16.mxu0 0
  %5300 = vmatpush1.bf16.msra.mxu0 0
  %5301 = vmatprep.subr.bf16.mxu0 0
  %5302 = vmatpush1.bf16.msra.mxu0 0
  %5303 = vmatprep.mubr.bf16.mxu0 0
  %5304 = vmatmul.mubr.bf16.gmra.mrb[0].mxu0 %v5204
  %v5305 = vpop.f32.mrb[0].mxu0
  %v5306 = vadd.f32 0.0, %v5305
  %v5307 = vpop.f32.mrb[0].mxu0
  %v5308 = vadd.f32 0.0, %v5307
  %v5309 = vpop.f32.mrb[0].mxu0
  %v5310 = vpop.f32.mrb[0].mxu0
  %5311 = vdwg.mxu0
  %5312 = vmatprep.subr.bf16.mxu0 %v5222
  %5313 = vmatpush1.bf16.msra.mxu0 %v5219
  %5314 = vmatprep.subr.bf16.mxu0 0
  %5315 = vmatpush1.bf16.msra.mxu0 0
  %5316 = vmatprep.subr.bf16.mxu0 0
  %5317 = vmatpush1.bf16.msra.mxu0 0
  %5318 = vmatprep.subr.bf16.mxu0 0
  %5319 = vmatpush1.bf16.msra.mxu0 0
  %5320 = vmatprep.subr.bf16.mxu0 0
  %5321 = vmatpush1.bf16.msra.mxu0 0
  %5322 = vmatprep.subr.bf16.mxu0 0
  %5323 = vmatpush1.bf16.msra.mxu0 0
  %5324 = vmatprep.subr.bf16.mxu0 0
  %5325 = vmatpush1.bf16.msra.mxu0 0
  %5326 = vmatprep.subr.bf16.mxu0 0
  %5327 = vmatpush1.bf16.msra.mxu0 0
  %5328 = vmatprep.subr.bf16.mxu0 0
  %5329 = vmatpush1.bf16.msra.mxu0 0
  %5330 = vmatprep.subr.bf16.mxu0 0
  %5331 = vmatpush1.bf16.msra.mxu0 0
  %5332 = vmatprep.subr.bf16.mxu0 0
  %5333 = vmatpush1.bf16.msra.mxu0 0
  %5334 = vmatprep.subr.bf16.mxu0 0
  %5335 = vmatpush1.bf16.msra.mxu0 0
  %5336 = vmatprep.subr.bf16.mxu0 0
  %5337 = vmatpush1.bf16.msra.mxu0 0
  %5338 = vmatprep.subr.bf16.mxu0 0
  %5339 = vmatpush1.bf16.msra.mxu0 0
  %5340 = vmatprep.subr.bf16.mxu0 0
  %5341 = vmatpush1.bf16.msra.mxu0 0
  %5342 = vmatprep.subr.bf16.mxu0 0
  %5343 = vmatpush1.bf16.msra.mxu0 0
  %5344 = vmatprep.mubr.bf16.mxu0 0
  %5345 = vmatmul.mubr.bf16.gmra.mrb[0].mxu0 %v5204
  %v5346 = vpop.f32.mrb[0].mxu0
  %v5347 = vadd.f32 0.0, %v5346
  %v5348 = vpop.f32.mrb[0].mxu0
  %v5349 = vadd.f32 0.0, %v5348
  %v5350 = vpop.f32.mrb[0].mxu0
  %v5351 = vpop.f32.mrb[0].mxu0
  %5352 = vdwg.mxu0
  %5353 = vmatprep.subr.bf16.mxu0 %v5228
  %5354 = vmatpush1.bf16.msra.mxu0 %v5225
  %5355 = vmatprep.subr.bf16.mxu0 0
  %5356 = vmatpush1.bf16.msra.mxu0 0
  %5357 = vmatprep.subr.bf16.mxu0 0
  %5358 = vmatpush1.bf16.msra.mxu0 0
  %5359 = vmatprep.subr.bf16.mxu0 0
  %5360 = vmatpush1.bf16.msra.mxu0 0
  %5361 = vmatprep.subr.bf16.mxu0 0
  %5362 = vmatpush1.bf16.msra.mxu0 0
  %5363 = vmatprep.subr.bf16.mxu0 0
  %5364 = vmatpush1.bf16.msra.mxu0 0
  %5365 = vmatprep.subr.bf16.mxu0 0
  %5366 = vmatpush1.bf16.msra.mxu0 0
  %5367 = vmatprep.subr.bf16.mxu0 0
  %5368 = vmatpush1.bf16.msra.mxu0 0
  %5369 = vmatprep.subr.bf16.mxu0 0
  %5370 = vmatpush1.bf16.msra.mxu0 0
  %5371 = vmatprep.subr.bf16.mxu0 0
  %5372 = vmatpush1.bf16.msra.mxu0 0
  %5373 = vmatprep.subr.bf16.mxu0 0
  %5374 = vmatpush1.bf16.msra.mxu0 0
  %5375 = vmatprep.subr.bf16.mxu0 0
  %5376 = vmatpush1.bf16.msra.mxu0 0
  %5377 = vmatprep.subr.bf16.mxu0 0
  %5378 = vmatpush1.bf16.msra.mxu0 0
  %5379 = vmatprep.subr.bf16.mxu0 0
  %5380 = vmatpush1.bf16.msra.mxu0 0
  %5381 = vmatprep.subr.bf16.mxu0 0
  %5382 = vmatpush1.bf16.msra.mxu0 0
  %5383 = vmatprep.subr.bf16.mxu0 0
  %5384 = vmatpush1.bf16.msra.mxu0 0
  %5385 = vmatprep.mubr.bf16.mxu0 0
  %5386 = vmatmul.mubr.bf16.gmra.mrb[0].mxu0 %v5204
  %v5387 = vpop.f32.mrb[0].mxu0
  %v5388 = vadd.f32 0.0, %v5387
  %v5389 = vpop.f32.mrb[0].mxu0
  %v5390 = vadd.f32 0.0, %v5389
  %v5391 = vpop.f32.mrb[0].mxu0
  %v5392 = vpop.f32.mrb[0].mxu0
  %5393 = vdwg.mxu0
  %v5394 = vadd.f32 %v5168, %v5265
  %v5395 = vadd.f32 %v5169, %v5267
  %v5396 = vadd.f32 %v5170, %v5306
  %v5397 = vadd.f32 %v5171, %v5308
  %v5398 = vadd.f32 %v5172, %v5347
  %v5399 = vadd.f32 %v5173, %v5349
  %v5400 = vadd.f32 %v5174, %v5388
  %v5401 = vadd.f32 %v5175, %v5390
  %v5402 = vld [vmem:[%s3217] sm:$0xf]
  %5403 = vrot.lane.b32.xlu0 %v4679, 64
  %v5404 = vpop.permute.xlu0 %5403
  %5405 = vrot.lane.b32.xlu0 %v4680, 64
  %v5406 = vpop.permute.xlu0 %5405
  %5407 = vrot.lane.b32.xlu0 %v4681, 64
  %v5408 = vpop.permute.xlu0 %5407
  %5409 = vrot.lane.b32.xlu0 %v4682, 64
  %v5410 = vpop.permute.xlu0 %5409
  %5411 = vrot.lane.b32.xlu0 %v4683, 64
  %v5412 = vpop.permute.xlu0 %5411
  %5413 = vrot.lane.b32.xlu0 %v4684, 64
  %v5414 = vpop.permute.xlu0 %5413
  %5415 = vrot.lane.b32.xlu0 %v4685, 64
  %v5416 = vpop.permute.xlu0 %5415
  %5417 = vrot.lane.b32.xlu0 %v4686, 64
  %v5418 = vpop.permute.xlu0 %5417
  %5419 = vrot.lane.b32.xlu0 %v4687, 64
  %v5420 = vpop.permute.xlu0 %5419
  %v5421 = vsel %vm3009, %v5404, %v5406
  %v5422 = vsel %vm3009, %v5406, %v5408
  %v5423 = vsel %vm3009, %v5408, %v5410
  %v5424 = vsel %vm3009, %v5410, %v5412
  %v5425 = vsel %vm3009, %v5412, %v5414
  %v5426 = vsel %vm3009, %v5414, %v5416
  %v5427 = vsel %vm3009, %v5416, %v5418
  %v5428 = vsel %vm3009, %v5418, %v5420
  %v5430 = vsel %vm1595, %v5402, 0
  %v5433 = vsel %vm1599, %v5421, 0
  %v5436 = vsel %vm1599, %v5422, 0
  %v5439 = vsel %vm1599, %v5423, 0
  %v5442 = vsel %vm1599, %v5424, 0
  %v5445 = vsel %vm1599, %v5425, 0
  %v5448 = vsel %vm1599, %v5426, 0
  %v5451 = vsel %vm1599, %v5427, 0
  %v5454 = vsel %vm1599, %v5428, 0
  %5456 = vmatprep.subr.bf16.mxu0 %v5436
  %5457 = vmatpush1.bf16.msra.mxu0 %v5433
  %5458 = vmatprep.subr.bf16.mxu0 0
  %5459 = vmatpush1.bf16.msra.mxu0 0
  %5460 = vmatprep.subr.bf16.mxu0 0
  %5461 = vmatpush1.bf16.msra.mxu0 0
  %5462 = vmatprep.subr.bf16.mxu0 0
  %5463 = vmatpush1.bf16.msra.mxu0 0
  %5464 = vmatprep.subr.bf16.mxu0 0
  %5465 = vmatpush1.bf16.msra.mxu0 0
  %5466 = vmatprep.subr.bf16.mxu0 0
  %5467 = vmatpush1.bf16.msra.mxu0 0
  %5468 = vmatprep.subr.bf16.mxu0 0
  %5469 = vmatpush1.bf16.msra.mxu0 0
  %5470 = vmatprep.subr.bf16.mxu0 0
  %5471 = vmatpush1.bf16.msra.mxu0 0
  %5472 = vmatprep.subr.bf16.mxu0 0
  %5473 = vmatpush1.bf16.msra.mxu0 0
  %5474 = vmatprep.subr.bf16.mxu0 0
  %5475 = vmatpush1.bf16.msra.mxu0 0
  %5476 = vmatprep.subr.bf16.mxu0 0
  %5477 = vmatpush1.bf16.msra.mxu0 0
  %5478 = vmatprep.subr.bf16.mxu0 0
  %5479 = vmatpush1.bf16.msra.mxu0 0
  %5480 = vmatprep.subr.bf16.mxu0 0
  %5481 = vmatpush1.bf16.msra.mxu0 0
  %5482 = vmatprep.subr.bf16.mxu0 0
  %5483 = vmatpush1.bf16.msra.mxu0 0
  %5484 = vmatprep.subr.bf16.mxu0 0
  %5485 = vmatpush1.bf16.msra.mxu0 0
  %5486 = vmatprep.subr.bf16.mxu0 0
  %5487 = vmatpush1.bf16.msra.mxu0 0
  %5488 = vmatprep.mubr.bf16.mxu0 0
  %5489 = vmatmul.mubr.bf16.gmra.mrb[0].mxu0 %v5430
  %v5490 = vpop.f32.mrb[0].mxu0
  %v5491 = vadd.f32 0.0, %v5490
  %v5492 = vpop.f32.mrb[0].mxu0
  %v5493 = vadd.f32 0.0, %v5492
  %v5494 = vpop.f32.mrb[0].mxu0
  %v5495 = vpop.f32.mrb[0].mxu0
  %5496 = vdwg.mxu0
  %5497 = vmatprep.subr.bf16.mxu0 %v5442
  %5498 = vmatpush1.bf16.msra.mxu0 %v5439
  %5499 = vmatprep.subr.bf16.mxu0 0
  %5500 = vmatpush1.bf16.msra.mxu0 0
  %5501 = vmatprep.subr.bf16.mxu0 0
  %5502 = vmatpush1.bf16.msra.mxu0 0
  %5503 = vmatprep.subr.bf16.mxu0 0
  %5504 = vmatpush1.bf16.msra.mxu0 0
  %5505 = vmatprep.subr.bf16.mxu0 0
  %5506 = vmatpush1.bf16.msra.mxu0 0
  %5507 = vmatprep.subr.bf16.mxu0 0
  %5508 = vmatpush1.bf16.msra.mxu0 0
  %5509 = vmatprep.subr.bf16.mxu0 0
  %5510 = vmatpush1.bf16.msra.mxu0 0
  %5511 = vmatprep.subr.bf16.mxu0 0
  %5512 = vmatpush1.bf16.msra.mxu0 0
  %5513 = vmatprep.subr.bf16.mxu0 0
  %5514 = vmatpush1.bf16.msra.mxu0 0
  %5515 = vmatprep.subr.bf16.mxu0 0
  %5516 = vmatpush1.bf16.msra.mxu0 0
  %5517 = vmatprep.subr.bf16.mxu0 0
  %5518 = vmatpush1.bf16.msra.mxu0 0
  %5519 = vmatprep.subr.bf16.mxu0 0
  %5520 = vmatpush1.bf16.msra.mxu0 0
  %5521 = vmatprep.subr.bf16.mxu0 0
  %5522 = vmatpush1.bf16.msra.mxu0 0
  %5523 = vmatprep.subr.bf16.mxu0 0
  %5524 = vmatpush1.bf16.msra.mxu0 0
  %5525 = vmatprep.subr.bf16.mxu0 0
  %5526 = vmatpush1.bf16.msra.mxu0 0
  %5527 = vmatprep.subr.bf16.mxu0 0
  %5528 = vmatpush1.bf16.msra.mxu0 0
  %5529 = vmatprep.mubr.bf16.mxu0 0
  %5530 = vmatmul.mubr.bf16.gmra.mrb[0].mxu0 %v5430
  %v5531 = vpop.f32.mrb[0].mxu0
  %v5532 = vadd.f32 0.0, %v5531
  %v5533 = vpop.f32.mrb[0].mxu0
  %v5534 = vadd.f32 0.0, %v5533
  %v5535 = vpop.f32.mrb[0].mxu0
  %v5536 = vpop.f32.mrb[0].mxu0
  %5537 = vdwg.mxu0
  %5538 = vmatprep.subr.bf16.mxu0 %v5448
  %5539 = vmatpush1.bf16.msra.mxu0 %v5445
  %5540 = vmatprep.subr.bf16.mxu0 0
  %5541 = vmatpush1.bf16.msra.mxu0 0
  %5542 = vmatprep.subr.bf16.mxu0 0
  %5543 = vmatpush1.bf16.msra.mxu0 0
  %5544 = vmatprep.subr.bf16.mxu0 0
  %5545 = vmatpush1.bf16.msra.mxu0 0
  %5546 = vmatprep.subr.bf16.mxu0 0
  %5547 = vmatpush1.bf16.msra.mxu0 0
  %5548 = vmatprep.subr.bf16.mxu0 0
  %5549 = vmatpush1.bf16.msra.mxu0 0
  %5550 = vmatprep.subr.bf16.mxu0 0
  %5551 = vmatpush1.bf16.msra.mxu0 0
  %5552 = vmatprep.subr.bf16.mxu0 0
  %5553 = vmatpush1.bf16.msra.mxu0 0
  %5554 = vmatprep.subr.bf16.mxu0 0
  %5555 = vmatpush1.bf16.msra.mxu0 0
  %5556 = vmatprep.subr.bf16.mxu0 0
  %5557 = vmatpush1.bf16.msra.mxu0 0
  %5558 = vmatprep.subr.bf16.mxu0 0
  %5559 = vmatpush1.bf16.msra.mxu0 0
  %5560 = vmatprep.subr.bf16.mxu0 0
  %5561 = vmatpush1.bf16.msra.mxu0 0
  %5562 = vmatprep.subr.bf16.mxu0 0
  %5563 = vmatpush1.bf16.msra.mxu0 0
  %5564 = vmatprep.subr.bf16.mxu0 0
  %5565 = vmatpush1.bf16.msra.mxu0 0
  %5566 = vmatprep.subr.bf16.mxu0 0
  %5567 = vmatpush1.bf16.msra.mxu0 0
  %5568 = vmatprep.subr.bf16.mxu0 0
  %5569 = vmatpush1.bf16.msra.mxu0 0
  %5570 = vmatprep.mubr.bf16.mxu0 0
  %5571 = vmatmul.mubr.bf16.gmra.mrb[0].mxu0 %v5430
  %v5572 = vpop.f32.mrb[0].mxu0
  %v5573 = vadd.f32 0.0, %v5572
  %v5574 = vpop.f32.mrb[0].mxu0
  %v5575 = vadd.f32 0.0, %v5574
  %v5576 = vpop.f32.mrb[0].mxu0
  %v5577 = vpop.f32.mrb[0].mxu0
  %5578 = vdwg.mxu0
  %5579 = vmatprep.subr.bf16.mxu0 %v5454
  %5580 = vmatpush1.bf16.msra.mxu0 %v5451
  %5581 = vmatprep.subr.bf16.mxu0 0
  %5582 = vmatpush1.bf16.msra.mxu0 0
  %5583 = vmatprep.subr.bf16.mxu0 0
  %5584 = vmatpush1.bf16.msra.mxu0 0
  %5585 = vmatprep.subr.bf16.mxu0 0
  %5586 = vmatpush1.bf16.msra.mxu0 0
  %5587 = vmatprep.subr.bf16.mxu0 0
  %5588 = vmatpush1.bf16.msra.mxu0 0
  %5589 = vmatprep.subr.bf16.mxu0 0
  %5590 = vmatpush1.bf16.msra.mxu0 0
  %5591 = vmatprep.subr.bf16.mxu0 0
  %5592 = vmatpush1.bf16.msra.mxu0 0
  %5593 = vmatprep.subr.bf16.mxu0 0
  %5594 = vmatpush1.bf16.msra.mxu0 0
  %5595 = vmatprep.subr.bf16.mxu0 0
  %5596 = vmatpush1.bf16.msra.mxu0 0
  %5597 = vmatprep.subr.bf16.mxu0 0
  %5598 = vmatpush1.bf16.msra.mxu0 0
  %5599 = vmatprep.subr.bf16.mxu0 0
  %5600 = vmatpush1.bf16.msra.mxu0 0
  %5601 = vmatprep.subr.bf16.mxu0 0
  %5602 = vmatpush1.bf16.msra.mxu0 0
  %5603 = vmatprep.subr.bf16.mxu0 0
  %5604 = vmatpush1.bf16.msra.mxu0 0
  %5605 = vmatprep.subr.bf16.mxu0 0
  %5606 = vmatpush1.bf16.msra.mxu0 0
  %5607 = vmatprep.subr.bf16.mxu0 0
  %5608 = vmatpush1.bf16.msra.mxu0 0
  %5609 = vmatprep.subr.bf16.mxu0 0
  %5610 = vmatpush1.bf16.msra.mxu0 0
  %5611 = vmatprep.mubr.bf16.mxu0 0
  %5612 = vmatmul.mubr.bf16.gmra.mrb[0].mxu0 %v5430
  %v5613 = vpop.f32.mrb[0].mxu0
  %v5614 = vadd.f32 0.0, %v5613
  %v5615 = vpop.f32.mrb[0].mxu0
  %v5616 = vadd.f32 0.0, %v5615
  %v5617 = vpop.f32.mrb[0].mxu0
  %v5618 = vpop.f32.mrb[0].mxu0
  %5619 = vdwg.mxu0
  %v5620 = vadd.f32 %v5394, %v5491
  %v5621 = vadd.f32 %v5395, %v5493
  %v5622 = vadd.f32 %v5396, %v5532
  %v5623 = vadd.f32 %v5397, %v5534
  %v5624 = vadd.f32 %v5398, %v5573
  %v5625 = vadd.f32 %v5399, %v5575
  %v5626 = vadd.f32 %v5400, %v5614
  %v5627 = vadd.f32 %v5401, %v5616
  %v5628 = vld [vmem:[%s3444] sm:$0xf]
  %5629 = vrot.lane.b32.xlu0 %v4942, 64
  %v5630 = vpop.permute.xlu0 %5629
  %5631 = vrot.lane.b32.xlu0 %v4943, 64
  %v5632 = vpop.permute.xlu0 %5631
  %5633 = vrot.lane.b32.xlu0 %v4944, 64
  %v5634 = vpop.permute.xlu0 %5633
  %5635 = vrot.lane.b32.xlu0 %v4945, 64
  %v5636 = vpop.permute.xlu0 %5635
  %5637 = vrot.lane.b32.xlu0 %v4946, 64
  %v5638 = vpop.permute.xlu0 %5637
  %5639 = vrot.lane.b32.xlu0 %v4947, 64
  %v5640 = vpop.permute.xlu0 %5639
  %5641 = vrot.lane.b32.xlu0 %v4948, 64
  %v5642 = vpop.permute.xlu0 %5641
  %5643 = vrot.lane.b32.xlu0 %v4949, 64
  %v5644 = vpop.permute.xlu0 %5643
  %5645 = vrot.lane.b32.xlu0 %v4950, 64
  %v5646 = vpop.permute.xlu0 %5645
  %v5647 = vsel %vm3009, %v5630, %v5632
  %v5648 = vsel %vm3009, %v5632, %v5634
  %v5649 = vsel %vm3009, %v5634, %v5636
  %v5650 = vsel %vm3009, %v5636, %v5638
  %v5651 = vsel %vm3009, %v5638, %v5640
  %v5652 = vsel %vm3009, %v5640, %v5642
  %v5653 = vsel %vm3009, %v5642, %v5644
  %v5654 = vsel %vm3009, %v5644, %v5646
  %v5656 = vsel %vm1595, %v5628, 0
  %v5659 = vsel %vm1599, %v5647, 0
  %v5662 = vsel %vm1599, %v5648, 0
  %v5665 = vsel %vm1599, %v5649, 0
  %v5668 = vsel %vm1599, %v5650, 0
  %v5671 = vsel %vm1599, %v5651, 0
  %v5674 = vsel %vm1599, %v5652, 0
  %v5677 = vsel %vm1599, %v5653, 0
  %v5680 = vsel %vm1599, %v5654, 0
  %5682 = vmatprep.subr.bf16.mxu0 %v5662
  %5683 = vmatpush1.bf16.msra.mxu0 %v5659
  %5684 = vmatprep.subr.bf16.mxu0 0
  %5685 = vmatpush1.bf16.msra.mxu0 0
  %5686 = vmatprep.subr.bf16.mxu0 0
  %5687 = vmatpush1.bf16.msra.mxu0 0
  %5688 = vmatprep.subr.bf16.mxu0 0
  %5689 = vmatpush1.bf16.msra.mxu0 0
  %5690 = vmatprep.subr.bf16.mxu0 0
  %5691 = vmatpush1.bf16.msra.mxu0 0
  %5692 = vmatprep.subr.bf16.mxu0 0
  %5693 = vmatpush1.bf16.msra.mxu0 0
  %5694 = vmatprep.subr.bf16.mxu0 0
  %5695 = vmatpush1.bf16.msra.mxu0 0
  %5696 = vmatprep.subr.bf16.mxu0 0
  %5697 = vmatpush1.bf16.msra.mxu0 0
  %5698 = vmatprep.subr.bf16.mxu0 0
  %5699 = vmatpush1.bf16.msra.mxu0 0
  %5700 = vmatprep.subr.bf16.mxu0 0
  %5701 = vmatpush1.bf16.msra.mxu0 0
  %5702 = vmatprep.subr.bf16.mxu0 0
  %5703 = vmatpush1.bf16.msra.mxu0 0
  %5704 = vmatprep.subr.bf16.mxu0 0
  %5705 = vmatpush1.bf16.msra.mxu0 0
  %5706 = vmatprep.subr.bf16.mxu0 0
  %5707 = vmatpush1.bf16.msra.mxu0 0
  %5708 = vmatprep.subr.bf16.mxu0 0
  %5709 = vmatpush1.bf16.msra.mxu0 0
  %5710 = vmatprep.subr.bf16.mxu0 0
  %5711 = vmatpush1.bf16.msra.mxu0 0
  %5712 = vmatprep.subr.bf16.mxu0 0
  %5713 = vmatpush1.bf16.msra.mxu0 0
  %5714 = vmatprep.mubr.bf16.mxu0 0
  %5715 = vmatmul.mubr.bf16.gmra.mrb[0].mxu0 %v5656
  %v5716 = vpop.f32.mrb[0].mxu0
  %v5717 = vadd.f32 0.0, %v5716
  %v5718 = vpop.f32.mrb[0].mxu0
  %v5719 = vadd.f32 0.0, %v5718
  %v5720 = vpop.f32.mrb[0].mxu0
  %v5721 = vpop.f32.mrb[0].mxu0
  %5722 = vdwg.mxu0
  %5723 = vmatprep.subr.bf16.mxu0 %v5668
  %5724 = vmatpush1.bf16.msra.mxu0 %v5665
  %5725 = vmatprep.subr.bf16.mxu0 0
  %5726 = vmatpush1.bf16.msra.mxu0 0
  %5727 = vmatprep.subr.bf16.mxu0 0
  %5728 = vmatpush1.bf16.msra.mxu0 0
  %5729 = vmatprep.subr.bf16.mxu0 0
  %5730 = vmatpush1.bf16.msra.mxu0 0
  %5731 = vmatprep.subr.bf16.mxu0 0
  %5732 = vmatpush1.bf16.msra.mxu0 0
  %5733 = vmatprep.subr.bf16.mxu0 0
  %5734 = vmatpush1.bf16.msra.mxu0 0
  %5735 = vmatprep.subr.bf16.mxu0 0
  %5736 = vmatpush1.bf16.msra.mxu0 0
  %5737 = vmatprep.subr.bf16.mxu0 0
  %5738 = vmatpush1.bf16.msra.mxu0 0
  %5739 = vmatprep.subr.bf16.mxu0 0
  %5740 = vmatpush1.bf16.msra.mxu0 0
  %5741 = vmatprep.subr.bf16.mxu0 0
  %5742 = vmatpush1.bf16.msra.mxu0 0
  %5743 = vmatprep.subr.bf16.mxu0 0
  %5744 = vmatpush1.bf16.msra.mxu0 0
  %5745 = vmatprep.subr.bf16.mxu0 0
  %5746 = vmatpush1.bf16.msra.mxu0 0
  %5747 = vmatprep.subr.bf16.mxu0 0
  %5748 = vmatpush1.bf16.msra.mxu0 0
  %5749 = vmatprep.subr.bf16.mxu0 0
  %5750 = vmatpush1.bf16.msra.mxu0 0
  %5751 = vmatprep.subr.bf16.mxu0 0
  %5752 = vmatpush1.bf16.msra.mxu0 0
  %5753 = vmatprep.subr.bf16.mxu0 0
  %5754 = vmatpush1.bf16.msra.mxu0 0
  %5755 = vmatprep.mubr.bf16.mxu0 0
  %5756 = vmatmul.mubr.bf16.gmra.mrb[0].mxu0 %v5656
  %v5757 = vpop.f32.mrb[0].mxu0
  %v5758 = vadd.f32 0.0, %v5757
  %v5759 = vpop.f32.mrb[0].mxu0
  %v5760 = vadd.f32 0.0, %v5759
  %v5761 = vpop.f32.mrb[0].mxu0
  %v5762 = vpop.f32.mrb[0].mxu0
  %5763 = vdwg.mxu0
  %5764 = vmatprep.subr.bf16.mxu0 %v5674
  %5765 = vmatpush1.bf16.msra.mxu0 %v5671
  %5766 = vmatprep.subr.bf16.mxu0 0
  %5767 = vmatpush1.bf16.msra.mxu0 0
  %5768 = vmatprep.subr.bf16.mxu0 0
  %5769 = vmatpush1.bf16.msra.mxu0 0
  %5770 = vmatprep.subr.bf16.mxu0 0
  %5771 = vmatpush1.bf16.msra.mxu0 0
  %5772 = vmatprep.subr.bf16.mxu0 0
  %5773 = vmatpush1.bf16.msra.mxu0 0
  %5774 = vmatprep.subr.bf16.mxu0 0
  %5775 = vmatpush1.bf16.msra.mxu0 0
  %5776 = vmatprep.subr.bf16.mxu0 0
  %5777 = vmatpush1.bf16.msra.mxu0 0
  %5778 = vmatprep.subr.bf16.mxu0 0
  %5779 = vmatpush1.bf16.msra.mxu0 0
  %5780 = vmatprep.subr.bf16.mxu0 0
  %5781 = vmatpush1.bf16.msra.mxu0 0
  %5782 = vmatprep.subr.bf16.mxu0 0
  %5783 = vmatpush1.bf16.msra.mxu0 0
  %5784 = vmatprep.subr.bf16.mxu0 0
  %5785 = vmatpush1.bf16.msra.mxu0 0
  %5786 = vmatprep.subr.bf16.mxu0 0
  %5787 = vmatpush1.bf16.msra.mxu0 0
  %5788 = vmatprep.subr.bf16.mxu0 0
  %5789 = vmatpush1.bf16.msra.mxu0 0
  %5790 = vmatprep.subr.bf16.mxu0 0
  %5791 = vmatpush1.bf16.msra.mxu0 0
  %5792 = vmatprep.subr.bf16.mxu0 0
  %5793 = vmatpush1.bf16.msra.mxu0 0
  %5794 = vmatprep.subr.bf16.mxu0 0
  %5795 = vmatpush1.bf16.msra.mxu0 0
  %5796 = vmatprep.mubr.bf16.mxu0 0
  %5797 = vmatmul.mubr.bf16.gmra.mrb[0].mxu0 %v5656
  %v5798 = vpop.f32.mrb[0].mxu0
  %v5799 = vadd.f32 0.0, %v5798
  %v5800 = vpop.f32.mrb[0].mxu0
  %v5801 = vadd.f32 0.0, %v5800
  %v5802 = vpop.f32.mrb[0].mxu0
  %v5803 = vpop.f32.mrb[0].mxu0
  %5804 = vdwg.mxu0
  %5805 = vmatprep.subr.bf16.mxu0 %v5680
  %5806 = vmatpush1.bf16.msra.mxu0 %v5677
  %5807 = vmatprep.subr.bf16.mxu0 0
  %5808 = vmatpush1.bf16.msra.mxu0 0
  %5809 = vmatprep.subr.bf16.mxu0 0
  %5810 = vmatpush1.bf16.msra.mxu0 0
  %5811 = vmatprep.subr.bf16.mxu0 0
  %5812 = vmatpush1.bf16.msra.mxu0 0
  %5813 = vmatprep.subr.bf16.mxu0 0
  %5814 = vmatpush1.bf16.msra.mxu0 0
  %5815 = vmatprep.subr.bf16.mxu0 0
  %5816 = vmatpush1.bf16.msra.mxu0 0
  %5817 = vmatprep.subr.bf16.mxu0 0
  %5818 = vmatpush1.bf16.msra.mxu0 0
  %5819 = vmatprep.subr.bf16.mxu0 0
  %5820 = vmatpush1.bf16.msra.mxu0 0
  %5821 = vmatprep.subr.bf16.mxu0 0
  %5822 = vmatpush1.bf16.msra.mxu0 0
  %5823 = vmatprep.subr.bf16.mxu0 0
  %5824 = vmatpush1.bf16.msra.mxu0 0
  %5825 = vmatprep.subr.bf16.mxu0 0
  %5826 = vmatpush1.bf16.msra.mxu0 0
  %5827 = vmatprep.subr.bf16.mxu0 0
  %5828 = vmatpush1.bf16.msra.mxu0 0
  %5829 = vmatprep.subr.bf16.mxu0 0
  %5830 = vmatpush1.bf16.msra.mxu0 0
  %5831 = vmatprep.subr.bf16.mxu0 0
  %5832 = vmatpush1.bf16.msra.mxu0 0
  %5833 = vmatprep.subr.bf16.mxu0 0
  %5834 = vmatpush1.bf16.msra.mxu0 0
  %5835 = vmatprep.subr.bf16.mxu0 0
  %5836 = vmatpush1.bf16.msra.mxu0 0
  %5837 = vmatprep.mubr.bf16.mxu0 0
  %5838 = vmatmul.mubr.bf16.gmra.mrb[0].mxu0 %v5656
  %v5839 = vpop.f32.mrb[0].mxu0
  %v5840 = vadd.f32 0.0, %v5839
  %v5841 = vpop.f32.mrb[0].mxu0
  %v5842 = vadd.f32 0.0, %v5841
  %v5843 = vpop.f32.mrb[0].mxu0
  %v5844 = vpop.f32.mrb[0].mxu0
  %5845 = vdwg.mxu0
  %v5846 = vadd.f32 %v5620, %v5717
  %v5847 = vadd.f32 %v5621, %v5719
  %v5848 = vadd.f32 %v5622, %v5758
  %v5849 = vadd.f32 %v5623, %v5760
  %v5850 = vadd.f32 %v5624, %v5799
  %v5851 = vadd.f32 %v5625, %v5801
  %v5852 = vadd.f32 %v5626, %v5840
  %v5853 = vadd.f32 %v5627, %v5842
  %s5854 = scalar_lea.vmem %s5, 64
  %5855 = vst [vmem:[%s5854] sm:$0xff] %v5846
  %5856 = vst [vmem:[%s5854 + $0x8] sm:$0xff] %v5847
  %5857 = vst [vmem:[%s5854 + $0x10] sm:$0xff] %v5848
  %5858 = vst [vmem:[%s5854 + $0x18] sm:$0xff] %v5849
  %5859 = vst [vmem:[%s5854 + $0x20] sm:$0xff] %v5850
  %5860 = vst [vmem:[%s5854 + $0x28] sm:$0xff] %v5851
  %5861 = vst [vmem:[%s5854 + $0x30] sm:$0xff] %v5852
  %5862 = vst [vmem:[%s5854 + $0x38] sm:$0xff] %v5853
  %v5863 = vadd.f32 %v5846, %v5847
  %v5864 = vadd.f32 %v5863, %v5848
  %v5865 = vadd.f32 %v5864, %v5849
  %v5866 = vadd.f32 %v5865, %v5850
  %v5867 = vadd.f32 %v5866, %v5851
  %v5868 = vadd.f32 %v5867, %v5852
  %v5869 = vadd.f32 %v5868, %v5853
  %5870 = vadd.xlane.f32.xlu0 %v5869
  %v5871 = vpop.xlane.xlu0 %5870
  %v5872 = vadd.f32 %v3688, %v5871
  %v5873 = vmul.f32 %v5846, %v5846
  %v5874 = vmul.f32 %v5847, %v5847
  %v5875 = vmul.f32 %v5848, %v5848
  %v5876 = vmul.f32 %v5849, %v5849
  %v5877 = vmul.f32 %v5850, %v5850
  %v5878 = vmul.f32 %v5851, %v5851
  %v5879 = vmul.f32 %v5852, %v5852
  %v5880 = vmul.f32 %v5853, %v5853
  %v5881 = vadd.f32 %v5873, %v5874
  %v5882 = vadd.f32 %v5881, %v5875
  %v5883 = vadd.f32 %v5882, %v5876
  %v5884 = vadd.f32 %v5883, %v5877
  %v5885 = vadd.f32 %v5884, %v5878
  %v5886 = vadd.f32 %v5885, %v5879
  %v5887 = vadd.f32 %v5886, %v5880
  %5888 = vadd.xlane.f32.xlu0 %v5887
  %v5889 = vpop.xlane.xlu0 %5888
  %v5890 = vadd.f32 %v3706, %v5889
  %v5891 = vmul.f32 %v5872, 0.00048828125
  %v5892 = vmul.f32 %v5890, 0.00048828125
  %v5893 = vmul.f32 %v5891, %v5891
  %v5894 = vsub.f32 %v5892, %v5893
  %v5895 = vld [vmem:[%s3] sm:$0xff]
  %v5896 = vadd.f32 %v5894, 0.8
  %v5897 = vrsqrt.pop %v5896
  %v5898 = vmul.f32 %v5895, %v5897
  %v5899 = vld [vmem:[%s4] sm:$0xff]
  %v5900 = vmul.f32 %v5891, %v5898
  %v5901 = vsub.f32 %v5899, %v5900
  %v5902 = vld [vmem:[%s5] sm:$0xff]
  %v5903 = vld [vmem:[%s5 + $0x8] sm:$0xff]
  %v5904 = vld [vmem:[%s5 + $0x10] sm:$0xff]
  %v5905 = vld [vmem:[%s5 + $0x18] sm:$0xff]
  %v5906 = vld [vmem:[%s5 + $0x20] sm:$0xff]
  %v5907 = vld [vmem:[%s5 + $0x28] sm:$0xff]
  %v5908 = vld [vmem:[%s5 + $0x30] sm:$0xff]
  %v5909 = vld [vmem:[%s5 + $0x38] sm:$0xff]
  %5911 = vset.pattern.permute.xlu0 0
  %5912 = vperm.xlu0 %5911, %v5898
  %v5913 = vpop.permute.xlu0 %5912
  %v5915 = vmul.f32 %v5902, %v5913
  %v5916 = vmul.f32 %v5903, %v5913
  %v5917 = vmul.f32 %v5904, %v5913
  %v5918 = vmul.f32 %v5905, %v5913
  %v5919 = vmul.f32 %v5906, %v5913
  %v5920 = vmul.f32 %v5907, %v5913
  %v5921 = vmul.f32 %v5908, %v5913
  %v5922 = vmul.f32 %v5909, %v5913
  %5924 = vset.pattern.permute.xlu0 0
  %5925 = vperm.xlu0 %5924, %v5901
  %v5926 = vpop.permute.xlu0 %5925
  %v5928 = vadd.f32 %v5915, %v5926
  %v5929 = vadd.f32 %v5916, %v5926
  %v5930 = vadd.f32 %v5917, %v5926
  %v5931 = vadd.f32 %v5918, %v5926
  %v5932 = vadd.f32 %v5919, %v5926
  %v5933 = vadd.f32 %v5920, %v5926
  %v5934 = vadd.f32 %v5921, %v5926
  %v5935 = vadd.f32 %v5922, %v5926
  %v5936 = vmax.f32 %v5928, 0.0
  %v5937 = vmax.f32 %v5929, 0.0
  %v5938 = vmax.f32 %v5930, 0.0
  %v5939 = vmax.f32 %v5931, 0.0
  %v5940 = vmax.f32 %v5932, 0.0
  %v5941 = vmax.f32 %v5933, 0.0
  %v5942 = vmax.f32 %v5934, 0.0
  %v5943 = vmax.f32 %v5935, 0.0
  %5944 = vst [vmem:[%s5] sm:$0xff] %v5936
  %5945 = vst [vmem:[%s5 + $0x8] sm:$0xff] %v5937
  %5946 = vst [vmem:[%s5 + $0x10] sm:$0xff] %v5938
  %5947 = vst [vmem:[%s5 + $0x18] sm:$0xff] %v5939
  %5948 = vst [vmem:[%s5 + $0x20] sm:$0xff] %v5940
  %5949 = vst [vmem:[%s5 + $0x28] sm:$0xff] %v5941
  %5950 = vst [vmem:[%s5 + $0x30] sm:$0xff] %v5942
  %5951 = vst [vmem:[%s5 + $0x38] sm:$0xff] %v5943
  %v5952 = vld [vmem:[%s5854] sm:$0xff]
  %v5953 = vld [vmem:[%s5854 + $0x8] sm:$0xff]
  %v5954 = vld [vmem:[%s5854 + $0x10] sm:$0xff]
  %v5955 = vld [vmem:[%s5854 + $0x18] sm:$0xff]
  %v5956 = vld [vmem:[%s5854 + $0x20] sm:$0xff]
  %v5957 = vld [vmem:[%s5854 + $0x28] sm:$0xff]
  %v5958 = vld [vmem:[%s5854 + $0x30] sm:$0xff]
  %v5959 = vld [vmem:[%s5854 + $0x38] sm:$0xff]
  %v5960 = vmul.f32 %v5952, %v5913
  %v5961 = vmul.f32 %v5953, %v5913
  %v5962 = vmul.f32 %v5954, %v5913
  %v5963 = vmul.f32 %v5955, %v5913
  %v5964 = vmul.f32 %v5956, %v5913
  %v5965 = vmul.f32 %v5957, %v5913
  %v5966 = vmul.f32 %v5958, %v5913
  %v5967 = vmul.f32 %v5959, %v5913
  %v5968 = vadd.f32 %v5960, %v5926
  %v5969 = vadd.f32 %v5961, %v5926
  %v5970 = vadd.f32 %v5962, %v5926
  %v5971 = vadd.f32 %v5963, %v5926
  %v5972 = vadd.f32 %v5964, %v5926
  %v5973 = vadd.f32 %v5965, %v5926
  %v5974 = vadd.f32 %v5966, %v5926
  %v5975 = vadd.f32 %v5967, %v5926
  %v5976 = vmax.f32 %v5968, 0.0
  %v5977 = vmax.f32 %v5969, 0.0
  %v5978 = vmax.f32 %v5970, 0.0
  %v5979 = vmax.f32 %v5971, 0.0
  %v5980 = vmax.f32 %v5972, 0.0
  %v5981 = vmax.f32 %v5973, 0.0
  %v5982 = vmax.f32 %v5974, 0.0
  %v5983 = vmax.f32 %v5975, 0.0
  %5984 = vst [vmem:[%s5854] sm:$0xff] %v5976
  %5985 = vst [vmem:[%s5854 + $0x8] sm:$0xff] %v5977
  %5986 = vst [vmem:[%s5854 + $0x10] sm:$0xff] %v5978
  %5987 = vst [vmem:[%s5854 + $0x18] sm:$0xff] %v5979
  %5988 = vst [vmem:[%s5854 + $0x20] sm:$0xff] %v5980
  %5989 = vst [vmem:[%s5854 + $0x28] sm:$0xff] %v5981
  %5990 = vst [vmem:[%s5854 + $0x30] sm:$0xff] %v5982
  %5991 = vst [vmem:[%s5854 + $0x38] sm:$0xff] %v5983
  // Predicated region
  $region22: #{unet_up.1} parent=0 // pred_check
    _
  $region23: #{unet_up.1} parent=0 // pred_check_branch
    %5993 = sbr.rel (0) target = $region25
  $region24: #{unet_up.1} parent=0 // pred_region
    _
  $region25: #{unet_up.1} parent=0 // pred_fallthru
    _
  // Predicated region
  $region26: #{unet_up.1} parent=0 // pred_check
    _
  $region27: #{unet_up.1} parent=0 // pred_check_branch
    %5995 = sbr.rel (0) target = $region29
  $region28: #{unet_up.1} parent=0 // pred_region
    _
  $region29: #{unet_up.1} parent=0 // pred_fallthru
    _

</llo_original>
